<compile_context>
chip_gen: v6e
topology: v6e:2x2x1
jax: 0.10.0
libtpu: 0.0.40
codegen_flags: <defaults>
</compile_context>

<pallas_src>
import functools

import jax
import jax.numpy as jnp
from jax.experimental import pallas as pl
from jax.experimental.pallas import tpu as pltpu


def _nbytes(*arrays):
    return int(sum(a.size * a.dtype.itemsize for a in arrays))


def _vmem_limit_bytes():
    """Generation-aware VMEM budget (v5e/v6e: 128 MiB physical, v7x: 64 MiB)."""
    try:
        cap = int(pltpu.get_tpu_info().vmem_capacity_bytes)
    except Exception:
        cap = 64 * 1024 * 1024
    return max(32 * 1024 * 1024, min(3 * cap // 4, 100 * 1024 * 1024))


def _pick_hw_tile(hw, batch, target=None):
    """Largest HW tile dividing `hw` s.t. the f32 conv activation block (B*tp, 512) stays small."""
    if target is None:
        target = max(8, 4096 // max(batch, 1))   # B*tp <= 4096 rows -> <= 8 MiB f32 at C_out=512
    for t in (2048, 1024, 512, 256, 128, 64, 32, 16, 8):
        if t <= target and hw % t == 0:
            return t
    return hw


# -----------------------------------------------------------------------------
# Fused kernel:
#   per HW step : conv (im2col matmul, bf16->f32) + bias + ReLU + pooled partial sums
#   last HW step: global-average-pool finalize, projection head, prediction head
#   head(x) = Linear(no bias, bf16) -> BatchNorm1d(train, f32) -> ReLU -> Linear(+bias, bf16)
# grid = (HW // tp,), batch folded into the matmul M dimension.
# -----------------------------------------------------------------------------
def _byol_fused_kernel(patches_ref, cw_ref, cb_ref,
                       pw1_ref, pg_ref, pb_ref, pw2_ref, pb2_ref,
                       qw1_ref, qg_ref, qb_ref, qw2_ref, qb2_ref,
                       o_ref, acc_ref, *, inv_hw, inv_b, eps):
    t = pl.program_id(0)

    @pl.when(t == 0)
    def _():
        acc_ref[...] = jnp.zeros_like(acc_ref)

    b, tp, k = patches_ref.shape
    c_out = cw_ref.shape[1]

    # One fat matmul per step: (B*tp, K) x (K, 512), bf16 in, f32 accumulation.
    x = patches_ref[...].reshape(b * tp, k)
    h = jnp.dot(x, cw_ref[...], preferred_element_type=jnp.float32)
    h = jnp.maximum(h + cb_ref[...], 0.0)                          # bias + ReLU (f32)
    acc_ref[...] += jnp.sum(h.reshape(b, tp, c_out), axis=1)       # per-sample pool sums

    @pl.when(t == pl.num_programs(0) - 1)
    def _():
        y = (acc_ref[...] * inv_hw).astype(jnp.bfloat16)           # GAP result, bf16 MXU feed

        def head(x_bf16, w1_ref, g_ref, beta_ref, w2_ref, b2_ref):
            hh = jnp.dot(x_bf16, w1_ref[...], preferred_element_type=jnp.float32)  # (B, H)
            s = jnp.sum(hh, axis=0, keepdims=True)                 # one-pass BN stats
            ss = jnp.sum(hh * hh, axis=0, keepdims=True)
            mean = s * inv_b
            var = jnp.maximum(ss * inv_b - mean * mean, 0.0)
            hn = (hh - mean) * jax.lax.rsqrt(var + eps)
            hn = jnp.maximum(hn * g_ref[...] + beta_ref[...], 0.0)  # affine + ReLU (f32)
            return jnp.dot(hn.astype(jnp.bfloat16), w2_ref[...],
                           preferred_element_type=jnp.float32) + b2_ref[...]

        z = head(y, pw1_ref, pg_ref, pb_ref, pw2_ref, pb2_ref)                  # projection
        p = head(z.astype(jnp.bfloat16), qw1_ref, qg_ref, qb_ref, qw2_ref, qb2_ref)  # prediction
        o_ref[...] = p


def _const_spec(a):
    return pl.BlockSpec(a.shape, lambda t, _nd=a.ndim: (0,) * _nd)


# -----------------------------------------------------------------------------
# Host-side glue
# -----------------------------------------------------------------------------
def im2col_3x3(x_nhwc):
    """3x3 / stride 1 / pad 1 patches. Returns (B, H*W, 9*C), ordering (kh, kw, c)."""
    B, H, W, C = x_nhwc.shape
    xp = jnp.pad(x_nhwc, ((0, 0), (1, 1), (1, 1), (0, 0)))
    slabs = [xp[:, di:di + H, dj:dj + W, :] for di in range(3) for dj in range(3)]
    patches = jnp.stack(slabs, axis=3)                       # (B, H, W, 9, C)
    return patches.reshape(B, H * W, 9 * C)


def byol_forward(x_nchw, params, *, tile_hw=None):
    """p = prediction_head(projection_head(backbone(x).flatten(1)))."""
    x_nhwc = jnp.transpose(x_nchw, (0, 2, 3, 1)).astype(jnp.float32)
    B, H, W, C = x_nhwc.shape
    HW = H * W

    patches = im2col_3x3(x_nhwc).astype(jnp.bfloat16)        # (B, HW, 9C), K left unpadded
    K = patches.shape[-1]

    tp = _pick_hw_tile(HW, B, target=tile_hw)
    grid = (HW // tp,)

    args = (patches, params["conv_w"], params["conv_b"],
            params["proj_w1"], params["proj_gamma"], params["proj_beta"],
            params["proj_w2"], params["proj_b2"],
            params["pred_w1"], params["pred_gamma"], params["pred_beta"],
            params["pred_w2"], params["pred_b2"])
    C_bb = params["conv_w"].shape[1]
    D_out = params["pred_w2"].shape[1]

    kernel = functools.partial(_byol_fused_kernel,
                               inv_hw=1.0 / float(HW), inv_b=1.0 / float(B), eps=1e-5)

    flops = (2 * B * HW * K * C_bb
             + 2 * B * (512 * 1024 + 1024 * 256 + 256 * 1024 + 1024 * 256))
    cost = pl.CostEstimate(flops=flops, transcendentals=2 * 1024,
                           bytes_accessed=_nbytes(*args) + B * D_out * 4)

    in_specs = [pl.BlockSpec((B, tp, K), lambda t: (0, t, 0))]
    in_specs += [_const_spec(a) for a in args[1:]]

    return pl.pallas_call(
        kernel,
        out_shape=jax.ShapeDtypeStruct((B, D_out), jnp.float32),
        grid_spec=pltpu.PrefetchScalarGridSpec(
            num_scalar_prefetch=0,
            grid=grid,
            in_specs=in_specs,
            out_specs=pl.BlockSpec((B, D_out), lambda t: (0, 0)),
            scratch_shapes=[pltpu.VMEM((B, C_bb), jnp.float32)],
        ),
        compiler_params=pltpu.CompilerParams(
            dimension_semantics=("arbitrary",),
            vmem_limit_bytes=_vmem_limit_bytes(),
        ),
        cost_estimate=cost,
    )(*args)


def init_params(key, c_in):
    ks = jax.random.split(key, 8)
    s = 0.02
    f32, bf16 = jnp.float32, jnp.bfloat16
    return {
        "conv_w": (s * jax.random.normal(ks[0], (9 * c_in, 512), f32)).astype(bf16),
        "conv_b": s * jax.random.normal(ks[1], (1, 512), f32),
        # projection head: 512 -> 1024 -> 256
        "proj_w1": (s * jax.random.normal(ks[2], (512, 1024), f32)).astype(bf16),
        "proj_gamma": jnp.ones((1, 1024), f32),
        "proj_beta": jnp.zeros((1, 1024), f32),
        "proj_w2": (s * jax.random.normal(ks[3], (1024, 256), f32)).astype(bf16),
        "proj_b2": s * jax.random.normal(ks[4], (1, 256), f32),
        # prediction head: 256 -> 1024 -> 256
        "pred_w1": (s * jax.random.normal(ks[5], (256, 1024), f32)).astype(bf16),
        "pred_gamma": jnp.ones((1, 1024), f32),
        "pred_beta": jnp.zeros((1, 1024), f32),
        "pred_w2": (s * jax.random.normal(ks[6], (1024, 256), f32)).astype(bf16),
        "pred_b2": s * jax.random.normal(ks[7], (1, 256), f32),
    }


def byol_forward_reference(x_nchw, params):
    """Pure-JAX reference using the same bf16-matmul / f32-elementwise precision."""
    x_nhwc = jnp.transpose(x_nchw, (0, 2, 3, 1)).astype(jnp.float32)
    patches = im2col_3x3(x_nhwc).astype(jnp.bfloat16)
    h = jnp.einsum("bpk,kc->bpc", patches, params["conv_w"],
                   preferred_element_type=jnp.float32) + params["conv_b"][None]
    y = jnp.mean(jnp.maximum(h, 0.0), axis=1)

    def head(x, w1, gamma, beta, w2, b2):
        h = jnp.dot(x.astype(jnp.bfloat16), w1, preferred_element_type=jnp.float32)
        m = jnp.mean(h, axis=0, keepdims=True)
        v = jnp.mean((h - m) ** 2, axis=0, keepdims=True)
        hn = (h - m) * jax.lax.rsqrt(v + 1e-5) * gamma + beta
        hn = jnp.maximum(hn, 0.0)
        return jnp.dot(hn.astype(jnp.bfloat16), w2, preferred_element_type=jnp.float32) + b2

    z = head(y, params["proj_w1"], params["proj_gamma"], params["proj_beta"],
             params["proj_w2"], params["proj_b2"])
    return head(z, params["pred_w1"], params["pred_gamma"], params["pred_beta"],
                params["pred_w2"], params["pred_b2"])


if __name__ == "__main__":
    key = jax.random.PRNGKey(0)
    k_x, k_p = jax.random.split(key)

    # B=8: full f32 sublane on the head matmul M-dim, non-degenerate train-mode BN stats.
    B, C, H, W = 8, 4, 16, 16
    x = jax.random.normal(k_x, (B, C, H, W), jnp.float32)    # NCHW, like PyTorch
    params = init_params(k_p, C)

    p_ref = jax.block_until_ready(byol_forward_reference(x, params))

    # Default: fat tile covers the whole HW in one grid step.
    fwd = jax.jit(byol_forward)
    p = jax.block_until_ready(fwd(x, params))
    assert p.shape == (B, 256), p.shape
    max_err = float(jnp.max(jnp.abs(p - p_ref)))
    assert jnp.allclose(p, p_ref, atol=2e-2, rtol=2e-2), max_err

    # Also exercise the multi-HW-step pooling-accumulation path.
    fwd_multi = jax.jit(functools.partial(byol_forward, tile_hw=64))
    p2 = jax.block_until_ready(fwd_multi(x, params))
    max_err2 = float(jnp.max(jnp.abs(p2 - p_ref)))
    assert jnp.allclose(p2, p_ref, atol=2e-2, rtol=2e-2), max_err2

    print("KERNEL_OK")
</pallas_src>

<mosaic_0001>
module attributes {stable_mosaic.version = 11 : i64} {
  func.func @_byol_fused_kernel(%arg0: i32, %arg1: memref<8x256x36xbf16, #tpu.memory_space<vmem>>, %arg2: memref<36x512xbf16, #tpu.memory_space<vmem>>, %arg3: memref<1x512xf32, #tpu.memory_space<vmem>>, %arg4: memref<512x1024xbf16, #tpu.memory_space<vmem>>, %arg5: memref<1x1024xf32, #tpu.memory_space<vmem>>, %arg6: memref<1x1024xf32, #tpu.memory_space<vmem>>, %arg7: memref<1024x256xbf16, #tpu.memory_space<vmem>>, %arg8: memref<1x256xf32, #tpu.memory_space<vmem>>, %arg9: memref<256x1024xbf16, #tpu.memory_space<vmem>>, %arg10: memref<1x1024xf32, #tpu.memory_space<vmem>>, %arg11: memref<1x1024xf32, #tpu.memory_space<vmem>>, %arg12: memref<1024x256xbf16, #tpu.memory_space<vmem>>, %arg13: memref<1x256xf32, #tpu.memory_space<vmem>>, %arg14: memref<8x256xf32, #tpu.memory_space<vmem>>, %arg15: memref<8x512xf32, #tpu.memory_space<vmem>>) attributes {dimension_semantics = [#tpu.dimension_semantics<arbitrary>], iteration_bounds = array<i64: 1>, scalar_prefetch = 0 : i64, scratch_operands = 1 : i64, tpu.core_type = #tpu.core_type<tc>, window_params = [{transform_indices = @transform_0, window_bounds = array<i64: 8, 256, 36>}, {pipeline_mode = #tpu.pipeline_mode<synchronous>, transform_indices = @transform_1, window_bounds = array<i64: 36, 512>}, {pipeline_mode = #tpu.pipeline_mode<synchronous>, transform_indices = @transform_2, window_bounds = array<i64: 1, 512>}, {pipeline_mode = #tpu.pipeline_mode<synchronous>, transform_indices = @transform_3, window_bounds = array<i64: 512, 1024>}, {pipeline_mode = #tpu.pipeline_mode<synchronous>, transform_indices = @transform_4, window_bounds = array<i64: 1, 1024>}, {pipeline_mode = #tpu.pipeline_mode<synchronous>, transform_indices = @transform_5, window_bounds = array<i64: 1, 1024>}, {pipeline_mode = #tpu.pipeline_mode<synchronous>, transform_indices = @transform_6, window_bounds = array<i64: 1024, 256>}, {pipeline_mode = #tpu.pipeline_mode<synchronous>, transform_indices = @transform_7, window_bounds = array<i64: 1, 256>}, {pipeline_mode = #tpu.pipeline_mode<synchronous>, transform_indices = @transform_8, window_bounds = array<i64: 256, 1024>}, {pipeline_mode = #tpu.pipeline_mode<synchronous>, transform_indices = @transform_9, window_bounds = array<i64: 1, 1024>}, {pipeline_mode = #tpu.pipeline_mode<synchronous>, transform_indices = @transform_10, window_bounds = array<i64: 1, 1024>}, {pipeline_mode = #tpu.pipeline_mode<synchronous>, transform_indices = @transform_11, window_bounds = array<i64: 1024, 256>}, {pipeline_mode = #tpu.pipeline_mode<synchronous>, transform_indices = @transform_12, window_bounds = array<i64: 1, 256>}, {pipeline_mode = #tpu.pipeline_mode<synchronous>, transform_indices = @transform_13, window_bounds = array<i64: 8, 256>}]} {
    %c0_i32 = arith.constant 0 : i32
    %0 = arith.cmpi eq, %arg0, %c0_i32 : i32
    %1 = arith.extui %0 : i1 to i32
    %c0_i32_0 = arith.constant 0 : i32
    %2 = arith.cmpi ne, %1, %c0_i32_0 : i32
    scf.if %2 {
      %cst_15 = arith.constant 0.000000e+00 : f32
      %20 = vector.broadcast %cst_15 : f32 to vector<8x512xf32>
      %c0_16 = arith.constant 0 : index
      %c0_17 = arith.constant 0 : index
      %21 = vector.load %arg15[%c0_16, %c0_17] : memref<8x512xf32, #tpu.memory_space<vmem>>, vector<8x512xf32>
      tpu.vector_store %arg15[%c0_16, %c0_17], %20 {strides = array<i32>} : memref<8x512xf32, #tpu.memory_space<vmem>>, vector<8x512xf32>,
    } else {
    }
    %c0 = arith.constant 0 : index
    %c0_1 = arith.constant 0 : index
    %c0_2 = arith.constant 0 : index
    %3 = vector.load %arg1[%c0, %c0_1, %c0_2] : memref<8x256x36xbf16, #tpu.memory_space<vmem>>, vector<8x256x36xbf16>
    %4 = vector.shape_cast %3 : vector<8x256x36xbf16> to vector<2048x36xbf16>
    %c0_3 = arith.constant 0 : index
    %c0_4 = arith.constant 0 : index
    %5 = vector.load %arg2[%c0_3, %c0_4] : memref<36x512xbf16, #tpu.memory_space<vmem>>, vector<36x512xbf16>
    %cst = arith.constant dense<0.000000e+00> : vector<2048x512xf32>
    %6 = tpu.matmul %4, %5, %cst {dimension_numbers = #tpu.dot_dimension_numbers<[1], [0], [0], [1], [0, 0, 1, 1], [], []>} : vector<2048x36xbf16>, vector<36x512xbf16>, vector<2048x512xf32> -> vector<2048x512xf32>
    %c0_5 = arith.constant 0 : index
    %c0_6 = arith.constant 0 : index
    %7 = vector.load %arg3[%c0_5, %c0_6] : memref<1x512xf32, #tpu.memory_space<vmem>>, vector<1x512xf32>
    %8 = vector.broadcast %7 : vector<1x512xf32> to vector<2048x512xf32>
    %9 = arith.addf %6, %8 : vector<2048x512xf32>
    %cst_7 = arith.constant 0.000000e+00 : f32
    %10 = vector.broadcast %cst_7 : f32 to vector<2048x512xf32>
    %11 = arith.maximumf %9, %10 : vector<2048x512xf32>
    %c0_8 = arith.constant 0 : index
    %c0_9 = arith.constant 0 : index
    %12 = vector.load %arg15[%c0_8, %c0_9] : memref<8x512xf32, #tpu.memory_space<vmem>>, vector<8x512xf32>
    %13 = vector.shape_cast %11 : vector<2048x512xf32> to vector<8x256x512xf32>
    %cst_10 = arith.constant dense<0.000000e+00> : vector<8x512xf32>
    %14 = vector.multi_reduction <add>, %13, %cst_10 [1] : vector<8x256x512xf32> to vector<8x512xf32>
    %15 = arith.addf %12, %14 : vector<8x512xf32>
    %c0_11 = arith.constant 0 : index
    %c0_12 = arith.constant 0 : index
    %16 = vector.load %arg15[%c0_11, %c0_12] : memref<8x512xf32, #tpu.memory_space<vmem>>, vector<8x512xf32>
    tpu.vector_store %arg15[%c0_11, %c0_12], %15 {strides = array<i32>} : memref<8x512xf32, #tpu.memory_space<vmem>>, vector<8x512xf32>,
    %c0_i32_13 = arith.constant 0 : i32
    %17 = arith.cmpi eq, %arg0, %c0_i32_13 : i32
    %18 = arith.extui %17 : i1 to i32
    %c0_i32_14 = arith.constant 0 : i32
    %19 = arith.cmpi ne, %18, %c0_i32_14 : i32
    scf.if %19 {
      %c0_15 = arith.constant 0 : index
      %c0_16 = arith.constant 0 : index
      %20 = vector.load %arg15[%c0_15, %c0_16] : memref<8x512xf32, #tpu.memory_space<vmem>>, vector<8x512xf32>
      %cst_17 = arith.constant 3.906250e-03 : f32
      %21 = vector.broadcast %cst_17 : f32 to vector<8x512xf32>
      %22 = arith.mulf %20, %21 : vector<8x512xf32>
      %23 = arith.truncf %22 : vector<8x512xf32> to vector<8x512xbf16>
      %c0_18 = arith.constant 0 : index
      %c0_19 = arith.constant 0 : index
      %24 = vector.load %arg4[%c0_18, %c0_19] : memref<512x1024xbf16, #tpu.memory_space<vmem>>, vector<512x1024xbf16>
      %cst_20 = arith.constant dense<0.000000e+00> : vector<8x1024xf32>
      %25 = tpu.matmul %23, %24, %cst_20 {dimension_numbers = #tpu.dot_dimension_numbers<[1], [0], [0], [1], [0, 0, 1, 1], [], []>} : vector<8x512xbf16>, vector<512x1024xbf16>, vector<8x1024xf32> -> vector<8x1024xf32>
      %cst_21 = arith.constant dense<0.000000e+00> : vector<1024xf32>
      %26 = vector.multi_reduction <add>, %25, %cst_21 [0] : vector<8x1024xf32> to vector<1024xf32>
      %27 = vector.shape_cast %26 : vector<1024xf32> to vector<1x1024xf32>
      %28 = arith.mulf %25, %25 : vector<8x1024xf32>
      %cst_22 = arith.constant dense<0.000000e+00> : vector<1024xf32>
      %29 = vector.multi_reduction <add>, %28, %cst_22 [0] : vector<8x1024xf32> to vector<1024xf32>
      %30 = vector.shape_cast %29 : vector<1024xf32> to vector<1x1024xf32>
      %cst_23 = arith.constant 1.250000e-01 : f32
      %31 = vector.broadcast %cst_23 : f32 to vector<1x1024xf32>
      %32 = arith.mulf %27, %31 : vector<1x1024xf32>
      %cst_24 = arith.constant 1.250000e-01 : f32
      %33 = vector.broadcast %cst_24 : f32 to vector<1x1024xf32>
      %34 = arith.mulf %30, %33 : vector<1x1024xf32>
      %35 = arith.mulf %32, %32 : vector<1x1024xf32>
      %36 = arith.subf %34, %35 : vector<1x1024xf32>
      %cst_25 = arith.constant 0.000000e+00 : f32
      %37 = vector.broadcast %cst_25 : f32 to vector<1x1024xf32>
      %38 = arith.maximumf %36, %37 : vector<1x1024xf32>
      %39 = vector.broadcast %32 : vector<1x1024xf32> to vector<8x1024xf32>
      %40 = arith.subf %25, %39 : vector<8x1024xf32>
      %cst_26 = arith.constant 9.99999974E-6 : f32
      %41 = vector.broadcast %cst_26 : f32 to vector<1x1024xf32>
      %42 = arith.addf %38, %41 : vector<1x1024xf32>
      %43 = math.rsqrt %42 : vector<1x1024xf32>
      %44 = vector.broadcast %43 : vector<1x1024xf32> to vector<8x1024xf32>
      %45 = arith.mulf %40, %44 : vector<8x1024xf32>
      %c0_27 = arith.constant 0 : index
      %c0_28 = arith.constant 0 : index
      %46 = vector.load %arg5[%c0_27, %c0_28] : memref<1x1024xf32, #tpu.memory_space<vmem>>, vector<1x1024xf32>
      %47 = vector.broadcast %46 : vector<1x1024xf32> to vector<8x1024xf32>
      %48 = arith.mulf %45, %47 : vector<8x1024xf32>
      %c0_29 = arith.constant 0 : index
      %c0_30 = arith.constant 0 : index
      %49 = vector.load %arg6[%c0_29, %c0_30] : memref<1x1024xf32, #tpu.memory_space<vmem>>, vector<1x1024xf32>
      %50 = vector.broadcast %49 : vector<1x1024xf32> to vector<8x1024xf32>
      %51 = arith.addf %48, %50 : vector<8x1024xf32>
      %cst_31 = arith.constant 0.000000e+00 : f32
      %52 = vector.broadcast %cst_31 : f32 to vector<8x1024xf32>
      %53 = arith.maximumf %51, %52 : vector<8x1024xf32>
      %54 = arith.truncf %53 : vector<8x1024xf32> to vector<8x1024xbf16>
      %c0_32 = arith.constant 0 : index
      %c0_33 = arith.constant 0 : index
      %55 = vector.load %arg7[%c0_32, %c0_33] : memref<1024x256xbf16, #tpu.memory_space<vmem>>, vector<1024x256xbf16>
      %cst_34 = arith.constant dense<0.000000e+00> : vector<8x256xf32>
      %56 = tpu.matmul %54, %55, %cst_34 {dimension_numbers = #tpu.dot_dimension_numbers<[1], [0], [0], [1], [0, 0, 1, 1], [], []>} : vector<8x1024xbf16>, vector<1024x256xbf16>, vector<8x256xf32> -> vector<8x256xf32>
      %c0_35 = arith.constant 0 : index
      %c0_36 = arith.constant 0 : index
      %57 = vector.load %arg8[%c0_35, %c0_36] : memref<1x256xf32, #tpu.memory_space<vmem>>, vector<1x256xf32>
      %58 = vector.broadcast %57 : vector<1x256xf32> to vector<8x256xf32>
      %59 = arith.addf %56, %58 : vector<8x256xf32>
      %60 = arith.truncf %59 : vector<8x256xf32> to vector<8x256xbf16>
      %c0_37 = arith.constant 0 : index
      %c0_38 = arith.constant 0 : index
      %61 = vector.load %arg9[%c0_37, %c0_38] : memref<256x1024xbf16, #tpu.memory_space<vmem>>, vector<256x1024xbf16>
      %cst_39 = arith.constant dense<0.000000e+00> : vector<8x1024xf32>
      %62 = tpu.matmul %60, %61, %cst_39 {dimension_numbers = #tpu.dot_dimension_numbers<[1], [0], [0], [1], [0, 0, 1, 1], [], []>} : vector<8x256xbf16>, vector<256x1024xbf16>, vector<8x1024xf32> -> vector<8x1024xf32>
      %cst_40 = arith.constant dense<0.000000e+00> : vector<1024xf32>
      %63 = vector.multi_reduction <add>, %62, %cst_40 [0] : vector<8x1024xf32> to vector<1024xf32>
      %64 = vector.shape_cast %63 : vector<1024xf32> to vector<1x1024xf32>
      %65 = arith.mulf %62, %62 : vector<8x1024xf32>
      %cst_41 = arith.constant dense<0.000000e+00> : vector<1024xf32>
      %66 = vector.multi_reduction <add>, %65, %cst_41 [0] : vector<8x1024xf32> to vector<1024xf32>
      %67 = vector.shape_cast %66 : vector<1024xf32> to vector<1x1024xf32>
      %cst_42 = arith.constant 1.250000e-01 : f32
      %68 = vector.broadcast %cst_42 : f32 to vector<1x1024xf32>
      %69 = arith.mulf %64, %68 : vector<1x1024xf32>
      %cst_43 = arith.constant 1.250000e-01 : f32
      %70 = vector.broadcast %cst_43 : f32 to vector<1x1024xf32>
      %71 = arith.mulf %67, %70 : vector<1x1024xf32>
      %72 = arith.mulf %69, %69 : vector<1x1024xf32>
      %73 = arith.subf %71, %72 : vector<1x1024xf32>
      %cst_44 = arith.constant 0.000000e+00 : f32
      %74 = vector.broadcast %cst_44 : f32 to vector<1x1024xf32>
      %75 = arith.maximumf %73, %74 : vector<1x1024xf32>
      %76 = vector.broadcast %69 : vector<1x1024xf32> to vector<8x1024xf32>
      %77 = arith.subf %62, %76 : vector<8x1024xf32>
      %cst_45 = arith.constant 9.99999974E-6 : f32
      %78 = vector.broadcast %cst_45 : f32 to vector<1x1024xf32>
      %79 = arith.addf %75, %78 : vector<1x1024xf32>
      %80 = math.rsqrt %79 : vector<1x1024xf32>
      %81 = vector.broadcast %80 : vector<1x1024xf32> to vector<8x1024xf32>
      %82 = arith.mulf %77, %81 : vector<8x1024xf32>
      %c0_46 = arith.constant 0 : index
      %c0_47 = arith.constant 0 : index
      %83 = vector.load %arg10[%c0_46, %c0_47] : memref<1x1024xf32, #tpu.memory_space<vmem>>, vector<1x1024xf32>
      %84 = vector.broadcast %83 : vector<1x1024xf32> to vector<8x1024xf32>
      %85 = arith.mulf %82, %84 : vector<8x1024xf32>
      %c0_48 = arith.constant 0 : index
      %c0_49 = arith.constant 0 : index
      %86 = vector.load %arg11[%c0_48, %c0_49] : memref<1x1024xf32, #tpu.memory_space<vmem>>, vector<1x1024xf32>
      %87 = vector.broadcast %86 : vector<1x1024xf32> to vector<8x1024xf32>
      %88 = arith.addf %85, %87 : vector<8x1024xf32>
      %cst_50 = arith.constant 0.000000e+00 : f32
      %89 = vector.broadcast %cst_50 : f32 to vector<8x1024xf32>
      %90 = arith.maximumf %88, %89 : vector<8x1024xf32>
      %91 = arith.truncf %90 : vector<8x1024xf32> to vector<8x1024xbf16>
      %c0_51 = arith.constant 0 : index
      %c0_52 = arith.constant 0 : index
      %92 = vector.load %arg12[%c0_51, %c0_52] : memref<1024x256xbf16, #tpu.memory_space<vmem>>, vector<1024x256xbf16>
      %cst_53 = arith.constant dense<0.000000e+00> : vector<8x256xf32>
      %93 = tpu.matmul %91, %92, %cst_53 {dimension_numbers = #tpu.dot_dimension_numbers<[1], [0], [0], [1], [0, 0, 1, 1], [], []>} : vector<8x1024xbf16>, vector<1024x256xbf16>, vector<8x256xf32> -> vector<8x256xf32>
      %c0_54 = arith.constant 0 : index
      %c0_55 = arith.constant 0 : index
      %94 = vector.load %arg13[%c0_54, %c0_55] : memref<1x256xf32, #tpu.memory_space<vmem>>, vector<1x256xf32>
      %95 = vector.broadcast %94 : vector<1x256xf32> to vector<8x256xf32>
      %96 = arith.addf %93, %95 : vector<8x256xf32>
      %c0_56 = arith.constant 0 : index
      %c0_57 = arith.constant 0 : index
      %97 = vector.load %arg14[%c0_56, %c0_57] : memref<8x256xf32, #tpu.memory_space<vmem>>, vector<8x256xf32>
      tpu.vector_store %arg14[%c0_56, %c0_57], %96 {strides = array<i32>} : memref<8x256xf32, #tpu.memory_space<vmem>>, vector<8x256xf32>,
    } else {
    }
    return
  }
  func.func @transform_0(%arg0: i32) -> (i32, i32, i32) {
    %c0_i32 = arith.constant 0 : i32
    %c0_i32_0 = arith.constant 0 : i32
    %c0_i32_1 = arith.constant 0 : i32
    return %c0_i32, %arg0, %c0_i32_0 : i32, i32, i32
  }
  func.func @transform_1(%arg0: i32) -> (i32, i32) {
    %c0_i32 = arith.constant 0 : i32
    %c0_i32_0 = arith.constant 0 : i32
    %c0_i32_1 = arith.constant 0 : i32
    return %c0_i32, %c0_i32_0 : i32, i32
  }
  func.func @transform_2(%arg0: i32) -> (i32, i32) {
    %c0_i32 = arith.constant 0 : i32
    %c0_i32_0 = arith.constant 0 : i32
    %c0_i32_1 = arith.constant 0 : i32
    return %c0_i32, %c0_i32_0 : i32, i32
  }
  func.func @transform_3(%arg0: i32) -> (i32, i32) {
    %c0_i32 = arith.constant 0 : i32
    %c0_i32_0 = arith.constant 0 : i32
    %c0_i32_1 = arith.constant 0 : i32
    return %c0_i32, %c0_i32_0 : i32, i32
  }
  func.func @transform_4(%arg0: i32) -> (i32, i32) {
    %c0_i32 = arith.constant 0 : i32
    %c0_i32_0 = arith.constant 0 : i32
    %c0_i32_1 = arith.constant 0 : i32
    return %c0_i32, %c0_i32_0 : i32, i32
  }
  func.func @transform_5(%arg0: i32) -> (i32, i32) {
    %c0_i32 = arith.constant 0 : i32
    %c0_i32_0 = arith.constant 0 : i32
    %c0_i32_1 = arith.constant 0 : i32
    return %c0_i32, %c0_i32_0 : i32, i32
  }
  func.func @transform_6(%arg0: i32) -> (i32, i32) {
    %c0_i32 = arith.constant 0 : i32
    %c0_i32_0 = arith.constant 0 : i32
    %c0_i32_1 = arith.constant 0 : i32
    return %c0_i32, %c0_i32_0 : i32, i32
  }
  func.func @transform_7(%arg0: i32) -> (i32, i32) {
    %c0_i32 = arith.constant 0 : i32
    %c0_i32_0 = arith.constant 0 : i32
    %c0_i32_1 = arith.constant 0 : i32
    return %c0_i32, %c0_i32_0 : i32, i32
  }
  func.func @transform_8(%arg0: i32) -> (i32, i32) {
    %c0_i32 = arith.constant 0 : i32
    %c0_i32_0 = arith.constant 0 : i32
    %c0_i32_1 = arith.constant 0 : i32
    return %c0_i32, %c0_i32_0 : i32, i32
  }
  func.func @transform_9(%arg0: i32) -> (i32, i32) {
    %c0_i32 = arith.constant 0 : i32
    %c0_i32_0 = arith.constant 0 : i32
    %c0_i32_1 = arith.constant 0 : i32
    return %c0_i32, %c0_i32_0 : i32, i32
  }
  func.func @transform_10(%arg0: i32) -> (i32, i32) {
    %c0_i32 = arith.constant 0 : i32
    %c0_i32_0 = arith.constant 0 : i32
    %c0_i32_1 = arith.constant 0 : i32
    return %c0_i32, %c0_i32_0 : i32, i32
  }
  func.func @transform_11(%arg0: i32) -> (i32, i32) {
    %c0_i32 = arith.constant 0 : i32
    %c0_i32_0 = arith.constant 0 : i32
    %c0_i32_1 = arith.constant 0 : i32
    return %c0_i32, %c0_i32_0 : i32, i32
  }
  func.func @transform_12(%arg0: i32) -> (i32, i32) {
    %c0_i32 = arith.constant 0 : i32
    %c0_i32_0 = arith.constant 0 : i32
    %c0_i32_1 = arith.constant 0 : i32
    return %c0_i32, %c0_i32_0 : i32, i32
  }
  func.func @transform_13(%arg0: i32) -> (i32, i32) {
    %c0_i32 = arith.constant 0 : i32
    %c0_i32_0 = arith.constant 0 : i32
    %c0_i32_1 = arith.constant 0 : i32
    return %c0_i32, %c0_i32_0 : i32, i32
  }
}

</mosaic_0001>

<llo_original>
// kernel: byol_forward.1
$region0: #{byol_forward.1}
  #allocation0 [shape = 'u32[]', space=smem, size = 0x4, offset = 0x4, fixed_abs, tag = 'smem constant byte address 0x4 - core index']
  #allocation1 [shape = 'u32[144,128]{1,0:T(1,128)}', space=vmem, size = 0x12000, scoped, tag = 'internal scratch']
  #allocation2 [shape = 'f32[8,512]{1,0:T(8,128)}', space=vmem, size = 0x4000, scoped, tag = 'scratch operand']
  %s0 = inlined_call_operand.vmem [shape: bf16[8,256,36], index: 0, kind: input, shape index: {}]
  %s1 = inlined_call_operand.vmem [shape: bf16[36,512], index: 1, kind: input, shape index: {}]
  %s2 = inlined_call_operand.vmem [shape: f32[1,512], index: 2, kind: input, shape index: {}]
  %s3 = inlined_call_operand.vmem [shape: bf16[512,1024], index: 3, kind: input, shape index: {}]
  %s4 = inlined_call_operand.vmem [shape: f32[1,1024], index: 4, kind: input, shape index: {}]
  %s5 = inlined_call_operand.vmem [shape: f32[1,1024], index: 5, kind: input, shape index: {}]
  %s6 = inlined_call_operand.vmem [shape: bf16[1024,256], index: 6, kind: input, shape index: {}]
  %s7 = inlined_call_operand.vmem [shape: f32[1,256], index: 7, kind: input, shape index: {}]
  %s8 = inlined_call_operand.vmem [shape: bf16[256,1024], index: 8, kind: input, shape index: {}]
  %s9 = inlined_call_operand.vmem [shape: f32[1,1024], index: 9, kind: input, shape index: {}]
  %s10 = inlined_call_operand.vmem [shape: f32[1,1024], index: 10, kind: input, shape index: {}]
  %s11 = inlined_call_operand.vmem [shape: bf16[1024,256], index: 11, kind: input, shape index: {}]
  %s12 = inlined_call_operand.vmem [shape: f32[1,256], index: 12, kind: input, shape index: {}]
  %s13 = inlined_call_operand.hbm [shape: f32[8,256], index: 13, kind: output, shape index: {}]
  %s14 = sld [smem:[#allocation0]]
  $region70: #{byol_forward.1} parent=0
    _
  %s16 = ssub.s32 1, %s14
  %s17 = scalar_select 0, %s16, %s14
  $region1: #{byol_forward.1} parent=0
    #allocation3 [shape = 'u8[8192]{0}', space=vmem, size = 0x2000, scoped, tag = 'output window, operand 0, single buffered']
    #allocation4 [shape = 's32[1]{0}', space=sflag, size = 0x4, scoped, tag = 'scoped memory for byol_forward.1']
    %18 = vsyncpa [#allocation4], 0
    // Predicated region
    $region2: #{byol_forward.1} parent=1 // pred_check
      _
    $region3: #{byol_forward.1} parent=1 // pred_check_branch
      %20 = sbr.rel (0) target = $region5
    $region4: #{byol_forward.1} parent=1 // pred_region
      _
    $region5: #{byol_forward.1} parent=1 // pred_fallthru
      _
    // Predicated region
    $region6: #{byol_forward.1} parent=1 // pred_check
      _
    $region7: #{byol_forward.1} parent=1 // pred_check_branch
      %22 = sbr.rel (0) target = $region9
    $region8: #{byol_forward.1} parent=1 // pred_region
      _
    $region9: #{byol_forward.1} parent=1 // pred_fallthru
      _
    // Predicated region
    $region10: #{byol_forward.1} parent=1 // pred_check
      _
    $region11: #{byol_forward.1} parent=1 // pred_check_branch
      %24 = sbr.rel (0) target = $region13
    $region12: #{byol_forward.1} parent=1 // pred_region
      _
    $region13: #{byol_forward.1} parent=1 // pred_fallthru
      _
    // Predicated region
    $region14: #{byol_forward.1} parent=1 // pred_check
      _
    $region15: #{byol_forward.1} parent=1 // pred_check_branch
      %26 = sbr.rel (0) target = $region17
    $region16: #{byol_forward.1} parent=1 // pred_region
      _
    $region17: #{byol_forward.1} parent=1 // pred_fallthru
      _
    // Predicated region
    $region18: #{byol_forward.1} parent=1 // pred_check
      _
    $region19: #{byol_forward.1} parent=1 // pred_check_branch
      %28 = sbr.rel (0) target = $region21
    $region20: #{byol_forward.1} parent=1 // pred_region
      _
    $region21: #{byol_forward.1} parent=1 // pred_fallthru
      _
    // Predicated region
    $region22: #{byol_forward.1} parent=1 // pred_check
      _
    $region23: #{byol_forward.1} parent=1 // pred_check_branch
      %30 = sbr.rel (0) target = $region25
    $region24: #{byol_forward.1} parent=1 // pred_region
      _
    $region25: #{byol_forward.1} parent=1 // pred_fallthru
      _
    // Predicated region
    $region26: #{byol_forward.1} parent=1 // pred_check
      _
    $region27: #{byol_forward.1} parent=1 // pred_check_branch
      %32 = sbr.rel (0) target = $region29
    $region28: #{byol_forward.1} parent=1 // pred_region
      _
    $region29: #{byol_forward.1} parent=1 // pred_fallthru
      _
    // Predicated region
    $region30: #{byol_forward.1} parent=1 // pred_check
      _
    $region31: #{byol_forward.1} parent=1 // pred_check_branch
      %34 = sbr.rel (0) target = $region33
    $region32: #{byol_forward.1} parent=1 // pred_region
      _
    $region33: #{byol_forward.1} parent=1 // pred_fallthru
      _
    // Predicated region
    $region34: #{byol_forward.1} parent=1 // pred_check
      _
    $region35: #{byol_forward.1} parent=1 // pred_check_branch
      %36 = sbr.rel (0) target = $region37
    $region36: #{byol_forward.1} parent=1 // pred_region
      _
    $region37: #{byol_forward.1} parent=1 // pred_fallthru
      _
    // Predicated region
    $region38: #{byol_forward.1} parent=1 // pred_check
      _
    $region39: #{byol_forward.1} parent=1 // pred_check_branch
      %38 = sbr.rel (0) target = $region41
    $region40: #{byol_forward.1} parent=1 // pred_region
      _
    $region41: #{byol_forward.1} parent=1 // pred_fallthru
      _
    // Predicated region
    $region42: #{byol_forward.1} parent=1 // pred_check
      _
    $region43: #{byol_forward.1} parent=1 // pred_check_branch
      %40 = sbr.rel (0) target = $region45
    $region44: #{byol_forward.1} parent=1 // pred_region
      _
    $region45: #{byol_forward.1} parent=1 // pred_fallthru
      _
    // Predicated region
    $region46: #{byol_forward.1} parent=1 // pred_check
      _
    $region47: #{byol_forward.1} parent=1 // pred_check_branch
      %42 = sbr.rel (0) target = $region49
    $region48: #{byol_forward.1} parent=1 // pred_region
      _
    $region49: #{byol_forward.1} parent=1 // pred_fallthru
      _
    // Predicated region
    $region50: #{byol_forward.1} parent=1 // pred_check
      _
    $region51: #{byol_forward.1} parent=1 // pred_check_branch
      %44 = sbr.rel (0) target = $region53
    $region52: #{byol_forward.1} parent=1 // pred_region
      _
    $region53: #{byol_forward.1} parent=1 // pred_fallthru
      _
    %p46 = scmp.eq.s32.totalorder 0, 0
    // Predicated region
    $region54: #{byol_forward.1} parent=1 // pred_check
      %p47 = pneg %p46
    $region55: #{byol_forward.1} parent=1 // pred_check_branch
      %49 = sbr.rel (%p47) target = $region57
    $region56: #{byol_forward.1} parent=1 // pred_region
      %50 = vst [vmem:[#allocation2] sm:$0xff] 0.0
      %51 = vst [vmem:[#allocation2 + $0x8] sm:$0xff] 0.0
      %52 = vst [vmem:[#allocation2 + $0x10] sm:$0xff] 0.0
      %53 = vst [vmem:[#allocation2 + $0x18] sm:$0xff] 0.0
    $region57: #{byol_forward.1} parent=1 // pred_fallthru
      _
    %v54 = vld [vmem:[%s0] sm:$0xf]
    %v55 = vld [vmem:[%s0 + $0x4] sm:$0xf]
    %v56 = vld [vmem:[%s0 + $0x8] sm:$0xf]
    %v57 = vld [vmem:[%s0 + $0xc] sm:$0xf]
    %v58 = vld [vmem:[%s0 + $0x10] sm:$0xf]
    %v59 = vld [vmem:[%s0 + $0x14] sm:$0xf]
    %v60 = vld [vmem:[%s0 + $0x18] sm:$0xf]
    %v61 = vld [vmem:[%s0 + $0x1c] sm:$0xf]
    %v62 = vld [vmem:[%s0 + $0x20] sm:$0xf]
    %v63 = vld [vmem:[%s0 + $0x24] sm:$0xf]
    %v64 = vld [vmem:[%s0 + $0x28] sm:$0xf]
    %v65 = vld [vmem:[%s0 + $0x2c] sm:$0xf]
    %v66 = vld [vmem:[%s0 + $0x30] sm:$0xf]
    %v67 = vld [vmem:[%s0 + $0x34] sm:$0xf]
    %v68 = vld [vmem:[%s0 + $0x38] sm:$0xf]
    %v69 = vld [vmem:[%s0 + $0x3c] sm:$0xf]
    %v70 = vld [vmem:[%s0 + $0x40] sm:$0xf]
    %v71 = vld [vmem:[%s0 + $0x44] sm:$0xf]
    %v72 = vld [vmem:[%s0 + $0x48] sm:$0xf]
    %v73 = vld [vmem:[%s0 + $0x4c] sm:$0xf]
    %v74 = vld [vmem:[%s0 + $0x50] sm:$0xf]
    %v75 = vld [vmem:[%s0 + $0x54] sm:$0xf]
    %v76 = vld [vmem:[%s0 + $0x58] sm:$0xf]
    %v77 = vld [vmem:[%s0 + $0x5c] sm:$0xf]
    %v78 = vld [vmem:[%s0 + $0x60] sm:$0xf]
    %v79 = vld [vmem:[%s0 + $0x64] sm:$0xf]
    %v80 = vld [vmem:[%s0 + $0x68] sm:$0xf]
    %v81 = vld [vmem:[%s0 + $0x6c] sm:$0xf]
    %v82 = vld [vmem:[%s0 + $0x70] sm:$0xf]
    %v83 = vld [vmem:[%s0 + $0x74] sm:$0xf]
    %v84 = vld [vmem:[%s0 + $0x78] sm:$0xf]
    %v85 = vld [vmem:[%s0 + $0x7c] sm:$0xf]
    %v86 = vld [vmem:[%s0 + $0x80] sm:$0xf]
    %v87 = vld [vmem:[%s0 + $0x84] sm:$0xf]
    %v88 = vld [vmem:[%s0 + $0x88] sm:$0xf]
    %v89 = vld [vmem:[%s0 + $0x8c] sm:$0xf]
    %v90 = vld [vmem:[%s0 + $0x90] sm:$0xf]
    %v91 = vld [vmem:[%s0 + $0x94] sm:$0xf]
    %v92 = vld [vmem:[%s0 + $0x98] sm:$0xf]
    %v93 = vld [vmem:[%s0 + $0x9c] sm:$0xf]
    %v94 = vld [vmem:[%s0 + $0xa0] sm:$0xf]
    %v95 = vld [vmem:[%s0 + $0xa4] sm:$0xf]
    %v96 = vld [vmem:[%s0 + $0xa8] sm:$0xf]
    %v97 = vld [vmem:[%s0 + $0xac] sm:$0xf]
    %v98 = vld [vmem:[%s0 + $0xb0] sm:$0xf]
    %v99 = vld [vmem:[%s0 + $0xb4] sm:$0xf]
    %v100 = vld [vmem:[%s0 + $0xb8] sm:$0xf]
    %v101 = vld [vmem:[%s0 + $0xbc] sm:$0xf]
    %v102 = vld [vmem:[%s0 + $0xc0] sm:$0xf]
    %v103 = vld [vmem:[%s0 + $0xc4] sm:$0xf]
    %v104 = vld [vmem:[%s0 + $0xc8] sm:$0xf]
    %v105 = vld [vmem:[%s0 + $0xcc] sm:$0xf]
    %v106 = vld [vmem:[%s0 + $0xd0] sm:$0xf]
    %v107 = vld [vmem:[%s0 + $0xd4] sm:$0xf]
    %v108 = vld [vmem:[%s0 + $0xd8] sm:$0xf]
    %v109 = vld [vmem:[%s0 + $0xdc] sm:$0xf]
    %v110 = vld [vmem:[%s0 + $0xe0] sm:$0xf]
    %v111 = vld [vmem:[%s0 + $0xe4] sm:$0xf]
    %v112 = vld [vmem:[%s0 + $0xe8] sm:$0xf]
    %v113 = vld [vmem:[%s0 + $0xec] sm:$0xf]
    %v114 = vld [vmem:[%s0 + $0xf0] sm:$0xf]
    %v115 = vld [vmem:[%s0 + $0xf4] sm:$0xf]
    %v116 = vld [vmem:[%s0 + $0xf8] sm:$0xf]
    %v117 = vld [vmem:[%s0 + $0xfc] sm:$0xf]
    %v118 = vld [vmem:[%s0 + $0x100] sm:$0xf]
    %v119 = vld [vmem:[%s0 + $0x104] sm:$0xf]
    %v120 = vld [vmem:[%s0 + $0x108] sm:$0xf]
    %v121 = vld [vmem:[%s0 + $0x10c] sm:$0xf]
    %v122 = vld [vmem:[%s0 + $0x110] sm:$0xf]
    %v123 = vld [vmem:[%s0 + $0x114] sm:$0xf]
    %v124 = vld [vmem:[%s0 + $0x118] sm:$0xf]
    %v125 = vld [vmem:[%s0 + $0x11c] sm:$0xf]
    %v126 = vld [vmem:[%s0 + $0x120] sm:$0xf]
    %v127 = vld [vmem:[%s0 + $0x124] sm:$0xf]
    %v128 = vld [vmem:[%s0 + $0x128] sm:$0xf]
    %v129 = vld [vmem:[%s0 + $0x12c] sm:$0xf]
    %v130 = vld [vmem:[%s0 + $0x130] sm:$0xf]
    %v131 = vld [vmem:[%s0 + $0x134] sm:$0xf]
    %v132 = vld [vmem:[%s0 + $0x138] sm:$0xf]
    %v133 = vld [vmem:[%s0 + $0x13c] sm:$0xf]
    %v134 = vld [vmem:[%s0 + $0x140] sm:$0xf]
    %v135 = vld [vmem:[%s0 + $0x144] sm:$0xf]
    %v136 = vld [vmem:[%s0 + $0x148] sm:$0xf]
    %v137 = vld [vmem:[%s0 + $0x14c] sm:$0xf]
    %v138 = vld [vmem:[%s0 + $0x150] sm:$0xf]
    %v139 = vld [vmem:[%s0 + $0x154] sm:$0xf]
    %v140 = vld [vmem:[%s0 + $0x158] sm:$0xf]
    %v141 = vld [vmem:[%s0 + $0x15c] sm:$0xf]
    %v142 = vld [vmem:[%s0 + $0x160] sm:$0xf]
    %v143 = vld [vmem:[%s0 + $0x164] sm:$0xf]
    %v144 = vld [vmem:[%s0 + $0x168] sm:$0xf]
    %v145 = vld [vmem:[%s0 + $0x16c] sm:$0xf]
    %v146 = vld [vmem:[%s0 + $0x170] sm:$0xf]
    %v147 = vld [vmem:[%s0 + $0x174] sm:$0xf]
    %v148 = vld [vmem:[%s0 + $0x178] sm:$0xf]
    %v149 = vld [vmem:[%s0 + $0x17c] sm:$0xf]
    %v150 = vld [vmem:[%s0 + $0x180] sm:$0xf]
    %v151 = vld [vmem:[%s0 + $0x184] sm:$0xf]
    %v152 = vld [vmem:[%s0 + $0x188] sm:$0xf]
    %v153 = vld [vmem:[%s0 + $0x18c] sm:$0xf]
    %v154 = vld [vmem:[%s0 + $0x190] sm:$0xf]
    %v155 = vld [vmem:[%s0 + $0x194] sm:$0xf]
    %v156 = vld [vmem:[%s0 + $0x198] sm:$0xf]
    %v157 = vld [vmem:[%s0 + $0x19c] sm:$0xf]
    %v158 = vld [vmem:[%s0 + $0x1a0] sm:$0xf]
    %v159 = vld [vmem:[%s0 + $0x1a4] sm:$0xf]
    %v160 = vld [vmem:[%s0 + $0x1a8] sm:$0xf]
    %v161 = vld [vmem:[%s0 + $0x1ac] sm:$0xf]
    %v162 = vld [vmem:[%s0 + $0x1b0] sm:$0xf]
    %v163 = vld [vmem:[%s0 + $0x1b4] sm:$0xf]
    %v164 = vld [vmem:[%s0 + $0x1b8] sm:$0xf]
    %v165 = vld [vmem:[%s0 + $0x1bc] sm:$0xf]
    %v166 = vld [vmem:[%s0 + $0x1c0] sm:$0xf]
    %v167 = vld [vmem:[%s0 + $0x1c4] sm:$0xf]
    %v168 = vld [vmem:[%s0 + $0x1c8] sm:$0xf]
    %v169 = vld [vmem:[%s0 + $0x1cc] sm:$0xf]
    %v170 = vld [vmem:[%s0 + $0x1d0] sm:$0xf]
    %v171 = vld [vmem:[%s0 + $0x1d4] sm:$0xf]
    %v172 = vld [vmem:[%s0 + $0x1d8] sm:$0xf]
    %v173 = vld [vmem:[%s0 + $0x1dc] sm:$0xf]
    %v174 = vld [vmem:[%s0 + $0x1e0] sm:$0xf]
    %v175 = vld [vmem:[%s0 + $0x1e4] sm:$0xf]
    %v176 = vld [vmem:[%s0 + $0x1e8] sm:$0xf]
    %v177 = vld [vmem:[%s0 + $0x1ec] sm:$0xf]
    %v178 = vld [vmem:[%s0 + $0x1f0] sm:$0xf]
    %v179 = vld [vmem:[%s0 + $0x1f4] sm:$0xf]
    %v180 = vld [vmem:[%s0 + $0x1f8] sm:$0xf]
    %v181 = vld [vmem:[%s0 + $0x1fc] sm:$0xf]
    %v182 = vld [vmem:[%s0 + $0x200] sm:$0xf]
    %v183 = vld [vmem:[%s0 + $0x204] sm:$0xf]
    %v184 = vld [vmem:[%s0 + $0x208] sm:$0xf]
    %v185 = vld [vmem:[%s0 + $0x20c] sm:$0xf]
    %v186 = vld [vmem:[%s0 + $0x210] sm:$0xf]
    %v187 = vld [vmem:[%s0 + $0x214] sm:$0xf]
    %v188 = vld [vmem:[%s0 + $0x218] sm:$0xf]
    %v189 = vld [vmem:[%s0 + $0x21c] sm:$0xf]
    %v190 = vld [vmem:[%s0 + $0x220] sm:$0xf]
    %v191 = vld [vmem:[%s0 + $0x224] sm:$0xf]
    %v192 = vld [vmem:[%s0 + $0x228] sm:$0xf]
    %v193 = vld [vmem:[%s0 + $0x22c] sm:$0xf]
    %v194 = vld [vmem:[%s0 + $0x230] sm:$0xf]
    %v195 = vld [vmem:[%s0 + $0x234] sm:$0xf]
    %v196 = vld [vmem:[%s0 + $0x238] sm:$0xf]
    %v197 = vld [vmem:[%s0 + $0x23c] sm:$0xf]
    %v198 = vld [vmem:[%s0 + $0x240] sm:$0xf]
    %v199 = vld [vmem:[%s0 + $0x244] sm:$0xf]
    %v200 = vld [vmem:[%s0 + $0x248] sm:$0xf]
    %v201 = vld [vmem:[%s0 + $0x24c] sm:$0xf]
    %v202 = vld [vmem:[%s0 + $0x250] sm:$0xf]
    %v203 = vld [vmem:[%s0 + $0x254] sm:$0xf]
    %v204 = vld [vmem:[%s0 + $0x258] sm:$0xf]
    %v205 = vld [vmem:[%s0 + $0x25c] sm:$0xf]
    %v206 = vld [vmem:[%s0 + $0x260] sm:$0xf]
    %v207 = vld [vmem:[%s0 + $0x264] sm:$0xf]
    %v208 = vld [vmem:[%s0 + $0x268] sm:$0xf]
    %v209 = vld [vmem:[%s0 + $0x26c] sm:$0xf]
    %v210 = vld [vmem:[%s0 + $0x270] sm:$0xf]
    %v211 = vld [vmem:[%s0 + $0x274] sm:$0xf]
    %v212 = vld [vmem:[%s0 + $0x278] sm:$0xf]
    %v213 = vld [vmem:[%s0 + $0x27c] sm:$0xf]
    %v214 = vld [vmem:[%s0 + $0x280] sm:$0xf]
    %v215 = vld [vmem:[%s0 + $0x284] sm:$0xf]
    %v216 = vld [vmem:[%s0 + $0x288] sm:$0xf]
    %v217 = vld [vmem:[%s0 + $0x28c] sm:$0xf]
    %v218 = vld [vmem:[%s0 + $0x290] sm:$0xf]
    %v219 = vld [vmem:[%s0 + $0x294] sm:$0xf]
    %v220 = vld [vmem:[%s0 + $0x298] sm:$0xf]
    %v221 = vld [vmem:[%s0 + $0x29c] sm:$0xf]
    %v222 = vld [vmem:[%s0 + $0x2a0] sm:$0xf]
    %v223 = vld [vmem:[%s0 + $0x2a4] sm:$0xf]
    %v224 = vld [vmem:[%s0 + $0x2a8] sm:$0xf]
    %v225 = vld [vmem:[%s0 + $0x2ac] sm:$0xf]
    %v226 = vld [vmem:[%s0 + $0x2b0] sm:$0xf]
    %v227 = vld [vmem:[%s0 + $0x2b4] sm:$0xf]
    %v228 = vld [vmem:[%s0 + $0x2b8] sm:$0xf]
    %v229 = vld [vmem:[%s0 + $0x2bc] sm:$0xf]
    %v230 = vld [vmem:[%s0 + $0x2c0] sm:$0xf]
    %v231 = vld [vmem:[%s0 + $0x2c4] sm:$0xf]
    %v232 = vld [vmem:[%s0 + $0x2c8] sm:$0xf]
    %v233 = vld [vmem:[%s0 + $0x2cc] sm:$0xf]
    %v234 = vld [vmem:[%s0 + $0x2d0] sm:$0xf]
    %v235 = vld [vmem:[%s0 + $0x2d4] sm:$0xf]
    %v236 = vld [vmem:[%s0 + $0x2d8] sm:$0xf]
    %v237 = vld [vmem:[%s0 + $0x2dc] sm:$0xf]
    %v238 = vld [vmem:[%s0 + $0x2e0] sm:$0xf]
    %v239 = vld [vmem:[%s0 + $0x2e4] sm:$0xf]
    %v240 = vld [vmem:[%s0 + $0x2e8] sm:$0xf]
    %v241 = vld [vmem:[%s0 + $0x2ec] sm:$0xf]
    %v242 = vld [vmem:[%s0 + $0x2f0] sm:$0xf]
    %v243 = vld [vmem:[%s0 + $0x2f4] sm:$0xf]
    %v244 = vld [vmem:[%s0 + $0x2f8] sm:$0xf]
    %v245 = vld [vmem:[%s0 + $0x2fc] sm:$0xf]
    %v246 = vld [vmem:[%s0 + $0x300] sm:$0xf]
    %v247 = vld [vmem:[%s0 + $0x304] sm:$0xf]
    %v248 = vld [vmem:[%s0 + $0x308] sm:$0xf]
    %v249 = vld [vmem:[%s0 + $0x30c] sm:$0xf]
    %v250 = vld [vmem:[%s0 + $0x310] sm:$0xf]
    %v251 = vld [vmem:[%s0 + $0x314] sm:$0xf]
    %v252 = vld [vmem:[%s0 + $0x318] sm:$0xf]
    %v253 = vld [vmem:[%s0 + $0x31c] sm:$0xf]
    %v254 = vld [vmem:[%s0 + $0x320] sm:$0xf]
    %v255 = vld [vmem:[%s0 + $0x324] sm:$0xf]
    %v256 = vld [vmem:[%s0 + $0x328] sm:$0xf]
    %v257 = vld [vmem:[%s0 + $0x32c] sm:$0xf]
    %v258 = vld [vmem:[%s0 + $0x330] sm:$0xf]
    %v259 = vld [vmem:[%s0 + $0x334] sm:$0xf]
    %v260 = vld [vmem:[%s0 + $0x338] sm:$0xf]
    %v261 = vld [vmem:[%s0 + $0x33c] sm:$0xf]
    %v262 = vld [vmem:[%s0 + $0x340] sm:$0xf]
    %v263 = vld [vmem:[%s0 + $0x344] sm:$0xf]
    %v264 = vld [vmem:[%s0 + $0x348] sm:$0xf]
    %v265 = vld [vmem:[%s0 + $0x34c] sm:$0xf]
    %v266 = vld [vmem:[%s0 + $0x350] sm:$0xf]
    %v267 = vld [vmem:[%s0 + $0x354] sm:$0xf]
    %v268 = vld [vmem:[%s0 + $0x358] sm:$0xf]
    %v269 = vld [vmem:[%s0 + $0x35c] sm:$0xf]
    %v270 = vld [vmem:[%s0 + $0x360] sm:$0xf]
    %v271 = vld [vmem:[%s0 + $0x364] sm:$0xf]
    %v272 = vld [vmem:[%s0 + $0x368] sm:$0xf]
    %v273 = vld [vmem:[%s0 + $0x36c] sm:$0xf]
    %v274 = vld [vmem:[%s0 + $0x370] sm:$0xf]
    %v275 = vld [vmem:[%s0 + $0x374] sm:$0xf]
    %v276 = vld [vmem:[%s0 + $0x378] sm:$0xf]
    %v277 = vld [vmem:[%s0 + $0x37c] sm:$0xf]
    %v278 = vld [vmem:[%s0 + $0x380] sm:$0xf]
    %v279 = vld [vmem:[%s0 + $0x384] sm:$0xf]
    %v280 = vld [vmem:[%s0 + $0x388] sm:$0xf]
    %v281 = vld [vmem:[%s0 + $0x38c] sm:$0xf]
    %v282 = vld [vmem:[%s0 + $0x390] sm:$0xf]
    %v283 = vld [vmem:[%s0 + $0x394] sm:$0xf]
    %v284 = vld [vmem:[%s0 + $0x398] sm:$0xf]
    %v285 = vld [vmem:[%s0 + $0x39c] sm:$0xf]
    %v286 = vld [vmem:[%s0 + $0x3a0] sm:$0xf]
    %v287 = vld [vmem:[%s0 + $0x3a4] sm:$0xf]
    %v288 = vld [vmem:[%s0 + $0x3a8] sm:$0xf]
    %v289 = vld [vmem:[%s0 + $0x3ac] sm:$0xf]
    %v290 = vld [vmem:[%s0 + $0x3b0] sm:$0xf]
    %v291 = vld [vmem:[%s0 + $0x3b4] sm:$0xf]
    %v292 = vld [vmem:[%s0 + $0x3b8] sm:$0xf]
    %v293 = vld [vmem:[%s0 + $0x3bc] sm:$0xf]
    %v294 = vld [vmem:[%s0 + $0x3c0] sm:$0xf]
    %v295 = vld [vmem:[%s0 + $0x3c4] sm:$0xf]
    %v296 = vld [vmem:[%s0 + $0x3c8] sm:$0xf]
    %v297 = vld [vmem:[%s0 + $0x3cc] sm:$0xf]
    %v298 = vld [vmem:[%s0 + $0x3d0] sm:$0xf]
    %v299 = vld [vmem:[%s0 + $0x3d4] sm:$0xf]
    %v300 = vld [vmem:[%s0 + $0x3d8] sm:$0xf]
    %v301 = vld [vmem:[%s0 + $0x3dc] sm:$0xf]
    %v302 = vld [vmem:[%s0 + $0x3e0] sm:$0xf]
    %v303 = vld [vmem:[%s0 + $0x3e4] sm:$0xf]
    %v304 = vld [vmem:[%s0 + $0x3e8] sm:$0xf]
    %v305 = vld [vmem:[%s0 + $0x3ec] sm:$0xf]
    %v306 = vld [vmem:[%s0 + $0x3f0] sm:$0xf]
    %v307 = vld [vmem:[%s0 + $0x3f4] sm:$0xf]
    %v308 = vld [vmem:[%s0 + $0x3f8] sm:$0xf]
    %v309 = vld [vmem:[%s0 + $0x3fc] sm:$0xf]
    %v310 = vld [vmem:[%s1] sm:$0xff]
    %v311 = vld [vmem:[%s1 + $0x8] sm:$0xff]
    %v312 = vld [vmem:[%s1 + $0x10] sm:$0xff]
    %v313 = vld [vmem:[%s1 + $0x18] sm:$0xff]
    %v314 = vld [vmem:[%s1 + $0x20] sm:$0xff]
    %v315 = vld [vmem:[%s1 + $0x28] sm:$0xff]
    %v316 = vld [vmem:[%s1 + $0x30] sm:$0xff]
    %v317 = vld [vmem:[%s1 + $0x38] sm:$0xff]
    %v318 = vld [vmem:[%s1 + $0x40] sm:$0x33]
    %v319 = vld [vmem:[%s1 + $0x48] sm:$0x33]
    %v320 = vld [vmem:[%s2] sm:$0xf]
    %v322 = vlaneseq
    %v323 = vshrl.u32 %v322, 7
    %v324 = vsub.s32 0, %v323
    %v325 = vrot.slane %v320, %v324
    %v326 = vlaneseq
    %v327 = vshrl.u32 %v326, 7
    %v328 = vsub.s32 1, %v327
    %v329 = vrot.slane %v320, %v328
    %v330 = vlaneseq
    %v331 = vshrl.u32 %v330, 7
    %v332 = vsub.s32 2, %v331
    %v333 = vrot.slane %v320, %v332
    %v334 = vlaneseq
    %v335 = vshrl.u32 %v334, 7
    %v336 = vsub.s32 3, %v335
    %v337 = vrot.slane %v320, %v336
    %v598 = vunpack.c.l.b16 %v54
    %v599 = vunpack.c.l.b16 %v55
    %v600 = vunpack.c.l.b16 %v56
    %v601 = vunpack.c.l.b16 %v57
    %v602 = vunpack.c.l.b16 %v58
    %v603 = vunpack.c.l.b16 %v59
    %v604 = vunpack.c.l.b16 %v60
    %v605 = vunpack.c.l.b16 %v61
    %v606 = vunpack.c.l.b16 %v62
    %v607 = vunpack.c.l.b16 %v63
    %v608 = vunpack.c.l.b16 %v64
    %v609 = vunpack.c.l.b16 %v65
    %v610 = vunpack.c.l.b16 %v66
    %v611 = vunpack.c.l.b16 %v67
    %v612 = vunpack.c.l.b16 %v68
    %v613 = vunpack.c.l.b16 %v69
    %v614 = vunpack.c.l.b16 %v70
    %v615 = vunpack.c.l.b16 %v71
    %v616 = vunpack.c.l.b16 %v72
    %v617 = vunpack.c.l.b16 %v73
    %v618 = vunpack.c.l.b16 %v74
    %v619 = vunpack.c.l.b16 %v75
    %v620 = vunpack.c.l.b16 %v76
    %v621 = vunpack.c.l.b16 %v77
    %v622 = vunpack.c.l.b16 %v78
    %v623 = vunpack.c.l.b16 %v79
    %v624 = vunpack.c.l.b16 %v80
    %v625 = vunpack.c.l.b16 %v81
    %v626 = vunpack.c.l.b16 %v82
    %v627 = vunpack.c.l.b16 %v83
    %v628 = vunpack.c.l.b16 %v84
    %v629 = vunpack.c.l.b16 %v85
    %v630 = vunpack.c.l.b16 %v86
    %v631 = vunpack.c.l.b16 %v87
    %v632 = vunpack.c.l.b16 %v88
    %v633 = vunpack.c.l.b16 %v89
    %v634 = vunpack.c.l.b16 %v90
    %v635 = vunpack.c.l.b16 %v91
    %v636 = vunpack.c.l.b16 %v92
    %v637 = vunpack.c.l.b16 %v93
    %v638 = vunpack.c.l.b16 %v94
    %v639 = vunpack.c.l.b16 %v95
    %v640 = vunpack.c.l.b16 %v96
    %v641 = vunpack.c.l.b16 %v97
    %v642 = vunpack.c.l.b16 %v98
    %v643 = vunpack.c.l.b16 %v99
    %v644 = vunpack.c.l.b16 %v100
    %v645 = vunpack.c.l.b16 %v101
    %v646 = vunpack.c.l.b16 %v102
    %v647 = vunpack.c.l.b16 %v103
    %v648 = vunpack.c.l.b16 %v104
    %v649 = vunpack.c.l.b16 %v105
    %v650 = vunpack.c.l.b16 %v106
    %v651 = vunpack.c.l.b16 %v107
    %v652 = vunpack.c.l.b16 %v108
    %v653 = vunpack.c.l.b16 %v109
    %v654 = vunpack.c.l.b16 %v110
    %v655 = vunpack.c.l.b16 %v111
    %v656 = vunpack.c.l.b16 %v112
    %v657 = vunpack.c.l.b16 %v113
    %v658 = vunpack.c.l.b16 %v114
    %v659 = vunpack.c.l.b16 %v115
    %v660 = vunpack.c.l.b16 %v116
    %v661 = vunpack.c.l.b16 %v117
    %v662 = vunpack.c.l.b16 %v118
    %v663 = vunpack.c.l.b16 %v119
    %v664 = vunpack.c.l.b16 %v120
    %v665 = vunpack.c.l.b16 %v121
    %v666 = vunpack.c.l.b16 %v122
    %v667 = vunpack.c.l.b16 %v123
    %v668 = vunpack.c.l.b16 %v124
    %v669 = vunpack.c.l.b16 %v125
    %v670 = vunpack.c.l.b16 %v126
    %v671 = vunpack.c.l.b16 %v127
    %v672 = vunpack.c.l.b16 %v128
    %v673 = vunpack.c.l.b16 %v129
    %v674 = vunpack.c.l.b16 %v130
    %v675 = vunpack.c.l.b16 %v131
    %v676 = vunpack.c.l.b16 %v132
    %v677 = vunpack.c.l.b16 %v133
    %v678 = vunpack.c.l.b16 %v134
    %v679 = vunpack.c.l.b16 %v135
    %v680 = vunpack.c.l.b16 %v136
    %v681 = vunpack.c.l.b16 %v137
    %v682 = vunpack.c.l.b16 %v138
    %v683 = vunpack.c.l.b16 %v139
    %v684 = vunpack.c.l.b16 %v140
    %v685 = vunpack.c.l.b16 %v141
    %v686 = vunpack.c.l.b16 %v142
    %v687 = vunpack.c.l.b16 %v143
    %v688 = vunpack.c.l.b16 %v144
    %v689 = vunpack.c.l.b16 %v145
    %v690 = vunpack.c.l.b16 %v146
    %v691 = vunpack.c.l.b16 %v147
    %v692 = vunpack.c.l.b16 %v148
    %v693 = vunpack.c.l.b16 %v149
    %v694 = vunpack.c.l.b16 %v150
    %v695 = vunpack.c.l.b16 %v151
    %v696 = vunpack.c.l.b16 %v152
    %v697 = vunpack.c.l.b16 %v153
    %v698 = vunpack.c.l.b16 %v154
    %v699 = vunpack.c.l.b16 %v155
    %v700 = vunpack.c.l.b16 %v156
    %v701 = vunpack.c.l.b16 %v157
    %v702 = vunpack.c.l.b16 %v158
    %v703 = vunpack.c.l.b16 %v159
    %v704 = vunpack.c.l.b16 %v160
    %v705 = vunpack.c.l.b16 %v161
    %v706 = vunpack.c.l.b16 %v162
    %v707 = vunpack.c.l.b16 %v163
    %v708 = vunpack.c.l.b16 %v164
    %v709 = vunpack.c.l.b16 %v165
    %v710 = vunpack.c.l.b16 %v166
    %v711 = vunpack.c.l.b16 %v167
    %v712 = vunpack.c.l.b16 %v168
    %v713 = vunpack.c.l.b16 %v169
    %v714 = vunpack.c.l.b16 %v170
    %v715 = vunpack.c.l.b16 %v171
    %v716 = vunpack.c.l.b16 %v172
    %v717 = vunpack.c.l.b16 %v173
    %v718 = vunpack.c.l.b16 %v174
    %v719 = vunpack.c.l.b16 %v175
    %v720 = vunpack.c.l.b16 %v176
    %v721 = vunpack.c.l.b16 %v177
    %v722 = vunpack.c.l.b16 %v178
    %v723 = vunpack.c.l.b16 %v179
    %v724 = vunpack.c.l.b16 %v180
    %v725 = vunpack.c.l.b16 %v181
    %v726 = vunpack.c.l.b16 %v182
    %v727 = vunpack.c.l.b16 %v183
    %v728 = vunpack.c.l.b16 %v184
    %v729 = vunpack.c.l.b16 %v185
    %v730 = vunpack.c.l.b16 %v186
    %v731 = vunpack.c.l.b16 %v187
    %v732 = vunpack.c.l.b16 %v188
    %v733 = vunpack.c.l.b16 %v189
    %v734 = vunpack.c.l.b16 %v190
    %v735 = vunpack.c.l.b16 %v191
    %v736 = vunpack.c.l.b16 %v192
    %v737 = vunpack.c.l.b16 %v193
    %v738 = vunpack.c.l.b16 %v194
    %v739 = vunpack.c.l.b16 %v195
    %v740 = vunpack.c.l.b16 %v196
    %v741 = vunpack.c.l.b16 %v197
    %v742 = vunpack.c.l.b16 %v198
    %v743 = vunpack.c.l.b16 %v199
    %v744 = vunpack.c.l.b16 %v200
    %v745 = vunpack.c.l.b16 %v201
    %v746 = vunpack.c.l.b16 %v202
    %v747 = vunpack.c.l.b16 %v203
    %v748 = vunpack.c.l.b16 %v204
    %v749 = vunpack.c.l.b16 %v205
    %v750 = vunpack.c.l.b16 %v206
    %v751 = vunpack.c.l.b16 %v207
    %v752 = vunpack.c.l.b16 %v208
    %v753 = vunpack.c.l.b16 %v209
    %v754 = vunpack.c.l.b16 %v210
    %v755 = vunpack.c.l.b16 %v211
    %v756 = vunpack.c.l.b16 %v212
    %v757 = vunpack.c.l.b16 %v213
    %v758 = vunpack.c.l.b16 %v214
    %v759 = vunpack.c.l.b16 %v215
    %v760 = vunpack.c.l.b16 %v216
    %v761 = vunpack.c.l.b16 %v217
    %v762 = vunpack.c.l.b16 %v218
    %v763 = vunpack.c.l.b16 %v219
    %v764 = vunpack.c.l.b16 %v220
    %v765 = vunpack.c.l.b16 %v221
    %v766 = vunpack.c.l.b16 %v222
    %v767 = vunpack.c.l.b16 %v223
    %v768 = vunpack.c.l.b16 %v224
    %v769 = vunpack.c.l.b16 %v225
    %v770 = vunpack.c.l.b16 %v226
    %v771 = vunpack.c.l.b16 %v227
    %v772 = vunpack.c.l.b16 %v228
    %v773 = vunpack.c.l.b16 %v229
    %v774 = vunpack.c.l.b16 %v230
    %v775 = vunpack.c.l.b16 %v231
    %v776 = vunpack.c.l.b16 %v232
    %v777 = vunpack.c.l.b16 %v233
    %v778 = vunpack.c.l.b16 %v234
    %v779 = vunpack.c.l.b16 %v235
    %v780 = vunpack.c.l.b16 %v236
    %v781 = vunpack.c.l.b16 %v237
    %v782 = vunpack.c.l.b16 %v238
    %v783 = vunpack.c.l.b16 %v239
    %v784 = vunpack.c.l.b16 %v240
    %v785 = vunpack.c.l.b16 %v241
    %v786 = vunpack.c.l.b16 %v242
    %v787 = vunpack.c.l.b16 %v243
    %v788 = vunpack.c.l.b16 %v244
    %v789 = vunpack.c.l.b16 %v245
    %v790 = vunpack.c.l.b16 %v246
    %v791 = vunpack.c.l.b16 %v247
    %v792 = vunpack.c.l.b16 %v248
    %v793 = vunpack.c.l.b16 %v249
    %v794 = vunpack.c.l.b16 %v250
    %v795 = vunpack.c.l.b16 %v251
    %v796 = vunpack.c.l.b16 %v252
    %v797 = vunpack.c.l.b16 %v253
    %v798 = vunpack.c.l.b16 %v254
    %v799 = vunpack.c.l.b16 %v255
    %v800 = vunpack.c.l.b16 %v256
    %v801 = vunpack.c.l.b16 %v257
    %v802 = vunpack.c.l.b16 %v258
    %v803 = vunpack.c.l.b16 %v259
    %v804 = vunpack.c.l.b16 %v260
    %v805 = vunpack.c.l.b16 %v261
    %v806 = vunpack.c.l.b16 %v262
    %v807 = vunpack.c.l.b16 %v263
    %v808 = vunpack.c.l.b16 %v264
    %v809 = vunpack.c.l.b16 %v265
    %v810 = vunpack.c.l.b16 %v266
    %v811 = vunpack.c.l.b16 %v267
    %v812 = vunpack.c.l.b16 %v268
    %v813 = vunpack.c.l.b16 %v269
    %v814 = vunpack.c.l.b16 %v270
    %v815 = vunpack.c.l.b16 %v271
    %v816 = vunpack.c.l.b16 %v272
    %v817 = vunpack.c.l.b16 %v273
    %v818 = vunpack.c.l.b16 %v274
    %v819 = vunpack.c.l.b16 %v275
    %v820 = vunpack.c.l.b16 %v276
    %v821 = vunpack.c.l.b16 %v277
    %v822 = vunpack.c.l.b16 %v278
    %v823 = vunpack.c.l.b16 %v279
    %v824 = vunpack.c.l.b16 %v280
    %v825 = vunpack.c.l.b16 %v281
    %v826 = vunpack.c.l.b16 %v282
    %v827 = vunpack.c.l.b16 %v283
    %v828 = vunpack.c.l.b16 %v284
    %v829 = vunpack.c.l.b16 %v285
    %v830 = vunpack.c.l.b16 %v286
    %v831 = vunpack.c.l.b16 %v287
    %v832 = vunpack.c.l.b16 %v288
    %v833 = vunpack.c.l.b16 %v289
    %v834 = vunpack.c.l.b16 %v290
    %v835 = vunpack.c.l.b16 %v291
    %v836 = vunpack.c.l.b16 %v292
    %v837 = vunpack.c.l.b16 %v293
    %v838 = vunpack.c.l.b16 %v294
    %v839 = vunpack.c.l.b16 %v295
    %v840 = vunpack.c.l.b16 %v296
    %v841 = vunpack.c.l.b16 %v297
    %v842 = vunpack.c.l.b16 %v298
    %v843 = vunpack.c.l.b16 %v299
    %v844 = vunpack.c.l.b16 %v300
    %v845 = vunpack.c.l.b16 %v301
    %v846 = vunpack.c.l.b16 %v302
    %v847 = vunpack.c.l.b16 %v303
    %v848 = vunpack.c.l.b16 %v304
    %v849 = vunpack.c.l.b16 %v305
    %v850 = vunpack.c.l.b16 %v306
    %v851 = vunpack.c.l.b16 %v307
    %v852 = vunpack.c.l.b16 %v308
    %v853 = vunpack.c.l.b16 %v309
    %v854 = vpack.c.b16 %v599, %v598
    %v855 = vpack.c.b16 %v601, %v600
    %v856 = vpack.c.b16 %v603, %v602
    %v857 = vpack.c.b16 %v605, %v604
    %v858 = vpack.c.b16 %v607, %v606
    %v859 = vpack.c.b16 %v609, %v608
    %v860 = vpack.c.b16 %v611, %v610
    %v861 = vpack.c.b16 %v613, %v612
    %v862 = vpack.c.b16 %v615, %v614
    %v863 = vpack.c.b16 %v617, %v616
    %v864 = vpack.c.b16 %v619, %v618
    %v865 = vpack.c.b16 %v621, %v620
    %v866 = vpack.c.b16 %v623, %v622
    %v867 = vpack.c.b16 %v625, %v624
    %v868 = vpack.c.b16 %v627, %v626
    %v869 = vpack.c.b16 %v629, %v628
    %v870 = vpack.c.b16 %v631, %v630
    %v871 = vpack.c.b16 %v633, %v632
    %v872 = vpack.c.b16 %v635, %v634
    %v873 = vpack.c.b16 %v637, %v636
    %v874 = vpack.c.b16 %v639, %v638
    %v875 = vpack.c.b16 %v641, %v640
    %v876 = vpack.c.b16 %v643, %v642
    %v877 = vpack.c.b16 %v645, %v644
    %v878 = vpack.c.b16 %v647, %v646
    %v879 = vpack.c.b16 %v649, %v648
    %v880 = vpack.c.b16 %v651, %v650
    %v881 = vpack.c.b16 %v653, %v652
    %v882 = vpack.c.b16 %v655, %v654
    %v883 = vpack.c.b16 %v657, %v656
    %v884 = vpack.c.b16 %v659, %v658
    %v885 = vpack.c.b16 %v661, %v660
    %v886 = vpack.c.b16 %v663, %v662
    %v887 = vpack.c.b16 %v665, %v664
    %v888 = vpack.c.b16 %v667, %v666
    %v889 = vpack.c.b16 %v669, %v668
    %v890 = vpack.c.b16 %v671, %v670
    %v891 = vpack.c.b16 %v673, %v672
    %v892 = vpack.c.b16 %v675, %v674
    %v893 = vpack.c.b16 %v677, %v676
    %v894 = vpack.c.b16 %v679, %v678
    %v895 = vpack.c.b16 %v681, %v680
    %v896 = vpack.c.b16 %v683, %v682
    %v897 = vpack.c.b16 %v685, %v684
    %v898 = vpack.c.b16 %v687, %v686
    %v899 = vpack.c.b16 %v689, %v688
    %v900 = vpack.c.b16 %v691, %v690
    %v901 = vpack.c.b16 %v693, %v692
    %v902 = vpack.c.b16 %v695, %v694
    %v903 = vpack.c.b16 %v697, %v696
    %v904 = vpack.c.b16 %v699, %v698
    %v905 = vpack.c.b16 %v701, %v700
    %v906 = vpack.c.b16 %v703, %v702
    %v907 = vpack.c.b16 %v705, %v704
    %v908 = vpack.c.b16 %v707, %v706
    %v909 = vpack.c.b16 %v709, %v708
    %v910 = vpack.c.b16 %v711, %v710
    %v911 = vpack.c.b16 %v713, %v712
    %v912 = vpack.c.b16 %v715, %v714
    %v913 = vpack.c.b16 %v717, %v716
    %v914 = vpack.c.b16 %v719, %v718
    %v915 = vpack.c.b16 %v721, %v720
    %v916 = vpack.c.b16 %v723, %v722
    %v917 = vpack.c.b16 %v725, %v724
    %v918 = vpack.c.b16 %v727, %v726
    %v919 = vpack.c.b16 %v729, %v728
    %v920 = vpack.c.b16 %v731, %v730
    %v921 = vpack.c.b16 %v733, %v732
    %v922 = vpack.c.b16 %v735, %v734
    %v923 = vpack.c.b16 %v737, %v736
    %v924 = vpack.c.b16 %v739, %v738
    %v925 = vpack.c.b16 %v741, %v740
    %v926 = vpack.c.b16 %v743, %v742
    %v927 = vpack.c.b16 %v745, %v744
    %v928 = vpack.c.b16 %v747, %v746
    %v929 = vpack.c.b16 %v749, %v748
    %v930 = vpack.c.b16 %v751, %v750
    %v931 = vpack.c.b16 %v753, %v752
    %v932 = vpack.c.b16 %v755, %v754
    %v933 = vpack.c.b16 %v757, %v756
    %v934 = vpack.c.b16 %v759, %v758
    %v935 = vpack.c.b16 %v761, %v760
    %v936 = vpack.c.b16 %v763, %v762
    %v937 = vpack.c.b16 %v765, %v764
    %v938 = vpack.c.b16 %v767, %v766
    %v939 = vpack.c.b16 %v769, %v768
    %v940 = vpack.c.b16 %v771, %v770
    %v941 = vpack.c.b16 %v773, %v772
    %v942 = vpack.c.b16 %v775, %v774
    %v943 = vpack.c.b16 %v777, %v776
    %v944 = vpack.c.b16 %v779, %v778
    %v945 = vpack.c.b16 %v781, %v780
    %v946 = vpack.c.b16 %v783, %v782
    %v947 = vpack.c.b16 %v785, %v784
    %v948 = vpack.c.b16 %v787, %v786
    %v949 = vpack.c.b16 %v789, %v788
    %v950 = vpack.c.b16 %v791, %v790
    %v951 = vpack.c.b16 %v793, %v792
    %v952 = vpack.c.b16 %v795, %v794
    %v953 = vpack.c.b16 %v797, %v796
    %v954 = vpack.c.b16 %v799, %v798
    %v955 = vpack.c.b16 %v801, %v800
    %v956 = vpack.c.b16 %v803, %v802
    %v957 = vpack.c.b16 %v805, %v804
    %v958 = vpack.c.b16 %v807, %v806
    %v959 = vpack.c.b16 %v809, %v808
    %v960 = vpack.c.b16 %v811, %v810
    %v961 = vpack.c.b16 %v813, %v812
    %v962 = vpack.c.b16 %v815, %v814
    %v963 = vpack.c.b16 %v817, %v816
    %v964 = vpack.c.b16 %v819, %v818
    %v965 = vpack.c.b16 %v821, %v820
    %v966 = vpack.c.b16 %v823, %v822
    %v967 = vpack.c.b16 %v825, %v824
    %v968 = vpack.c.b16 %v827, %v826
    %v969 = vpack.c.b16 %v829, %v828
    %v970 = vpack.c.b16 %v831, %v830
    %v971 = vpack.c.b16 %v833, %v832
    %v972 = vpack.c.b16 %v835, %v834
    %v973 = vpack.c.b16 %v837, %v836
    %v974 = vpack.c.b16 %v839, %v838
    %v975 = vpack.c.b16 %v841, %v840
    %v976 = vpack.c.b16 %v843, %v842
    %v977 = vpack.c.b16 %v845, %v844
    %v978 = vpack.c.b16 %v847, %v846
    %v979 = vpack.c.b16 %v849, %v848
    %v980 = vpack.c.b16 %v851, %v850
    %v981 = vpack.c.b16 %v853, %v852
    %v992 = vunpack.c.l.b16 %v310
    %v993 = vunpack.c.h.b16 %v310
    %v994 = vunpack.c.l.b16 %v311
    %v995 = vunpack.c.h.b16 %v311
    %v996 = vunpack.c.l.b16 %v312
    %v997 = vunpack.c.h.b16 %v312
    %v998 = vunpack.c.l.b16 %v313
    %v999 = vunpack.c.h.b16 %v313
    %v1000 = vunpack.c.l.b16 %v314
    %v1001 = vunpack.c.h.b16 %v314
    %v1002 = vunpack.c.l.b16 %v315
    %v1003 = vunpack.c.h.b16 %v315
    %v1004 = vunpack.c.l.b16 %v316
    %v1005 = vunpack.c.h.b16 %v316
    %v1006 = vunpack.c.l.b16 %v317
    %v1007 = vunpack.c.h.b16 %v317
    %v1008 = vunpack.c.l.b16 %v318
    %v1009 = vunpack.c.h.b16 %v318
    %v1010 = vunpack.c.l.b16 %v319
    %v1011 = vunpack.c.h.b16 %v319
    %v1012 = vpack.c.b16 %v996, %v992
    %v1013 = vpack.c.b16 %v997, %v993
    %v1014 = vpack.c.b16 %v998, %v994
    %v1015 = vpack.c.b16 %v999, %v995
    %v1016 = vpack.c.b16 %v1004, %v1000
    %v1017 = vpack.c.b16 %v1005, %v1001
    %v1018 = vpack.c.b16 %v1006, %v1002
    %v1019 = vpack.c.b16 %v1007, %v1003
    %v1020 = vpack.c.b16 %v1008, %v1008
    %v1021 = vpack.c.b16 %v1009, %v1009
    %v1022 = vpack.c.b16 %v1010, %v1010
    %v1023 = vpack.c.b16 %v1011, %v1011
    %vm1032 = vcmask 293888
    %v1034 = vsel %vm1032, %v854, 0
    %v1037 = vsel %vm1032, %v855, 0
    %v1040 = vsel %vm1032, %v856, 0
    %v1043 = vsel %vm1032, %v857, 0
    %v1046 = vsel %vm1032, %v858, 0
    %v1049 = vsel %vm1032, %v859, 0
    %v1052 = vsel %vm1032, %v860, 0
    %v1055 = vsel %vm1032, %v861, 0
    %v1058 = vsel %vm1032, %v862, 0
    %v1061 = vsel %vm1032, %v863, 0
    %v1064 = vsel %vm1032, %v864, 0
    %v1067 = vsel %vm1032, %v865, 0
    %v1070 = vsel %vm1032, %v866, 0
    %v1073 = vsel %vm1032, %v867, 0
    %v1076 = vsel %vm1032, %v868, 0
    %v1079 = vsel %vm1032, %v869, 0
    %v1082 = vsel %vm1032, %v870, 0
    %v1085 = vsel %vm1032, %v871, 0
    %v1088 = vsel %vm1032, %v872, 0
    %v1091 = vsel %vm1032, %v873, 0
    %v1094 = vsel %vm1032, %v874, 0
    %v1097 = vsel %vm1032, %v875, 0
    %v1100 = vsel %vm1032, %v876, 0
    %v1103 = vsel %vm1032, %v877, 0
    %v1106 = vsel %vm1032, %v878, 0
    %v1109 = vsel %vm1032, %v879, 0
    %v1112 = vsel %vm1032, %v880, 0
    %v1115 = vsel %vm1032, %v881, 0
    %v1118 = vsel %vm1032, %v882, 0
    %v1121 = vsel %vm1032, %v883, 0
    %v1124 = vsel %vm1032, %v884, 0
    %v1127 = vsel %vm1032, %v885, 0
    %v1130 = vsel %vm1032, %v886, 0
    %v1133 = vsel %vm1032, %v887, 0
    %v1136 = vsel %vm1032, %v888, 0
    %v1139 = vsel %vm1032, %v889, 0
    %v1142 = vsel %vm1032, %v890, 0
    %v1145 = vsel %vm1032, %v891, 0
    %v1148 = vsel %vm1032, %v892, 0
    %v1151 = vsel %vm1032, %v893, 0
    %v1154 = vsel %vm1032, %v894, 0
    %v1157 = vsel %vm1032, %v895, 0
    %v1160 = vsel %vm1032, %v896, 0
    %v1163 = vsel %vm1032, %v897, 0
    %v1166 = vsel %vm1032, %v898, 0
    %v1169 = vsel %vm1032, %v899, 0
    %v1172 = vsel %vm1032, %v900, 0
    %v1175 = vsel %vm1032, %v901, 0
    %v1178 = vsel %vm1032, %v902, 0
    %v1181 = vsel %vm1032, %v903, 0
    %v1184 = vsel %vm1032, %v904, 0
    %v1187 = vsel %vm1032, %v905, 0
    %v1190 = vsel %vm1032, %v906, 0
    %v1193 = vsel %vm1032, %v907, 0
    %v1196 = vsel %vm1032, %v908, 0
    %v1199 = vsel %vm1032, %v909, 0
    %v1202 = vsel %vm1032, %v910, 0
    %v1205 = vsel %vm1032, %v911, 0
    %v1208 = vsel %vm1032, %v912, 0
    %v1211 = vsel %vm1032, %v913, 0
    %v1214 = vsel %vm1032, %v914, 0
    %v1217 = vsel %vm1032, %v915, 0
    %v1220 = vsel %vm1032, %v916, 0
    %v1223 = vsel %vm1032, %v917, 0
    %v1226 = vsel %vm1032, %v918, 0
    %v1229 = vsel %vm1032, %v919, 0
    %v1232 = vsel %vm1032, %v920, 0
    %v1235 = vsel %vm1032, %v921, 0
    %v1238 = vsel %vm1032, %v922, 0
    %v1241 = vsel %vm1032, %v923, 0
    %v1244 = vsel %vm1032, %v924, 0
    %v1247 = vsel %vm1032, %v925, 0
    %v1250 = vsel %vm1032, %v926, 0
    %v1253 = vsel %vm1032, %v927, 0
    %v1256 = vsel %vm1032, %v928, 0
    %v1259 = vsel %vm1032, %v929, 0
    %v1262 = vsel %vm1032, %v930, 0
    %v1265 = vsel %vm1032, %v931, 0
    %v1268 = vsel %vm1032, %v932, 0
    %v1271 = vsel %vm1032, %v933, 0
    %v1274 = vsel %vm1032, %v934, 0
    %v1277 = vsel %vm1032, %v935, 0
    %v1280 = vsel %vm1032, %v936, 0
    %v1283 = vsel %vm1032, %v937, 0
    %v1286 = vsel %vm1032, %v938, 0
    %v1289 = vsel %vm1032, %v939, 0
    %v1292 = vsel %vm1032, %v940, 0
    %v1295 = vsel %vm1032, %v941, 0
    %v1298 = vsel %vm1032, %v942, 0
    %v1301 = vsel %vm1032, %v943, 0
    %v1304 = vsel %vm1032, %v944, 0
    %v1307 = vsel %vm1032, %v945, 0
    %v1310 = vsel %vm1032, %v946, 0
    %v1313 = vsel %vm1032, %v947, 0
    %v1316 = vsel %vm1032, %v948, 0
    %v1319 = vsel %vm1032, %v949, 0
    %v1322 = vsel %vm1032, %v950, 0
    %v1325 = vsel %vm1032, %v951, 0
    %v1328 = vsel %vm1032, %v952, 0
    %v1331 = vsel %vm1032, %v953, 0
    %v1334 = vsel %vm1032, %v954, 0
    %v1337 = vsel %vm1032, %v955, 0
    %v1340 = vsel %vm1032, %v956, 0
    %v1343 = vsel %vm1032, %v957, 0
    %v1346 = vsel %vm1032, %v958, 0
    %v1349 = vsel %vm1032, %v959, 0
    %v1352 = vsel %vm1032, %v960, 0
    %v1355 = vsel %vm1032, %v961, 0
    %v1358 = vsel %vm1032, %v962, 0
    %v1361 = vsel %vm1032, %v963, 0
    %v1364 = vsel %vm1032, %v964, 0
    %v1367 = vsel %vm1032, %v965, 0
    %v1370 = vsel %vm1032, %v966, 0
    %v1373 = vsel %vm1032, %v967, 0
    %v1376 = vsel %vm1032, %v968, 0
    %v1379 = vsel %vm1032, %v969, 0
    %v1382 = vsel %vm1032, %v970, 0
    %v1385 = vsel %vm1032, %v971, 0
    %v1388 = vsel %vm1032, %v972, 0
    %v1391 = vsel %vm1032, %v973, 0
    %v1394 = vsel %vm1032, %v974, 0
    %v1397 = vsel %vm1032, %v975, 0
    %v1400 = vsel %vm1032, %v976, 0
    %v1403 = vsel %vm1032, %v977, 0
    %v1406 = vsel %vm1032, %v978, 0
    %v1409 = vsel %vm1032, %v979, 0
    %v1412 = vsel %vm1032, %v980, 0
    %v1415 = vsel %vm1032, %v981, 0
    %vm1417 = vcmask 1041408
    %v1419 = vsel %vm1417, %v1020, 0
    %v1422 = vsel %vm1417, %v1021, 0
    %v1425 = vsel %vm1417, %v1022, 0
    %v1428 = vsel %vm1417, %v1023, 0
    %1430 = vmatprep.subr.bf16.mxu0 0
    %1431 = vmatpush1.bf16.msra.mxu0 0
    %1432 = vmatprep.subr.bf16.mxu0 0
    %1433 = vmatpush1.bf16.msra.mxu0 0
    %1434 = vmatprep.subr.bf16.mxu0 0
    %1435 = vmatpush1.bf16.msra.mxu0 0
    %1436 = vmatprep.subr.bf16.mxu0 0
    %1437 = vmatpush1.bf16.msra.mxu0 0
    %1438 = vmatprep.subr.bf16.mxu0 0
    %1439 = vmatpush1.bf16.msra.mxu0 0
    %1440 = vmatprep.subr.bf16.mxu0 %v1422
    %1441 = vmatpush1.bf16.msra.mxu0 %v1419
    %1442 = vmatprep.subr.bf16.mxu0 %v1017
    %1443 = vmatpush1.bf16.msra.mxu0 %v1016
    %1444 = vmatprep.subr.bf16.mxu0 %v1013
    %1445 = vmatpush1.bf16.msra.mxu0 %v1012
    %1446 = vmatprep.subr.bf16.mxu0 0
    %1447 = vmatpush2.bf16.msra.mxu0 0
    %1448 = vmatprep.subr.bf16.mxu0 0
    %1449 = vmatpush2.bf16.msra.mxu0 0
    %1450 = vmatprep.subr.bf16.mxu0 0
    %1451 = vmatpush2.bf16.msra.mxu0 0
    %1452 = vmatprep.subr.bf16.mxu0 0
    %1453 = vmatpush2.bf16.msra.mxu0 0
    %1454 = vmatprep.subr.bf16.mxu0 0
    %1455 = vmatpush2.bf16.msra.mxu0 0
    %1456 = vmatprep.subr.bf16.mxu0 0
    %1457 = vmatpush2.bf16.msra.mxu0 0
    %1458 = vmatprep.subr.bf16.mxu0 0
    %1459 = vmatpush2.bf16.msra.mxu0 0
    %1460 = vmatprep.subr.bf16.mxu0 0
    %1461 = vmatpush2.bf16.msra.mxu0 0
    %1462 = vmatprep.mubr.bf16.mxu0 0
    %1463 = vmatmul.mubr.bf16.gmra.mxu0 %v1034
    %v1464 = vpop.f32.mrf.mxu0
    %v1465 = vadd.f32 %v325, %v1464
    %v1466 = vpop.f32.mrf.mxu0
    %v1467 = vadd.f32 %v329, %v1466
    %v1468 = vpop.f32.mrf.mxu0
    %v1469 = vadd.f32 %v325, %v1468
    %v1470 = vpop.f32.mrf.mxu0
    %v1471 = vadd.f32 %v329, %v1470
    %1472 = vmatprep.mubr.bf16.mxu0 0
    %1473 = vmatmul.mubr.bf16.gmra.mxu0 %v1037
    %v1474 = vpop.f32.mrf.mxu0
    %v1475 = vadd.f32 %v325, %v1474
    %v1476 = vpop.f32.mrf.mxu0
    %v1477 = vadd.f32 %v329, %v1476
    %v1478 = vpop.f32.mrf.mxu0
    %v1479 = vadd.f32 %v325, %v1478
    %v1480 = vpop.f32.mrf.mxu0
    %v1481 = vadd.f32 %v329, %v1480
    %1482 = vmatprep.mubr.bf16.mxu0 0
    %1483 = vmatmul.mubr.bf16.gmra.mxu0 %v1040
    %v1484 = vpop.f32.mrf.mxu0
    %v1485 = vadd.f32 %v325, %v1484
    %v1486 = vpop.f32.mrf.mxu0
    %v1487 = vadd.f32 %v329, %v1486
    %v1488 = vpop.f32.mrf.mxu0
    %v1489 = vadd.f32 %v325, %v1488
    %v1490 = vpop.f32.mrf.mxu0
    %v1491 = vadd.f32 %v329, %v1490
    %1492 = vmatprep.mubr.bf16.mxu0 0
    %1493 = vmatmul.mubr.bf16.gmra.mxu0 %v1043
    %v1494 = vpop.f32.mrf.mxu0
    %v1495 = vadd.f32 %v325, %v1494
    %v1496 = vpop.f32.mrf.mxu0
    %v1497 = vadd.f32 %v329, %v1496
    %v1498 = vpop.f32.mrf.mxu0
    %v1499 = vadd.f32 %v325, %v1498
    %v1500 = vpop.f32.mrf.mxu0
    %v1501 = vadd.f32 %v329, %v1500
    %1502 = vmatprep.mubr.bf16.mxu0 0
    %1503 = vmatmul.mubr.bf16.gmra.mxu0 %v1046
    %v1504 = vpop.f32.mrf.mxu0
    %v1505 = vadd.f32 %v325, %v1504
    %v1506 = vpop.f32.mrf.mxu0
    %v1507 = vadd.f32 %v329, %v1506
    %v1508 = vpop.f32.mrf.mxu0
    %v1509 = vadd.f32 %v325, %v1508
    %v1510 = vpop.f32.mrf.mxu0
    %v1511 = vadd.f32 %v329, %v1510
    %1512 = vmatprep.mubr.bf16.mxu0 0
    %1513 = vmatmul.mubr.bf16.gmra.mxu0 %v1049
    %v1514 = vpop.f32.mrf.mxu0
    %v1515 = vadd.f32 %v325, %v1514
    %v1516 = vpop.f32.mrf.mxu0
    %v1517 = vadd.f32 %v329, %v1516
    %v1518 = vpop.f32.mrf.mxu0
    %v1519 = vadd.f32 %v325, %v1518
    %v1520 = vpop.f32.mrf.mxu0
    %v1521 = vadd.f32 %v329, %v1520
    %1522 = vmatprep.mubr.bf16.mxu0 0
    %1523 = vmatmul.mubr.bf16.gmra.mxu0 %v1052
    %v1524 = vpop.f32.mrf.mxu0
    %v1525 = vadd.f32 %v325, %v1524
    %v1526 = vpop.f32.mrf.mxu0
    %v1527 = vadd.f32 %v329, %v1526
    %v1528 = vpop.f32.mrf.mxu0
    %v1529 = vadd.f32 %v325, %v1528
    %v1530 = vpop.f32.mrf.mxu0
    %v1531 = vadd.f32 %v329, %v1530
    %1532 = vmatprep.mubr.bf16.mxu0 0
    %1533 = vmatmul.mubr.bf16.gmra.mxu0 %v1055
    %v1534 = vpop.f32.mrf.mxu0
    %v1535 = vadd.f32 %v325, %v1534
    %v1536 = vpop.f32.mrf.mxu0
    %v1537 = vadd.f32 %v329, %v1536
    %v1538 = vpop.f32.mrf.mxu0
    %v1539 = vadd.f32 %v325, %v1538
    %v1540 = vpop.f32.mrf.mxu0
    %v1541 = vadd.f32 %v329, %v1540
    %1542 = vmatprep.mubr.bf16.mxu0 0
    %1543 = vmatmul.mubr.bf16.gmra.mxu0 %v1058
    %v1544 = vpop.f32.mrf.mxu0
    %v1545 = vadd.f32 %v325, %v1544
    %v1546 = vpop.f32.mrf.mxu0
    %v1547 = vadd.f32 %v329, %v1546
    %v1548 = vpop.f32.mrf.mxu0
    %v1549 = vadd.f32 %v325, %v1548
    %v1550 = vpop.f32.mrf.mxu0
    %v1551 = vadd.f32 %v329, %v1550
    %1552 = vmatprep.mubr.bf16.mxu0 0
    %1553 = vmatmul.mubr.bf16.gmra.mxu0 %v1061
    %v1554 = vpop.f32.mrf.mxu0
    %v1555 = vadd.f32 %v325, %v1554
    %v1556 = vpop.f32.mrf.mxu0
    %v1557 = vadd.f32 %v329, %v1556
    %v1558 = vpop.f32.mrf.mxu0
    %v1559 = vadd.f32 %v325, %v1558
    %v1560 = vpop.f32.mrf.mxu0
    %v1561 = vadd.f32 %v329, %v1560
    %1562 = vmatprep.mubr.bf16.mxu0 0
    %1563 = vmatmul.mubr.bf16.gmra.mxu0 %v1064
    %v1564 = vpop.f32.mrf.mxu0
    %v1565 = vadd.f32 %v325, %v1564
    %v1566 = vpop.f32.mrf.mxu0
    %v1567 = vadd.f32 %v329, %v1566
    %v1568 = vpop.f32.mrf.mxu0
    %v1569 = vadd.f32 %v325, %v1568
    %v1570 = vpop.f32.mrf.mxu0
    %v1571 = vadd.f32 %v329, %v1570
    %1572 = vmatprep.mubr.bf16.mxu0 0
    %1573 = vmatmul.mubr.bf16.gmra.mxu0 %v1067
    %v1574 = vpop.f32.mrf.mxu0
    %v1575 = vadd.f32 %v325, %v1574
    %v1576 = vpop.f32.mrf.mxu0
    %v1577 = vadd.f32 %v329, %v1576
    %v1578 = vpop.f32.mrf.mxu0
    %v1579 = vadd.f32 %v325, %v1578
    %v1580 = vpop.f32.mrf.mxu0
    %v1581 = vadd.f32 %v329, %v1580
    %1582 = vmatprep.mubr.bf16.mxu0 0
    %1583 = vmatmul.mubr.bf16.gmra.mxu0 %v1070
    %v1584 = vpop.f32.mrf.mxu0
    %v1585 = vadd.f32 %v325, %v1584
    %v1586 = vpop.f32.mrf.mxu0
    %v1587 = vadd.f32 %v329, %v1586
    %v1588 = vpop.f32.mrf.mxu0
    %v1589 = vadd.f32 %v325, %v1588
    %v1590 = vpop.f32.mrf.mxu0
    %v1591 = vadd.f32 %v329, %v1590
    %1592 = vmatprep.mubr.bf16.mxu0 0
    %1593 = vmatmul.mubr.bf16.gmra.mxu0 %v1073
    %v1594 = vpop.f32.mrf.mxu0
    %v1595 = vadd.f32 %v325, %v1594
    %v1596 = vpop.f32.mrf.mxu0
    %v1597 = vadd.f32 %v329, %v1596
    %v1598 = vpop.f32.mrf.mxu0
    %v1599 = vadd.f32 %v325, %v1598
    %v1600 = vpop.f32.mrf.mxu0
    %v1601 = vadd.f32 %v329, %v1600
    %1602 = vmatprep.mubr.bf16.mxu0 0
    %1603 = vmatmul.mubr.bf16.gmra.mxu0 %v1076
    %v1604 = vpop.f32.mrf.mxu0
    %v1605 = vadd.f32 %v325, %v1604
    %v1606 = vpop.f32.mrf.mxu0
    %v1607 = vadd.f32 %v329, %v1606
    %v1608 = vpop.f32.mrf.mxu0
    %v1609 = vadd.f32 %v325, %v1608
    %v1610 = vpop.f32.mrf.mxu0
    %v1611 = vadd.f32 %v329, %v1610
    %1612 = vmatprep.mubr.bf16.mxu0 0
    %1613 = vmatmul.mubr.bf16.gmra.mxu0 %v1079
    %v1614 = vpop.f32.mrf.mxu0
    %v1615 = vadd.f32 %v325, %v1614
    %v1616 = vpop.f32.mrf.mxu0
    %v1617 = vadd.f32 %v329, %v1616
    %v1618 = vpop.f32.mrf.mxu0
    %v1619 = vadd.f32 %v325, %v1618
    %v1620 = vpop.f32.mrf.mxu0
    %v1621 = vadd.f32 %v329, %v1620
    %1622 = vmatprep.mubr.bf16.mxu0 0
    %1623 = vmatmul.mubr.bf16.gmra.mxu0 %v1082
    %v1624 = vpop.f32.mrf.mxu0
    %v1625 = vadd.f32 %v325, %v1624
    %v1626 = vpop.f32.mrf.mxu0
    %v1627 = vadd.f32 %v329, %v1626
    %v1628 = vpop.f32.mrf.mxu0
    %v1629 = vadd.f32 %v325, %v1628
    %v1630 = vpop.f32.mrf.mxu0
    %v1631 = vadd.f32 %v329, %v1630
    %1632 = vmatprep.mubr.bf16.mxu0 0
    %1633 = vmatmul.mubr.bf16.gmra.mxu0 %v1085
    %v1634 = vpop.f32.mrf.mxu0
    %v1635 = vadd.f32 %v325, %v1634
    %v1636 = vpop.f32.mrf.mxu0
    %v1637 = vadd.f32 %v329, %v1636
    %v1638 = vpop.f32.mrf.mxu0
    %v1639 = vadd.f32 %v325, %v1638
    %v1640 = vpop.f32.mrf.mxu0
    %v1641 = vadd.f32 %v329, %v1640
    %1642 = vmatprep.mubr.bf16.mxu0 0
    %1643 = vmatmul.mubr.bf16.gmra.mxu0 %v1088
    %v1644 = vpop.f32.mrf.mxu0
    %v1645 = vadd.f32 %v325, %v1644
    %v1646 = vpop.f32.mrf.mxu0
    %v1647 = vadd.f32 %v329, %v1646
    %v1648 = vpop.f32.mrf.mxu0
    %v1649 = vadd.f32 %v325, %v1648
    %v1650 = vpop.f32.mrf.mxu0
    %v1651 = vadd.f32 %v329, %v1650
    %1652 = vmatprep.mubr.bf16.mxu0 0
    %1653 = vmatmul.mubr.bf16.gmra.mxu0 %v1091
    %v1654 = vpop.f32.mrf.mxu0
    %v1655 = vadd.f32 %v325, %v1654
    %v1656 = vpop.f32.mrf.mxu0
    %v1657 = vadd.f32 %v329, %v1656
    %v1658 = vpop.f32.mrf.mxu0
    %v1659 = vadd.f32 %v325, %v1658
    %v1660 = vpop.f32.mrf.mxu0
    %v1661 = vadd.f32 %v329, %v1660
    %1662 = vmatprep.mubr.bf16.mxu0 0
    %1663 = vmatmul.mubr.bf16.gmra.mxu0 %v1094
    %v1664 = vpop.f32.mrf.mxu0
    %v1665 = vadd.f32 %v325, %v1664
    %v1666 = vpop.f32.mrf.mxu0
    %v1667 = vadd.f32 %v329, %v1666
    %v1668 = vpop.f32.mrf.mxu0
    %v1669 = vadd.f32 %v325, %v1668
    %v1670 = vpop.f32.mrf.mxu0
    %v1671 = vadd.f32 %v329, %v1670
    %1672 = vmatprep.mubr.bf16.mxu0 0
    %1673 = vmatmul.mubr.bf16.gmra.mxu0 %v1097
    %v1674 = vpop.f32.mrf.mxu0
    %v1675 = vadd.f32 %v325, %v1674
    %v1676 = vpop.f32.mrf.mxu0
    %v1677 = vadd.f32 %v329, %v1676
    %v1678 = vpop.f32.mrf.mxu0
    %v1679 = vadd.f32 %v325, %v1678
    %v1680 = vpop.f32.mrf.mxu0
    %v1681 = vadd.f32 %v329, %v1680
    %1682 = vmatprep.mubr.bf16.mxu0 0
    %1683 = vmatmul.mubr.bf16.gmra.mxu0 %v1100
    %v1684 = vpop.f32.mrf.mxu0
    %v1685 = vadd.f32 %v325, %v1684
    %v1686 = vpop.f32.mrf.mxu0
    %v1687 = vadd.f32 %v329, %v1686
    %v1688 = vpop.f32.mrf.mxu0
    %v1689 = vadd.f32 %v325, %v1688
    %v1690 = vpop.f32.mrf.mxu0
    %v1691 = vadd.f32 %v329, %v1690
    %1692 = vmatprep.mubr.bf16.mxu0 0
    %1693 = vmatmul.mubr.bf16.gmra.mxu0 %v1103
    %v1694 = vpop.f32.mrf.mxu0
    %v1695 = vadd.f32 %v325, %v1694
    %v1696 = vpop.f32.mrf.mxu0
    %v1697 = vadd.f32 %v329, %v1696
    %v1698 = vpop.f32.mrf.mxu0
    %v1699 = vadd.f32 %v325, %v1698
    %v1700 = vpop.f32.mrf.mxu0
    %v1701 = vadd.f32 %v329, %v1700
    %1702 = vmatprep.mubr.bf16.mxu0 0
    %1703 = vmatmul.mubr.bf16.gmra.mxu0 %v1106
    %v1704 = vpop.f32.mrf.mxu0
    %v1705 = vadd.f32 %v325, %v1704
    %v1706 = vpop.f32.mrf.mxu0
    %v1707 = vadd.f32 %v329, %v1706
    %v1708 = vpop.f32.mrf.mxu0
    %v1709 = vadd.f32 %v325, %v1708
    %v1710 = vpop.f32.mrf.mxu0
    %v1711 = vadd.f32 %v329, %v1710
    %1712 = vmatprep.mubr.bf16.mxu0 0
    %1713 = vmatmul.mubr.bf16.gmra.mxu0 %v1109
    %v1714 = vpop.f32.mrf.mxu0
    %v1715 = vadd.f32 %v325, %v1714
    %v1716 = vpop.f32.mrf.mxu0
    %v1717 = vadd.f32 %v329, %v1716
    %v1718 = vpop.f32.mrf.mxu0
    %v1719 = vadd.f32 %v325, %v1718
    %v1720 = vpop.f32.mrf.mxu0
    %v1721 = vadd.f32 %v329, %v1720
    %1722 = vmatprep.mubr.bf16.mxu0 0
    %1723 = vmatmul.mubr.bf16.gmra.mxu0 %v1112
    %v1724 = vpop.f32.mrf.mxu0
    %v1725 = vadd.f32 %v325, %v1724
    %v1726 = vpop.f32.mrf.mxu0
    %v1727 = vadd.f32 %v329, %v1726
    %v1728 = vpop.f32.mrf.mxu0
    %v1729 = vadd.f32 %v325, %v1728
    %v1730 = vpop.f32.mrf.mxu0
    %v1731 = vadd.f32 %v329, %v1730
    %1732 = vmatprep.mubr.bf16.mxu0 0
    %1733 = vmatmul.mubr.bf16.gmra.mxu0 %v1115
    %v1734 = vpop.f32.mrf.mxu0
    %v1735 = vadd.f32 %v325, %v1734
    %v1736 = vpop.f32.mrf.mxu0
    %v1737 = vadd.f32 %v329, %v1736
    %v1738 = vpop.f32.mrf.mxu0
    %v1739 = vadd.f32 %v325, %v1738
    %v1740 = vpop.f32.mrf.mxu0
    %v1741 = vadd.f32 %v329, %v1740
    %1742 = vmatprep.mubr.bf16.mxu0 0
    %1743 = vmatmul.mubr.bf16.gmra.mxu0 %v1118
    %v1744 = vpop.f32.mrf.mxu0
    %v1745 = vadd.f32 %v325, %v1744
    %v1746 = vpop.f32.mrf.mxu0
    %v1747 = vadd.f32 %v329, %v1746
    %v1748 = vpop.f32.mrf.mxu0
    %v1749 = vadd.f32 %v325, %v1748
    %v1750 = vpop.f32.mrf.mxu0
    %v1751 = vadd.f32 %v329, %v1750
    %1752 = vmatprep.mubr.bf16.mxu0 0
    %1753 = vmatmul.mubr.bf16.gmra.mxu0 %v1121
    %v1754 = vpop.f32.mrf.mxu0
    %v1755 = vadd.f32 %v325, %v1754
    %v1756 = vpop.f32.mrf.mxu0
    %v1757 = vadd.f32 %v329, %v1756
    %v1758 = vpop.f32.mrf.mxu0
    %v1759 = vadd.f32 %v325, %v1758
    %v1760 = vpop.f32.mrf.mxu0
    %v1761 = vadd.f32 %v329, %v1760
    %1762 = vmatprep.mubr.bf16.mxu0 0
    %1763 = vmatmul.mubr.bf16.gmra.mxu0 %v1124
    %v1764 = vpop.f32.mrf.mxu0
    %v1765 = vadd.f32 %v325, %v1764
    %v1766 = vpop.f32.mrf.mxu0
    %v1767 = vadd.f32 %v329, %v1766
    %v1768 = vpop.f32.mrf.mxu0
    %v1769 = vadd.f32 %v325, %v1768
    %v1770 = vpop.f32.mrf.mxu0
    %v1771 = vadd.f32 %v329, %v1770
    %1772 = vmatprep.mubr.bf16.mxu0 0
    %1773 = vmatmul.mubr.bf16.gmra.mxu0 %v1127
    %v1774 = vpop.f32.mrf.mxu0
    %v1775 = vadd.f32 %v325, %v1774
    %v1776 = vpop.f32.mrf.mxu0
    %v1777 = vadd.f32 %v329, %v1776
    %v1778 = vpop.f32.mrf.mxu0
    %v1779 = vadd.f32 %v325, %v1778
    %v1780 = vpop.f32.mrf.mxu0
    %v1781 = vadd.f32 %v329, %v1780
    %1782 = vmatprep.mubr.bf16.mxu0 0
    %1783 = vmatmul.mubr.bf16.gmra.mxu0 %v1130
    %v1784 = vpop.f32.mrf.mxu0
    %v1785 = vadd.f32 %v325, %v1784
    %v1786 = vpop.f32.mrf.mxu0
    %v1787 = vadd.f32 %v329, %v1786
    %v1788 = vpop.f32.mrf.mxu0
    %v1789 = vadd.f32 %v325, %v1788
    %v1790 = vpop.f32.mrf.mxu0
    %v1791 = vadd.f32 %v329, %v1790
    %1792 = vmatprep.mubr.bf16.mxu0 0
    %1793 = vmatmul.mubr.bf16.gmra.mxu0 %v1133
    %v1794 = vpop.f32.mrf.mxu0
    %v1795 = vadd.f32 %v325, %v1794
    %v1796 = vpop.f32.mrf.mxu0
    %v1797 = vadd.f32 %v329, %v1796
    %v1798 = vpop.f32.mrf.mxu0
    %v1799 = vadd.f32 %v325, %v1798
    %v1800 = vpop.f32.mrf.mxu0
    %v1801 = vadd.f32 %v329, %v1800
    %1802 = vmatprep.mubr.bf16.mxu0 0
    %1803 = vmatmul.mubr.bf16.gmra.mxu0 %v1136
    %v1804 = vpop.f32.mrf.mxu0
    %v1805 = vadd.f32 %v325, %v1804
    %v1806 = vpop.f32.mrf.mxu0
    %v1807 = vadd.f32 %v329, %v1806
    %v1808 = vpop.f32.mrf.mxu0
    %v1809 = vadd.f32 %v325, %v1808
    %v1810 = vpop.f32.mrf.mxu0
    %v1811 = vadd.f32 %v329, %v1810
    %1812 = vmatprep.mubr.bf16.mxu0 0
    %1813 = vmatmul.mubr.bf16.gmra.mxu0 %v1139
    %v1814 = vpop.f32.mrf.mxu0
    %v1815 = vadd.f32 %v325, %v1814
    %v1816 = vpop.f32.mrf.mxu0
    %v1817 = vadd.f32 %v329, %v1816
    %v1818 = vpop.f32.mrf.mxu0
    %v1819 = vadd.f32 %v325, %v1818
    %v1820 = vpop.f32.mrf.mxu0
    %v1821 = vadd.f32 %v329, %v1820
    %1822 = vmatprep.mubr.bf16.mxu0 0
    %1823 = vmatmul.mubr.bf16.gmra.mxu0 %v1142
    %v1824 = vpop.f32.mrf.mxu0
    %v1825 = vadd.f32 %v325, %v1824
    %v1826 = vpop.f32.mrf.mxu0
    %v1827 = vadd.f32 %v329, %v1826
    %v1828 = vpop.f32.mrf.mxu0
    %v1829 = vadd.f32 %v325, %v1828
    %v1830 = vpop.f32.mrf.mxu0
    %v1831 = vadd.f32 %v329, %v1830
    %1832 = vmatprep.mubr.bf16.mxu0 0
    %1833 = vmatmul.mubr.bf16.gmra.mxu0 %v1145
    %v1834 = vpop.f32.mrf.mxu0
    %v1835 = vadd.f32 %v325, %v1834
    %v1836 = vpop.f32.mrf.mxu0
    %v1837 = vadd.f32 %v329, %v1836
    %v1838 = vpop.f32.mrf.mxu0
    %v1839 = vadd.f32 %v325, %v1838
    %v1840 = vpop.f32.mrf.mxu0
    %v1841 = vadd.f32 %v329, %v1840
    %1842 = vmatprep.mubr.bf16.mxu0 0
    %1843 = vmatmul.mubr.bf16.gmra.mxu0 %v1148
    %v1844 = vpop.f32.mrf.mxu0
    %v1845 = vadd.f32 %v325, %v1844
    %v1846 = vpop.f32.mrf.mxu0
    %v1847 = vadd.f32 %v329, %v1846
    %v1848 = vpop.f32.mrf.mxu0
    %v1849 = vadd.f32 %v325, %v1848
    %v1850 = vpop.f32.mrf.mxu0
    %v1851 = vadd.f32 %v329, %v1850
    %1852 = vmatprep.mubr.bf16.mxu0 0
    %1853 = vmatmul.mubr.bf16.gmra.mxu0 %v1151
    %v1854 = vpop.f32.mrf.mxu0
    %v1855 = vadd.f32 %v325, %v1854
    %v1856 = vpop.f32.mrf.mxu0
    %v1857 = vadd.f32 %v329, %v1856
    %v1858 = vpop.f32.mrf.mxu0
    %v1859 = vadd.f32 %v325, %v1858
    %v1860 = vpop.f32.mrf.mxu0
    %v1861 = vadd.f32 %v329, %v1860
    %1862 = vmatprep.mubr.bf16.mxu0 0
    %1863 = vmatmul.mubr.bf16.gmra.mxu0 %v1154
    %v1864 = vpop.f32.mrf.mxu0
    %v1865 = vadd.f32 %v325, %v1864
    %v1866 = vpop.f32.mrf.mxu0
    %v1867 = vadd.f32 %v329, %v1866
    %v1868 = vpop.f32.mrf.mxu0
    %v1869 = vadd.f32 %v325, %v1868
    %v1870 = vpop.f32.mrf.mxu0
    %v1871 = vadd.f32 %v329, %v1870
    %1872 = vmatprep.mubr.bf16.mxu0 0
    %1873 = vmatmul.mubr.bf16.gmra.mxu0 %v1157
    %v1874 = vpop.f32.mrf.mxu0
    %v1875 = vadd.f32 %v325, %v1874
    %v1876 = vpop.f32.mrf.mxu0
    %v1877 = vadd.f32 %v329, %v1876
    %v1878 = vpop.f32.mrf.mxu0
    %v1879 = vadd.f32 %v325, %v1878
    %v1880 = vpop.f32.mrf.mxu0
    %v1881 = vadd.f32 %v329, %v1880
    %1882 = vmatprep.mubr.bf16.mxu0 0
    %1883 = vmatmul.mubr.bf16.gmra.mxu0 %v1160
    %v1884 = vpop.f32.mrf.mxu0
    %v1885 = vadd.f32 %v325, %v1884
    %v1886 = vpop.f32.mrf.mxu0
    %v1887 = vadd.f32 %v329, %v1886
    %v1888 = vpop.f32.mrf.mxu0
    %v1889 = vadd.f32 %v325, %v1888
    %v1890 = vpop.f32.mrf.mxu0
    %v1891 = vadd.f32 %v329, %v1890
    %1892 = vmatprep.mubr.bf16.mxu0 0
    %1893 = vmatmul.mubr.bf16.gmra.mxu0 %v1163
    %v1894 = vpop.f32.mrf.mxu0
    %v1895 = vadd.f32 %v325, %v1894
    %v1896 = vpop.f32.mrf.mxu0
    %v1897 = vadd.f32 %v329, %v1896
    %v1898 = vpop.f32.mrf.mxu0
    %v1899 = vadd.f32 %v325, %v1898
    %v1900 = vpop.f32.mrf.mxu0
    %v1901 = vadd.f32 %v329, %v1900
    %1902 = vmatprep.mubr.bf16.mxu0 0
    %1903 = vmatmul.mubr.bf16.gmra.mxu0 %v1166
    %v1904 = vpop.f32.mrf.mxu0
    %v1905 = vadd.f32 %v325, %v1904
    %v1906 = vpop.f32.mrf.mxu0
    %v1907 = vadd.f32 %v329, %v1906
    %v1908 = vpop.f32.mrf.mxu0
    %v1909 = vadd.f32 %v325, %v1908
    %v1910 = vpop.f32.mrf.mxu0
    %v1911 = vadd.f32 %v329, %v1910
    %1912 = vmatprep.mubr.bf16.mxu0 0
    %1913 = vmatmul.mubr.bf16.gmra.mxu0 %v1169
    %v1914 = vpop.f32.mrf.mxu0
    %v1915 = vadd.f32 %v325, %v1914
    %v1916 = vpop.f32.mrf.mxu0
    %v1917 = vadd.f32 %v329, %v1916
    %v1918 = vpop.f32.mrf.mxu0
    %v1919 = vadd.f32 %v325, %v1918
    %v1920 = vpop.f32.mrf.mxu0
    %v1921 = vadd.f32 %v329, %v1920
    %1922 = vmatprep.mubr.bf16.mxu0 0
    %1923 = vmatmul.mubr.bf16.gmra.mxu0 %v1172
    %v1924 = vpop.f32.mrf.mxu0
    %v1925 = vadd.f32 %v325, %v1924
    %v1926 = vpop.f32.mrf.mxu0
    %v1927 = vadd.f32 %v329, %v1926
    %v1928 = vpop.f32.mrf.mxu0
    %v1929 = vadd.f32 %v325, %v1928
    %v1930 = vpop.f32.mrf.mxu0
    %v1931 = vadd.f32 %v329, %v1930
    %1932 = vmatprep.mubr.bf16.mxu0 0
    %1933 = vmatmul.mubr.bf16.gmra.mxu0 %v1175
    %v1934 = vpop.f32.mrf.mxu0
    %v1935 = vadd.f32 %v325, %v1934
    %v1936 = vpop.f32.mrf.mxu0
    %v1937 = vadd.f32 %v329, %v1936
    %v1938 = vpop.f32.mrf.mxu0
    %v1939 = vadd.f32 %v325, %v1938
    %v1940 = vpop.f32.mrf.mxu0
    %v1941 = vadd.f32 %v329, %v1940
    %1942 = vmatprep.mubr.bf16.mxu0 0
    %1943 = vmatmul.mubr.bf16.gmra.mxu0 %v1178
    %v1944 = vpop.f32.mrf.mxu0
    %v1945 = vadd.f32 %v325, %v1944
    %v1946 = vpop.f32.mrf.mxu0
    %v1947 = vadd.f32 %v329, %v1946
    %v1948 = vpop.f32.mrf.mxu0
    %v1949 = vadd.f32 %v325, %v1948
    %v1950 = vpop.f32.mrf.mxu0
    %v1951 = vadd.f32 %v329, %v1950
    %1952 = vmatprep.mubr.bf16.mxu0 0
    %1953 = vmatmul.mubr.bf16.gmra.mxu0 %v1181
    %v1954 = vpop.f32.mrf.mxu0
    %v1955 = vadd.f32 %v325, %v1954
    %v1956 = vpop.f32.mrf.mxu0
    %v1957 = vadd.f32 %v329, %v1956
    %v1958 = vpop.f32.mrf.mxu0
    %v1959 = vadd.f32 %v325, %v1958
    %v1960 = vpop.f32.mrf.mxu0
    %v1961 = vadd.f32 %v329, %v1960
    %1962 = vmatprep.mubr.bf16.mxu0 0
    %1963 = vmatmul.mubr.bf16.gmra.mxu0 %v1184
    %v1964 = vpop.f32.mrf.mxu0
    %v1965 = vadd.f32 %v325, %v1964
    %v1966 = vpop.f32.mrf.mxu0
    %v1967 = vadd.f32 %v329, %v1966
    %v1968 = vpop.f32.mrf.mxu0
    %v1969 = vadd.f32 %v325, %v1968
    %v1970 = vpop.f32.mrf.mxu0
    %v1971 = vadd.f32 %v329, %v1970
    %1972 = vmatprep.mubr.bf16.mxu0 0
    %1973 = vmatmul.mubr.bf16.gmra.mxu0 %v1187
    %v1974 = vpop.f32.mrf.mxu0
    %v1975 = vadd.f32 %v325, %v1974
    %v1976 = vpop.f32.mrf.mxu0
    %v1977 = vadd.f32 %v329, %v1976
    %v1978 = vpop.f32.mrf.mxu0
    %v1979 = vadd.f32 %v325, %v1978
    %v1980 = vpop.f32.mrf.mxu0
    %v1981 = vadd.f32 %v329, %v1980
    %1982 = vmatprep.mubr.bf16.mxu0 0
    %1983 = vmatmul.mubr.bf16.gmra.mxu0 %v1190
    %v1984 = vpop.f32.mrf.mxu0
    %v1985 = vadd.f32 %v325, %v1984
    %v1986 = vpop.f32.mrf.mxu0
    %v1987 = vadd.f32 %v329, %v1986
    %v1988 = vpop.f32.mrf.mxu0
    %v1989 = vadd.f32 %v325, %v1988
    %v1990 = vpop.f32.mrf.mxu0
    %v1991 = vadd.f32 %v329, %v1990
    %1992 = vmatprep.mubr.bf16.mxu0 0
    %1993 = vmatmul.mubr.bf16.gmra.mxu0 %v1193
    %v1994 = vpop.f32.mrf.mxu0
    %v1995 = vadd.f32 %v325, %v1994
    %v1996 = vpop.f32.mrf.mxu0
    %v1997 = vadd.f32 %v329, %v1996
    %v1998 = vpop.f32.mrf.mxu0
    %v1999 = vadd.f32 %v325, %v1998
    %v2000 = vpop.f32.mrf.mxu0
    %v2001 = vadd.f32 %v329, %v2000
    %2002 = vmatprep.mubr.bf16.mxu0 0
    %2003 = vmatmul.mubr.bf16.gmra.mxu0 %v1196
    %v2004 = vpop.f32.mrf.mxu0
    %v2005 = vadd.f32 %v325, %v2004
    %v2006 = vpop.f32.mrf.mxu0
    %v2007 = vadd.f32 %v329, %v2006
    %v2008 = vpop.f32.mrf.mxu0
    %v2009 = vadd.f32 %v325, %v2008
    %v2010 = vpop.f32.mrf.mxu0
    %v2011 = vadd.f32 %v329, %v2010
    %2012 = vmatprep.mubr.bf16.mxu0 0
    %2013 = vmatmul.mubr.bf16.gmra.mxu0 %v1199
    %v2014 = vpop.f32.mrf.mxu0
    %v2015 = vadd.f32 %v325, %v2014
    %v2016 = vpop.f32.mrf.mxu0
    %v2017 = vadd.f32 %v329, %v2016
    %v2018 = vpop.f32.mrf.mxu0
    %v2019 = vadd.f32 %v325, %v2018
    %v2020 = vpop.f32.mrf.mxu0
    %v2021 = vadd.f32 %v329, %v2020
    %2022 = vmatprep.mubr.bf16.mxu0 0
    %2023 = vmatmul.mubr.bf16.gmra.mxu0 %v1202
    %v2024 = vpop.f32.mrf.mxu0
    %v2025 = vadd.f32 %v325, %v2024
    %v2026 = vpop.f32.mrf.mxu0
    %v2027 = vadd.f32 %v329, %v2026
    %v2028 = vpop.f32.mrf.mxu0
    %v2029 = vadd.f32 %v325, %v2028
    %v2030 = vpop.f32.mrf.mxu0
    %v2031 = vadd.f32 %v329, %v2030
    %2032 = vmatprep.mubr.bf16.mxu0 0
    %2033 = vmatmul.mubr.bf16.gmra.mxu0 %v1205
    %v2034 = vpop.f32.mrf.mxu0
    %v2035 = vadd.f32 %v325, %v2034
    %v2036 = vpop.f32.mrf.mxu0
    %v2037 = vadd.f32 %v329, %v2036
    %v2038 = vpop.f32.mrf.mxu0
    %v2039 = vadd.f32 %v325, %v2038
    %v2040 = vpop.f32.mrf.mxu0
    %v2041 = vadd.f32 %v329, %v2040
    %2042 = vmatprep.mubr.bf16.mxu0 0
    %2043 = vmatmul.mubr.bf16.gmra.mxu0 %v1208
    %v2044 = vpop.f32.mrf.mxu0
    %v2045 = vadd.f32 %v325, %v2044
    %v2046 = vpop.f32.mrf.mxu0
    %v2047 = vadd.f32 %v329, %v2046
    %v2048 = vpop.f32.mrf.mxu0
    %v2049 = vadd.f32 %v325, %v2048
    %v2050 = vpop.f32.mrf.mxu0
    %v2051 = vadd.f32 %v329, %v2050
    %2052 = vmatprep.mubr.bf16.mxu0 0
    %2053 = vmatmul.mubr.bf16.gmra.mxu0 %v1211
    %v2054 = vpop.f32.mrf.mxu0
    %v2055 = vadd.f32 %v325, %v2054
    %v2056 = vpop.f32.mrf.mxu0
    %v2057 = vadd.f32 %v329, %v2056
    %v2058 = vpop.f32.mrf.mxu0
    %v2059 = vadd.f32 %v325, %v2058
    %v2060 = vpop.f32.mrf.mxu0
    %v2061 = vadd.f32 %v329, %v2060
    %2062 = vmatprep.mubr.bf16.mxu0 0
    %2063 = vmatmul.mubr.bf16.gmra.mxu0 %v1214
    %v2064 = vpop.f32.mrf.mxu0
    %v2065 = vadd.f32 %v325, %v2064
    %v2066 = vpop.f32.mrf.mxu0
    %v2067 = vadd.f32 %v329, %v2066
    %v2068 = vpop.f32.mrf.mxu0
    %v2069 = vadd.f32 %v325, %v2068
    %v2070 = vpop.f32.mrf.mxu0
    %v2071 = vadd.f32 %v329, %v2070
    %2072 = vmatprep.mubr.bf16.mxu0 0
    %2073 = vmatmul.mubr.bf16.gmra.mxu0 %v1217
    %v2074 = vpop.f32.mrf.mxu0
    %v2075 = vadd.f32 %v325, %v2074
    %v2076 = vpop.f32.mrf.mxu0
    %v2077 = vadd.f32 %v329, %v2076
    %v2078 = vpop.f32.mrf.mxu0
    %v2079 = vadd.f32 %v325, %v2078
    %v2080 = vpop.f32.mrf.mxu0
    %v2081 = vadd.f32 %v329, %v2080
    %2082 = vmatprep.mubr.bf16.mxu0 0
    %2083 = vmatmul.mubr.bf16.gmra.mxu0 %v1220
    %v2084 = vpop.f32.mrf.mxu0
    %v2085 = vadd.f32 %v325, %v2084
    %v2086 = vpop.f32.mrf.mxu0
    %v2087 = vadd.f32 %v329, %v2086
    %v2088 = vpop.f32.mrf.mxu0
    %v2089 = vadd.f32 %v325, %v2088
    %v2090 = vpop.f32.mrf.mxu0
    %v2091 = vadd.f32 %v329, %v2090
    %2092 = vmatprep.mubr.bf16.mxu0 0
    %2093 = vmatmul.mubr.bf16.gmra.mxu0 %v1223
    %v2094 = vpop.f32.mrf.mxu0
    %v2095 = vadd.f32 %v325, %v2094
    %v2096 = vpop.f32.mrf.mxu0
    %v2097 = vadd.f32 %v329, %v2096
    %v2098 = vpop.f32.mrf.mxu0
    %v2099 = vadd.f32 %v325, %v2098
    %v2100 = vpop.f32.mrf.mxu0
    %v2101 = vadd.f32 %v329, %v2100
    %2102 = vmatprep.mubr.bf16.mxu0 0
    %2103 = vmatmul.mubr.bf16.gmra.mxu0 %v1226
    %v2104 = vpop.f32.mrf.mxu0
    %v2105 = vadd.f32 %v325, %v2104
    %v2106 = vpop.f32.mrf.mxu0
    %v2107 = vadd.f32 %v329, %v2106
    %v2108 = vpop.f32.mrf.mxu0
    %v2109 = vadd.f32 %v325, %v2108
    %v2110 = vpop.f32.mrf.mxu0
    %v2111 = vadd.f32 %v329, %v2110
    %2112 = vmatprep.mubr.bf16.mxu0 0
    %2113 = vmatmul.mubr.bf16.gmra.mxu0 %v1229
    %v2114 = vpop.f32.mrf.mxu0
    %v2115 = vadd.f32 %v325, %v2114
    %v2116 = vpop.f32.mrf.mxu0
    %v2117 = vadd.f32 %v329, %v2116
    %v2118 = vpop.f32.mrf.mxu0
    %v2119 = vadd.f32 %v325, %v2118
    %v2120 = vpop.f32.mrf.mxu0
    %v2121 = vadd.f32 %v329, %v2120
    %2122 = vmatprep.mubr.bf16.mxu0 0
    %2123 = vmatmul.mubr.bf16.gmra.mxu0 %v1232
    %v2124 = vpop.f32.mrf.mxu0
    %v2125 = vadd.f32 %v325, %v2124
    %v2126 = vpop.f32.mrf.mxu0
    %v2127 = vadd.f32 %v329, %v2126
    %v2128 = vpop.f32.mrf.mxu0
    %v2129 = vadd.f32 %v325, %v2128
    %v2130 = vpop.f32.mrf.mxu0
    %v2131 = vadd.f32 %v329, %v2130
    %2132 = vmatprep.mubr.bf16.mxu0 0
    %2133 = vmatmul.mubr.bf16.gmra.mxu0 %v1235
    %v2134 = vpop.f32.mrf.mxu0
    %v2135 = vadd.f32 %v325, %v2134
    %v2136 = vpop.f32.mrf.mxu0
    %v2137 = vadd.f32 %v329, %v2136
    %v2138 = vpop.f32.mrf.mxu0
    %v2139 = vadd.f32 %v325, %v2138
    %v2140 = vpop.f32.mrf.mxu0
    %v2141 = vadd.f32 %v329, %v2140
    %2142 = vmatprep.mubr.bf16.mxu0 0
    %2143 = vmatmul.mubr.bf16.gmra.mxu0 %v1238
    %v2144 = vpop.f32.mrf.mxu0
    %v2145 = vadd.f32 %v325, %v2144
    %v2146 = vpop.f32.mrf.mxu0
    %v2147 = vadd.f32 %v329, %v2146
    %v2148 = vpop.f32.mrf.mxu0
    %v2149 = vadd.f32 %v325, %v2148
    %v2150 = vpop.f32.mrf.mxu0
    %v2151 = vadd.f32 %v329, %v2150
    %2152 = vmatprep.mubr.bf16.mxu0 0
    %2153 = vmatmul.mubr.bf16.gmra.mxu0 %v1241
    %v2154 = vpop.f32.mrf.mxu0
    %v2155 = vadd.f32 %v325, %v2154
    %v2156 = vpop.f32.mrf.mxu0
    %v2157 = vadd.f32 %v329, %v2156
    %v2158 = vpop.f32.mrf.mxu0
    %v2159 = vadd.f32 %v325, %v2158
    %v2160 = vpop.f32.mrf.mxu0
    %v2161 = vadd.f32 %v329, %v2160
    %2162 = vmatprep.mubr.bf16.mxu0 0
    %2163 = vmatmul.mubr.bf16.gmra.mxu0 %v1244
    %v2164 = vpop.f32.mrf.mxu0
    %v2165 = vadd.f32 %v325, %v2164
    %v2166 = vpop.f32.mrf.mxu0
    %v2167 = vadd.f32 %v329, %v2166
    %v2168 = vpop.f32.mrf.mxu0
    %v2169 = vadd.f32 %v325, %v2168
    %v2170 = vpop.f32.mrf.mxu0
    %v2171 = vadd.f32 %v329, %v2170
    %2172 = vmatprep.mubr.bf16.mxu0 0
    %2173 = vmatmul.mubr.bf16.gmra.mxu0 %v1247
    %v2174 = vpop.f32.mrf.mxu0
    %v2175 = vadd.f32 %v325, %v2174
    %v2176 = vpop.f32.mrf.mxu0
    %v2177 = vadd.f32 %v329, %v2176
    %v2178 = vpop.f32.mrf.mxu0
    %v2179 = vadd.f32 %v325, %v2178
    %v2180 = vpop.f32.mrf.mxu0
    %v2181 = vadd.f32 %v329, %v2180
    %2182 = vmatprep.mubr.bf16.mxu0 0
    %2183 = vmatmul.mubr.bf16.gmra.mxu0 %v1250
    %v2184 = vpop.f32.mrf.mxu0
    %v2185 = vadd.f32 %v325, %v2184
    %v2186 = vpop.f32.mrf.mxu0
    %v2187 = vadd.f32 %v329, %v2186
    %v2188 = vpop.f32.mrf.mxu0
    %v2189 = vadd.f32 %v325, %v2188
    %v2190 = vpop.f32.mrf.mxu0
    %v2191 = vadd.f32 %v329, %v2190
    %2192 = vmatprep.mubr.bf16.mxu0 0
    %2193 = vmatmul.mubr.bf16.gmra.mxu0 %v1253
    %v2194 = vpop.f32.mrf.mxu0
    %v2195 = vadd.f32 %v325, %v2194
    %v2196 = vpop.f32.mrf.mxu0
    %v2197 = vadd.f32 %v329, %v2196
    %v2198 = vpop.f32.mrf.mxu0
    %v2199 = vadd.f32 %v325, %v2198
    %v2200 = vpop.f32.mrf.mxu0
    %v2201 = vadd.f32 %v329, %v2200
    %2202 = vmatprep.mubr.bf16.mxu0 0
    %2203 = vmatmul.mubr.bf16.gmra.mxu0 %v1256
    %v2204 = vpop.f32.mrf.mxu0
    %v2205 = vadd.f32 %v325, %v2204
    %v2206 = vpop.f32.mrf.mxu0
    %v2207 = vadd.f32 %v329, %v2206
    %v2208 = vpop.f32.mrf.mxu0
    %v2209 = vadd.f32 %v325, %v2208
    %v2210 = vpop.f32.mrf.mxu0
    %v2211 = vadd.f32 %v329, %v2210
    %2212 = vmatprep.mubr.bf16.mxu0 0
    %2213 = vmatmul.mubr.bf16.gmra.mxu0 %v1259
    %v2214 = vpop.f32.mrf.mxu0
    %v2215 = vadd.f32 %v325, %v2214
    %v2216 = vpop.f32.mrf.mxu0
    %v2217 = vadd.f32 %v329, %v2216
    %v2218 = vpop.f32.mrf.mxu0
    %v2219 = vadd.f32 %v325, %v2218
    %v2220 = vpop.f32.mrf.mxu0
    %v2221 = vadd.f32 %v329, %v2220
    %2222 = vmatprep.mubr.bf16.mxu0 0
    %2223 = vmatmul.mubr.bf16.gmra.mxu0 %v1262
    %v2224 = vpop.f32.mrf.mxu0
    %v2225 = vadd.f32 %v325, %v2224
    %v2226 = vpop.f32.mrf.mxu0
    %v2227 = vadd.f32 %v329, %v2226
    %v2228 = vpop.f32.mrf.mxu0
    %v2229 = vadd.f32 %v325, %v2228
    %v2230 = vpop.f32.mrf.mxu0
    %v2231 = vadd.f32 %v329, %v2230
    %2232 = vmatprep.mubr.bf16.mxu0 0
    %2233 = vmatmul.mubr.bf16.gmra.mxu0 %v1265
    %v2234 = vpop.f32.mrf.mxu0
    %v2235 = vadd.f32 %v325, %v2234
    %v2236 = vpop.f32.mrf.mxu0
    %v2237 = vadd.f32 %v329, %v2236
    %v2238 = vpop.f32.mrf.mxu0
    %v2239 = vadd.f32 %v325, %v2238
    %v2240 = vpop.f32.mrf.mxu0
    %v2241 = vadd.f32 %v329, %v2240
    %2242 = vmatprep.mubr.bf16.mxu0 0
    %2243 = vmatmul.mubr.bf16.gmra.mxu0 %v1268
    %v2244 = vpop.f32.mrf.mxu0
    %v2245 = vadd.f32 %v325, %v2244
    %v2246 = vpop.f32.mrf.mxu0
    %v2247 = vadd.f32 %v329, %v2246
    %v2248 = vpop.f32.mrf.mxu0
    %v2249 = vadd.f32 %v325, %v2248
    %v2250 = vpop.f32.mrf.mxu0
    %v2251 = vadd.f32 %v329, %v2250
    %2252 = vmatprep.mubr.bf16.mxu0 0
    %2253 = vmatmul.mubr.bf16.gmra.mxu0 %v1271
    %v2254 = vpop.f32.mrf.mxu0
    %v2255 = vadd.f32 %v325, %v2254
    %v2256 = vpop.f32.mrf.mxu0
    %v2257 = vadd.f32 %v329, %v2256
    %v2258 = vpop.f32.mrf.mxu0
    %v2259 = vadd.f32 %v325, %v2258
    %v2260 = vpop.f32.mrf.mxu0
    %v2261 = vadd.f32 %v329, %v2260
    %2262 = vmatprep.mubr.bf16.mxu0 0
    %2263 = vmatmul.mubr.bf16.gmra.mxu0 %v1274
    %v2264 = vpop.f32.mrf.mxu0
    %v2265 = vadd.f32 %v325, %v2264
    %v2266 = vpop.f32.mrf.mxu0
    %v2267 = vadd.f32 %v329, %v2266
    %v2268 = vpop.f32.mrf.mxu0
    %v2269 = vadd.f32 %v325, %v2268
    %v2270 = vpop.f32.mrf.mxu0
    %v2271 = vadd.f32 %v329, %v2270
    %2272 = vmatprep.mubr.bf16.mxu0 0
    %2273 = vmatmul.mubr.bf16.gmra.mxu0 %v1277
    %v2274 = vpop.f32.mrf.mxu0
    %v2275 = vadd.f32 %v325, %v2274
    %v2276 = vpop.f32.mrf.mxu0
    %v2277 = vadd.f32 %v329, %v2276
    %v2278 = vpop.f32.mrf.mxu0
    %v2279 = vadd.f32 %v325, %v2278
    %v2280 = vpop.f32.mrf.mxu0
    %v2281 = vadd.f32 %v329, %v2280
    %2282 = vmatprep.mubr.bf16.mxu0 0
    %2283 = vmatmul.mubr.bf16.gmra.mxu0 %v1280
    %v2284 = vpop.f32.mrf.mxu0
    %v2285 = vadd.f32 %v325, %v2284
    %v2286 = vpop.f32.mrf.mxu0
    %v2287 = vadd.f32 %v329, %v2286
    %v2288 = vpop.f32.mrf.mxu0
    %v2289 = vadd.f32 %v325, %v2288
    %v2290 = vpop.f32.mrf.mxu0
    %v2291 = vadd.f32 %v329, %v2290
    %2292 = vmatprep.mubr.bf16.mxu0 0
    %2293 = vmatmul.mubr.bf16.gmra.mxu0 %v1283
    %v2294 = vpop.f32.mrf.mxu0
    %v2295 = vadd.f32 %v325, %v2294
    %v2296 = vpop.f32.mrf.mxu0
    %v2297 = vadd.f32 %v329, %v2296
    %v2298 = vpop.f32.mrf.mxu0
    %v2299 = vadd.f32 %v325, %v2298
    %v2300 = vpop.f32.mrf.mxu0
    %v2301 = vadd.f32 %v329, %v2300
    %2302 = vmatprep.mubr.bf16.mxu0 0
    %2303 = vmatmul.mubr.bf16.gmra.mxu0 %v1286
    %v2304 = vpop.f32.mrf.mxu0
    %v2305 = vadd.f32 %v325, %v2304
    %v2306 = vpop.f32.mrf.mxu0
    %v2307 = vadd.f32 %v329, %v2306
    %v2308 = vpop.f32.mrf.mxu0
    %v2309 = vadd.f32 %v325, %v2308
    %v2310 = vpop.f32.mrf.mxu0
    %v2311 = vadd.f32 %v329, %v2310
    %2312 = vmatprep.mubr.bf16.mxu0 0
    %2313 = vmatmul.mubr.bf16.gmra.mxu0 %v1289
    %v2314 = vpop.f32.mrf.mxu0
    %v2315 = vadd.f32 %v325, %v2314
    %v2316 = vpop.f32.mrf.mxu0
    %v2317 = vadd.f32 %v329, %v2316
    %v2318 = vpop.f32.mrf.mxu0
    %v2319 = vadd.f32 %v325, %v2318
    %v2320 = vpop.f32.mrf.mxu0
    %v2321 = vadd.f32 %v329, %v2320
    %2322 = vmatprep.mubr.bf16.mxu0 0
    %2323 = vmatmul.mubr.bf16.gmra.mxu0 %v1292
    %v2324 = vpop.f32.mrf.mxu0
    %v2325 = vadd.f32 %v325, %v2324
    %v2326 = vpop.f32.mrf.mxu0
    %v2327 = vadd.f32 %v329, %v2326
    %v2328 = vpop.f32.mrf.mxu0
    %v2329 = vadd.f32 %v325, %v2328
    %v2330 = vpop.f32.mrf.mxu0
    %v2331 = vadd.f32 %v329, %v2330
    %2332 = vmatprep.mubr.bf16.mxu0 0
    %2333 = vmatmul.mubr.bf16.gmra.mxu0 %v1295
    %v2334 = vpop.f32.mrf.mxu0
    %v2335 = vadd.f32 %v325, %v2334
    %v2336 = vpop.f32.mrf.mxu0
    %v2337 = vadd.f32 %v329, %v2336
    %v2338 = vpop.f32.mrf.mxu0
    %v2339 = vadd.f32 %v325, %v2338
    %v2340 = vpop.f32.mrf.mxu0
    %v2341 = vadd.f32 %v329, %v2340
    %2342 = vmatprep.mubr.bf16.mxu0 0
    %2343 = vmatmul.mubr.bf16.gmra.mxu0 %v1298
    %v2344 = vpop.f32.mrf.mxu0
    %v2345 = vadd.f32 %v325, %v2344
    %v2346 = vpop.f32.mrf.mxu0
    %v2347 = vadd.f32 %v329, %v2346
    %v2348 = vpop.f32.mrf.mxu0
    %v2349 = vadd.f32 %v325, %v2348
    %v2350 = vpop.f32.mrf.mxu0
    %v2351 = vadd.f32 %v329, %v2350
    %2352 = vmatprep.mubr.bf16.mxu0 0
    %2353 = vmatmul.mubr.bf16.gmra.mxu0 %v1301
    %v2354 = vpop.f32.mrf.mxu0
    %v2355 = vadd.f32 %v325, %v2354
    %v2356 = vpop.f32.mrf.mxu0
    %v2357 = vadd.f32 %v329, %v2356
    %v2358 = vpop.f32.mrf.mxu0
    %v2359 = vadd.f32 %v325, %v2358
    %v2360 = vpop.f32.mrf.mxu0
    %v2361 = vadd.f32 %v329, %v2360
    %2362 = vmatprep.mubr.bf16.mxu0 0
    %2363 = vmatmul.mubr.bf16.gmra.mxu0 %v1304
    %v2364 = vpop.f32.mrf.mxu0
    %v2365 = vadd.f32 %v325, %v2364
    %v2366 = vpop.f32.mrf.mxu0
    %v2367 = vadd.f32 %v329, %v2366
    %v2368 = vpop.f32.mrf.mxu0
    %v2369 = vadd.f32 %v325, %v2368
    %v2370 = vpop.f32.mrf.mxu0
    %v2371 = vadd.f32 %v329, %v2370
    %2372 = vmatprep.mubr.bf16.mxu0 0
    %2373 = vmatmul.mubr.bf16.gmra.mxu0 %v1307
    %v2374 = vpop.f32.mrf.mxu0
    %v2375 = vadd.f32 %v325, %v2374
    %v2376 = vpop.f32.mrf.mxu0
    %v2377 = vadd.f32 %v329, %v2376
    %v2378 = vpop.f32.mrf.mxu0
    %v2379 = vadd.f32 %v325, %v2378
    %v2380 = vpop.f32.mrf.mxu0
    %v2381 = vadd.f32 %v329, %v2380
    %2382 = vmatprep.mubr.bf16.mxu0 0
    %2383 = vmatmul.mubr.bf16.gmra.mxu0 %v1310
    %v2384 = vpop.f32.mrf.mxu0
    %v2385 = vadd.f32 %v325, %v2384
    %v2386 = vpop.f32.mrf.mxu0
    %v2387 = vadd.f32 %v329, %v2386
    %v2388 = vpop.f32.mrf.mxu0
    %v2389 = vadd.f32 %v325, %v2388
    %v2390 = vpop.f32.mrf.mxu0
    %v2391 = vadd.f32 %v329, %v2390
    %2392 = vmatprep.mubr.bf16.mxu0 0
    %2393 = vmatmul.mubr.bf16.gmra.mxu0 %v1313
    %v2394 = vpop.f32.mrf.mxu0
    %v2395 = vadd.f32 %v325, %v2394
    %v2396 = vpop.f32.mrf.mxu0
    %v2397 = vadd.f32 %v329, %v2396
    %v2398 = vpop.f32.mrf.mxu0
    %v2399 = vadd.f32 %v325, %v2398
    %v2400 = vpop.f32.mrf.mxu0
    %v2401 = vadd.f32 %v329, %v2400
    %2402 = vmatprep.mubr.bf16.mxu0 0
    %2403 = vmatmul.mubr.bf16.gmra.mxu0 %v1316
    %v2404 = vpop.f32.mrf.mxu0
    %v2405 = vadd.f32 %v325, %v2404
    %v2406 = vpop.f32.mrf.mxu0
    %v2407 = vadd.f32 %v329, %v2406
    %v2408 = vpop.f32.mrf.mxu0
    %v2409 = vadd.f32 %v325, %v2408
    %v2410 = vpop.f32.mrf.mxu0
    %v2411 = vadd.f32 %v329, %v2410
    %2412 = vmatprep.mubr.bf16.mxu0 0
    %2413 = vmatmul.mubr.bf16.gmra.mxu0 %v1319
    %v2414 = vpop.f32.mrf.mxu0
    %v2415 = vadd.f32 %v325, %v2414
    %v2416 = vpop.f32.mrf.mxu0
    %v2417 = vadd.f32 %v329, %v2416
    %v2418 = vpop.f32.mrf.mxu0
    %v2419 = vadd.f32 %v325, %v2418
    %v2420 = vpop.f32.mrf.mxu0
    %v2421 = vadd.f32 %v329, %v2420
    %2422 = vmatprep.mubr.bf16.mxu0 0
    %2423 = vmatmul.mubr.bf16.gmra.mxu0 %v1322
    %v2424 = vpop.f32.mrf.mxu0
    %v2425 = vadd.f32 %v325, %v2424
    %v2426 = vpop.f32.mrf.mxu0
    %v2427 = vadd.f32 %v329, %v2426
    %v2428 = vpop.f32.mrf.mxu0
    %v2429 = vadd.f32 %v325, %v2428
    %v2430 = vpop.f32.mrf.mxu0
    %v2431 = vadd.f32 %v329, %v2430
    %2432 = vmatprep.mubr.bf16.mxu0 0
    %2433 = vmatmul.mubr.bf16.gmra.mxu0 %v1325
    %v2434 = vpop.f32.mrf.mxu0
    %v2435 = vadd.f32 %v325, %v2434
    %v2436 = vpop.f32.mrf.mxu0
    %v2437 = vadd.f32 %v329, %v2436
    %v2438 = vpop.f32.mrf.mxu0
    %v2439 = vadd.f32 %v325, %v2438
    %v2440 = vpop.f32.mrf.mxu0
    %v2441 = vadd.f32 %v329, %v2440
    %2442 = vmatprep.mubr.bf16.mxu0 0
    %2443 = vmatmul.mubr.bf16.gmra.mxu0 %v1328
    %v2444 = vpop.f32.mrf.mxu0
    %v2445 = vadd.f32 %v325, %v2444
    %v2446 = vpop.f32.mrf.mxu0
    %v2447 = vadd.f32 %v329, %v2446
    %v2448 = vpop.f32.mrf.mxu0
    %v2449 = vadd.f32 %v325, %v2448
    %v2450 = vpop.f32.mrf.mxu0
    %v2451 = vadd.f32 %v329, %v2450
    %2452 = vmatprep.mubr.bf16.mxu0 0
    %2453 = vmatmul.mubr.bf16.gmra.mxu0 %v1331
    %v2454 = vpop.f32.mrf.mxu0
    %v2455 = vadd.f32 %v325, %v2454
    %v2456 = vpop.f32.mrf.mxu0
    %v2457 = vadd.f32 %v329, %v2456
    %v2458 = vpop.f32.mrf.mxu0
    %v2459 = vadd.f32 %v325, %v2458
    %v2460 = vpop.f32.mrf.mxu0
    %v2461 = vadd.f32 %v329, %v2460
    %2462 = vmatprep.mubr.bf16.mxu0 0
    %2463 = vmatmul.mubr.bf16.gmra.mxu0 %v1334
    %v2464 = vpop.f32.mrf.mxu0
    %v2465 = vadd.f32 %v325, %v2464
    %v2466 = vpop.f32.mrf.mxu0
    %v2467 = vadd.f32 %v329, %v2466
    %v2468 = vpop.f32.mrf.mxu0
    %v2469 = vadd.f32 %v325, %v2468
    %v2470 = vpop.f32.mrf.mxu0
    %v2471 = vadd.f32 %v329, %v2470
    %2472 = vmatprep.mubr.bf16.mxu0 0
    %2473 = vmatmul.mubr.bf16.gmra.mxu0 %v1337
    %v2474 = vpop.f32.mrf.mxu0
    %v2475 = vadd.f32 %v325, %v2474
    %v2476 = vpop.f32.mrf.mxu0
    %v2477 = vadd.f32 %v329, %v2476
    %v2478 = vpop.f32.mrf.mxu0
    %v2479 = vadd.f32 %v325, %v2478
    %v2480 = vpop.f32.mrf.mxu0
    %v2481 = vadd.f32 %v329, %v2480
    %2482 = vmatprep.mubr.bf16.mxu0 0
    %2483 = vmatmul.mubr.bf16.gmra.mxu0 %v1340
    %v2484 = vpop.f32.mrf.mxu0
    %v2485 = vadd.f32 %v325, %v2484
    %v2486 = vpop.f32.mrf.mxu0
    %v2487 = vadd.f32 %v329, %v2486
    %v2488 = vpop.f32.mrf.mxu0
    %v2489 = vadd.f32 %v325, %v2488
    %v2490 = vpop.f32.mrf.mxu0
    %v2491 = vadd.f32 %v329, %v2490
    %2492 = vmatprep.mubr.bf16.mxu0 0
    %2493 = vmatmul.mubr.bf16.gmra.mxu0 %v1343
    %v2494 = vpop.f32.mrf.mxu0
    %v2495 = vadd.f32 %v325, %v2494
    %v2496 = vpop.f32.mrf.mxu0
    %v2497 = vadd.f32 %v329, %v2496
    %v2498 = vpop.f32.mrf.mxu0
    %v2499 = vadd.f32 %v325, %v2498
    %v2500 = vpop.f32.mrf.mxu0
    %v2501 = vadd.f32 %v329, %v2500
    %2502 = vmatprep.mubr.bf16.mxu0 0
    %2503 = vmatmul.mubr.bf16.gmra.mxu0 %v1346
    %v2504 = vpop.f32.mrf.mxu0
    %v2505 = vadd.f32 %v325, %v2504
    %v2506 = vpop.f32.mrf.mxu0
    %v2507 = vadd.f32 %v329, %v2506
    %v2508 = vpop.f32.mrf.mxu0
    %v2509 = vadd.f32 %v325, %v2508
    %v2510 = vpop.f32.mrf.mxu0
    %v2511 = vadd.f32 %v329, %v2510
    %2512 = vmatprep.mubr.bf16.mxu0 0
    %2513 = vmatmul.mubr.bf16.gmra.mxu0 %v1349
    %v2514 = vpop.f32.mrf.mxu0
    %v2515 = vadd.f32 %v325, %v2514
    %v2516 = vpop.f32.mrf.mxu0
    %v2517 = vadd.f32 %v329, %v2516
    %v2518 = vpop.f32.mrf.mxu0
    %v2519 = vadd.f32 %v325, %v2518
    %v2520 = vpop.f32.mrf.mxu0
    %v2521 = vadd.f32 %v329, %v2520
    %2522 = vmatprep.mubr.bf16.mxu0 0
    %2523 = vmatmul.mubr.bf16.gmra.mxu0 %v1352
    %v2524 = vpop.f32.mrf.mxu0
    %v2525 = vadd.f32 %v325, %v2524
    %v2526 = vpop.f32.mrf.mxu0
    %v2527 = vadd.f32 %v329, %v2526
    %v2528 = vpop.f32.mrf.mxu0
    %v2529 = vadd.f32 %v325, %v2528
    %v2530 = vpop.f32.mrf.mxu0
    %v2531 = vadd.f32 %v329, %v2530
    %2532 = vmatprep.mubr.bf16.mxu0 0
    %2533 = vmatmul.mubr.bf16.gmra.mxu0 %v1355
    %v2534 = vpop.f32.mrf.mxu0
    %v2535 = vadd.f32 %v325, %v2534
    %v2536 = vpop.f32.mrf.mxu0
    %v2537 = vadd.f32 %v329, %v2536
    %v2538 = vpop.f32.mrf.mxu0
    %v2539 = vadd.f32 %v325, %v2538
    %v2540 = vpop.f32.mrf.mxu0
    %v2541 = vadd.f32 %v329, %v2540
    %2542 = vmatprep.mubr.bf16.mxu0 0
    %2543 = vmatmul.mubr.bf16.gmra.mxu0 %v1358
    %v2544 = vpop.f32.mrf.mxu0
    %v2545 = vadd.f32 %v325, %v2544
    %v2546 = vpop.f32.mrf.mxu0
    %v2547 = vadd.f32 %v329, %v2546
    %v2548 = vpop.f32.mrf.mxu0
    %v2549 = vadd.f32 %v325, %v2548
    %v2550 = vpop.f32.mrf.mxu0
    %v2551 = vadd.f32 %v329, %v2550
    %2552 = vmatprep.mubr.bf16.mxu0 0
    %2553 = vmatmul.mubr.bf16.gmra.mxu0 %v1361
    %v2554 = vpop.f32.mrf.mxu0
    %v2555 = vadd.f32 %v325, %v2554
    %v2556 = vpop.f32.mrf.mxu0
    %v2557 = vadd.f32 %v329, %v2556
    %v2558 = vpop.f32.mrf.mxu0
    %v2559 = vadd.f32 %v325, %v2558
    %v2560 = vpop.f32.mrf.mxu0
    %v2561 = vadd.f32 %v329, %v2560
    %2562 = vmatprep.mubr.bf16.mxu0 0
    %2563 = vmatmul.mubr.bf16.gmra.mxu0 %v1364
    %v2564 = vpop.f32.mrf.mxu0
    %v2565 = vadd.f32 %v325, %v2564
    %v2566 = vpop.f32.mrf.mxu0
    %v2567 = vadd.f32 %v329, %v2566
    %v2568 = vpop.f32.mrf.mxu0
    %v2569 = vadd.f32 %v325, %v2568
    %v2570 = vpop.f32.mrf.mxu0
    %v2571 = vadd.f32 %v329, %v2570
    %2572 = vmatprep.mubr.bf16.mxu0 0
    %2573 = vmatmul.mubr.bf16.gmra.mxu0 %v1367
    %v2574 = vpop.f32.mrf.mxu0
    %v2575 = vadd.f32 %v325, %v2574
    %v2576 = vpop.f32.mrf.mxu0
    %v2577 = vadd.f32 %v329, %v2576
    %v2578 = vpop.f32.mrf.mxu0
    %v2579 = vadd.f32 %v325, %v2578
    %v2580 = vpop.f32.mrf.mxu0
    %v2581 = vadd.f32 %v329, %v2580
    %2582 = vmatprep.mubr.bf16.mxu0 0
    %2583 = vmatmul.mubr.bf16.gmra.mxu0 %v1370
    %v2584 = vpop.f32.mrf.mxu0
    %v2585 = vadd.f32 %v325, %v2584
    %v2586 = vpop.f32.mrf.mxu0
    %v2587 = vadd.f32 %v329, %v2586
    %v2588 = vpop.f32.mrf.mxu0
    %v2589 = vadd.f32 %v325, %v2588
    %v2590 = vpop.f32.mrf.mxu0
    %v2591 = vadd.f32 %v329, %v2590
    %2592 = vmatprep.mubr.bf16.mxu0 0
    %2593 = vmatmul.mubr.bf16.gmra.mxu0 %v1373
    %v2594 = vpop.f32.mrf.mxu0
    %v2595 = vadd.f32 %v325, %v2594
    %v2596 = vpop.f32.mrf.mxu0
    %v2597 = vadd.f32 %v329, %v2596
    %v2598 = vpop.f32.mrf.mxu0
    %v2599 = vadd.f32 %v325, %v2598
    %v2600 = vpop.f32.mrf.mxu0
    %v2601 = vadd.f32 %v329, %v2600
    %2602 = vmatprep.mubr.bf16.mxu0 0
    %2603 = vmatmul.mubr.bf16.gmra.mxu0 %v1376
    %v2604 = vpop.f32.mrf.mxu0
    %v2605 = vadd.f32 %v325, %v2604
    %v2606 = vpop.f32.mrf.mxu0
    %v2607 = vadd.f32 %v329, %v2606
    %v2608 = vpop.f32.mrf.mxu0
    %v2609 = vadd.f32 %v325, %v2608
    %v2610 = vpop.f32.mrf.mxu0
    %v2611 = vadd.f32 %v329, %v2610
    %2612 = vmatprep.mubr.bf16.mxu0 0
    %2613 = vmatmul.mubr.bf16.gmra.mxu0 %v1379
    %v2614 = vpop.f32.mrf.mxu0
    %v2615 = vadd.f32 %v325, %v2614
    %v2616 = vpop.f32.mrf.mxu0
    %v2617 = vadd.f32 %v329, %v2616
    %v2618 = vpop.f32.mrf.mxu0
    %v2619 = vadd.f32 %v325, %v2618
    %v2620 = vpop.f32.mrf.mxu0
    %v2621 = vadd.f32 %v329, %v2620
    %2622 = vmatprep.mubr.bf16.mxu0 0
    %2623 = vmatmul.mubr.bf16.gmra.mxu0 %v1382
    %v2624 = vpop.f32.mrf.mxu0
    %v2625 = vadd.f32 %v325, %v2624
    %v2626 = vpop.f32.mrf.mxu0
    %v2627 = vadd.f32 %v329, %v2626
    %v2628 = vpop.f32.mrf.mxu0
    %v2629 = vadd.f32 %v325, %v2628
    %v2630 = vpop.f32.mrf.mxu0
    %v2631 = vadd.f32 %v329, %v2630
    %2632 = vmatprep.mubr.bf16.mxu0 0
    %2633 = vmatmul.mubr.bf16.gmra.mxu0 %v1385
    %v2634 = vpop.f32.mrf.mxu0
    %v2635 = vadd.f32 %v325, %v2634
    %v2636 = vpop.f32.mrf.mxu0
    %v2637 = vadd.f32 %v329, %v2636
    %v2638 = vpop.f32.mrf.mxu0
    %v2639 = vadd.f32 %v325, %v2638
    %v2640 = vpop.f32.mrf.mxu0
    %v2641 = vadd.f32 %v329, %v2640
    %2642 = vmatprep.mubr.bf16.mxu0 0
    %2643 = vmatmul.mubr.bf16.gmra.mxu0 %v1388
    %v2644 = vpop.f32.mrf.mxu0
    %v2645 = vadd.f32 %v325, %v2644
    %v2646 = vpop.f32.mrf.mxu0
    %v2647 = vadd.f32 %v329, %v2646
    %v2648 = vpop.f32.mrf.mxu0
    %v2649 = vadd.f32 %v325, %v2648
    %v2650 = vpop.f32.mrf.mxu0
    %v2651 = vadd.f32 %v329, %v2650
    %2652 = vmatprep.mubr.bf16.mxu0 0
    %2653 = vmatmul.mubr.bf16.gmra.mxu0 %v1391
    %v2654 = vpop.f32.mrf.mxu0
    %v2655 = vadd.f32 %v325, %v2654
    %v2656 = vpop.f32.mrf.mxu0
    %v2657 = vadd.f32 %v329, %v2656
    %v2658 = vpop.f32.mrf.mxu0
    %v2659 = vadd.f32 %v325, %v2658
    %v2660 = vpop.f32.mrf.mxu0
    %v2661 = vadd.f32 %v329, %v2660
    %2662 = vmatprep.mubr.bf16.mxu0 0
    %2663 = vmatmul.mubr.bf16.gmra.mxu0 %v1394
    %v2664 = vpop.f32.mrf.mxu0
    %v2665 = vadd.f32 %v325, %v2664
    %v2666 = vpop.f32.mrf.mxu0
    %v2667 = vadd.f32 %v329, %v2666
    %v2668 = vpop.f32.mrf.mxu0
    %v2669 = vadd.f32 %v325, %v2668
    %v2670 = vpop.f32.mrf.mxu0
    %v2671 = vadd.f32 %v329, %v2670
    %2672 = vmatprep.mubr.bf16.mxu0 0
    %2673 = vmatmul.mubr.bf16.gmra.mxu0 %v1397
    %v2674 = vpop.f32.mrf.mxu0
    %v2675 = vadd.f32 %v325, %v2674
    %v2676 = vpop.f32.mrf.mxu0
    %v2677 = vadd.f32 %v329, %v2676
    %v2678 = vpop.f32.mrf.mxu0
    %v2679 = vadd.f32 %v325, %v2678
    %v2680 = vpop.f32.mrf.mxu0
    %v2681 = vadd.f32 %v329, %v2680
    %2682 = vmatprep.mubr.bf16.mxu0 0
    %2683 = vmatmul.mubr.bf16.gmra.mxu0 %v1400
    %v2684 = vpop.f32.mrf.mxu0
    %v2685 = vadd.f32 %v325, %v2684
    %v2686 = vpop.f32.mrf.mxu0
    %v2687 = vadd.f32 %v329, %v2686
    %v2688 = vpop.f32.mrf.mxu0
    %v2689 = vadd.f32 %v325, %v2688
    %v2690 = vpop.f32.mrf.mxu0
    %v2691 = vadd.f32 %v329, %v2690
    %2692 = vmatprep.mubr.bf16.mxu0 0
    %2693 = vmatmul.mubr.bf16.gmra.mxu0 %v1403
    %v2694 = vpop.f32.mrf.mxu0
    %v2695 = vadd.f32 %v325, %v2694
    %v2696 = vpop.f32.mrf.mxu0
    %v2697 = vadd.f32 %v329, %v2696
    %v2698 = vpop.f32.mrf.mxu0
    %v2699 = vadd.f32 %v325, %v2698
    %v2700 = vpop.f32.mrf.mxu0
    %v2701 = vadd.f32 %v329, %v2700
    %2702 = vmatprep.mubr.bf16.mxu0 0
    %2703 = vmatmul.mubr.bf16.gmra.mxu0 %v1406
    %v2704 = vpop.f32.mrf.mxu0
    %v2705 = vadd.f32 %v325, %v2704
    %v2706 = vpop.f32.mrf.mxu0
    %v2707 = vadd.f32 %v329, %v2706
    %v2708 = vpop.f32.mrf.mxu0
    %v2709 = vadd.f32 %v325, %v2708
    %v2710 = vpop.f32.mrf.mxu0
    %v2711 = vadd.f32 %v329, %v2710
    %2712 = vmatprep.mubr.bf16.mxu0 0
    %2713 = vmatmul.mubr.bf16.gmra.mxu0 %v1409
    %v2714 = vpop.f32.mrf.mxu0
    %v2715 = vadd.f32 %v325, %v2714
    %v2716 = vpop.f32.mrf.mxu0
    %v2717 = vadd.f32 %v329, %v2716
    %v2718 = vpop.f32.mrf.mxu0
    %v2719 = vadd.f32 %v325, %v2718
    %v2720 = vpop.f32.mrf.mxu0
    %v2721 = vadd.f32 %v329, %v2720
    %2722 = vmatprep.mubr.bf16.mxu0 0
    %2723 = vmatmul.mubr.bf16.gmra.mxu0 %v1412
    %v2724 = vpop.f32.mrf.mxu0
    %v2725 = vadd.f32 %v325, %v2724
    %v2726 = vpop.f32.mrf.mxu0
    %v2727 = vadd.f32 %v329, %v2726
    %v2728 = vpop.f32.mrf.mxu0
    %v2729 = vadd.f32 %v325, %v2728
    %v2730 = vpop.f32.mrf.mxu0
    %v2731 = vadd.f32 %v329, %v2730
    %2732 = vmatprep.mubr.bf16.mxu0 0
    %2733 = vmatmul.mubr.bf16.gmra.mxu0 %v1415
    %v2734 = vpop.f32.mrf.mxu0
    %v2735 = vadd.f32 %v325, %v2734
    %v2736 = vpop.f32.mrf.mxu0
    %v2737 = vadd.f32 %v329, %v2736
    %v2738 = vpop.f32.mrf.mxu0
    %v2739 = vadd.f32 %v325, %v2738
    %v2740 = vpop.f32.mrf.mxu0
    %v2741 = vadd.f32 %v329, %v2740
    %2742 = vdwg.mxu0
    %2743 = vmatprep.subr.bf16.mxu0 0
    %2744 = vmatpush1.bf16.msra.mxu0 0
    %2745 = vmatprep.subr.bf16.mxu0 0
    %2746 = vmatpush1.bf16.msra.mxu0 0
    %2747 = vmatprep.subr.bf16.mxu0 0
    %2748 = vmatpush1.bf16.msra.mxu0 0
    %2749 = vmatprep.subr.bf16.mxu0 0
    %2750 = vmatpush1.bf16.msra.mxu0 0
    %2751 = vmatprep.subr.bf16.mxu0 0
    %2752 = vmatpush1.bf16.msra.mxu0 0
    %2753 = vmatprep.subr.bf16.mxu0 %v1428
    %2754 = vmatpush1.bf16.msra.mxu0 %v1425
    %2755 = vmatprep.subr.bf16.mxu0 %v1019
    %2756 = vmatpush1.bf16.msra.mxu0 %v1018
    %2757 = vmatprep.subr.bf16.mxu0 %v1015
    %2758 = vmatpush1.bf16.msra.mxu0 %v1014
    %2759 = vmatprep.subr.bf16.mxu0 0
    %2760 = vmatpush2.bf16.msra.mxu0 0
    %2761 = vmatprep.subr.bf16.mxu0 0
    %2762 = vmatpush2.bf16.msra.mxu0 0
    %2763 = vmatprep.subr.bf16.mxu0 0
    %2764 = vmatpush2.bf16.msra.mxu0 0
    %2765 = vmatprep.subr.bf16.mxu0 0
    %2766 = vmatpush2.bf16.msra.mxu0 0
    %2767 = vmatprep.subr.bf16.mxu0 0
    %2768 = vmatpush2.bf16.msra.mxu0 0
    %2769 = vmatprep.subr.bf16.mxu0 0
    %2770 = vmatpush2.bf16.msra.mxu0 0
    %2771 = vmatprep.subr.bf16.mxu0 0
    %2772 = vmatpush2.bf16.msra.mxu0 0
    %2773 = vmatprep.subr.bf16.mxu0 0
    %2774 = vmatpush2.bf16.msra.mxu0 0
    %2775 = vmatprep.mubr.bf16.mxu0 0
    %2776 = vmatmul.mubr.bf16.gmra.mxu0 %v1034
    %v2777 = vpop.f32.mrf.mxu0
    %v2778 = vadd.f32 %v333, %v2777
    %v2779 = vpop.f32.mrf.mxu0
    %v2780 = vadd.f32 %v337, %v2779
    %v2781 = vpop.f32.mrf.mxu0
    %v2782 = vadd.f32 %v333, %v2781
    %v2783 = vpop.f32.mrf.mxu0
    %v2784 = vadd.f32 %v337, %v2783
    %2785 = vmatprep.mubr.bf16.mxu0 0
    %2786 = vmatmul.mubr.bf16.gmra.mxu0 %v1037
    %v2787 = vpop.f32.mrf.mxu0
    %v2788 = vadd.f32 %v333, %v2787
    %v2789 = vpop.f32.mrf.mxu0
    %v2790 = vadd.f32 %v337, %v2789
    %v2791 = vpop.f32.mrf.mxu0
    %v2792 = vadd.f32 %v333, %v2791
    %v2793 = vpop.f32.mrf.mxu0
    %v2794 = vadd.f32 %v337, %v2793
    %2795 = vmatprep.mubr.bf16.mxu0 0
    %2796 = vmatmul.mubr.bf16.gmra.mxu0 %v1040
    %v2797 = vpop.f32.mrf.mxu0
    %v2798 = vadd.f32 %v333, %v2797
    %v2799 = vpop.f32.mrf.mxu0
    %v2800 = vadd.f32 %v337, %v2799
    %v2801 = vpop.f32.mrf.mxu0
    %v2802 = vadd.f32 %v333, %v2801
    %v2803 = vpop.f32.mrf.mxu0
    %v2804 = vadd.f32 %v337, %v2803
    %2805 = vmatprep.mubr.bf16.mxu0 0
    %2806 = vmatmul.mubr.bf16.gmra.mxu0 %v1043
    %v2807 = vpop.f32.mrf.mxu0
    %v2808 = vadd.f32 %v333, %v2807
    %v2809 = vpop.f32.mrf.mxu0
    %v2810 = vadd.f32 %v337, %v2809
    %v2811 = vpop.f32.mrf.mxu0
    %v2812 = vadd.f32 %v333, %v2811
    %v2813 = vpop.f32.mrf.mxu0
    %v2814 = vadd.f32 %v337, %v2813
    %2815 = vmatprep.mubr.bf16.mxu0 0
    %2816 = vmatmul.mubr.bf16.gmra.mxu0 %v1046
    %v2817 = vpop.f32.mrf.mxu0
    %v2818 = vadd.f32 %v333, %v2817
    %v2819 = vpop.f32.mrf.mxu0
    %v2820 = vadd.f32 %v337, %v2819
    %v2821 = vpop.f32.mrf.mxu0
    %v2822 = vadd.f32 %v333, %v2821
    %v2823 = vpop.f32.mrf.mxu0
    %v2824 = vadd.f32 %v337, %v2823
    %2825 = vmatprep.mubr.bf16.mxu0 0
    %2826 = vmatmul.mubr.bf16.gmra.mxu0 %v1049
    %v2827 = vpop.f32.mrf.mxu0
    %v2828 = vadd.f32 %v333, %v2827
    %v2829 = vpop.f32.mrf.mxu0
    %v2830 = vadd.f32 %v337, %v2829
    %v2831 = vpop.f32.mrf.mxu0
    %v2832 = vadd.f32 %v333, %v2831
    %v2833 = vpop.f32.mrf.mxu0
    %v2834 = vadd.f32 %v337, %v2833
    %2835 = vmatprep.mubr.bf16.mxu0 0
    %2836 = vmatmul.mubr.bf16.gmra.mxu0 %v1052
    %v2837 = vpop.f32.mrf.mxu0
    %v2838 = vadd.f32 %v333, %v2837
    %v2839 = vpop.f32.mrf.mxu0
    %v2840 = vadd.f32 %v337, %v2839
    %v2841 = vpop.f32.mrf.mxu0
    %v2842 = vadd.f32 %v333, %v2841
    %v2843 = vpop.f32.mrf.mxu0
    %v2844 = vadd.f32 %v337, %v2843
    %2845 = vmatprep.mubr.bf16.mxu0 0
    %2846 = vmatmul.mubr.bf16.gmra.mxu0 %v1055
    %v2847 = vpop.f32.mrf.mxu0
    %v2848 = vadd.f32 %v333, %v2847
    %v2849 = vpop.f32.mrf.mxu0
    %v2850 = vadd.f32 %v337, %v2849
    %v2851 = vpop.f32.mrf.mxu0
    %v2852 = vadd.f32 %v333, %v2851
    %v2853 = vpop.f32.mrf.mxu0
    %v2854 = vadd.f32 %v337, %v2853
    %2855 = vmatprep.mubr.bf16.mxu0 0
    %2856 = vmatmul.mubr.bf16.gmra.mxu0 %v1058
    %v2857 = vpop.f32.mrf.mxu0
    %v2858 = vadd.f32 %v333, %v2857
    %v2859 = vpop.f32.mrf.mxu0
    %v2860 = vadd.f32 %v337, %v2859
    %v2861 = vpop.f32.mrf.mxu0
    %v2862 = vadd.f32 %v333, %v2861
    %v2863 = vpop.f32.mrf.mxu0
    %v2864 = vadd.f32 %v337, %v2863
    %2865 = vmatprep.mubr.bf16.mxu0 0
    %2866 = vmatmul.mubr.bf16.gmra.mxu0 %v1061
    %v2867 = vpop.f32.mrf.mxu0
    %v2868 = vadd.f32 %v333, %v2867
    %v2869 = vpop.f32.mrf.mxu0
    %v2870 = vadd.f32 %v337, %v2869
    %v2871 = vpop.f32.mrf.mxu0
    %v2872 = vadd.f32 %v333, %v2871
    %v2873 = vpop.f32.mrf.mxu0
    %v2874 = vadd.f32 %v337, %v2873
    %2875 = vmatprep.mubr.bf16.mxu0 0
    %2876 = vmatmul.mubr.bf16.gmra.mxu0 %v1064
    %v2877 = vpop.f32.mrf.mxu0
    %v2878 = vadd.f32 %v333, %v2877
    %v2879 = vpop.f32.mrf.mxu0
    %v2880 = vadd.f32 %v337, %v2879
    %v2881 = vpop.f32.mrf.mxu0
    %v2882 = vadd.f32 %v333, %v2881
    %v2883 = vpop.f32.mrf.mxu0
    %v2884 = vadd.f32 %v337, %v2883
    %2885 = vmatprep.mubr.bf16.mxu0 0
    %2886 = vmatmul.mubr.bf16.gmra.mxu0 %v1067
    %v2887 = vpop.f32.mrf.mxu0
    %v2888 = vadd.f32 %v333, %v2887
    %v2889 = vpop.f32.mrf.mxu0
    %v2890 = vadd.f32 %v337, %v2889
    %v2891 = vpop.f32.mrf.mxu0
    %v2892 = vadd.f32 %v333, %v2891
    %v2893 = vpop.f32.mrf.mxu0
    %v2894 = vadd.f32 %v337, %v2893
    %2895 = vmatprep.mubr.bf16.mxu0 0
    %2896 = vmatmul.mubr.bf16.gmra.mxu0 %v1070
    %v2897 = vpop.f32.mrf.mxu0
    %v2898 = vadd.f32 %v333, %v2897
    %v2899 = vpop.f32.mrf.mxu0
    %v2900 = vadd.f32 %v337, %v2899
    %v2901 = vpop.f32.mrf.mxu0
    %v2902 = vadd.f32 %v333, %v2901
    %v2903 = vpop.f32.mrf.mxu0
    %v2904 = vadd.f32 %v337, %v2903
    %2905 = vmatprep.mubr.bf16.mxu0 0
    %2906 = vmatmul.mubr.bf16.gmra.mxu0 %v1073
    %v2907 = vpop.f32.mrf.mxu0
    %v2908 = vadd.f32 %v333, %v2907
    %v2909 = vpop.f32.mrf.mxu0
    %v2910 = vadd.f32 %v337, %v2909
    %v2911 = vpop.f32.mrf.mxu0
    %v2912 = vadd.f32 %v333, %v2911
    %v2913 = vpop.f32.mrf.mxu0
    %v2914 = vadd.f32 %v337, %v2913
    %2915 = vmatprep.mubr.bf16.mxu0 0
    %2916 = vmatmul.mubr.bf16.gmra.mxu0 %v1076
    %v2917 = vpop.f32.mrf.mxu0
    %v2918 = vadd.f32 %v333, %v2917
    %v2919 = vpop.f32.mrf.mxu0
    %v2920 = vadd.f32 %v337, %v2919
    %v2921 = vpop.f32.mrf.mxu0
    %v2922 = vadd.f32 %v333, %v2921
    %v2923 = vpop.f32.mrf.mxu0
    %v2924 = vadd.f32 %v337, %v2923
    %2925 = vmatprep.mubr.bf16.mxu0 0
    %2926 = vmatmul.mubr.bf16.gmra.mxu0 %v1079
    %v2927 = vpop.f32.mrf.mxu0
    %v2928 = vadd.f32 %v333, %v2927
    %v2929 = vpop.f32.mrf.mxu0
    %v2930 = vadd.f32 %v337, %v2929
    %v2931 = vpop.f32.mrf.mxu0
    %v2932 = vadd.f32 %v333, %v2931
    %v2933 = vpop.f32.mrf.mxu0
    %v2934 = vadd.f32 %v337, %v2933
    %2935 = vmatprep.mubr.bf16.mxu0 0
    %2936 = vmatmul.mubr.bf16.gmra.mxu0 %v1082
    %v2937 = vpop.f32.mrf.mxu0
    %v2938 = vadd.f32 %v333, %v2937
    %v2939 = vpop.f32.mrf.mxu0
    %v2940 = vadd.f32 %v337, %v2939
    %v2941 = vpop.f32.mrf.mxu0
    %v2942 = vadd.f32 %v333, %v2941
    %v2943 = vpop.f32.mrf.mxu0
    %v2944 = vadd.f32 %v337, %v2943
    %2945 = vmatprep.mubr.bf16.mxu0 0
    %2946 = vmatmul.mubr.bf16.gmra.mxu0 %v1085
    %v2947 = vpop.f32.mrf.mxu0
    %v2948 = vadd.f32 %v333, %v2947
    %v2949 = vpop.f32.mrf.mxu0
    %v2950 = vadd.f32 %v337, %v2949
    %v2951 = vpop.f32.mrf.mxu0
    %v2952 = vadd.f32 %v333, %v2951
    %v2953 = vpop.f32.mrf.mxu0
    %v2954 = vadd.f32 %v337, %v2953
    %2955 = vmatprep.mubr.bf16.mxu0 0
    %2956 = vmatmul.mubr.bf16.gmra.mxu0 %v1088
    %v2957 = vpop.f32.mrf.mxu0
    %v2958 = vadd.f32 %v333, %v2957
    %v2959 = vpop.f32.mrf.mxu0
    %v2960 = vadd.f32 %v337, %v2959
    %v2961 = vpop.f32.mrf.mxu0
    %v2962 = vadd.f32 %v333, %v2961
    %v2963 = vpop.f32.mrf.mxu0
    %v2964 = vadd.f32 %v337, %v2963
    %2965 = vmatprep.mubr.bf16.mxu0 0
    %2966 = vmatmul.mubr.bf16.gmra.mxu0 %v1091
    %v2967 = vpop.f32.mrf.mxu0
    %v2968 = vadd.f32 %v333, %v2967
    %v2969 = vpop.f32.mrf.mxu0
    %v2970 = vadd.f32 %v337, %v2969
    %v2971 = vpop.f32.mrf.mxu0
    %v2972 = vadd.f32 %v333, %v2971
    %v2973 = vpop.f32.mrf.mxu0
    %v2974 = vadd.f32 %v337, %v2973
    %2975 = vmatprep.mubr.bf16.mxu0 0
    %2976 = vmatmul.mubr.bf16.gmra.mxu0 %v1094
    %v2977 = vpop.f32.mrf.mxu0
    %v2978 = vadd.f32 %v333, %v2977
    %v2979 = vpop.f32.mrf.mxu0
    %v2980 = vadd.f32 %v337, %v2979
    %v2981 = vpop.f32.mrf.mxu0
    %v2982 = vadd.f32 %v333, %v2981
    %v2983 = vpop.f32.mrf.mxu0
    %v2984 = vadd.f32 %v337, %v2983
    %2985 = vmatprep.mubr.bf16.mxu0 0
    %2986 = vmatmul.mubr.bf16.gmra.mxu0 %v1097
    %v2987 = vpop.f32.mrf.mxu0
    %v2988 = vadd.f32 %v333, %v2987
    %v2989 = vpop.f32.mrf.mxu0
    %v2990 = vadd.f32 %v337, %v2989
    %v2991 = vpop.f32.mrf.mxu0
    %v2992 = vadd.f32 %v333, %v2991
    %v2993 = vpop.f32.mrf.mxu0
    %v2994 = vadd.f32 %v337, %v2993
    %2995 = vmatprep.mubr.bf16.mxu0 0
    %2996 = vmatmul.mubr.bf16.gmra.mxu0 %v1100
    %v2997 = vpop.f32.mrf.mxu0
    %v2998 = vadd.f32 %v333, %v2997
    %v2999 = vpop.f32.mrf.mxu0
    %v3000 = vadd.f32 %v337, %v2999
    %v3001 = vpop.f32.mrf.mxu0
    %v3002 = vadd.f32 %v333, %v3001
    %v3003 = vpop.f32.mrf.mxu0
    %v3004 = vadd.f32 %v337, %v3003
    %3005 = vmatprep.mubr.bf16.mxu0 0
    %3006 = vmatmul.mubr.bf16.gmra.mxu0 %v1103
    %v3007 = vpop.f32.mrf.mxu0
    %v3008 = vadd.f32 %v333, %v3007
    %v3009 = vpop.f32.mrf.mxu0
    %v3010 = vadd.f32 %v337, %v3009
    %v3011 = vpop.f32.mrf.mxu0
    %v3012 = vadd.f32 %v333, %v3011
    %v3013 = vpop.f32.mrf.mxu0
    %v3014 = vadd.f32 %v337, %v3013
    %3015 = vmatprep.mubr.bf16.mxu0 0
    %3016 = vmatmul.mubr.bf16.gmra.mxu0 %v1106
    %v3017 = vpop.f32.mrf.mxu0
    %v3018 = vadd.f32 %v333, %v3017
    %v3019 = vpop.f32.mrf.mxu0
    %v3020 = vadd.f32 %v337, %v3019
    %v3021 = vpop.f32.mrf.mxu0
    %v3022 = vadd.f32 %v333, %v3021
    %v3023 = vpop.f32.mrf.mxu0
    %v3024 = vadd.f32 %v337, %v3023
    %3025 = vmatprep.mubr.bf16.mxu0 0
    %3026 = vmatmul.mubr.bf16.gmra.mxu0 %v1109
    %v3027 = vpop.f32.mrf.mxu0
    %v3028 = vadd.f32 %v333, %v3027
    %v3029 = vpop.f32.mrf.mxu0
    %v3030 = vadd.f32 %v337, %v3029
    %v3031 = vpop.f32.mrf.mxu0
    %v3032 = vadd.f32 %v333, %v3031
    %v3033 = vpop.f32.mrf.mxu0
    %v3034 = vadd.f32 %v337, %v3033
    %3035 = vmatprep.mubr.bf16.mxu0 0
    %3036 = vmatmul.mubr.bf16.gmra.mxu0 %v1112
    %v3037 = vpop.f32.mrf.mxu0
    %v3038 = vadd.f32 %v333, %v3037
    %v3039 = vpop.f32.mrf.mxu0
    %v3040 = vadd.f32 %v337, %v3039
    %v3041 = vpop.f32.mrf.mxu0
    %v3042 = vadd.f32 %v333, %v3041
    %v3043 = vpop.f32.mrf.mxu0
    %v3044 = vadd.f32 %v337, %v3043
    %3045 = vmatprep.mubr.bf16.mxu0 0
    %3046 = vmatmul.mubr.bf16.gmra.mxu0 %v1115
    %v3047 = vpop.f32.mrf.mxu0
    %v3048 = vadd.f32 %v333, %v3047
    %v3049 = vpop.f32.mrf.mxu0
    %v3050 = vadd.f32 %v337, %v3049
    %v3051 = vpop.f32.mrf.mxu0
    %v3052 = vadd.f32 %v333, %v3051
    %v3053 = vpop.f32.mrf.mxu0
    %v3054 = vadd.f32 %v337, %v3053
    %3055 = vmatprep.mubr.bf16.mxu0 0
    %3056 = vmatmul.mubr.bf16.gmra.mxu0 %v1118
    %v3057 = vpop.f32.mrf.mxu0
    %v3058 = vadd.f32 %v333, %v3057
    %v3059 = vpop.f32.mrf.mxu0
    %v3060 = vadd.f32 %v337, %v3059
    %v3061 = vpop.f32.mrf.mxu0
    %v3062 = vadd.f32 %v333, %v3061
    %v3063 = vpop.f32.mrf.mxu0
    %v3064 = vadd.f32 %v337, %v3063
    %3065 = vmatprep.mubr.bf16.mxu0 0
    %3066 = vmatmul.mubr.bf16.gmra.mxu0 %v1121
    %v3067 = vpop.f32.mrf.mxu0
    %v3068 = vadd.f32 %v333, %v3067
    %v3069 = vpop.f32.mrf.mxu0
    %v3070 = vadd.f32 %v337, %v3069
    %v3071 = vpop.f32.mrf.mxu0
    %v3072 = vadd.f32 %v333, %v3071
    %v3073 = vpop.f32.mrf.mxu0
    %v3074 = vadd.f32 %v337, %v3073
    %3075 = vmatprep.mubr.bf16.mxu0 0
    %3076 = vmatmul.mubr.bf16.gmra.mxu0 %v1124
    %v3077 = vpop.f32.mrf.mxu0
    %v3078 = vadd.f32 %v333, %v3077
    %v3079 = vpop.f32.mrf.mxu0
    %v3080 = vadd.f32 %v337, %v3079
    %v3081 = vpop.f32.mrf.mxu0
    %v3082 = vadd.f32 %v333, %v3081
    %v3083 = vpop.f32.mrf.mxu0
    %v3084 = vadd.f32 %v337, %v3083
    %3085 = vmatprep.mubr.bf16.mxu0 0
    %3086 = vmatmul.mubr.bf16.gmra.mxu0 %v1127
    %v3087 = vpop.f32.mrf.mxu0
    %v3088 = vadd.f32 %v333, %v3087
    %v3089 = vpop.f32.mrf.mxu0
    %v3090 = vadd.f32 %v337, %v3089
    %v3091 = vpop.f32.mrf.mxu0
    %v3092 = vadd.f32 %v333, %v3091
    %v3093 = vpop.f32.mrf.mxu0
    %v3094 = vadd.f32 %v337, %v3093
    %3095 = vmatprep.mubr.bf16.mxu0 0
    %3096 = vmatmul.mubr.bf16.gmra.mxu0 %v1130
    %v3097 = vpop.f32.mrf.mxu0
    %v3098 = vadd.f32 %v333, %v3097
    %v3099 = vpop.f32.mrf.mxu0
    %v3100 = vadd.f32 %v337, %v3099
    %v3101 = vpop.f32.mrf.mxu0
    %v3102 = vadd.f32 %v333, %v3101
    %v3103 = vpop.f32.mrf.mxu0
    %v3104 = vadd.f32 %v337, %v3103
    %3105 = vmatprep.mubr.bf16.mxu0 0
    %3106 = vmatmul.mubr.bf16.gmra.mxu0 %v1133
    %v3107 = vpop.f32.mrf.mxu0
    %v3108 = vadd.f32 %v333, %v3107
    %v3109 = vpop.f32.mrf.mxu0
    %v3110 = vadd.f32 %v337, %v3109
    %v3111 = vpop.f32.mrf.mxu0
    %v3112 = vadd.f32 %v333, %v3111
    %v3113 = vpop.f32.mrf.mxu0
    %v3114 = vadd.f32 %v337, %v3113
    %3115 = vmatprep.mubr.bf16.mxu0 0
    %3116 = vmatmul.mubr.bf16.gmra.mxu0 %v1136
    %v3117 = vpop.f32.mrf.mxu0
    %v3118 = vadd.f32 %v333, %v3117
    %v3119 = vpop.f32.mrf.mxu0
    %v3120 = vadd.f32 %v337, %v3119
    %v3121 = vpop.f32.mrf.mxu0
    %v3122 = vadd.f32 %v333, %v3121
    %v3123 = vpop.f32.mrf.mxu0
    %v3124 = vadd.f32 %v337, %v3123
    %3125 = vmatprep.mubr.bf16.mxu0 0
    %3126 = vmatmul.mubr.bf16.gmra.mxu0 %v1139
    %v3127 = vpop.f32.mrf.mxu0
    %v3128 = vadd.f32 %v333, %v3127
    %v3129 = vpop.f32.mrf.mxu0
    %v3130 = vadd.f32 %v337, %v3129
    %v3131 = vpop.f32.mrf.mxu0
    %v3132 = vadd.f32 %v333, %v3131
    %v3133 = vpop.f32.mrf.mxu0
    %v3134 = vadd.f32 %v337, %v3133
    %3135 = vmatprep.mubr.bf16.mxu0 0
    %3136 = vmatmul.mubr.bf16.gmra.mxu0 %v1142
    %v3137 = vpop.f32.mrf.mxu0
    %v3138 = vadd.f32 %v333, %v3137
    %v3139 = vpop.f32.mrf.mxu0
    %v3140 = vadd.f32 %v337, %v3139
    %v3141 = vpop.f32.mrf.mxu0
    %v3142 = vadd.f32 %v333, %v3141
    %v3143 = vpop.f32.mrf.mxu0
    %v3144 = vadd.f32 %v337, %v3143
    %3145 = vmatprep.mubr.bf16.mxu0 0
    %3146 = vmatmul.mubr.bf16.gmra.mxu0 %v1145
    %v3147 = vpop.f32.mrf.mxu0
    %v3148 = vadd.f32 %v333, %v3147
    %v3149 = vpop.f32.mrf.mxu0
    %v3150 = vadd.f32 %v337, %v3149
    %v3151 = vpop.f32.mrf.mxu0
    %v3152 = vadd.f32 %v333, %v3151
    %v3153 = vpop.f32.mrf.mxu0
    %v3154 = vadd.f32 %v337, %v3153
    %3155 = vmatprep.mubr.bf16.mxu0 0
    %3156 = vmatmul.mubr.bf16.gmra.mxu0 %v1148
    %v3157 = vpop.f32.mrf.mxu0
    %v3158 = vadd.f32 %v333, %v3157
    %v3159 = vpop.f32.mrf.mxu0
    %v3160 = vadd.f32 %v337, %v3159
    %v3161 = vpop.f32.mrf.mxu0
    %v3162 = vadd.f32 %v333, %v3161
    %v3163 = vpop.f32.mrf.mxu0
    %v3164 = vadd.f32 %v337, %v3163
    %3165 = vmatprep.mubr.bf16.mxu0 0
    %3166 = vmatmul.mubr.bf16.gmra.mxu0 %v1151
    %v3167 = vpop.f32.mrf.mxu0
    %v3168 = vadd.f32 %v333, %v3167
    %v3169 = vpop.f32.mrf.mxu0
    %v3170 = vadd.f32 %v337, %v3169
    %v3171 = vpop.f32.mrf.mxu0
    %v3172 = vadd.f32 %v333, %v3171
    %v3173 = vpop.f32.mrf.mxu0
    %v3174 = vadd.f32 %v337, %v3173
    %3175 = vmatprep.mubr.bf16.mxu0 0
    %3176 = vmatmul.mubr.bf16.gmra.mxu0 %v1154
    %v3177 = vpop.f32.mrf.mxu0
    %v3178 = vadd.f32 %v333, %v3177
    %v3179 = vpop.f32.mrf.mxu0
    %v3180 = vadd.f32 %v337, %v3179
    %v3181 = vpop.f32.mrf.mxu0
    %v3182 = vadd.f32 %v333, %v3181
    %v3183 = vpop.f32.mrf.mxu0
    %v3184 = vadd.f32 %v337, %v3183
    %3185 = vmatprep.mubr.bf16.mxu0 0
    %3186 = vmatmul.mubr.bf16.gmra.mxu0 %v1157
    %v3187 = vpop.f32.mrf.mxu0
    %v3188 = vadd.f32 %v333, %v3187
    %v3189 = vpop.f32.mrf.mxu0
    %v3190 = vadd.f32 %v337, %v3189
    %v3191 = vpop.f32.mrf.mxu0
    %v3192 = vadd.f32 %v333, %v3191
    %v3193 = vpop.f32.mrf.mxu0
    %v3194 = vadd.f32 %v337, %v3193
    %3195 = vmatprep.mubr.bf16.mxu0 0
    %3196 = vmatmul.mubr.bf16.gmra.mxu0 %v1160
    %v3197 = vpop.f32.mrf.mxu0
    %v3198 = vadd.f32 %v333, %v3197
    %v3199 = vpop.f32.mrf.mxu0
    %v3200 = vadd.f32 %v337, %v3199
    %v3201 = vpop.f32.mrf.mxu0
    %v3202 = vadd.f32 %v333, %v3201
    %v3203 = vpop.f32.mrf.mxu0
    %v3204 = vadd.f32 %v337, %v3203
    %3205 = vmatprep.mubr.bf16.mxu0 0
    %3206 = vmatmul.mubr.bf16.gmra.mxu0 %v1163
    %v3207 = vpop.f32.mrf.mxu0
    %v3208 = vadd.f32 %v333, %v3207
    %v3209 = vpop.f32.mrf.mxu0
    %v3210 = vadd.f32 %v337, %v3209
    %v3211 = vpop.f32.mrf.mxu0
    %v3212 = vadd.f32 %v333, %v3211
    %v3213 = vpop.f32.mrf.mxu0
    %v3214 = vadd.f32 %v337, %v3213
    %3215 = vmatprep.mubr.bf16.mxu0 0
    %3216 = vmatmul.mubr.bf16.gmra.mxu0 %v1166
    %v3217 = vpop.f32.mrf.mxu0
    %v3218 = vadd.f32 %v333, %v3217
    %v3219 = vpop.f32.mrf.mxu0
    %v3220 = vadd.f32 %v337, %v3219
    %v3221 = vpop.f32.mrf.mxu0
    %v3222 = vadd.f32 %v333, %v3221
    %v3223 = vpop.f32.mrf.mxu0
    %v3224 = vadd.f32 %v337, %v3223
    %3225 = vmatprep.mubr.bf16.mxu0 0
    %3226 = vmatmul.mubr.bf16.gmra.mxu0 %v1169
    %v3227 = vpop.f32.mrf.mxu0
    %v3228 = vadd.f32 %v333, %v3227
    %v3229 = vpop.f32.mrf.mxu0
    %v3230 = vadd.f32 %v337, %v3229
    %v3231 = vpop.f32.mrf.mxu0
    %v3232 = vadd.f32 %v333, %v3231
    %v3233 = vpop.f32.mrf.mxu0
    %v3234 = vadd.f32 %v337, %v3233
    %3235 = vmatprep.mubr.bf16.mxu0 0
    %3236 = vmatmul.mubr.bf16.gmra.mxu0 %v1172
    %v3237 = vpop.f32.mrf.mxu0
    %v3238 = vadd.f32 %v333, %v3237
    %v3239 = vpop.f32.mrf.mxu0
    %v3240 = vadd.f32 %v337, %v3239
    %v3241 = vpop.f32.mrf.mxu0
    %v3242 = vadd.f32 %v333, %v3241
    %v3243 = vpop.f32.mrf.mxu0
    %v3244 = vadd.f32 %v337, %v3243
    %3245 = vmatprep.mubr.bf16.mxu0 0
    %3246 = vmatmul.mubr.bf16.gmra.mxu0 %v1175
    %v3247 = vpop.f32.mrf.mxu0
    %v3248 = vadd.f32 %v333, %v3247
    %v3249 = vpop.f32.mrf.mxu0
    %v3250 = vadd.f32 %v337, %v3249
    %v3251 = vpop.f32.mrf.mxu0
    %v3252 = vadd.f32 %v333, %v3251
    %v3253 = vpop.f32.mrf.mxu0
    %v3254 = vadd.f32 %v337, %v3253
    %3255 = vmatprep.mubr.bf16.mxu0 0
    %3256 = vmatmul.mubr.bf16.gmra.mxu0 %v1178
    %v3257 = vpop.f32.mrf.mxu0
    %v3258 = vadd.f32 %v333, %v3257
    %v3259 = vpop.f32.mrf.mxu0
    %v3260 = vadd.f32 %v337, %v3259
    %v3261 = vpop.f32.mrf.mxu0
    %v3262 = vadd.f32 %v333, %v3261
    %v3263 = vpop.f32.mrf.mxu0
    %v3264 = vadd.f32 %v337, %v3263
    %3265 = vmatprep.mubr.bf16.mxu0 0
    %3266 = vmatmul.mubr.bf16.gmra.mxu0 %v1181
    %v3267 = vpop.f32.mrf.mxu0
    %v3268 = vadd.f32 %v333, %v3267
    %v3269 = vpop.f32.mrf.mxu0
    %v3270 = vadd.f32 %v337, %v3269
    %v3271 = vpop.f32.mrf.mxu0
    %v3272 = vadd.f32 %v333, %v3271
    %v3273 = vpop.f32.mrf.mxu0
    %v3274 = vadd.f32 %v337, %v3273
    %3275 = vmatprep.mubr.bf16.mxu0 0
    %3276 = vmatmul.mubr.bf16.gmra.mxu0 %v1184
    %v3277 = vpop.f32.mrf.mxu0
    %v3278 = vadd.f32 %v333, %v3277
    %v3279 = vpop.f32.mrf.mxu0
    %v3280 = vadd.f32 %v337, %v3279
    %v3281 = vpop.f32.mrf.mxu0
    %v3282 = vadd.f32 %v333, %v3281
    %v3283 = vpop.f32.mrf.mxu0
    %v3284 = vadd.f32 %v337, %v3283
    %3285 = vmatprep.mubr.bf16.mxu0 0
    %3286 = vmatmul.mubr.bf16.gmra.mxu0 %v1187
    %v3287 = vpop.f32.mrf.mxu0
    %v3288 = vadd.f32 %v333, %v3287
    %v3289 = vpop.f32.mrf.mxu0
    %v3290 = vadd.f32 %v337, %v3289
    %v3291 = vpop.f32.mrf.mxu0
    %v3292 = vadd.f32 %v333, %v3291
    %v3293 = vpop.f32.mrf.mxu0
    %v3294 = vadd.f32 %v337, %v3293
    %3295 = vmatprep.mubr.bf16.mxu0 0
    %3296 = vmatmul.mubr.bf16.gmra.mxu0 %v1190
    %v3297 = vpop.f32.mrf.mxu0
    %v3298 = vadd.f32 %v333, %v3297
    %v3299 = vpop.f32.mrf.mxu0
    %v3300 = vadd.f32 %v337, %v3299
    %v3301 = vpop.f32.mrf.mxu0
    %v3302 = vadd.f32 %v333, %v3301
    %v3303 = vpop.f32.mrf.mxu0
    %v3304 = vadd.f32 %v337, %v3303
    %3305 = vmatprep.mubr.bf16.mxu0 0
    %3306 = vmatmul.mubr.bf16.gmra.mxu0 %v1193
    %v3307 = vpop.f32.mrf.mxu0
    %v3308 = vadd.f32 %v333, %v3307
    %v3309 = vpop.f32.mrf.mxu0
    %v3310 = vadd.f32 %v337, %v3309
    %v3311 = vpop.f32.mrf.mxu0
    %v3312 = vadd.f32 %v333, %v3311
    %v3313 = vpop.f32.mrf.mxu0
    %v3314 = vadd.f32 %v337, %v3313
    %3315 = vmatprep.mubr.bf16.mxu0 0
    %3316 = vmatmul.mubr.bf16.gmra.mxu0 %v1196
    %v3317 = vpop.f32.mrf.mxu0
    %v3318 = vadd.f32 %v333, %v3317
    %v3319 = vpop.f32.mrf.mxu0
    %v3320 = vadd.f32 %v337, %v3319
    %v3321 = vpop.f32.mrf.mxu0
    %v3322 = vadd.f32 %v333, %v3321
    %v3323 = vpop.f32.mrf.mxu0
    %v3324 = vadd.f32 %v337, %v3323
    %3325 = vmatprep.mubr.bf16.mxu0 0
    %3326 = vmatmul.mubr.bf16.gmra.mxu0 %v1199
    %v3327 = vpop.f32.mrf.mxu0
    %v3328 = vadd.f32 %v333, %v3327
    %v3329 = vpop.f32.mrf.mxu0
    %v3330 = vadd.f32 %v337, %v3329
    %v3331 = vpop.f32.mrf.mxu0
    %v3332 = vadd.f32 %v333, %v3331
    %v3333 = vpop.f32.mrf.mxu0
    %v3334 = vadd.f32 %v337, %v3333
    %3335 = vmatprep.mubr.bf16.mxu0 0
    %3336 = vmatmul.mubr.bf16.gmra.mxu0 %v1202
    %v3337 = vpop.f32.mrf.mxu0
    %v3338 = vadd.f32 %v333, %v3337
    %v3339 = vpop.f32.mrf.mxu0
    %v3340 = vadd.f32 %v337, %v3339
    %v3341 = vpop.f32.mrf.mxu0
    %v3342 = vadd.f32 %v333, %v3341
    %v3343 = vpop.f32.mrf.mxu0
    %v3344 = vadd.f32 %v337, %v3343
    %3345 = vmatprep.mubr.bf16.mxu0 0
    %3346 = vmatmul.mubr.bf16.gmra.mxu0 %v1205
    %v3347 = vpop.f32.mrf.mxu0
    %v3348 = vadd.f32 %v333, %v3347
    %v3349 = vpop.f32.mrf.mxu0
    %v3350 = vadd.f32 %v337, %v3349
    %v3351 = vpop.f32.mrf.mxu0
    %v3352 = vadd.f32 %v333, %v3351
    %v3353 = vpop.f32.mrf.mxu0
    %v3354 = vadd.f32 %v337, %v3353
    %3355 = vmatprep.mubr.bf16.mxu0 0
    %3356 = vmatmul.mubr.bf16.gmra.mxu0 %v1208
    %v3357 = vpop.f32.mrf.mxu0
    %v3358 = vadd.f32 %v333, %v3357
    %v3359 = vpop.f32.mrf.mxu0
    %v3360 = vadd.f32 %v337, %v3359
    %v3361 = vpop.f32.mrf.mxu0
    %v3362 = vadd.f32 %v333, %v3361
    %v3363 = vpop.f32.mrf.mxu0
    %v3364 = vadd.f32 %v337, %v3363
    %3365 = vmatprep.mubr.bf16.mxu0 0
    %3366 = vmatmul.mubr.bf16.gmra.mxu0 %v1211
    %v3367 = vpop.f32.mrf.mxu0
    %v3368 = vadd.f32 %v333, %v3367
    %v3369 = vpop.f32.mrf.mxu0
    %v3370 = vadd.f32 %v337, %v3369
    %v3371 = vpop.f32.mrf.mxu0
    %v3372 = vadd.f32 %v333, %v3371
    %v3373 = vpop.f32.mrf.mxu0
    %v3374 = vadd.f32 %v337, %v3373
    %3375 = vmatprep.mubr.bf16.mxu0 0
    %3376 = vmatmul.mubr.bf16.gmra.mxu0 %v1214
    %v3377 = vpop.f32.mrf.mxu0
    %v3378 = vadd.f32 %v333, %v3377
    %v3379 = vpop.f32.mrf.mxu0
    %v3380 = vadd.f32 %v337, %v3379
    %v3381 = vpop.f32.mrf.mxu0
    %v3382 = vadd.f32 %v333, %v3381
    %v3383 = vpop.f32.mrf.mxu0
    %v3384 = vadd.f32 %v337, %v3383
    %3385 = vmatprep.mubr.bf16.mxu0 0
    %3386 = vmatmul.mubr.bf16.gmra.mxu0 %v1217
    %v3387 = vpop.f32.mrf.mxu0
    %v3388 = vadd.f32 %v333, %v3387
    %v3389 = vpop.f32.mrf.mxu0
    %v3390 = vadd.f32 %v337, %v3389
    %v3391 = vpop.f32.mrf.mxu0
    %v3392 = vadd.f32 %v333, %v3391
    %v3393 = vpop.f32.mrf.mxu0
    %v3394 = vadd.f32 %v337, %v3393
    %3395 = vmatprep.mubr.bf16.mxu0 0
    %3396 = vmatmul.mubr.bf16.gmra.mxu0 %v1220
    %v3397 = vpop.f32.mrf.mxu0
    %v3398 = vadd.f32 %v333, %v3397
    %v3399 = vpop.f32.mrf.mxu0
    %v3400 = vadd.f32 %v337, %v3399
    %v3401 = vpop.f32.mrf.mxu0
    %v3402 = vadd.f32 %v333, %v3401
    %v3403 = vpop.f32.mrf.mxu0
    %v3404 = vadd.f32 %v337, %v3403
    %3405 = vmatprep.mubr.bf16.mxu0 0
    %3406 = vmatmul.mubr.bf16.gmra.mxu0 %v1223
    %v3407 = vpop.f32.mrf.mxu0
    %v3408 = vadd.f32 %v333, %v3407
    %v3409 = vpop.f32.mrf.mxu0
    %v3410 = vadd.f32 %v337, %v3409
    %v3411 = vpop.f32.mrf.mxu0
    %v3412 = vadd.f32 %v333, %v3411
    %v3413 = vpop.f32.mrf.mxu0
    %v3414 = vadd.f32 %v337, %v3413
    %3415 = vmatprep.mubr.bf16.mxu0 0
    %3416 = vmatmul.mubr.bf16.gmra.mxu0 %v1226
    %v3417 = vpop.f32.mrf.mxu0
    %v3418 = vadd.f32 %v333, %v3417
    %v3419 = vpop.f32.mrf.mxu0
    %v3420 = vadd.f32 %v337, %v3419
    %v3421 = vpop.f32.mrf.mxu0
    %v3422 = vadd.f32 %v333, %v3421
    %v3423 = vpop.f32.mrf.mxu0
    %v3424 = vadd.f32 %v337, %v3423
    %3425 = vmatprep.mubr.bf16.mxu0 0
    %3426 = vmatmul.mubr.bf16.gmra.mxu0 %v1229
    %v3427 = vpop.f32.mrf.mxu0
    %v3428 = vadd.f32 %v333, %v3427
    %v3429 = vpop.f32.mrf.mxu0
    %v3430 = vadd.f32 %v337, %v3429
    %v3431 = vpop.f32.mrf.mxu0
    %v3432 = vadd.f32 %v333, %v3431
    %v3433 = vpop.f32.mrf.mxu0
    %v3434 = vadd.f32 %v337, %v3433
    %3435 = vmatprep.mubr.bf16.mxu0 0
    %3436 = vmatmul.mubr.bf16.gmra.mxu0 %v1232
    %v3437 = vpop.f32.mrf.mxu0
    %v3438 = vadd.f32 %v333, %v3437
    %v3439 = vpop.f32.mrf.mxu0
    %v3440 = vadd.f32 %v337, %v3439
    %v3441 = vpop.f32.mrf.mxu0
    %v3442 = vadd.f32 %v333, %v3441
    %v3443 = vpop.f32.mrf.mxu0
    %v3444 = vadd.f32 %v337, %v3443
    %3445 = vmatprep.mubr.bf16.mxu0 0
    %3446 = vmatmul.mubr.bf16.gmra.mxu0 %v1235
    %v3447 = vpop.f32.mrf.mxu0
    %v3448 = vadd.f32 %v333, %v3447
    %v3449 = vpop.f32.mrf.mxu0
    %v3450 = vadd.f32 %v337, %v3449
    %v3451 = vpop.f32.mrf.mxu0
    %v3452 = vadd.f32 %v333, %v3451
    %v3453 = vpop.f32.mrf.mxu0
    %v3454 = vadd.f32 %v337, %v3453
    %3455 = vmatprep.mubr.bf16.mxu0 0
    %3456 = vmatmul.mubr.bf16.gmra.mxu0 %v1238
    %v3457 = vpop.f32.mrf.mxu0
    %v3458 = vadd.f32 %v333, %v3457
    %v3459 = vpop.f32.mrf.mxu0
    %v3460 = vadd.f32 %v337, %v3459
    %v3461 = vpop.f32.mrf.mxu0
    %v3462 = vadd.f32 %v333, %v3461
    %v3463 = vpop.f32.mrf.mxu0
    %v3464 = vadd.f32 %v337, %v3463
    %3465 = vmatprep.mubr.bf16.mxu0 0
    %3466 = vmatmul.mubr.bf16.gmra.mxu0 %v1241
    %v3467 = vpop.f32.mrf.mxu0
    %v3468 = vadd.f32 %v333, %v3467
    %v3469 = vpop.f32.mrf.mxu0
    %v3470 = vadd.f32 %v337, %v3469
    %v3471 = vpop.f32.mrf.mxu0
    %v3472 = vadd.f32 %v333, %v3471
    %v3473 = vpop.f32.mrf.mxu0
    %v3474 = vadd.f32 %v337, %v3473
    %3475 = vmatprep.mubr.bf16.mxu0 0
    %3476 = vmatmul.mubr.bf16.gmra.mxu0 %v1244
    %v3477 = vpop.f32.mrf.mxu0
    %v3478 = vadd.f32 %v333, %v3477
    %v3479 = vpop.f32.mrf.mxu0
    %v3480 = vadd.f32 %v337, %v3479
    %v3481 = vpop.f32.mrf.mxu0
    %v3482 = vadd.f32 %v333, %v3481
    %v3483 = vpop.f32.mrf.mxu0
    %v3484 = vadd.f32 %v337, %v3483
    %3485 = vmatprep.mubr.bf16.mxu0 0
    %3486 = vmatmul.mubr.bf16.gmra.mxu0 %v1247
    %v3487 = vpop.f32.mrf.mxu0
    %v3488 = vadd.f32 %v333, %v3487
    %v3489 = vpop.f32.mrf.mxu0
    %v3490 = vadd.f32 %v337, %v3489
    %v3491 = vpop.f32.mrf.mxu0
    %v3492 = vadd.f32 %v333, %v3491
    %v3493 = vpop.f32.mrf.mxu0
    %v3494 = vadd.f32 %v337, %v3493
    %3495 = vmatprep.mubr.bf16.mxu0 0
    %3496 = vmatmul.mubr.bf16.gmra.mxu0 %v1250
    %v3497 = vpop.f32.mrf.mxu0
    %v3498 = vadd.f32 %v333, %v3497
    %v3499 = vpop.f32.mrf.mxu0
    %v3500 = vadd.f32 %v337, %v3499
    %v3501 = vpop.f32.mrf.mxu0
    %v3502 = vadd.f32 %v333, %v3501
    %v3503 = vpop.f32.mrf.mxu0
    %v3504 = vadd.f32 %v337, %v3503
    %3505 = vmatprep.mubr.bf16.mxu0 0
    %3506 = vmatmul.mubr.bf16.gmra.mxu0 %v1253
    %v3507 = vpop.f32.mrf.mxu0
    %v3508 = vadd.f32 %v333, %v3507
    %v3509 = vpop.f32.mrf.mxu0
    %v3510 = vadd.f32 %v337, %v3509
    %v3511 = vpop.f32.mrf.mxu0
    %v3512 = vadd.f32 %v333, %v3511
    %v3513 = vpop.f32.mrf.mxu0
    %v3514 = vadd.f32 %v337, %v3513
    %3515 = vmatprep.mubr.bf16.mxu0 0
    %3516 = vmatmul.mubr.bf16.gmra.mxu0 %v1256
    %v3517 = vpop.f32.mrf.mxu0
    %v3518 = vadd.f32 %v333, %v3517
    %v3519 = vpop.f32.mrf.mxu0
    %v3520 = vadd.f32 %v337, %v3519
    %v3521 = vpop.f32.mrf.mxu0
    %v3522 = vadd.f32 %v333, %v3521
    %v3523 = vpop.f32.mrf.mxu0
    %v3524 = vadd.f32 %v337, %v3523
    %3525 = vmatprep.mubr.bf16.mxu0 0
    %3526 = vmatmul.mubr.bf16.gmra.mxu0 %v1259
    %v3527 = vpop.f32.mrf.mxu0
    %v3528 = vadd.f32 %v333, %v3527
    %v3529 = vpop.f32.mrf.mxu0
    %v3530 = vadd.f32 %v337, %v3529
    %v3531 = vpop.f32.mrf.mxu0
    %v3532 = vadd.f32 %v333, %v3531
    %v3533 = vpop.f32.mrf.mxu0
    %v3534 = vadd.f32 %v337, %v3533
    %3535 = vmatprep.mubr.bf16.mxu0 0
    %3536 = vmatmul.mubr.bf16.gmra.mxu0 %v1262
    %v3537 = vpop.f32.mrf.mxu0
    %v3538 = vadd.f32 %v333, %v3537
    %v3539 = vpop.f32.mrf.mxu0
    %v3540 = vadd.f32 %v337, %v3539
    %v3541 = vpop.f32.mrf.mxu0
    %v3542 = vadd.f32 %v333, %v3541
    %v3543 = vpop.f32.mrf.mxu0
    %v3544 = vadd.f32 %v337, %v3543
    %3545 = vmatprep.mubr.bf16.mxu0 0
    %3546 = vmatmul.mubr.bf16.gmra.mxu0 %v1265
    %v3547 = vpop.f32.mrf.mxu0
    %v3548 = vadd.f32 %v333, %v3547
    %v3549 = vpop.f32.mrf.mxu0
    %v3550 = vadd.f32 %v337, %v3549
    %v3551 = vpop.f32.mrf.mxu0
    %v3552 = vadd.f32 %v333, %v3551
    %v3553 = vpop.f32.mrf.mxu0
    %v3554 = vadd.f32 %v337, %v3553
    %3555 = vmatprep.mubr.bf16.mxu0 0
    %3556 = vmatmul.mubr.bf16.gmra.mxu0 %v1268
    %v3557 = vpop.f32.mrf.mxu0
    %v3558 = vadd.f32 %v333, %v3557
    %v3559 = vpop.f32.mrf.mxu0
    %v3560 = vadd.f32 %v337, %v3559
    %v3561 = vpop.f32.mrf.mxu0
    %v3562 = vadd.f32 %v333, %v3561
    %v3563 = vpop.f32.mrf.mxu0
    %v3564 = vadd.f32 %v337, %v3563
    %3565 = vmatprep.mubr.bf16.mxu0 0
    %3566 = vmatmul.mubr.bf16.gmra.mxu0 %v1271
    %v3567 = vpop.f32.mrf.mxu0
    %v3568 = vadd.f32 %v333, %v3567
    %v3569 = vpop.f32.mrf.mxu0
    %v3570 = vadd.f32 %v337, %v3569
    %v3571 = vpop.f32.mrf.mxu0
    %v3572 = vadd.f32 %v333, %v3571
    %v3573 = vpop.f32.mrf.mxu0
    %v3574 = vadd.f32 %v337, %v3573
    %3575 = vmatprep.mubr.bf16.mxu0 0
    %3576 = vmatmul.mubr.bf16.gmra.mxu0 %v1274
    %v3577 = vpop.f32.mrf.mxu0
    %v3578 = vadd.f32 %v333, %v3577
    %v3579 = vpop.f32.mrf.mxu0
    %v3580 = vadd.f32 %v337, %v3579
    %v3581 = vpop.f32.mrf.mxu0
    %v3582 = vadd.f32 %v333, %v3581
    %v3583 = vpop.f32.mrf.mxu0
    %v3584 = vadd.f32 %v337, %v3583
    %3585 = vmatprep.mubr.bf16.mxu0 0
    %3586 = vmatmul.mubr.bf16.gmra.mxu0 %v1277
    %v3587 = vpop.f32.mrf.mxu0
    %v3588 = vadd.f32 %v333, %v3587
    %v3589 = vpop.f32.mrf.mxu0
    %v3590 = vadd.f32 %v337, %v3589
    %v3591 = vpop.f32.mrf.mxu0
    %v3592 = vadd.f32 %v333, %v3591
    %v3593 = vpop.f32.mrf.mxu0
    %v3594 = vadd.f32 %v337, %v3593
    %3595 = vmatprep.mubr.bf16.mxu0 0
    %3596 = vmatmul.mubr.bf16.gmra.mxu0 %v1280
    %v3597 = vpop.f32.mrf.mxu0
    %v3598 = vadd.f32 %v333, %v3597
    %v3599 = vpop.f32.mrf.mxu0
    %v3600 = vadd.f32 %v337, %v3599
    %v3601 = vpop.f32.mrf.mxu0
    %v3602 = vadd.f32 %v333, %v3601
    %v3603 = vpop.f32.mrf.mxu0
    %v3604 = vadd.f32 %v337, %v3603
    %3605 = vmatprep.mubr.bf16.mxu0 0
    %3606 = vmatmul.mubr.bf16.gmra.mxu0 %v1283
    %v3607 = vpop.f32.mrf.mxu0
    %v3608 = vadd.f32 %v333, %v3607
    %v3609 = vpop.f32.mrf.mxu0
    %v3610 = vadd.f32 %v337, %v3609
    %v3611 = vpop.f32.mrf.mxu0
    %v3612 = vadd.f32 %v333, %v3611
    %v3613 = vpop.f32.mrf.mxu0
    %v3614 = vadd.f32 %v337, %v3613
    %3615 = vmatprep.mubr.bf16.mxu0 0
    %3616 = vmatmul.mubr.bf16.gmra.mxu0 %v1286
    %v3617 = vpop.f32.mrf.mxu0
    %v3618 = vadd.f32 %v333, %v3617
    %v3619 = vpop.f32.mrf.mxu0
    %v3620 = vadd.f32 %v337, %v3619
    %v3621 = vpop.f32.mrf.mxu0
    %v3622 = vadd.f32 %v333, %v3621
    %v3623 = vpop.f32.mrf.mxu0
    %v3624 = vadd.f32 %v337, %v3623
    %3625 = vmatprep.mubr.bf16.mxu0 0
    %3626 = vmatmul.mubr.bf16.gmra.mxu0 %v1289
    %v3627 = vpop.f32.mrf.mxu0
    %v3628 = vadd.f32 %v333, %v3627
    %v3629 = vpop.f32.mrf.mxu0
    %v3630 = vadd.f32 %v337, %v3629
    %v3631 = vpop.f32.mrf.mxu0
    %v3632 = vadd.f32 %v333, %v3631
    %v3633 = vpop.f32.mrf.mxu0
    %v3634 = vadd.f32 %v337, %v3633
    %3635 = vmatprep.mubr.bf16.mxu0 0
    %3636 = vmatmul.mubr.bf16.gmra.mxu0 %v1292
    %v3637 = vpop.f32.mrf.mxu0
    %v3638 = vadd.f32 %v333, %v3637
    %v3639 = vpop.f32.mrf.mxu0
    %v3640 = vadd.f32 %v337, %v3639
    %v3641 = vpop.f32.mrf.mxu0
    %v3642 = vadd.f32 %v333, %v3641
    %v3643 = vpop.f32.mrf.mxu0
    %v3644 = vadd.f32 %v337, %v3643
    %3645 = vmatprep.mubr.bf16.mxu0 0
    %3646 = vmatmul.mubr.bf16.gmra.mxu0 %v1295
    %v3647 = vpop.f32.mrf.mxu0
    %v3648 = vadd.f32 %v333, %v3647
    %v3649 = vpop.f32.mrf.mxu0
    %v3650 = vadd.f32 %v337, %v3649
    %v3651 = vpop.f32.mrf.mxu0
    %v3652 = vadd.f32 %v333, %v3651
    %v3653 = vpop.f32.mrf.mxu0
    %v3654 = vadd.f32 %v337, %v3653
    %3655 = vmatprep.mubr.bf16.mxu0 0
    %3656 = vmatmul.mubr.bf16.gmra.mxu0 %v1298
    %v3657 = vpop.f32.mrf.mxu0
    %v3658 = vadd.f32 %v333, %v3657
    %v3659 = vpop.f32.mrf.mxu0
    %v3660 = vadd.f32 %v337, %v3659
    %v3661 = vpop.f32.mrf.mxu0
    %v3662 = vadd.f32 %v333, %v3661
    %v3663 = vpop.f32.mrf.mxu0
    %v3664 = vadd.f32 %v337, %v3663
    %3665 = vmatprep.mubr.bf16.mxu0 0
    %3666 = vmatmul.mubr.bf16.gmra.mxu0 %v1301
    %v3667 = vpop.f32.mrf.mxu0
    %v3668 = vadd.f32 %v333, %v3667
    %v3669 = vpop.f32.mrf.mxu0
    %v3670 = vadd.f32 %v337, %v3669
    %v3671 = vpop.f32.mrf.mxu0
    %v3672 = vadd.f32 %v333, %v3671
    %v3673 = vpop.f32.mrf.mxu0
    %v3674 = vadd.f32 %v337, %v3673
    %3675 = vmatprep.mubr.bf16.mxu0 0
    %3676 = vmatmul.mubr.bf16.gmra.mxu0 %v1304
    %v3677 = vpop.f32.mrf.mxu0
    %v3678 = vadd.f32 %v333, %v3677
    %v3679 = vpop.f32.mrf.mxu0
    %v3680 = vadd.f32 %v337, %v3679
    %v3681 = vpop.f32.mrf.mxu0
    %v3682 = vadd.f32 %v333, %v3681
    %v3683 = vpop.f32.mrf.mxu0
    %v3684 = vadd.f32 %v337, %v3683
    %3685 = vmatprep.mubr.bf16.mxu0 0
    %3686 = vmatmul.mubr.bf16.gmra.mxu0 %v1307
    %v3687 = vpop.f32.mrf.mxu0
    %v3688 = vadd.f32 %v333, %v3687
    %v3689 = vpop.f32.mrf.mxu0
    %v3690 = vadd.f32 %v337, %v3689
    %v3691 = vpop.f32.mrf.mxu0
    %v3692 = vadd.f32 %v333, %v3691
    %v3693 = vpop.f32.mrf.mxu0
    %v3694 = vadd.f32 %v337, %v3693
    %3695 = vmatprep.mubr.bf16.mxu0 0
    %3696 = vmatmul.mubr.bf16.gmra.mxu0 %v1310
    %v3697 = vpop.f32.mrf.mxu0
    %v3698 = vadd.f32 %v333, %v3697
    %v3699 = vpop.f32.mrf.mxu0
    %v3700 = vadd.f32 %v337, %v3699
    %v3701 = vpop.f32.mrf.mxu0
    %v3702 = vadd.f32 %v333, %v3701
    %v3703 = vpop.f32.mrf.mxu0
    %v3704 = vadd.f32 %v337, %v3703
    %3705 = vmatprep.mubr.bf16.mxu0 0
    %3706 = vmatmul.mubr.bf16.gmra.mxu0 %v1313
    %v3707 = vpop.f32.mrf.mxu0
    %v3708 = vadd.f32 %v333, %v3707
    %v3709 = vpop.f32.mrf.mxu0
    %v3710 = vadd.f32 %v337, %v3709
    %v3711 = vpop.f32.mrf.mxu0
    %v3712 = vadd.f32 %v333, %v3711
    %v3713 = vpop.f32.mrf.mxu0
    %v3714 = vadd.f32 %v337, %v3713
    %3715 = vmatprep.mubr.bf16.mxu0 0
    %3716 = vmatmul.mubr.bf16.gmra.mxu0 %v1316
    %v3717 = vpop.f32.mrf.mxu0
    %v3718 = vadd.f32 %v333, %v3717
    %v3719 = vpop.f32.mrf.mxu0
    %v3720 = vadd.f32 %v337, %v3719
    %v3721 = vpop.f32.mrf.mxu0
    %v3722 = vadd.f32 %v333, %v3721
    %v3723 = vpop.f32.mrf.mxu0
    %v3724 = vadd.f32 %v337, %v3723
    %3725 = vmatprep.mubr.bf16.mxu0 0
    %3726 = vmatmul.mubr.bf16.gmra.mxu0 %v1319
    %v3727 = vpop.f32.mrf.mxu0
    %v3728 = vadd.f32 %v333, %v3727
    %v3729 = vpop.f32.mrf.mxu0
    %v3730 = vadd.f32 %v337, %v3729
    %v3731 = vpop.f32.mrf.mxu0
    %v3732 = vadd.f32 %v333, %v3731
    %v3733 = vpop.f32.mrf.mxu0
    %v3734 = vadd.f32 %v337, %v3733
    %3735 = vmatprep.mubr.bf16.mxu0 0
    %3736 = vmatmul.mubr.bf16.gmra.mxu0 %v1322
    %v3737 = vpop.f32.mrf.mxu0
    %v3738 = vadd.f32 %v333, %v3737
    %v3739 = vpop.f32.mrf.mxu0
    %v3740 = vadd.f32 %v337, %v3739
    %v3741 = vpop.f32.mrf.mxu0
    %v3742 = vadd.f32 %v333, %v3741
    %v3743 = vpop.f32.mrf.mxu0
    %v3744 = vadd.f32 %v337, %v3743
    %3745 = vmatprep.mubr.bf16.mxu0 0
    %3746 = vmatmul.mubr.bf16.gmra.mxu0 %v1325
    %v3747 = vpop.f32.mrf.mxu0
    %v3748 = vadd.f32 %v333, %v3747
    %v3749 = vpop.f32.mrf.mxu0
    %v3750 = vadd.f32 %v337, %v3749
    %v3751 = vpop.f32.mrf.mxu0
    %v3752 = vadd.f32 %v333, %v3751
    %v3753 = vpop.f32.mrf.mxu0
    %v3754 = vadd.f32 %v337, %v3753
    %3755 = vmatprep.mubr.bf16.mxu0 0
    %3756 = vmatmul.mubr.bf16.gmra.mxu0 %v1328
    %v3757 = vpop.f32.mrf.mxu0
    %v3758 = vadd.f32 %v333, %v3757
    %v3759 = vpop.f32.mrf.mxu0
    %v3760 = vadd.f32 %v337, %v3759
    %v3761 = vpop.f32.mrf.mxu0
    %v3762 = vadd.f32 %v333, %v3761
    %v3763 = vpop.f32.mrf.mxu0
    %v3764 = vadd.f32 %v337, %v3763
    %3765 = vmatprep.mubr.bf16.mxu0 0
    %3766 = vmatmul.mubr.bf16.gmra.mxu0 %v1331
    %v3767 = vpop.f32.mrf.mxu0
    %v3768 = vadd.f32 %v333, %v3767
    %v3769 = vpop.f32.mrf.mxu0
    %v3770 = vadd.f32 %v337, %v3769
    %v3771 = vpop.f32.mrf.mxu0
    %v3772 = vadd.f32 %v333, %v3771
    %v3773 = vpop.f32.mrf.mxu0
    %v3774 = vadd.f32 %v337, %v3773
    %3775 = vmatprep.mubr.bf16.mxu0 0
    %3776 = vmatmul.mubr.bf16.gmra.mxu0 %v1334
    %v3777 = vpop.f32.mrf.mxu0
    %v3778 = vadd.f32 %v333, %v3777
    %v3779 = vpop.f32.mrf.mxu0
    %v3780 = vadd.f32 %v337, %v3779
    %v3781 = vpop.f32.mrf.mxu0
    %v3782 = vadd.f32 %v333, %v3781
    %v3783 = vpop.f32.mrf.mxu0
    %v3784 = vadd.f32 %v337, %v3783
    %3785 = vmatprep.mubr.bf16.mxu0 0
    %3786 = vmatmul.mubr.bf16.gmra.mxu0 %v1337
    %v3787 = vpop.f32.mrf.mxu0
    %v3788 = vadd.f32 %v333, %v3787
    %v3789 = vpop.f32.mrf.mxu0
    %v3790 = vadd.f32 %v337, %v3789
    %v3791 = vpop.f32.mrf.mxu0
    %v3792 = vadd.f32 %v333, %v3791
    %v3793 = vpop.f32.mrf.mxu0
    %v3794 = vadd.f32 %v337, %v3793
    %3795 = vmatprep.mubr.bf16.mxu0 0
    %3796 = vmatmul.mubr.bf16.gmra.mxu0 %v1340
    %v3797 = vpop.f32.mrf.mxu0
    %v3798 = vadd.f32 %v333, %v3797
    %v3799 = vpop.f32.mrf.mxu0
    %v3800 = vadd.f32 %v337, %v3799
    %v3801 = vpop.f32.mrf.mxu0
    %v3802 = vadd.f32 %v333, %v3801
    %v3803 = vpop.f32.mrf.mxu0
    %v3804 = vadd.f32 %v337, %v3803
    %3805 = vmatprep.mubr.bf16.mxu0 0
    %3806 = vmatmul.mubr.bf16.gmra.mxu0 %v1343
    %v3807 = vpop.f32.mrf.mxu0
    %v3808 = vadd.f32 %v333, %v3807
    %v3809 = vpop.f32.mrf.mxu0
    %v3810 = vadd.f32 %v337, %v3809
    %v3811 = vpop.f32.mrf.mxu0
    %v3812 = vadd.f32 %v333, %v3811
    %v3813 = vpop.f32.mrf.mxu0
    %v3814 = vadd.f32 %v337, %v3813
    %3815 = vmatprep.mubr.bf16.mxu0 0
    %3816 = vmatmul.mubr.bf16.gmra.mxu0 %v1346
    %v3817 = vpop.f32.mrf.mxu0
    %v3818 = vadd.f32 %v333, %v3817
    %v3819 = vpop.f32.mrf.mxu0
    %v3820 = vadd.f32 %v337, %v3819
    %v3821 = vpop.f32.mrf.mxu0
    %v3822 = vadd.f32 %v333, %v3821
    %v3823 = vpop.f32.mrf.mxu0
    %v3824 = vadd.f32 %v337, %v3823
    %3825 = vmatprep.mubr.bf16.mxu0 0
    %3826 = vmatmul.mubr.bf16.gmra.mxu0 %v1349
    %v3827 = vpop.f32.mrf.mxu0
    %v3828 = vadd.f32 %v333, %v3827
    %v3829 = vpop.f32.mrf.mxu0
    %v3830 = vadd.f32 %v337, %v3829
    %v3831 = vpop.f32.mrf.mxu0
    %v3832 = vadd.f32 %v333, %v3831
    %v3833 = vpop.f32.mrf.mxu0
    %v3834 = vadd.f32 %v337, %v3833
    %3835 = vmatprep.mubr.bf16.mxu0 0
    %3836 = vmatmul.mubr.bf16.gmra.mxu0 %v1352
    %v3837 = vpop.f32.mrf.mxu0
    %v3838 = vadd.f32 %v333, %v3837
    %v3839 = vpop.f32.mrf.mxu0
    %v3840 = vadd.f32 %v337, %v3839
    %v3841 = vpop.f32.mrf.mxu0
    %v3842 = vadd.f32 %v333, %v3841
    %v3843 = vpop.f32.mrf.mxu0
    %v3844 = vadd.f32 %v337, %v3843
    %3845 = vmatprep.mubr.bf16.mxu0 0
    %3846 = vmatmul.mubr.bf16.gmra.mxu0 %v1355
    %v3847 = vpop.f32.mrf.mxu0
    %v3848 = vadd.f32 %v333, %v3847
    %v3849 = vpop.f32.mrf.mxu0
    %v3850 = vadd.f32 %v337, %v3849
    %v3851 = vpop.f32.mrf.mxu0
    %v3852 = vadd.f32 %v333, %v3851
    %v3853 = vpop.f32.mrf.mxu0
    %v3854 = vadd.f32 %v337, %v3853
    %3855 = vmatprep.mubr.bf16.mxu0 0
    %3856 = vmatmul.mubr.bf16.gmra.mxu0 %v1358
    %v3857 = vpop.f32.mrf.mxu0
    %v3858 = vadd.f32 %v333, %v3857
    %v3859 = vpop.f32.mrf.mxu0
    %v3860 = vadd.f32 %v337, %v3859
    %v3861 = vpop.f32.mrf.mxu0
    %v3862 = vadd.f32 %v333, %v3861
    %v3863 = vpop.f32.mrf.mxu0
    %v3864 = vadd.f32 %v337, %v3863
    %3865 = vmatprep.mubr.bf16.mxu0 0
    %3866 = vmatmul.mubr.bf16.gmra.mxu0 %v1361
    %v3867 = vpop.f32.mrf.mxu0
    %v3868 = vadd.f32 %v333, %v3867
    %v3869 = vpop.f32.mrf.mxu0
    %v3870 = vadd.f32 %v337, %v3869
    %v3871 = vpop.f32.mrf.mxu0
    %v3872 = vadd.f32 %v333, %v3871
    %v3873 = vpop.f32.mrf.mxu0
    %v3874 = vadd.f32 %v337, %v3873
    %3875 = vmatprep.mubr.bf16.mxu0 0
    %3876 = vmatmul.mubr.bf16.gmra.mxu0 %v1364
    %v3877 = vpop.f32.mrf.mxu0
    %v3878 = vadd.f32 %v333, %v3877
    %v3879 = vpop.f32.mrf.mxu0
    %v3880 = vadd.f32 %v337, %v3879
    %v3881 = vpop.f32.mrf.mxu0
    %v3882 = vadd.f32 %v333, %v3881
    %v3883 = vpop.f32.mrf.mxu0
    %v3884 = vadd.f32 %v337, %v3883
    %3885 = vmatprep.mubr.bf16.mxu0 0
    %3886 = vmatmul.mubr.bf16.gmra.mxu0 %v1367
    %v3887 = vpop.f32.mrf.mxu0
    %v3888 = vadd.f32 %v333, %v3887
    %v3889 = vpop.f32.mrf.mxu0
    %v3890 = vadd.f32 %v337, %v3889
    %v3891 = vpop.f32.mrf.mxu0
    %v3892 = vadd.f32 %v333, %v3891
    %v3893 = vpop.f32.mrf.mxu0
    %v3894 = vadd.f32 %v337, %v3893
    %3895 = vmatprep.mubr.bf16.mxu0 0
    %3896 = vmatmul.mubr.bf16.gmra.mxu0 %v1370
    %v3897 = vpop.f32.mrf.mxu0
    %v3898 = vadd.f32 %v333, %v3897
    %v3899 = vpop.f32.mrf.mxu0
    %v3900 = vadd.f32 %v337, %v3899
    %v3901 = vpop.f32.mrf.mxu0
    %v3902 = vadd.f32 %v333, %v3901
    %v3903 = vpop.f32.mrf.mxu0
    %v3904 = vadd.f32 %v337, %v3903
    %3905 = vmatprep.mubr.bf16.mxu0 0
    %3906 = vmatmul.mubr.bf16.gmra.mxu0 %v1373
    %v3907 = vpop.f32.mrf.mxu0
    %v3908 = vadd.f32 %v333, %v3907
    %v3909 = vpop.f32.mrf.mxu0
    %v3910 = vadd.f32 %v337, %v3909
    %v3911 = vpop.f32.mrf.mxu0
    %v3912 = vadd.f32 %v333, %v3911
    %v3913 = vpop.f32.mrf.mxu0
    %v3914 = vadd.f32 %v337, %v3913
    %3915 = vmatprep.mubr.bf16.mxu0 0
    %3916 = vmatmul.mubr.bf16.gmra.mxu0 %v1376
    %v3917 = vpop.f32.mrf.mxu0
    %v3918 = vadd.f32 %v333, %v3917
    %v3919 = vpop.f32.mrf.mxu0
    %v3920 = vadd.f32 %v337, %v3919
    %v3921 = vpop.f32.mrf.mxu0
    %v3922 = vadd.f32 %v333, %v3921
    %v3923 = vpop.f32.mrf.mxu0
    %v3924 = vadd.f32 %v337, %v3923
    %3925 = vmatprep.mubr.bf16.mxu0 0
    %3926 = vmatmul.mubr.bf16.gmra.mxu0 %v1379
    %v3927 = vpop.f32.mrf.mxu0
    %v3928 = vadd.f32 %v333, %v3927
    %v3929 = vpop.f32.mrf.mxu0
    %v3930 = vadd.f32 %v337, %v3929
    %v3931 = vpop.f32.mrf.mxu0
    %v3932 = vadd.f32 %v333, %v3931
    %v3933 = vpop.f32.mrf.mxu0
    %v3934 = vadd.f32 %v337, %v3933
    %3935 = vmatprep.mubr.bf16.mxu0 0
    %3936 = vmatmul.mubr.bf16.gmra.mxu0 %v1382
    %v3937 = vpop.f32.mrf.mxu0
    %v3938 = vadd.f32 %v333, %v3937
    %v3939 = vpop.f32.mrf.mxu0
    %v3940 = vadd.f32 %v337, %v3939
    %v3941 = vpop.f32.mrf.mxu0
    %v3942 = vadd.f32 %v333, %v3941
    %v3943 = vpop.f32.mrf.mxu0
    %v3944 = vadd.f32 %v337, %v3943
    %3945 = vmatprep.mubr.bf16.mxu0 0
    %3946 = vmatmul.mubr.bf16.gmra.mxu0 %v1385
    %v3947 = vpop.f32.mrf.mxu0
    %v3948 = vadd.f32 %v333, %v3947
    %v3949 = vpop.f32.mrf.mxu0
    %v3950 = vadd.f32 %v337, %v3949
    %v3951 = vpop.f32.mrf.mxu0
    %v3952 = vadd.f32 %v333, %v3951
    %v3953 = vpop.f32.mrf.mxu0
    %v3954 = vadd.f32 %v337, %v3953
    %3955 = vmatprep.mubr.bf16.mxu0 0
    %3956 = vmatmul.mubr.bf16.gmra.mxu0 %v1388
    %v3957 = vpop.f32.mrf.mxu0
    %v3958 = vadd.f32 %v333, %v3957
    %v3959 = vpop.f32.mrf.mxu0
    %v3960 = vadd.f32 %v337, %v3959
    %v3961 = vpop.f32.mrf.mxu0
    %v3962 = vadd.f32 %v333, %v3961
    %v3963 = vpop.f32.mrf.mxu0
    %v3964 = vadd.f32 %v337, %v3963
    %3965 = vmatprep.mubr.bf16.mxu0 0
    %3966 = vmatmul.mubr.bf16.gmra.mxu0 %v1391
    %v3967 = vpop.f32.mrf.mxu0
    %v3968 = vadd.f32 %v333, %v3967
    %v3969 = vpop.f32.mrf.mxu0
    %v3970 = vadd.f32 %v337, %v3969
    %v3971 = vpop.f32.mrf.mxu0
    %v3972 = vadd.f32 %v333, %v3971
    %v3973 = vpop.f32.mrf.mxu0
    %v3974 = vadd.f32 %v337, %v3973
    %3975 = vmatprep.mubr.bf16.mxu0 0
    %3976 = vmatmul.mubr.bf16.gmra.mxu0 %v1394
    %v3977 = vpop.f32.mrf.mxu0
    %v3978 = vadd.f32 %v333, %v3977
    %v3979 = vpop.f32.mrf.mxu0
    %v3980 = vadd.f32 %v337, %v3979
    %v3981 = vpop.f32.mrf.mxu0
    %v3982 = vadd.f32 %v333, %v3981
    %v3983 = vpop.f32.mrf.mxu0
    %v3984 = vadd.f32 %v337, %v3983
    %3985 = vmatprep.mubr.bf16.mxu0 0
    %3986 = vmatmul.mubr.bf16.gmra.mxu0 %v1397
    %v3987 = vpop.f32.mrf.mxu0
    %v3988 = vadd.f32 %v333, %v3987
    %v3989 = vpop.f32.mrf.mxu0
    %v3990 = vadd.f32 %v337, %v3989
    %v3991 = vpop.f32.mrf.mxu0
    %v3992 = vadd.f32 %v333, %v3991
    %v3993 = vpop.f32.mrf.mxu0
    %v3994 = vadd.f32 %v337, %v3993
    %3995 = vmatprep.mubr.bf16.mxu0 0
    %3996 = vmatmul.mubr.bf16.gmra.mxu0 %v1400
    %v3997 = vpop.f32.mrf.mxu0
    %v3998 = vadd.f32 %v333, %v3997
    %v3999 = vpop.f32.mrf.mxu0
    %v4000 = vadd.f32 %v337, %v3999
    %v4001 = vpop.f32.mrf.mxu0
    %v4002 = vadd.f32 %v333, %v4001
    %v4003 = vpop.f32.mrf.mxu0
    %v4004 = vadd.f32 %v337, %v4003
    %4005 = vmatprep.mubr.bf16.mxu0 0
    %4006 = vmatmul.mubr.bf16.gmra.mxu0 %v1403
    %v4007 = vpop.f32.mrf.mxu0
    %v4008 = vadd.f32 %v333, %v4007
    %v4009 = vpop.f32.mrf.mxu0
    %v4010 = vadd.f32 %v337, %v4009
    %v4011 = vpop.f32.mrf.mxu0
    %v4012 = vadd.f32 %v333, %v4011
    %v4013 = vpop.f32.mrf.mxu0
    %v4014 = vadd.f32 %v337, %v4013
    %4015 = vmatprep.mubr.bf16.mxu0 0
    %4016 = vmatmul.mubr.bf16.gmra.mxu0 %v1406
    %v4017 = vpop.f32.mrf.mxu0
    %v4018 = vadd.f32 %v333, %v4017
    %v4019 = vpop.f32.mrf.mxu0
    %v4020 = vadd.f32 %v337, %v4019
    %v4021 = vpop.f32.mrf.mxu0
    %v4022 = vadd.f32 %v333, %v4021
    %v4023 = vpop.f32.mrf.mxu0
    %v4024 = vadd.f32 %v337, %v4023
    %4025 = vmatprep.mubr.bf16.mxu0 0
    %4026 = vmatmul.mubr.bf16.gmra.mxu0 %v1409
    %v4027 = vpop.f32.mrf.mxu0
    %v4028 = vadd.f32 %v333, %v4027
    %v4029 = vpop.f32.mrf.mxu0
    %v4030 = vadd.f32 %v337, %v4029
    %v4031 = vpop.f32.mrf.mxu0
    %v4032 = vadd.f32 %v333, %v4031
    %v4033 = vpop.f32.mrf.mxu0
    %v4034 = vadd.f32 %v337, %v4033
    %4035 = vmatprep.mubr.bf16.mxu0 0
    %4036 = vmatmul.mubr.bf16.gmra.mxu0 %v1412
    %v4037 = vpop.f32.mrf.mxu0
    %v4038 = vadd.f32 %v333, %v4037
    %v4039 = vpop.f32.mrf.mxu0
    %v4040 = vadd.f32 %v337, %v4039
    %v4041 = vpop.f32.mrf.mxu0
    %v4042 = vadd.f32 %v333, %v4041
    %v4043 = vpop.f32.mrf.mxu0
    %v4044 = vadd.f32 %v337, %v4043
    %4045 = vmatprep.mubr.bf16.mxu0 0
    %4046 = vmatmul.mubr.bf16.gmra.mxu0 %v1415
    %v4047 = vpop.f32.mrf.mxu0
    %v4048 = vadd.f32 %v333, %v4047
    %v4049 = vpop.f32.mrf.mxu0
    %v4050 = vadd.f32 %v337, %v4049
    %v4051 = vpop.f32.mrf.mxu0
    %v4052 = vadd.f32 %v333, %v4051
    %v4053 = vpop.f32.mrf.mxu0
    %v4054 = vadd.f32 %v337, %v4053
    %4055 = vdwg.mxu0
    %v4056 = vmax.f32 %v1465, 0.0
    %v4057 = vmax.f32 %v1467, 0.0
    %v4058 = vmax.f32 %v2778, 0.0
    %v4059 = vmax.f32 %v2780, 0.0
    %v4060 = vmax.f32 %v1469, 0.0
    %v4061 = vmax.f32 %v1471, 0.0
    %v4062 = vmax.f32 %v2782, 0.0
    %v4063 = vmax.f32 %v2784, 0.0
    %v4064 = vmax.f32 %v1475, 0.0
    %v4065 = vmax.f32 %v1477, 0.0
    %v4066 = vmax.f32 %v2788, 0.0
    %v4067 = vmax.f32 %v2790, 0.0
    %v4068 = vmax.f32 %v1479, 0.0
    %v4069 = vmax.f32 %v1481, 0.0
    %v4070 = vmax.f32 %v2792, 0.0
    %v4071 = vmax.f32 %v2794, 0.0
    %v4072 = vmax.f32 %v1485, 0.0
    %v4073 = vmax.f32 %v1487, 0.0
    %v4074 = vmax.f32 %v2798, 0.0
    %v4075 = vmax.f32 %v2800, 0.0
    %v4076 = vmax.f32 %v1489, 0.0
    %v4077 = vmax.f32 %v1491, 0.0
    %v4078 = vmax.f32 %v2802, 0.0
    %v4079 = vmax.f32 %v2804, 0.0
    %v4080 = vmax.f32 %v1495, 0.0
    %v4081 = vmax.f32 %v1497, 0.0
    %v4082 = vmax.f32 %v2808, 0.0
    %v4083 = vmax.f32 %v2810, 0.0
    %v4084 = vmax.f32 %v1499, 0.0
    %v4085 = vmax.f32 %v1501, 0.0
    %v4086 = vmax.f32 %v2812, 0.0
    %v4087 = vmax.f32 %v2814, 0.0
    %v4088 = vmax.f32 %v1505, 0.0
    %v4089 = vmax.f32 %v1507, 0.0
    %v4090 = vmax.f32 %v2818, 0.0
    %v4091 = vmax.f32 %v2820, 0.0
    %v4092 = vmax.f32 %v1509, 0.0
    %v4093 = vmax.f32 %v1511, 0.0
    %v4094 = vmax.f32 %v2822, 0.0
    %v4095 = vmax.f32 %v2824, 0.0
    %v4096 = vmax.f32 %v1515, 0.0
    %v4097 = vmax.f32 %v1517, 0.0
    %v4098 = vmax.f32 %v2828, 0.0
    %v4099 = vmax.f32 %v2830, 0.0
    %v4100 = vmax.f32 %v1519, 0.0
    %v4101 = vmax.f32 %v1521, 0.0
    %v4102 = vmax.f32 %v2832, 0.0
    %v4103 = vmax.f32 %v2834, 0.0
    %v4104 = vmax.f32 %v1525, 0.0
    %v4105 = vmax.f32 %v1527, 0.0
    %v4106 = vmax.f32 %v2838, 0.0
    %v4107 = vmax.f32 %v2840, 0.0
    %v4108 = vmax.f32 %v1529, 0.0
    %v4109 = vmax.f32 %v1531, 0.0
    %v4110 = vmax.f32 %v2842, 0.0
    %v4111 = vmax.f32 %v2844, 0.0
    %v4112 = vmax.f32 %v1535, 0.0
    %v4113 = vmax.f32 %v1537, 0.0
    %v4114 = vmax.f32 %v2848, 0.0
    %v4115 = vmax.f32 %v2850, 0.0
    %v4116 = vmax.f32 %v1539, 0.0
    %v4117 = vmax.f32 %v1541, 0.0
    %v4118 = vmax.f32 %v2852, 0.0
    %v4119 = vmax.f32 %v2854, 0.0
    %v4120 = vmax.f32 %v1545, 0.0
    %v4121 = vmax.f32 %v1547, 0.0
    %v4122 = vmax.f32 %v2858, 0.0
    %v4123 = vmax.f32 %v2860, 0.0
    %v4124 = vmax.f32 %v1549, 0.0
    %v4125 = vmax.f32 %v1551, 0.0
    %v4126 = vmax.f32 %v2862, 0.0
    %v4127 = vmax.f32 %v2864, 0.0
    %v4128 = vmax.f32 %v1555, 0.0
    %v4129 = vmax.f32 %v1557, 0.0
    %v4130 = vmax.f32 %v2868, 0.0
    %v4131 = vmax.f32 %v2870, 0.0
    %v4132 = vmax.f32 %v1559, 0.0
    %v4133 = vmax.f32 %v1561, 0.0
    %v4134 = vmax.f32 %v2872, 0.0
    %v4135 = vmax.f32 %v2874, 0.0
    %v4136 = vmax.f32 %v1565, 0.0
    %v4137 = vmax.f32 %v1567, 0.0
    %v4138 = vmax.f32 %v2878, 0.0
    %v4139 = vmax.f32 %v2880, 0.0
    %v4140 = vmax.f32 %v1569, 0.0
    %v4141 = vmax.f32 %v1571, 0.0
    %v4142 = vmax.f32 %v2882, 0.0
    %v4143 = vmax.f32 %v2884, 0.0
    %v4144 = vmax.f32 %v1575, 0.0
    %v4145 = vmax.f32 %v1577, 0.0
    %v4146 = vmax.f32 %v2888, 0.0
    %v4147 = vmax.f32 %v2890, 0.0
    %v4148 = vmax.f32 %v1579, 0.0
    %v4149 = vmax.f32 %v1581, 0.0
    %v4150 = vmax.f32 %v2892, 0.0
    %v4151 = vmax.f32 %v2894, 0.0
    %v4152 = vmax.f32 %v1585, 0.0
    %v4153 = vmax.f32 %v1587, 0.0
    %v4154 = vmax.f32 %v2898, 0.0
    %v4155 = vmax.f32 %v2900, 0.0
    %v4156 = vmax.f32 %v1589, 0.0
    %v4157 = vmax.f32 %v1591, 0.0
    %v4158 = vmax.f32 %v2902, 0.0
    %v4159 = vmax.f32 %v2904, 0.0
    %v4160 = vmax.f32 %v1595, 0.0
    %v4161 = vmax.f32 %v1597, 0.0
    %v4162 = vmax.f32 %v2908, 0.0
    %v4163 = vmax.f32 %v2910, 0.0
    %v4164 = vmax.f32 %v1599, 0.0
    %v4165 = vmax.f32 %v1601, 0.0
    %v4166 = vmax.f32 %v2912, 0.0
    %v4167 = vmax.f32 %v2914, 0.0
    %v4168 = vmax.f32 %v1605, 0.0
    %v4169 = vmax.f32 %v1607, 0.0
    %v4170 = vmax.f32 %v2918, 0.0
    %v4171 = vmax.f32 %v2920, 0.0
    %v4172 = vmax.f32 %v1609, 0.0
    %v4173 = vmax.f32 %v1611, 0.0
    %v4174 = vmax.f32 %v2922, 0.0
    %v4175 = vmax.f32 %v2924, 0.0
    %v4176 = vmax.f32 %v1615, 0.0
    %v4177 = vmax.f32 %v1617, 0.0
    %v4178 = vmax.f32 %v2928, 0.0
    %v4179 = vmax.f32 %v2930, 0.0
    %v4180 = vmax.f32 %v1619, 0.0
    %v4181 = vmax.f32 %v1621, 0.0
    %v4182 = vmax.f32 %v2932, 0.0
    %v4183 = vmax.f32 %v2934, 0.0
    %v4184 = vmax.f32 %v1625, 0.0
    %v4185 = vmax.f32 %v1627, 0.0
    %v4186 = vmax.f32 %v2938, 0.0
    %v4187 = vmax.f32 %v2940, 0.0
    %v4188 = vmax.f32 %v1629, 0.0
    %v4189 = vmax.f32 %v1631, 0.0
    %v4190 = vmax.f32 %v2942, 0.0
    %v4191 = vmax.f32 %v2944, 0.0
    %v4192 = vmax.f32 %v1635, 0.0
    %v4193 = vmax.f32 %v1637, 0.0
    %v4194 = vmax.f32 %v2948, 0.0
    %v4195 = vmax.f32 %v2950, 0.0
    %v4196 = vmax.f32 %v1639, 0.0
    %v4197 = vmax.f32 %v1641, 0.0
    %v4198 = vmax.f32 %v2952, 0.0
    %v4199 = vmax.f32 %v2954, 0.0
    %v4200 = vmax.f32 %v1645, 0.0
    %v4201 = vmax.f32 %v1647, 0.0
    %v4202 = vmax.f32 %v2958, 0.0
    %v4203 = vmax.f32 %v2960, 0.0
    %v4204 = vmax.f32 %v1649, 0.0
    %v4205 = vmax.f32 %v1651, 0.0
    %v4206 = vmax.f32 %v2962, 0.0
    %v4207 = vmax.f32 %v2964, 0.0
    %v4208 = vmax.f32 %v1655, 0.0
    %v4209 = vmax.f32 %v1657, 0.0
    %v4210 = vmax.f32 %v2968, 0.0
    %v4211 = vmax.f32 %v2970, 0.0
    %v4212 = vmax.f32 %v1659, 0.0
    %v4213 = vmax.f32 %v1661, 0.0
    %v4214 = vmax.f32 %v2972, 0.0
    %v4215 = vmax.f32 %v2974, 0.0
    %v4216 = vmax.f32 %v1665, 0.0
    %v4217 = vmax.f32 %v1667, 0.0
    %v4218 = vmax.f32 %v2978, 0.0
    %v4219 = vmax.f32 %v2980, 0.0
    %v4220 = vmax.f32 %v1669, 0.0
    %v4221 = vmax.f32 %v1671, 0.0
    %v4222 = vmax.f32 %v2982, 0.0
    %v4223 = vmax.f32 %v2984, 0.0
    %v4224 = vmax.f32 %v1675, 0.0
    %v4225 = vmax.f32 %v1677, 0.0
    %v4226 = vmax.f32 %v2988, 0.0
    %v4227 = vmax.f32 %v2990, 0.0
    %v4228 = vmax.f32 %v1679, 0.0
    %v4229 = vmax.f32 %v1681, 0.0
    %v4230 = vmax.f32 %v2992, 0.0
    %v4231 = vmax.f32 %v2994, 0.0
    %v4232 = vmax.f32 %v1685, 0.0
    %v4233 = vmax.f32 %v1687, 0.0
    %v4234 = vmax.f32 %v2998, 0.0
    %v4235 = vmax.f32 %v3000, 0.0
    %v4236 = vmax.f32 %v1689, 0.0
    %v4237 = vmax.f32 %v1691, 0.0
    %v4238 = vmax.f32 %v3002, 0.0
    %v4239 = vmax.f32 %v3004, 0.0
    %v4240 = vmax.f32 %v1695, 0.0
    %v4241 = vmax.f32 %v1697, 0.0
    %v4242 = vmax.f32 %v3008, 0.0
    %v4243 = vmax.f32 %v3010, 0.0
    %v4244 = vmax.f32 %v1699, 0.0
    %v4245 = vmax.f32 %v1701, 0.0
    %v4246 = vmax.f32 %v3012, 0.0
    %v4247 = vmax.f32 %v3014, 0.0
    %v4248 = vmax.f32 %v1705, 0.0
    %v4249 = vmax.f32 %v1707, 0.0
    %v4250 = vmax.f32 %v3018, 0.0
    %v4251 = vmax.f32 %v3020, 0.0
    %v4252 = vmax.f32 %v1709, 0.0
    %v4253 = vmax.f32 %v1711, 0.0
    %v4254 = vmax.f32 %v3022, 0.0
    %v4255 = vmax.f32 %v3024, 0.0
    %v4256 = vmax.f32 %v1715, 0.0
    %v4257 = vmax.f32 %v1717, 0.0
    %v4258 = vmax.f32 %v3028, 0.0
    %v4259 = vmax.f32 %v3030, 0.0
    %v4260 = vmax.f32 %v1719, 0.0
    %v4261 = vmax.f32 %v1721, 0.0
    %v4262 = vmax.f32 %v3032, 0.0
    %v4263 = vmax.f32 %v3034, 0.0
    %v4264 = vmax.f32 %v1725, 0.0
    %v4265 = vmax.f32 %v1727, 0.0
    %v4266 = vmax.f32 %v3038, 0.0
    %v4267 = vmax.f32 %v3040, 0.0
    %v4268 = vmax.f32 %v1729, 0.0
    %v4269 = vmax.f32 %v1731, 0.0
    %v4270 = vmax.f32 %v3042, 0.0
    %v4271 = vmax.f32 %v3044, 0.0
    %v4272 = vmax.f32 %v1735, 0.0
    %v4273 = vmax.f32 %v1737, 0.0
    %v4274 = vmax.f32 %v3048, 0.0
    %v4275 = vmax.f32 %v3050, 0.0
    %v4276 = vmax.f32 %v1739, 0.0
    %v4277 = vmax.f32 %v1741, 0.0
    %v4278 = vmax.f32 %v3052, 0.0
    %v4279 = vmax.f32 %v3054, 0.0
    %v4280 = vmax.f32 %v1745, 0.0
    %v4281 = vmax.f32 %v1747, 0.0
    %v4282 = vmax.f32 %v3058, 0.0
    %v4283 = vmax.f32 %v3060, 0.0
    %v4284 = vmax.f32 %v1749, 0.0
    %v4285 = vmax.f32 %v1751, 0.0
    %v4286 = vmax.f32 %v3062, 0.0
    %v4287 = vmax.f32 %v3064, 0.0
    %v4288 = vmax.f32 %v1755, 0.0
    %v4289 = vmax.f32 %v1757, 0.0
    %v4290 = vmax.f32 %v3068, 0.0
    %v4291 = vmax.f32 %v3070, 0.0
    %v4292 = vmax.f32 %v1759, 0.0
    %v4293 = vmax.f32 %v1761, 0.0
    %v4294 = vmax.f32 %v3072, 0.0
    %v4295 = vmax.f32 %v3074, 0.0
    %v4296 = vmax.f32 %v1765, 0.0
    %v4297 = vmax.f32 %v1767, 0.0
    %v4298 = vmax.f32 %v3078, 0.0
    %v4299 = vmax.f32 %v3080, 0.0
    %v4300 = vmax.f32 %v1769, 0.0
    %v4301 = vmax.f32 %v1771, 0.0
    %v4302 = vmax.f32 %v3082, 0.0
    %v4303 = vmax.f32 %v3084, 0.0
    %v4304 = vmax.f32 %v1775, 0.0
    %v4305 = vmax.f32 %v1777, 0.0
    %v4306 = vmax.f32 %v3088, 0.0
    %v4307 = vmax.f32 %v3090, 0.0
    %v4308 = vmax.f32 %v1779, 0.0
    %v4309 = vmax.f32 %v1781, 0.0
    %v4310 = vmax.f32 %v3092, 0.0
    %v4311 = vmax.f32 %v3094, 0.0
    %v4312 = vmax.f32 %v1785, 0.0
    %v4313 = vmax.f32 %v1787, 0.0
    %v4314 = vmax.f32 %v3098, 0.0
    %v4315 = vmax.f32 %v3100, 0.0
    %v4316 = vmax.f32 %v1789, 0.0
    %v4317 = vmax.f32 %v1791, 0.0
    %v4318 = vmax.f32 %v3102, 0.0
    %v4319 = vmax.f32 %v3104, 0.0
    %v4320 = vmax.f32 %v1795, 0.0
    %v4321 = vmax.f32 %v1797, 0.0
    %v4322 = vmax.f32 %v3108, 0.0
    %v4323 = vmax.f32 %v3110, 0.0
    %v4324 = vmax.f32 %v1799, 0.0
    %v4325 = vmax.f32 %v1801, 0.0
    %v4326 = vmax.f32 %v3112, 0.0
    %v4327 = vmax.f32 %v3114, 0.0
    %v4328 = vmax.f32 %v1805, 0.0
    %v4329 = vmax.f32 %v1807, 0.0
    %v4330 = vmax.f32 %v3118, 0.0
    %v4331 = vmax.f32 %v3120, 0.0
    %v4332 = vmax.f32 %v1809, 0.0
    %v4333 = vmax.f32 %v1811, 0.0
    %v4334 = vmax.f32 %v3122, 0.0
    %v4335 = vmax.f32 %v3124, 0.0
    %v4336 = vmax.f32 %v1815, 0.0
    %v4337 = vmax.f32 %v1817, 0.0
    %v4338 = vmax.f32 %v3128, 0.0
    %v4339 = vmax.f32 %v3130, 0.0
    %v4340 = vmax.f32 %v1819, 0.0
    %v4341 = vmax.f32 %v1821, 0.0
    %v4342 = vmax.f32 %v3132, 0.0
    %v4343 = vmax.f32 %v3134, 0.0
    %v4344 = vmax.f32 %v1825, 0.0
    %v4345 = vmax.f32 %v1827, 0.0
    %v4346 = vmax.f32 %v3138, 0.0
    %v4347 = vmax.f32 %v3140, 0.0
    %v4348 = vmax.f32 %v1829, 0.0
    %v4349 = vmax.f32 %v1831, 0.0
    %v4350 = vmax.f32 %v3142, 0.0
    %v4351 = vmax.f32 %v3144, 0.0
    %v4352 = vmax.f32 %v1835, 0.0
    %v4353 = vmax.f32 %v1837, 0.0
    %v4354 = vmax.f32 %v3148, 0.0
    %v4355 = vmax.f32 %v3150, 0.0
    %v4356 = vmax.f32 %v1839, 0.0
    %v4357 = vmax.f32 %v1841, 0.0
    %v4358 = vmax.f32 %v3152, 0.0
    %v4359 = vmax.f32 %v3154, 0.0
    %v4360 = vmax.f32 %v1845, 0.0
    %v4361 = vmax.f32 %v1847, 0.0
    %v4362 = vmax.f32 %v3158, 0.0
    %v4363 = vmax.f32 %v3160, 0.0
    %v4364 = vmax.f32 %v1849, 0.0
    %v4365 = vmax.f32 %v1851, 0.0
    %v4366 = vmax.f32 %v3162, 0.0
    %v4367 = vmax.f32 %v3164, 0.0
    %v4368 = vmax.f32 %v1855, 0.0
    %v4369 = vmax.f32 %v1857, 0.0
    %v4370 = vmax.f32 %v3168, 0.0
    %v4371 = vmax.f32 %v3170, 0.0
    %v4372 = vmax.f32 %v1859, 0.0
    %v4373 = vmax.f32 %v1861, 0.0
    %v4374 = vmax.f32 %v3172, 0.0
    %v4375 = vmax.f32 %v3174, 0.0
    %v4376 = vmax.f32 %v1865, 0.0
    %v4377 = vmax.f32 %v1867, 0.0
    %v4378 = vmax.f32 %v3178, 0.0
    %v4379 = vmax.f32 %v3180, 0.0
    %v4380 = vmax.f32 %v1869, 0.0
    %v4381 = vmax.f32 %v1871, 0.0
    %v4382 = vmax.f32 %v3182, 0.0
    %v4383 = vmax.f32 %v3184, 0.0
    %v4384 = vmax.f32 %v1875, 0.0
    %v4385 = vmax.f32 %v1877, 0.0
    %v4386 = vmax.f32 %v3188, 0.0
    %v4387 = vmax.f32 %v3190, 0.0
    %v4388 = vmax.f32 %v1879, 0.0
    %v4389 = vmax.f32 %v1881, 0.0
    %v4390 = vmax.f32 %v3192, 0.0
    %v4391 = vmax.f32 %v3194, 0.0
    %v4392 = vmax.f32 %v1885, 0.0
    %v4393 = vmax.f32 %v1887, 0.0
    %v4394 = vmax.f32 %v3198, 0.0
    %v4395 = vmax.f32 %v3200, 0.0
    %v4396 = vmax.f32 %v1889, 0.0
    %v4397 = vmax.f32 %v1891, 0.0
    %v4398 = vmax.f32 %v3202, 0.0
    %v4399 = vmax.f32 %v3204, 0.0
    %v4400 = vmax.f32 %v1895, 0.0
    %v4401 = vmax.f32 %v1897, 0.0
    %v4402 = vmax.f32 %v3208, 0.0
    %v4403 = vmax.f32 %v3210, 0.0
    %v4404 = vmax.f32 %v1899, 0.0
    %v4405 = vmax.f32 %v1901, 0.0
    %v4406 = vmax.f32 %v3212, 0.0
    %v4407 = vmax.f32 %v3214, 0.0
    %v4408 = vmax.f32 %v1905, 0.0
    %v4409 = vmax.f32 %v1907, 0.0
    %v4410 = vmax.f32 %v3218, 0.0
    %v4411 = vmax.f32 %v3220, 0.0
    %v4412 = vmax.f32 %v1909, 0.0
    %v4413 = vmax.f32 %v1911, 0.0
    %v4414 = vmax.f32 %v3222, 0.0
    %v4415 = vmax.f32 %v3224, 0.0
    %v4416 = vmax.f32 %v1915, 0.0
    %v4417 = vmax.f32 %v1917, 0.0
    %v4418 = vmax.f32 %v3228, 0.0
    %v4419 = vmax.f32 %v3230, 0.0
    %v4420 = vmax.f32 %v1919, 0.0
    %v4421 = vmax.f32 %v1921, 0.0
    %v4422 = vmax.f32 %v3232, 0.0
    %v4423 = vmax.f32 %v3234, 0.0
    %v4424 = vmax.f32 %v1925, 0.0
    %v4425 = vmax.f32 %v1927, 0.0
    %v4426 = vmax.f32 %v3238, 0.0
    %v4427 = vmax.f32 %v3240, 0.0
    %v4428 = vmax.f32 %v1929, 0.0
    %v4429 = vmax.f32 %v1931, 0.0
    %v4430 = vmax.f32 %v3242, 0.0
    %v4431 = vmax.f32 %v3244, 0.0
    %v4432 = vmax.f32 %v1935, 0.0
    %v4433 = vmax.f32 %v1937, 0.0
    %v4434 = vmax.f32 %v3248, 0.0
    %v4435 = vmax.f32 %v3250, 0.0
    %v4436 = vmax.f32 %v1939, 0.0
    %v4437 = vmax.f32 %v1941, 0.0
    %v4438 = vmax.f32 %v3252, 0.0
    %v4439 = vmax.f32 %v3254, 0.0
    %v4440 = vmax.f32 %v1945, 0.0
    %v4441 = vmax.f32 %v1947, 0.0
    %v4442 = vmax.f32 %v3258, 0.0
    %v4443 = vmax.f32 %v3260, 0.0
    %v4444 = vmax.f32 %v1949, 0.0
    %v4445 = vmax.f32 %v1951, 0.0
    %v4446 = vmax.f32 %v3262, 0.0
    %v4447 = vmax.f32 %v3264, 0.0
    %v4448 = vmax.f32 %v1955, 0.0
    %v4449 = vmax.f32 %v1957, 0.0
    %v4450 = vmax.f32 %v3268, 0.0
    %v4451 = vmax.f32 %v3270, 0.0
    %v4452 = vmax.f32 %v1959, 0.0
    %v4453 = vmax.f32 %v1961, 0.0
    %v4454 = vmax.f32 %v3272, 0.0
    %v4455 = vmax.f32 %v3274, 0.0
    %v4456 = vmax.f32 %v1965, 0.0
    %v4457 = vmax.f32 %v1967, 0.0
    %v4458 = vmax.f32 %v3278, 0.0
    %v4459 = vmax.f32 %v3280, 0.0
    %v4460 = vmax.f32 %v1969, 0.0
    %v4461 = vmax.f32 %v1971, 0.0
    %v4462 = vmax.f32 %v3282, 0.0
    %v4463 = vmax.f32 %v3284, 0.0
    %v4464 = vmax.f32 %v1975, 0.0
    %v4465 = vmax.f32 %v1977, 0.0
    %v4466 = vmax.f32 %v3288, 0.0
    %v4467 = vmax.f32 %v3290, 0.0
    %v4468 = vmax.f32 %v1979, 0.0
    %v4469 = vmax.f32 %v1981, 0.0
    %v4470 = vmax.f32 %v3292, 0.0
    %v4471 = vmax.f32 %v3294, 0.0
    %v4472 = vmax.f32 %v1985, 0.0
    %v4473 = vmax.f32 %v1987, 0.0
    %v4474 = vmax.f32 %v3298, 0.0
    %v4475 = vmax.f32 %v3300, 0.0
    %v4476 = vmax.f32 %v1989, 0.0
    %v4477 = vmax.f32 %v1991, 0.0
    %v4478 = vmax.f32 %v3302, 0.0
    %v4479 = vmax.f32 %v3304, 0.0
    %v4480 = vmax.f32 %v1995, 0.0
    %v4481 = vmax.f32 %v1997, 0.0
    %v4482 = vmax.f32 %v3308, 0.0
    %v4483 = vmax.f32 %v3310, 0.0
    %v4484 = vmax.f32 %v1999, 0.0
    %v4485 = vmax.f32 %v2001, 0.0
    %v4486 = vmax.f32 %v3312, 0.0
    %v4487 = vmax.f32 %v3314, 0.0
    %v4488 = vmax.f32 %v2005, 0.0
    %v4489 = vmax.f32 %v2007, 0.0
    %v4490 = vmax.f32 %v3318, 0.0
    %v4491 = vmax.f32 %v3320, 0.0
    %v4492 = vmax.f32 %v2009, 0.0
    %v4493 = vmax.f32 %v2011, 0.0
    %v4494 = vmax.f32 %v3322, 0.0
    %v4495 = vmax.f32 %v3324, 0.0
    %v4496 = vmax.f32 %v2015, 0.0
    %v4497 = vmax.f32 %v2017, 0.0
    %v4498 = vmax.f32 %v3328, 0.0
    %v4499 = vmax.f32 %v3330, 0.0
    %v4500 = vmax.f32 %v2019, 0.0
    %v4501 = vmax.f32 %v2021, 0.0
    %v4502 = vmax.f32 %v3332, 0.0
    %v4503 = vmax.f32 %v3334, 0.0
    %v4504 = vmax.f32 %v2025, 0.0
    %v4505 = vmax.f32 %v2027, 0.0
    %v4506 = vmax.f32 %v3338, 0.0
    %v4507 = vmax.f32 %v3340, 0.0
    %v4508 = vmax.f32 %v2029, 0.0
    %v4509 = vmax.f32 %v2031, 0.0
    %v4510 = vmax.f32 %v3342, 0.0
    %v4511 = vmax.f32 %v3344, 0.0
    %v4512 = vmax.f32 %v2035, 0.0
    %v4513 = vmax.f32 %v2037, 0.0
    %v4514 = vmax.f32 %v3348, 0.0
    %v4515 = vmax.f32 %v3350, 0.0
    %v4516 = vmax.f32 %v2039, 0.0
    %v4517 = vmax.f32 %v2041, 0.0
    %v4518 = vmax.f32 %v3352, 0.0
    %v4519 = vmax.f32 %v3354, 0.0
    %v4520 = vmax.f32 %v2045, 0.0
    %v4521 = vmax.f32 %v2047, 0.0
    %v4522 = vmax.f32 %v3358, 0.0
    %v4523 = vmax.f32 %v3360, 0.0
    %v4524 = vmax.f32 %v2049, 0.0
    %v4525 = vmax.f32 %v2051, 0.0
    %v4526 = vmax.f32 %v3362, 0.0
    %v4527 = vmax.f32 %v3364, 0.0
    %v4528 = vmax.f32 %v2055, 0.0
    %v4529 = vmax.f32 %v2057, 0.0
    %v4530 = vmax.f32 %v3368, 0.0
    %v4531 = vmax.f32 %v3370, 0.0
    %v4532 = vmax.f32 %v2059, 0.0
    %v4533 = vmax.f32 %v2061, 0.0
    %v4534 = vmax.f32 %v3372, 0.0
    %v4535 = vmax.f32 %v3374, 0.0
    %v4536 = vmax.f32 %v2065, 0.0
    %v4537 = vmax.f32 %v2067, 0.0
    %v4538 = vmax.f32 %v3378, 0.0
    %v4539 = vmax.f32 %v3380, 0.0
    %v4540 = vmax.f32 %v2069, 0.0
    %v4541 = vmax.f32 %v2071, 0.0
    %v4542 = vmax.f32 %v3382, 0.0
    %v4543 = vmax.f32 %v3384, 0.0
    %v4544 = vmax.f32 %v2075, 0.0
    %v4545 = vmax.f32 %v2077, 0.0
    %v4546 = vmax.f32 %v3388, 0.0
    %v4547 = vmax.f32 %v3390, 0.0
    %v4548 = vmax.f32 %v2079, 0.0
    %v4549 = vmax.f32 %v2081, 0.0
    %v4550 = vmax.f32 %v3392, 0.0
    %v4551 = vmax.f32 %v3394, 0.0
    %v4552 = vmax.f32 %v2085, 0.0
    %v4553 = vmax.f32 %v2087, 0.0
    %v4554 = vmax.f32 %v3398, 0.0
    %v4555 = vmax.f32 %v3400, 0.0
    %v4556 = vmax.f32 %v2089, 0.0
    %v4557 = vmax.f32 %v2091, 0.0
    %v4558 = vmax.f32 %v3402, 0.0
    %v4559 = vmax.f32 %v3404, 0.0
    %v4560 = vmax.f32 %v2095, 0.0
    %v4561 = vmax.f32 %v2097, 0.0
    %v4562 = vmax.f32 %v3408, 0.0
    %v4563 = vmax.f32 %v3410, 0.0
    %v4564 = vmax.f32 %v2099, 0.0
    %v4565 = vmax.f32 %v2101, 0.0
    %v4566 = vmax.f32 %v3412, 0.0
    %v4567 = vmax.f32 %v3414, 0.0
    %v4568 = vmax.f32 %v2105, 0.0
    %v4569 = vmax.f32 %v2107, 0.0
    %v4570 = vmax.f32 %v3418, 0.0
    %v4571 = vmax.f32 %v3420, 0.0
    %v4572 = vmax.f32 %v2109, 0.0
    %v4573 = vmax.f32 %v2111, 0.0
    %v4574 = vmax.f32 %v3422, 0.0
    %v4575 = vmax.f32 %v3424, 0.0
    %v4576 = vmax.f32 %v2115, 0.0
    %v4577 = vmax.f32 %v2117, 0.0
    %v4578 = vmax.f32 %v3428, 0.0
    %v4579 = vmax.f32 %v3430, 0.0
    %v4580 = vmax.f32 %v2119, 0.0
    %v4581 = vmax.f32 %v2121, 0.0
    %v4582 = vmax.f32 %v3432, 0.0
    %v4583 = vmax.f32 %v3434, 0.0
    %v4584 = vmax.f32 %v2125, 0.0
    %v4585 = vmax.f32 %v2127, 0.0
    %v4586 = vmax.f32 %v3438, 0.0
    %v4587 = vmax.f32 %v3440, 0.0
    %v4588 = vmax.f32 %v2129, 0.0
    %v4589 = vmax.f32 %v2131, 0.0
    %v4590 = vmax.f32 %v3442, 0.0
    %v4591 = vmax.f32 %v3444, 0.0
    %v4592 = vmax.f32 %v2135, 0.0
    %v4593 = vmax.f32 %v2137, 0.0
    %v4594 = vmax.f32 %v3448, 0.0
    %v4595 = vmax.f32 %v3450, 0.0
    %v4596 = vmax.f32 %v2139, 0.0
    %v4597 = vmax.f32 %v2141, 0.0
    %v4598 = vmax.f32 %v3452, 0.0
    %v4599 = vmax.f32 %v3454, 0.0
    %v4600 = vmax.f32 %v2145, 0.0
    %v4601 = vmax.f32 %v2147, 0.0
    %v4602 = vmax.f32 %v3458, 0.0
    %v4603 = vmax.f32 %v3460, 0.0
    %v4604 = vmax.f32 %v2149, 0.0
    %v4605 = vmax.f32 %v2151, 0.0
    %v4606 = vmax.f32 %v3462, 0.0
    %v4607 = vmax.f32 %v3464, 0.0
    %v4608 = vmax.f32 %v2155, 0.0
    %v4609 = vmax.f32 %v2157, 0.0
    %v4610 = vmax.f32 %v3468, 0.0
    %v4611 = vmax.f32 %v3470, 0.0
    %v4612 = vmax.f32 %v2159, 0.0
    %v4613 = vmax.f32 %v2161, 0.0
    %v4614 = vmax.f32 %v3472, 0.0
    %v4615 = vmax.f32 %v3474, 0.0
    %v4616 = vmax.f32 %v2165, 0.0
    %v4617 = vmax.f32 %v2167, 0.0
    %v4618 = vmax.f32 %v3478, 0.0
    %v4619 = vmax.f32 %v3480, 0.0
    %v4620 = vmax.f32 %v2169, 0.0
    %v4621 = vmax.f32 %v2171, 0.0
    %v4622 = vmax.f32 %v3482, 0.0
    %v4623 = vmax.f32 %v3484, 0.0
    %v4624 = vmax.f32 %v2175, 0.0
    %v4625 = vmax.f32 %v2177, 0.0
    %v4626 = vmax.f32 %v3488, 0.0
    %v4627 = vmax.f32 %v3490, 0.0
    %v4628 = vmax.f32 %v2179, 0.0
    %v4629 = vmax.f32 %v2181, 0.0
    %v4630 = vmax.f32 %v3492, 0.0
    %v4631 = vmax.f32 %v3494, 0.0
    %v4632 = vmax.f32 %v2185, 0.0
    %v4633 = vmax.f32 %v2187, 0.0
    %v4634 = vmax.f32 %v3498, 0.0
    %v4635 = vmax.f32 %v3500, 0.0
    %v4636 = vmax.f32 %v2189, 0.0
    %v4637 = vmax.f32 %v2191, 0.0
    %v4638 = vmax.f32 %v3502, 0.0
    %v4639 = vmax.f32 %v3504, 0.0
    %v4640 = vmax.f32 %v2195, 0.0
    %v4641 = vmax.f32 %v2197, 0.0
    %v4642 = vmax.f32 %v3508, 0.0
    %v4643 = vmax.f32 %v3510, 0.0
    %v4644 = vmax.f32 %v2199, 0.0
    %v4645 = vmax.f32 %v2201, 0.0
    %v4646 = vmax.f32 %v3512, 0.0
    %v4647 = vmax.f32 %v3514, 0.0
    %v4648 = vmax.f32 %v2205, 0.0
    %v4649 = vmax.f32 %v2207, 0.0
    %v4650 = vmax.f32 %v3518, 0.0
    %v4651 = vmax.f32 %v3520, 0.0
    %v4652 = vmax.f32 %v2209, 0.0
    %v4653 = vmax.f32 %v2211, 0.0
    %v4654 = vmax.f32 %v3522, 0.0
    %v4655 = vmax.f32 %v3524, 0.0
    %v4656 = vmax.f32 %v2215, 0.0
    %v4657 = vmax.f32 %v2217, 0.0
    %v4658 = vmax.f32 %v3528, 0.0
    %v4659 = vmax.f32 %v3530, 0.0
    %v4660 = vmax.f32 %v2219, 0.0
    %v4661 = vmax.f32 %v2221, 0.0
    %v4662 = vmax.f32 %v3532, 0.0
    %v4663 = vmax.f32 %v3534, 0.0
    %v4664 = vmax.f32 %v2225, 0.0
    %v4665 = vmax.f32 %v2227, 0.0
    %v4666 = vmax.f32 %v3538, 0.0
    %v4667 = vmax.f32 %v3540, 0.0
    %v4668 = vmax.f32 %v2229, 0.0
    %v4669 = vmax.f32 %v2231, 0.0
    %v4670 = vmax.f32 %v3542, 0.0
    %v4671 = vmax.f32 %v3544, 0.0
    %v4672 = vmax.f32 %v2235, 0.0
    %v4673 = vmax.f32 %v2237, 0.0
    %v4674 = vmax.f32 %v3548, 0.0
    %v4675 = vmax.f32 %v3550, 0.0
    %v4676 = vmax.f32 %v2239, 0.0
    %v4677 = vmax.f32 %v2241, 0.0
    %v4678 = vmax.f32 %v3552, 0.0
    %v4679 = vmax.f32 %v3554, 0.0
    %v4680 = vmax.f32 %v2245, 0.0
    %v4681 = vmax.f32 %v2247, 0.0
    %v4682 = vmax.f32 %v3558, 0.0
    %v4683 = vmax.f32 %v3560, 0.0
    %v4684 = vmax.f32 %v2249, 0.0
    %v4685 = vmax.f32 %v2251, 0.0
    %v4686 = vmax.f32 %v3562, 0.0
    %v4687 = vmax.f32 %v3564, 0.0
    %v4688 = vmax.f32 %v2255, 0.0
    %v4689 = vmax.f32 %v2257, 0.0
    %v4690 = vmax.f32 %v3568, 0.0
    %v4691 = vmax.f32 %v3570, 0.0
    %v4692 = vmax.f32 %v2259, 0.0
    %v4693 = vmax.f32 %v2261, 0.0
    %v4694 = vmax.f32 %v3572, 0.0
    %v4695 = vmax.f32 %v3574, 0.0
    %v4696 = vmax.f32 %v2265, 0.0
    %v4697 = vmax.f32 %v2267, 0.0
    %v4698 = vmax.f32 %v3578, 0.0
    %v4699 = vmax.f32 %v3580, 0.0
    %v4700 = vmax.f32 %v2269, 0.0
    %v4701 = vmax.f32 %v2271, 0.0
    %v4702 = vmax.f32 %v3582, 0.0
    %v4703 = vmax.f32 %v3584, 0.0
    %v4704 = vmax.f32 %v2275, 0.0
    %v4705 = vmax.f32 %v2277, 0.0
    %v4706 = vmax.f32 %v3588, 0.0
    %v4707 = vmax.f32 %v3590, 0.0
    %v4708 = vmax.f32 %v2279, 0.0
    %v4709 = vmax.f32 %v2281, 0.0
    %v4710 = vmax.f32 %v3592, 0.0
    %v4711 = vmax.f32 %v3594, 0.0
    %v4712 = vmax.f32 %v2285, 0.0
    %v4713 = vmax.f32 %v2287, 0.0
    %v4714 = vmax.f32 %v3598, 0.0
    %v4715 = vmax.f32 %v3600, 0.0
    %v4716 = vmax.f32 %v2289, 0.0
    %v4717 = vmax.f32 %v2291, 0.0
    %v4718 = vmax.f32 %v3602, 0.0
    %v4719 = vmax.f32 %v3604, 0.0
    %v4720 = vmax.f32 %v2295, 0.0
    %v4721 = vmax.f32 %v2297, 0.0
    %v4722 = vmax.f32 %v3608, 0.0
    %v4723 = vmax.f32 %v3610, 0.0
    %v4724 = vmax.f32 %v2299, 0.0
    %v4725 = vmax.f32 %v2301, 0.0
    %v4726 = vmax.f32 %v3612, 0.0
    %v4727 = vmax.f32 %v3614, 0.0
    %v4728 = vmax.f32 %v2305, 0.0
    %v4729 = vmax.f32 %v2307, 0.0
    %v4730 = vmax.f32 %v3618, 0.0
    %v4731 = vmax.f32 %v3620, 0.0
    %v4732 = vmax.f32 %v2309, 0.0
    %v4733 = vmax.f32 %v2311, 0.0
    %v4734 = vmax.f32 %v3622, 0.0
    %v4735 = vmax.f32 %v3624, 0.0
    %v4736 = vmax.f32 %v2315, 0.0
    %v4737 = vmax.f32 %v2317, 0.0
    %v4738 = vmax.f32 %v3628, 0.0
    %v4739 = vmax.f32 %v3630, 0.0
    %v4740 = vmax.f32 %v2319, 0.0
    %v4741 = vmax.f32 %v2321, 0.0
    %v4742 = vmax.f32 %v3632, 0.0
    %v4743 = vmax.f32 %v3634, 0.0
    %v4744 = vmax.f32 %v2325, 0.0
    %v4745 = vmax.f32 %v2327, 0.0
    %v4746 = vmax.f32 %v3638, 0.0
    %v4747 = vmax.f32 %v3640, 0.0
    %v4748 = vmax.f32 %v2329, 0.0
    %v4749 = vmax.f32 %v2331, 0.0
    %v4750 = vmax.f32 %v3642, 0.0
    %v4751 = vmax.f32 %v3644, 0.0
    %v4752 = vmax.f32 %v2335, 0.0
    %v4753 = vmax.f32 %v2337, 0.0
    %v4754 = vmax.f32 %v3648, 0.0
    %v4755 = vmax.f32 %v3650, 0.0
    %v4756 = vmax.f32 %v2339, 0.0
    %v4757 = vmax.f32 %v2341, 0.0
    %v4758 = vmax.f32 %v3652, 0.0
    %v4759 = vmax.f32 %v3654, 0.0
    %v4760 = vmax.f32 %v2345, 0.0
    %v4761 = vmax.f32 %v2347, 0.0
    %v4762 = vmax.f32 %v3658, 0.0
    %v4763 = vmax.f32 %v3660, 0.0
    %v4764 = vmax.f32 %v2349, 0.0
    %v4765 = vmax.f32 %v2351, 0.0
    %v4766 = vmax.f32 %v3662, 0.0
    %v4767 = vmax.f32 %v3664, 0.0
    %v4768 = vmax.f32 %v2355, 0.0
    %v4769 = vmax.f32 %v2357, 0.0
    %v4770 = vmax.f32 %v3668, 0.0
    %v4771 = vmax.f32 %v3670, 0.0
    %v4772 = vmax.f32 %v2359, 0.0
    %v4773 = vmax.f32 %v2361, 0.0
    %v4774 = vmax.f32 %v3672, 0.0
    %v4775 = vmax.f32 %v3674, 0.0
    %v4776 = vmax.f32 %v2365, 0.0
    %v4777 = vmax.f32 %v2367, 0.0
    %v4778 = vmax.f32 %v3678, 0.0
    %v4779 = vmax.f32 %v3680, 0.0
    %v4780 = vmax.f32 %v2369, 0.0
    %v4781 = vmax.f32 %v2371, 0.0
    %v4782 = vmax.f32 %v3682, 0.0
    %v4783 = vmax.f32 %v3684, 0.0
    %v4784 = vmax.f32 %v2375, 0.0
    %v4785 = vmax.f32 %v2377, 0.0
    %v4786 = vmax.f32 %v3688, 0.0
    %v4787 = vmax.f32 %v3690, 0.0
    %v4788 = vmax.f32 %v2379, 0.0
    %v4789 = vmax.f32 %v2381, 0.0
    %v4790 = vmax.f32 %v3692, 0.0
    %v4791 = vmax.f32 %v3694, 0.0
    %v4792 = vmax.f32 %v2385, 0.0
    %v4793 = vmax.f32 %v2387, 0.0
    %v4794 = vmax.f32 %v3698, 0.0
    %v4795 = vmax.f32 %v3700, 0.0
    %v4796 = vmax.f32 %v2389, 0.0
    %v4797 = vmax.f32 %v2391, 0.0
    %v4798 = vmax.f32 %v3702, 0.0
    %v4799 = vmax.f32 %v3704, 0.0
    %v4800 = vmax.f32 %v2395, 0.0
    %v4801 = vmax.f32 %v2397, 0.0
    %v4802 = vmax.f32 %v3708, 0.0
    %v4803 = vmax.f32 %v3710, 0.0
    %v4804 = vmax.f32 %v2399, 0.0
    %v4805 = vmax.f32 %v2401, 0.0
    %v4806 = vmax.f32 %v3712, 0.0
    %v4807 = vmax.f32 %v3714, 0.0
    %v4808 = vmax.f32 %v2405, 0.0
    %v4809 = vmax.f32 %v2407, 0.0
    %v4810 = vmax.f32 %v3718, 0.0
    %v4811 = vmax.f32 %v3720, 0.0
    %v4812 = vmax.f32 %v2409, 0.0
    %v4813 = vmax.f32 %v2411, 0.0
    %v4814 = vmax.f32 %v3722, 0.0
    %v4815 = vmax.f32 %v3724, 0.0
    %v4816 = vmax.f32 %v2415, 0.0
    %v4817 = vmax.f32 %v2417, 0.0
    %v4818 = vmax.f32 %v3728, 0.0
    %v4819 = vmax.f32 %v3730, 0.0
    %v4820 = vmax.f32 %v2419, 0.0
    %v4821 = vmax.f32 %v2421, 0.0
    %v4822 = vmax.f32 %v3732, 0.0
    %v4823 = vmax.f32 %v3734, 0.0
    %v4824 = vmax.f32 %v2425, 0.0
    %v4825 = vmax.f32 %v2427, 0.0
    %v4826 = vmax.f32 %v3738, 0.0
    %v4827 = vmax.f32 %v3740, 0.0
    %v4828 = vmax.f32 %v2429, 0.0
    %v4829 = vmax.f32 %v2431, 0.0
    %v4830 = vmax.f32 %v3742, 0.0
    %v4831 = vmax.f32 %v3744, 0.0
    %v4832 = vmax.f32 %v2435, 0.0
    %v4833 = vmax.f32 %v2437, 0.0
    %v4834 = vmax.f32 %v3748, 0.0
    %v4835 = vmax.f32 %v3750, 0.0
    %v4836 = vmax.f32 %v2439, 0.0
    %v4837 = vmax.f32 %v2441, 0.0
    %v4838 = vmax.f32 %v3752, 0.0
    %v4839 = vmax.f32 %v3754, 0.0
    %v4840 = vmax.f32 %v2445, 0.0
    %v4841 = vmax.f32 %v2447, 0.0
    %v4842 = vmax.f32 %v3758, 0.0
    %v4843 = vmax.f32 %v3760, 0.0
    %v4844 = vmax.f32 %v2449, 0.0
    %v4845 = vmax.f32 %v2451, 0.0
    %v4846 = vmax.f32 %v3762, 0.0
    %v4847 = vmax.f32 %v3764, 0.0
    %v4848 = vmax.f32 %v2455, 0.0
    %v4849 = vmax.f32 %v2457, 0.0
    %v4850 = vmax.f32 %v3768, 0.0
    %v4851 = vmax.f32 %v3770, 0.0
    %v4852 = vmax.f32 %v2459, 0.0
    %v4853 = vmax.f32 %v2461, 0.0
    %v4854 = vmax.f32 %v3772, 0.0
    %v4855 = vmax.f32 %v3774, 0.0
    %v4856 = vmax.f32 %v2465, 0.0
    %v4857 = vmax.f32 %v2467, 0.0
    %v4858 = vmax.f32 %v3778, 0.0
    %v4859 = vmax.f32 %v3780, 0.0
    %v4860 = vmax.f32 %v2469, 0.0
    %v4861 = vmax.f32 %v2471, 0.0
    %v4862 = vmax.f32 %v3782, 0.0
    %v4863 = vmax.f32 %v3784, 0.0
    %v4864 = vmax.f32 %v2475, 0.0
    %v4865 = vmax.f32 %v2477, 0.0
    %v4866 = vmax.f32 %v3788, 0.0
    %v4867 = vmax.f32 %v3790, 0.0
    %v4868 = vmax.f32 %v2479, 0.0
    %v4869 = vmax.f32 %v2481, 0.0
    %v4870 = vmax.f32 %v3792, 0.0
    %v4871 = vmax.f32 %v3794, 0.0
    %v4872 = vmax.f32 %v2485, 0.0
    %v4873 = vmax.f32 %v2487, 0.0
    %v4874 = vmax.f32 %v3798, 0.0
    %v4875 = vmax.f32 %v3800, 0.0
    %v4876 = vmax.f32 %v2489, 0.0
    %v4877 = vmax.f32 %v2491, 0.0
    %v4878 = vmax.f32 %v3802, 0.0
    %v4879 = vmax.f32 %v3804, 0.0
    %v4880 = vmax.f32 %v2495, 0.0
    %v4881 = vmax.f32 %v2497, 0.0
    %v4882 = vmax.f32 %v3808, 0.0
    %v4883 = vmax.f32 %v3810, 0.0
    %v4884 = vmax.f32 %v2499, 0.0
    %v4885 = vmax.f32 %v2501, 0.0
    %v4886 = vmax.f32 %v3812, 0.0
    %v4887 = vmax.f32 %v3814, 0.0
    %v4888 = vmax.f32 %v2505, 0.0
    %v4889 = vmax.f32 %v2507, 0.0
    %v4890 = vmax.f32 %v3818, 0.0
    %v4891 = vmax.f32 %v3820, 0.0
    %v4892 = vmax.f32 %v2509, 0.0
    %v4893 = vmax.f32 %v2511, 0.0
    %v4894 = vmax.f32 %v3822, 0.0
    %v4895 = vmax.f32 %v3824, 0.0
    %v4896 = vmax.f32 %v2515, 0.0
    %v4897 = vmax.f32 %v2517, 0.0
    %v4898 = vmax.f32 %v3828, 0.0
    %v4899 = vmax.f32 %v3830, 0.0
    %v4900 = vmax.f32 %v2519, 0.0
    %v4901 = vmax.f32 %v2521, 0.0
    %v4902 = vmax.f32 %v3832, 0.0
    %v4903 = vmax.f32 %v3834, 0.0
    %v4904 = vmax.f32 %v2525, 0.0
    %v4905 = vmax.f32 %v2527, 0.0
    %v4906 = vmax.f32 %v3838, 0.0
    %v4907 = vmax.f32 %v3840, 0.0
    %v4908 = vmax.f32 %v2529, 0.0
    %v4909 = vmax.f32 %v2531, 0.0
    %v4910 = vmax.f32 %v3842, 0.0
    %v4911 = vmax.f32 %v3844, 0.0
    %v4912 = vmax.f32 %v2535, 0.0
    %v4913 = vmax.f32 %v2537, 0.0
    %v4914 = vmax.f32 %v3848, 0.0
    %v4915 = vmax.f32 %v3850, 0.0
    %v4916 = vmax.f32 %v2539, 0.0
    %v4917 = vmax.f32 %v2541, 0.0
    %v4918 = vmax.f32 %v3852, 0.0
    %v4919 = vmax.f32 %v3854, 0.0
    %v4920 = vmax.f32 %v2545, 0.0
    %v4921 = vmax.f32 %v2547, 0.0
    %v4922 = vmax.f32 %v3858, 0.0
    %v4923 = vmax.f32 %v3860, 0.0
    %v4924 = vmax.f32 %v2549, 0.0
    %v4925 = vmax.f32 %v2551, 0.0
    %v4926 = vmax.f32 %v3862, 0.0
    %v4927 = vmax.f32 %v3864, 0.0
    %v4928 = vmax.f32 %v2555, 0.0
    %v4929 = vmax.f32 %v2557, 0.0
    %v4930 = vmax.f32 %v3868, 0.0
    %v4931 = vmax.f32 %v3870, 0.0
    %v4932 = vmax.f32 %v2559, 0.0
    %v4933 = vmax.f32 %v2561, 0.0
    %v4934 = vmax.f32 %v3872, 0.0
    %v4935 = vmax.f32 %v3874, 0.0
    %v4936 = vmax.f32 %v2565, 0.0
    %v4937 = vmax.f32 %v2567, 0.0
    %v4938 = vmax.f32 %v3878, 0.0
    %v4939 = vmax.f32 %v3880, 0.0
    %v4940 = vmax.f32 %v2569, 0.0
    %v4941 = vmax.f32 %v2571, 0.0
    %v4942 = vmax.f32 %v3882, 0.0
    %v4943 = vmax.f32 %v3884, 0.0
    %v4944 = vmax.f32 %v2575, 0.0
    %v4945 = vmax.f32 %v2577, 0.0
    %v4946 = vmax.f32 %v3888, 0.0
    %v4947 = vmax.f32 %v3890, 0.0
    %v4948 = vmax.f32 %v2579, 0.0
    %v4949 = vmax.f32 %v2581, 0.0
    %v4950 = vmax.f32 %v3892, 0.0
    %v4951 = vmax.f32 %v3894, 0.0
    %v4952 = vmax.f32 %v2585, 0.0
    %v4953 = vmax.f32 %v2587, 0.0
    %v4954 = vmax.f32 %v3898, 0.0
    %v4955 = vmax.f32 %v3900, 0.0
    %v4956 = vmax.f32 %v2589, 0.0
    %v4957 = vmax.f32 %v2591, 0.0
    %v4958 = vmax.f32 %v3902, 0.0
    %v4959 = vmax.f32 %v3904, 0.0
    %v4960 = vmax.f32 %v2595, 0.0
    %v4961 = vmax.f32 %v2597, 0.0
    %v4962 = vmax.f32 %v3908, 0.0
    %v4963 = vmax.f32 %v3910, 0.0
    %v4964 = vmax.f32 %v2599, 0.0
    %v4965 = vmax.f32 %v2601, 0.0
    %v4966 = vmax.f32 %v3912, 0.0
    %v4967 = vmax.f32 %v3914, 0.0
    %v4968 = vmax.f32 %v2605, 0.0
    %v4969 = vmax.f32 %v2607, 0.0
    %v4970 = vmax.f32 %v3918, 0.0
    %v4971 = vmax.f32 %v3920, 0.0
    %v4972 = vmax.f32 %v2609, 0.0
    %v4973 = vmax.f32 %v2611, 0.0
    %v4974 = vmax.f32 %v3922, 0.0
    %v4975 = vmax.f32 %v3924, 0.0
    %v4976 = vmax.f32 %v2615, 0.0
    %v4977 = vmax.f32 %v2617, 0.0
    %v4978 = vmax.f32 %v3928, 0.0
    %v4979 = vmax.f32 %v3930, 0.0
    %v4980 = vmax.f32 %v2619, 0.0
    %v4981 = vmax.f32 %v2621, 0.0
    %v4982 = vmax.f32 %v3932, 0.0
    %v4983 = vmax.f32 %v3934, 0.0
    %v4984 = vmax.f32 %v2625, 0.0
    %v4985 = vmax.f32 %v2627, 0.0
    %v4986 = vmax.f32 %v3938, 0.0
    %v4987 = vmax.f32 %v3940, 0.0
    %v4988 = vmax.f32 %v2629, 0.0
    %v4989 = vmax.f32 %v2631, 0.0
    %v4990 = vmax.f32 %v3942, 0.0
    %v4991 = vmax.f32 %v3944, 0.0
    %v4992 = vmax.f32 %v2635, 0.0
    %v4993 = vmax.f32 %v2637, 0.0
    %v4994 = vmax.f32 %v3948, 0.0
    %v4995 = vmax.f32 %v3950, 0.0
    %v4996 = vmax.f32 %v2639, 0.0
    %v4997 = vmax.f32 %v2641, 0.0
    %v4998 = vmax.f32 %v3952, 0.0
    %v4999 = vmax.f32 %v3954, 0.0
    %v5000 = vmax.f32 %v2645, 0.0
    %v5001 = vmax.f32 %v2647, 0.0
    %v5002 = vmax.f32 %v3958, 0.0
    %v5003 = vmax.f32 %v3960, 0.0
    %v5004 = vmax.f32 %v2649, 0.0
    %v5005 = vmax.f32 %v2651, 0.0
    %v5006 = vmax.f32 %v3962, 0.0
    %v5007 = vmax.f32 %v3964, 0.0
    %v5008 = vmax.f32 %v2655, 0.0
    %v5009 = vmax.f32 %v2657, 0.0
    %v5010 = vmax.f32 %v3968, 0.0
    %v5011 = vmax.f32 %v3970, 0.0
    %v5012 = vmax.f32 %v2659, 0.0
    %v5013 = vmax.f32 %v2661, 0.0
    %v5014 = vmax.f32 %v3972, 0.0
    %v5015 = vmax.f32 %v3974, 0.0
    %v5016 = vmax.f32 %v2665, 0.0
    %v5017 = vmax.f32 %v2667, 0.0
    %v5018 = vmax.f32 %v3978, 0.0
    %v5019 = vmax.f32 %v3980, 0.0
    %v5020 = vmax.f32 %v2669, 0.0
    %v5021 = vmax.f32 %v2671, 0.0
    %v5022 = vmax.f32 %v3982, 0.0
    %v5023 = vmax.f32 %v3984, 0.0
    %v5024 = vmax.f32 %v2675, 0.0
    %v5025 = vmax.f32 %v2677, 0.0
    %v5026 = vmax.f32 %v3988, 0.0
    %v5027 = vmax.f32 %v3990, 0.0
    %v5028 = vmax.f32 %v2679, 0.0
    %v5029 = vmax.f32 %v2681, 0.0
    %v5030 = vmax.f32 %v3992, 0.0
    %v5031 = vmax.f32 %v3994, 0.0
    %v5032 = vmax.f32 %v2685, 0.0
    %v5033 = vmax.f32 %v2687, 0.0
    %v5034 = vmax.f32 %v3998, 0.0
    %v5035 = vmax.f32 %v4000, 0.0
    %v5036 = vmax.f32 %v2689, 0.0
    %v5037 = vmax.f32 %v2691, 0.0
    %v5038 = vmax.f32 %v4002, 0.0
    %v5039 = vmax.f32 %v4004, 0.0
    %v5040 = vmax.f32 %v2695, 0.0
    %v5041 = vmax.f32 %v2697, 0.0
    %v5042 = vmax.f32 %v4008, 0.0
    %v5043 = vmax.f32 %v4010, 0.0
    %v5044 = vmax.f32 %v2699, 0.0
    %v5045 = vmax.f32 %v2701, 0.0
    %v5046 = vmax.f32 %v4012, 0.0
    %v5047 = vmax.f32 %v4014, 0.0
    %v5048 = vmax.f32 %v2705, 0.0
    %v5049 = vmax.f32 %v2707, 0.0
    %v5050 = vmax.f32 %v4018, 0.0
    %v5051 = vmax.f32 %v4020, 0.0
    %v5052 = vmax.f32 %v2709, 0.0
    %v5053 = vmax.f32 %v2711, 0.0
    %v5054 = vmax.f32 %v4022, 0.0
    %v5055 = vmax.f32 %v4024, 0.0
    %v5056 = vmax.f32 %v2715, 0.0
    %v5057 = vmax.f32 %v2717, 0.0
    %v5058 = vmax.f32 %v4028, 0.0
    %v5059 = vmax.f32 %v4030, 0.0
    %v5060 = vmax.f32 %v2719, 0.0
    %v5061 = vmax.f32 %v2721, 0.0
    %v5062 = vmax.f32 %v4032, 0.0
    %v5063 = vmax.f32 %v4034, 0.0
    %v5064 = vmax.f32 %v2725, 0.0
    %v5065 = vmax.f32 %v2727, 0.0
    %v5066 = vmax.f32 %v4038, 0.0
    %v5067 = vmax.f32 %v4040, 0.0
    %v5068 = vmax.f32 %v2729, 0.0
    %v5069 = vmax.f32 %v2731, 0.0
    %v5070 = vmax.f32 %v4042, 0.0
    %v5071 = vmax.f32 %v4044, 0.0
    %v5072 = vmax.f32 %v2735, 0.0
    %v5073 = vmax.f32 %v2737, 0.0
    %v5074 = vmax.f32 %v4048, 0.0
    %v5075 = vmax.f32 %v4050, 0.0
    %v5076 = vmax.f32 %v2739, 0.0
    %v5077 = vmax.f32 %v2741, 0.0
    %v5078 = vmax.f32 %v4052, 0.0
    %v5079 = vmax.f32 %v4054, 0.0
    %v5080 = vld [vmem:[#allocation2] sm:$0xff]
    %v5081 = vld [vmem:[#allocation2 + $0x8] sm:$0xff]
    %v5082 = vld [vmem:[#allocation2 + $0x10] sm:$0xff]
    %v5083 = vld [vmem:[#allocation2 + $0x18] sm:$0xff]
    %v5084 = vadd.f32 %v4056, %v4060
    %v5085 = vadd.f32 %v5084, %v4064
    %v5086 = vadd.f32 %v5085, %v4068
    %v5087 = vadd.f32 %v5086, %v4072
    %v5088 = vadd.f32 %v5087, %v4076
    %v5089 = vadd.f32 %v5088, %v4080
    %v5090 = vadd.f32 %v5089, %v4084
    %v5091 = vadd.f32 %v5090, %v4088
    %v5092 = vadd.f32 %v5091, %v4092
    %v5093 = vadd.f32 %v5092, %v4096
    %v5094 = vadd.f32 %v5093, %v4100
    %v5095 = vadd.f32 %v5094, %v4104
    %v5096 = vadd.f32 %v5095, %v4108
    %v5097 = vadd.f32 %v5096, %v4112
    %v5098 = vadd.f32 %v5097, %v4116
    %v5099 = vadd.f32 %v5098, %v4120
    %v5100 = vadd.f32 %v5099, %v4124
    %v5101 = vadd.f32 %v5100, %v4128
    %v5102 = vadd.f32 %v5101, %v4132
    %v5103 = vadd.f32 %v5102, %v4136
    %v5104 = vadd.f32 %v5103, %v4140
    %v5105 = vadd.f32 %v5104, %v4144
    %v5106 = vadd.f32 %v5105, %v4148
    %v5107 = vadd.f32 %v5106, %v4152
    %v5108 = vadd.f32 %v5107, %v4156
    %v5109 = vadd.f32 %v5108, %v4160
    %v5110 = vadd.f32 %v5109, %v4164
    %v5111 = vadd.f32 %v5110, %v4168
    %v5112 = vadd.f32 %v5111, %v4172
    %v5113 = vadd.f32 %v5112, %v4176
    %v5114 = vadd.f32 %v5113, %v4180
    %v5115 = vrot.slane %v5114, 4
    %v5116 = vadd.f32 %v5114, %v5115
    %v5117 = vrot.slane %v5116, 2
    %v5118 = vadd.f32 %v5116, %v5117
    %v5119 = vrot.slane %v5118, 1
    %v5120 = vadd.f32 %v5118, %v5119
    %v5121 = vadd.f32 %v4057, %v4061
    %v5122 = vadd.f32 %v5121, %v4065
    %v5123 = vadd.f32 %v5122, %v4069
    %v5124 = vadd.f32 %v5123, %v4073
    %v5125 = vadd.f32 %v5124, %v4077
    %v5126 = vadd.f32 %v5125, %v4081
    %v5127 = vadd.f32 %v5126, %v4085
    %v5128 = vadd.f32 %v5127, %v4089
    %v5129 = vadd.f32 %v5128, %v4093
    %v5130 = vadd.f32 %v5129, %v4097
    %v5131 = vadd.f32 %v5130, %v4101
    %v5132 = vadd.f32 %v5131, %v4105
    %v5133 = vadd.f32 %v5132, %v4109
    %v5134 = vadd.f32 %v5133, %v4113
    %v5135 = vadd.f32 %v5134, %v4117
    %v5136 = vadd.f32 %v5135, %v4121
    %v5137 = vadd.f32 %v5136, %v4125
    %v5138 = vadd.f32 %v5137, %v4129
    %v5139 = vadd.f32 %v5138, %v4133
    %v5140 = vadd.f32 %v5139, %v4137
    %v5141 = vadd.f32 %v5140, %v4141
    %v5142 = vadd.f32 %v5141, %v4145
    %v5143 = vadd.f32 %v5142, %v4149
    %v5144 = vadd.f32 %v5143, %v4153
    %v5145 = vadd.f32 %v5144, %v4157
    %v5146 = vadd.f32 %v5145, %v4161
    %v5147 = vadd.f32 %v5146, %v4165
    %v5148 = vadd.f32 %v5147, %v4169
    %v5149 = vadd.f32 %v5148, %v4173
    %v5150 = vadd.f32 %v5149, %v4177
    %v5151 = vadd.f32 %v5150, %v4181
    %v5152 = vrot.slane %v5151, 4
    %v5153 = vadd.f32 %v5151, %v5152
    %v5154 = vrot.slane %v5153, 2
    %v5155 = vadd.f32 %v5153, %v5154
    %v5156 = vrot.slane %v5155, 1
    %v5157 = vadd.f32 %v5155, %v5156
    %v5158 = vadd.f32 %v4058, %v4062
    %v5159 = vadd.f32 %v5158, %v4066
    %v5160 = vadd.f32 %v5159, %v4070
    %v5161 = vadd.f32 %v5160, %v4074
    %v5162 = vadd.f32 %v5161, %v4078
    %v5163 = vadd.f32 %v5162, %v4082
    %v5164 = vadd.f32 %v5163, %v4086
    %v5165 = vadd.f32 %v5164, %v4090
    %v5166 = vadd.f32 %v5165, %v4094
    %v5167 = vadd.f32 %v5166, %v4098
    %v5168 = vadd.f32 %v5167, %v4102
    %v5169 = vadd.f32 %v5168, %v4106
    %v5170 = vadd.f32 %v5169, %v4110
    %v5171 = vadd.f32 %v5170, %v4114
    %v5172 = vadd.f32 %v5171, %v4118
    %v5173 = vadd.f32 %v5172, %v4122
    %v5174 = vadd.f32 %v5173, %v4126
    %v5175 = vadd.f32 %v5174, %v4130
    %v5176 = vadd.f32 %v5175, %v4134
    %v5177 = vadd.f32 %v5176, %v4138
    %v5178 = vadd.f32 %v5177, %v4142
    %v5179 = vadd.f32 %v5178, %v4146
    %v5180 = vadd.f32 %v5179, %v4150
    %v5181 = vadd.f32 %v5180, %v4154
    %v5182 = vadd.f32 %v5181, %v4158
    %v5183 = vadd.f32 %v5182, %v4162
    %v5184 = vadd.f32 %v5183, %v4166
    %v5185 = vadd.f32 %v5184, %v4170
    %v5186 = vadd.f32 %v5185, %v4174
    %v5187 = vadd.f32 %v5186, %v4178
    %v5188 = vadd.f32 %v5187, %v4182
    %v5189 = vrot.slane %v5188, 4
    %v5190 = vadd.f32 %v5188, %v5189
    %v5191 = vrot.slane %v5190, 2
    %v5192 = vadd.f32 %v5190, %v5191
    %v5193 = vrot.slane %v5192, 1
    %v5194 = vadd.f32 %v5192, %v5193
    %v5195 = vadd.f32 %v4059, %v4063
    %v5196 = vadd.f32 %v5195, %v4067
    %v5197 = vadd.f32 %v5196, %v4071
    %v5198 = vadd.f32 %v5197, %v4075
    %v5199 = vadd.f32 %v5198, %v4079
    %v5200 = vadd.f32 %v5199, %v4083
    %v5201 = vadd.f32 %v5200, %v4087
    %v5202 = vadd.f32 %v5201, %v4091
    %v5203 = vadd.f32 %v5202, %v4095
    %v5204 = vadd.f32 %v5203, %v4099
    %v5205 = vadd.f32 %v5204, %v4103
    %v5206 = vadd.f32 %v5205, %v4107
    %v5207 = vadd.f32 %v5206, %v4111
    %v5208 = vadd.f32 %v5207, %v4115
    %v5209 = vadd.f32 %v5208, %v4119
    %v5210 = vadd.f32 %v5209, %v4123
    %v5211 = vadd.f32 %v5210, %v4127
    %v5212 = vadd.f32 %v5211, %v4131
    %v5213 = vadd.f32 %v5212, %v4135
    %v5214 = vadd.f32 %v5213, %v4139
    %v5215 = vadd.f32 %v5214, %v4143
    %v5216 = vadd.f32 %v5215, %v4147
    %v5217 = vadd.f32 %v5216, %v4151
    %v5218 = vadd.f32 %v5217, %v4155
    %v5219 = vadd.f32 %v5218, %v4159
    %v5220 = vadd.f32 %v5219, %v4163
    %v5221 = vadd.f32 %v5220, %v4167
    %v5222 = vadd.f32 %v5221, %v4171
    %v5223 = vadd.f32 %v5222, %v4175
    %v5224 = vadd.f32 %v5223, %v4179
    %v5225 = vadd.f32 %v5224, %v4183
    %v5226 = vrot.slane %v5225, 4
    %v5227 = vadd.f32 %v5225, %v5226
    %v5228 = vrot.slane %v5227, 2
    %v5229 = vadd.f32 %v5227, %v5228
    %v5230 = vrot.slane %v5229, 1
    %v5231 = vadd.f32 %v5229, %v5230
    %v5232 = vadd.f32 %v4184, %v4188
    %v5233 = vadd.f32 %v5232, %v4192
    %v5234 = vadd.f32 %v5233, %v4196
    %v5235 = vadd.f32 %v5234, %v4200
    %v5236 = vadd.f32 %v5235, %v4204
    %v5237 = vadd.f32 %v5236, %v4208
    %v5238 = vadd.f32 %v5237, %v4212
    %v5239 = vadd.f32 %v5238, %v4216
    %v5240 = vadd.f32 %v5239, %v4220
    %v5241 = vadd.f32 %v5240, %v4224
    %v5242 = vadd.f32 %v5241, %v4228
    %v5243 = vadd.f32 %v5242, %v4232
    %v5244 = vadd.f32 %v5243, %v4236
    %v5245 = vadd.f32 %v5244, %v4240
    %v5246 = vadd.f32 %v5245, %v4244
    %v5247 = vadd.f32 %v5246, %v4248
    %v5248 = vadd.f32 %v5247, %v4252
    %v5249 = vadd.f32 %v5248, %v4256
    %v5250 = vadd.f32 %v5249, %v4260
    %v5251 = vadd.f32 %v5250, %v4264
    %v5252 = vadd.f32 %v5251, %v4268
    %v5253 = vadd.f32 %v5252, %v4272
    %v5254 = vadd.f32 %v5253, %v4276
    %v5255 = vadd.f32 %v5254, %v4280
    %v5256 = vadd.f32 %v5255, %v4284
    %v5257 = vadd.f32 %v5256, %v4288
    %v5258 = vadd.f32 %v5257, %v4292
    %v5259 = vadd.f32 %v5258, %v4296
    %v5260 = vadd.f32 %v5259, %v4300
    %v5261 = vadd.f32 %v5260, %v4304
    %v5262 = vadd.f32 %v5261, %v4308
    %v5263 = vrot.slane %v5262, 4
    %v5264 = vadd.f32 %v5262, %v5263
    %v5265 = vrot.slane %v5264, 2
    %v5266 = vadd.f32 %v5264, %v5265
    %v5267 = vrot.slane %v5266, 1
    %v5268 = vadd.f32 %v5266, %v5267
    %v5269 = vadd.f32 %v4185, %v4189
    %v5270 = vadd.f32 %v5269, %v4193
    %v5271 = vadd.f32 %v5270, %v4197
    %v5272 = vadd.f32 %v5271, %v4201
    %v5273 = vadd.f32 %v5272, %v4205
    %v5274 = vadd.f32 %v5273, %v4209
    %v5275 = vadd.f32 %v5274, %v4213
    %v5276 = vadd.f32 %v5275, %v4217
    %v5277 = vadd.f32 %v5276, %v4221
    %v5278 = vadd.f32 %v5277, %v4225
    %v5279 = vadd.f32 %v5278, %v4229
    %v5280 = vadd.f32 %v5279, %v4233
    %v5281 = vadd.f32 %v5280, %v4237
    %v5282 = vadd.f32 %v5281, %v4241
    %v5283 = vadd.f32 %v5282, %v4245
    %v5284 = vadd.f32 %v5283, %v4249
    %v5285 = vadd.f32 %v5284, %v4253
    %v5286 = vadd.f32 %v5285, %v4257
    %v5287 = vadd.f32 %v5286, %v4261
    %v5288 = vadd.f32 %v5287, %v4265
    %v5289 = vadd.f32 %v5288, %v4269
    %v5290 = vadd.f32 %v5289, %v4273
    %v5291 = vadd.f32 %v5290, %v4277
    %v5292 = vadd.f32 %v5291, %v4281
    %v5293 = vadd.f32 %v5292, %v4285
    %v5294 = vadd.f32 %v5293, %v4289
    %v5295 = vadd.f32 %v5294, %v4293
    %v5296 = vadd.f32 %v5295, %v4297
    %v5297 = vadd.f32 %v5296, %v4301
    %v5298 = vadd.f32 %v5297, %v4305
    %v5299 = vadd.f32 %v5298, %v4309
    %v5300 = vrot.slane %v5299, 4
    %v5301 = vadd.f32 %v5299, %v5300
    %v5302 = vrot.slane %v5301, 2
    %v5303 = vadd.f32 %v5301, %v5302
    %v5304 = vrot.slane %v5303, 1
    %v5305 = vadd.f32 %v5303, %v5304
    %v5306 = vadd.f32 %v4186, %v4190
    %v5307 = vadd.f32 %v5306, %v4194
    %v5308 = vadd.f32 %v5307, %v4198
    %v5309 = vadd.f32 %v5308, %v4202
    %v5310 = vadd.f32 %v5309, %v4206
    %v5311 = vadd.f32 %v5310, %v4210
    %v5312 = vadd.f32 %v5311, %v4214
    %v5313 = vadd.f32 %v5312, %v4218
    %v5314 = vadd.f32 %v5313, %v4222
    %v5315 = vadd.f32 %v5314, %v4226
    %v5316 = vadd.f32 %v5315, %v4230
    %v5317 = vadd.f32 %v5316, %v4234
    %v5318 = vadd.f32 %v5317, %v4238
    %v5319 = vadd.f32 %v5318, %v4242
    %v5320 = vadd.f32 %v5319, %v4246
    %v5321 = vadd.f32 %v5320, %v4250
    %v5322 = vadd.f32 %v5321, %v4254
    %v5323 = vadd.f32 %v5322, %v4258
    %v5324 = vadd.f32 %v5323, %v4262
    %v5325 = vadd.f32 %v5324, %v4266
    %v5326 = vadd.f32 %v5325, %v4270
    %v5327 = vadd.f32 %v5326, %v4274
    %v5328 = vadd.f32 %v5327, %v4278
    %v5329 = vadd.f32 %v5328, %v4282
    %v5330 = vadd.f32 %v5329, %v4286
    %v5331 = vadd.f32 %v5330, %v4290
    %v5332 = vadd.f32 %v5331, %v4294
    %v5333 = vadd.f32 %v5332, %v4298
    %v5334 = vadd.f32 %v5333, %v4302
    %v5335 = vadd.f32 %v5334, %v4306
    %v5336 = vadd.f32 %v5335, %v4310
    %v5337 = vrot.slane %v5336, 4
    %v5338 = vadd.f32 %v5336, %v5337
    %v5339 = vrot.slane %v5338, 2
    %v5340 = vadd.f32 %v5338, %v5339
    %v5341 = vrot.slane %v5340, 1
    %v5342 = vadd.f32 %v5340, %v5341
    %v5343 = vadd.f32 %v4187, %v4191
    %v5344 = vadd.f32 %v5343, %v4195
    %v5345 = vadd.f32 %v5344, %v4199
    %v5346 = vadd.f32 %v5345, %v4203
    %v5347 = vadd.f32 %v5346, %v4207
    %v5348 = vadd.f32 %v5347, %v4211
    %v5349 = vadd.f32 %v5348, %v4215
    %v5350 = vadd.f32 %v5349, %v4219
    %v5351 = vadd.f32 %v5350, %v4223
    %v5352 = vadd.f32 %v5351, %v4227
    %v5353 = vadd.f32 %v5352, %v4231
    %v5354 = vadd.f32 %v5353, %v4235
    %v5355 = vadd.f32 %v5354, %v4239
    %v5356 = vadd.f32 %v5355, %v4243
    %v5357 = vadd.f32 %v5356, %v4247
    %v5358 = vadd.f32 %v5357, %v4251
    %v5359 = vadd.f32 %v5358, %v4255
    %v5360 = vadd.f32 %v5359, %v4259
    %v5361 = vadd.f32 %v5360, %v4263
    %v5362 = vadd.f32 %v5361, %v4267
    %v5363 = vadd.f32 %v5362, %v4271
    %v5364 = vadd.f32 %v5363, %v4275
    %v5365 = vadd.f32 %v5364, %v4279
    %v5366 = vadd.f32 %v5365, %v4283
    %v5367 = vadd.f32 %v5366, %v4287
    %v5368 = vadd.f32 %v5367, %v4291
    %v5369 = vadd.f32 %v5368, %v4295
    %v5370 = vadd.f32 %v5369, %v4299
    %v5371 = vadd.f32 %v5370, %v4303
    %v5372 = vadd.f32 %v5371, %v4307
    %v5373 = vadd.f32 %v5372, %v4311
    %v5374 = vrot.slane %v5373, 4
    %v5375 = vadd.f32 %v5373, %v5374
    %v5376 = vrot.slane %v5375, 2
    %v5377 = vadd.f32 %v5375, %v5376
    %v5378 = vrot.slane %v5377, 1
    %v5379 = vadd.f32 %v5377, %v5378
    %v5380 = vadd.f32 %v4312, %v4316
    %v5381 = vadd.f32 %v5380, %v4320
    %v5382 = vadd.f32 %v5381, %v4324
    %v5383 = vadd.f32 %v5382, %v4328
    %v5384 = vadd.f32 %v5383, %v4332
    %v5385 = vadd.f32 %v5384, %v4336
    %v5386 = vadd.f32 %v5385, %v4340
    %v5387 = vadd.f32 %v5386, %v4344
    %v5388 = vadd.f32 %v5387, %v4348
    %v5389 = vadd.f32 %v5388, %v4352
    %v5390 = vadd.f32 %v5389, %v4356
    %v5391 = vadd.f32 %v5390, %v4360
    %v5392 = vadd.f32 %v5391, %v4364
    %v5393 = vadd.f32 %v5392, %v4368
    %v5394 = vadd.f32 %v5393, %v4372
    %v5395 = vadd.f32 %v5394, %v4376
    %v5396 = vadd.f32 %v5395, %v4380
    %v5397 = vadd.f32 %v5396, %v4384
    %v5398 = vadd.f32 %v5397, %v4388
    %v5399 = vadd.f32 %v5398, %v4392
    %v5400 = vadd.f32 %v5399, %v4396
    %v5401 = vadd.f32 %v5400, %v4400
    %v5402 = vadd.f32 %v5401, %v4404
    %v5403 = vadd.f32 %v5402, %v4408
    %v5404 = vadd.f32 %v5403, %v4412
    %v5405 = vadd.f32 %v5404, %v4416
    %v5406 = vadd.f32 %v5405, %v4420
    %v5407 = vadd.f32 %v5406, %v4424
    %v5408 = vadd.f32 %v5407, %v4428
    %v5409 = vadd.f32 %v5408, %v4432
    %v5410 = vadd.f32 %v5409, %v4436
    %v5411 = vrot.slane %v5410, 4
    %v5412 = vadd.f32 %v5410, %v5411
    %v5413 = vrot.slane %v5412, 2
    %v5414 = vadd.f32 %v5412, %v5413
    %v5415 = vrot.slane %v5414, 1
    %v5416 = vadd.f32 %v5414, %v5415
    %v5417 = vadd.f32 %v4313, %v4317
    %v5418 = vadd.f32 %v5417, %v4321
    %v5419 = vadd.f32 %v5418, %v4325
    %v5420 = vadd.f32 %v5419, %v4329
    %v5421 = vadd.f32 %v5420, %v4333
    %v5422 = vadd.f32 %v5421, %v4337
    %v5423 = vadd.f32 %v5422, %v4341
    %v5424 = vadd.f32 %v5423, %v4345
    %v5425 = vadd.f32 %v5424, %v4349
    %v5426 = vadd.f32 %v5425, %v4353
    %v5427 = vadd.f32 %v5426, %v4357
    %v5428 = vadd.f32 %v5427, %v4361
    %v5429 = vadd.f32 %v5428, %v4365
    %v5430 = vadd.f32 %v5429, %v4369
    %v5431 = vadd.f32 %v5430, %v4373
    %v5432 = vadd.f32 %v5431, %v4377
    %v5433 = vadd.f32 %v5432, %v4381
    %v5434 = vadd.f32 %v5433, %v4385
    %v5435 = vadd.f32 %v5434, %v4389
    %v5436 = vadd.f32 %v5435, %v4393
    %v5437 = vadd.f32 %v5436, %v4397
    %v5438 = vadd.f32 %v5437, %v4401
    %v5439 = vadd.f32 %v5438, %v4405
    %v5440 = vadd.f32 %v5439, %v4409
    %v5441 = vadd.f32 %v5440, %v4413
    %v5442 = vadd.f32 %v5441, %v4417
    %v5443 = vadd.f32 %v5442, %v4421
    %v5444 = vadd.f32 %v5443, %v4425
    %v5445 = vadd.f32 %v5444, %v4429
    %v5446 = vadd.f32 %v5445, %v4433
    %v5447 = vadd.f32 %v5446, %v4437
    %v5448 = vrot.slane %v5447, 4
    %v5449 = vadd.f32 %v5447, %v5448
    %v5450 = vrot.slane %v5449, 2
    %v5451 = vadd.f32 %v5449, %v5450
    %v5452 = vrot.slane %v5451, 1
    %v5453 = vadd.f32 %v5451, %v5452
    %v5454 = vadd.f32 %v4314, %v4318
    %v5455 = vadd.f32 %v5454, %v4322
    %v5456 = vadd.f32 %v5455, %v4326
    %v5457 = vadd.f32 %v5456, %v4330
    %v5458 = vadd.f32 %v5457, %v4334
    %v5459 = vadd.f32 %v5458, %v4338
    %v5460 = vadd.f32 %v5459, %v4342
    %v5461 = vadd.f32 %v5460, %v4346
    %v5462 = vadd.f32 %v5461, %v4350
    %v5463 = vadd.f32 %v5462, %v4354
    %v5464 = vadd.f32 %v5463, %v4358
    %v5465 = vadd.f32 %v5464, %v4362
    %v5466 = vadd.f32 %v5465, %v4366
    %v5467 = vadd.f32 %v5466, %v4370
    %v5468 = vadd.f32 %v5467, %v4374
    %v5469 = vadd.f32 %v5468, %v4378
    %v5470 = vadd.f32 %v5469, %v4382
    %v5471 = vadd.f32 %v5470, %v4386
    %v5472 = vadd.f32 %v5471, %v4390
    %v5473 = vadd.f32 %v5472, %v4394
    %v5474 = vadd.f32 %v5473, %v4398
    %v5475 = vadd.f32 %v5474, %v4402
    %v5476 = vadd.f32 %v5475, %v4406
    %v5477 = vadd.f32 %v5476, %v4410
    %v5478 = vadd.f32 %v5477, %v4414
    %v5479 = vadd.f32 %v5478, %v4418
    %v5480 = vadd.f32 %v5479, %v4422
    %v5481 = vadd.f32 %v5480, %v4426
    %v5482 = vadd.f32 %v5481, %v4430
    %v5483 = vadd.f32 %v5482, %v4434
    %v5484 = vadd.f32 %v5483, %v4438
    %v5485 = vrot.slane %v5484, 4
    %v5486 = vadd.f32 %v5484, %v5485
    %v5487 = vrot.slane %v5486, 2
    %v5488 = vadd.f32 %v5486, %v5487
    %v5489 = vrot.slane %v5488, 1
    %v5490 = vadd.f32 %v5488, %v5489
    %v5491 = vadd.f32 %v4315, %v4319
    %v5492 = vadd.f32 %v5491, %v4323
    %v5493 = vadd.f32 %v5492, %v4327
    %v5494 = vadd.f32 %v5493, %v4331
    %v5495 = vadd.f32 %v5494, %v4335
    %v5496 = vadd.f32 %v5495, %v4339
    %v5497 = vadd.f32 %v5496, %v4343
    %v5498 = vadd.f32 %v5497, %v4347
    %v5499 = vadd.f32 %v5498, %v4351
    %v5500 = vadd.f32 %v5499, %v4355
    %v5501 = vadd.f32 %v5500, %v4359
    %v5502 = vadd.f32 %v5501, %v4363
    %v5503 = vadd.f32 %v5502, %v4367
    %v5504 = vadd.f32 %v5503, %v4371
    %v5505 = vadd.f32 %v5504, %v4375
    %v5506 = vadd.f32 %v5505, %v4379
    %v5507 = vadd.f32 %v5506, %v4383
    %v5508 = vadd.f32 %v5507, %v4387
    %v5509 = vadd.f32 %v5508, %v4391
    %v5510 = vadd.f32 %v5509, %v4395
    %v5511 = vadd.f32 %v5510, %v4399
    %v5512 = vadd.f32 %v5511, %v4403
    %v5513 = vadd.f32 %v5512, %v4407
    %v5514 = vadd.f32 %v5513, %v4411
    %v5515 = vadd.f32 %v5514, %v4415
    %v5516 = vadd.f32 %v5515, %v4419
    %v5517 = vadd.f32 %v5516, %v4423
    %v5518 = vadd.f32 %v5517, %v4427
    %v5519 = vadd.f32 %v5518, %v4431
    %v5520 = vadd.f32 %v5519, %v4435
    %v5521 = vadd.f32 %v5520, %v4439
    %v5522 = vrot.slane %v5521, 4
    %v5523 = vadd.f32 %v5521, %v5522
    %v5524 = vrot.slane %v5523, 2
    %v5525 = vadd.f32 %v5523, %v5524
    %v5526 = vrot.slane %v5525, 1
    %v5527 = vadd.f32 %v5525, %v5526
    %v5528 = vadd.f32 %v4440, %v4444
    %v5529 = vadd.f32 %v5528, %v4448
    %v5530 = vadd.f32 %v5529, %v4452
    %v5531 = vadd.f32 %v5530, %v4456
    %v5532 = vadd.f32 %v5531, %v4460
    %v5533 = vadd.f32 %v5532, %v4464
    %v5534 = vadd.f32 %v5533, %v4468
    %v5535 = vadd.f32 %v5534, %v4472
    %v5536 = vadd.f32 %v5535, %v4476
    %v5537 = vadd.f32 %v5536, %v4480
    %v5538 = vadd.f32 %v5537, %v4484
    %v5539 = vadd.f32 %v5538, %v4488
    %v5540 = vadd.f32 %v5539, %v4492
    %v5541 = vadd.f32 %v5540, %v4496
    %v5542 = vadd.f32 %v5541, %v4500
    %v5543 = vadd.f32 %v5542, %v4504
    %v5544 = vadd.f32 %v5543, %v4508
    %v5545 = vadd.f32 %v5544, %v4512
    %v5546 = vadd.f32 %v5545, %v4516
    %v5547 = vadd.f32 %v5546, %v4520
    %v5548 = vadd.f32 %v5547, %v4524
    %v5549 = vadd.f32 %v5548, %v4528
    %v5550 = vadd.f32 %v5549, %v4532
    %v5551 = vadd.f32 %v5550, %v4536
    %v5552 = vadd.f32 %v5551, %v4540
    %v5553 = vadd.f32 %v5552, %v4544
    %v5554 = vadd.f32 %v5553, %v4548
    %v5555 = vadd.f32 %v5554, %v4552
    %v5556 = vadd.f32 %v5555, %v4556
    %v5557 = vadd.f32 %v5556, %v4560
    %v5558 = vadd.f32 %v5557, %v4564
    %v5559 = vrot.slane %v5558, 4
    %v5560 = vadd.f32 %v5558, %v5559
    %v5561 = vrot.slane %v5560, 2
    %v5562 = vadd.f32 %v5560, %v5561
    %v5563 = vrot.slane %v5562, 1
    %v5564 = vadd.f32 %v5562, %v5563
    %v5565 = vadd.f32 %v4441, %v4445
    %v5566 = vadd.f32 %v5565, %v4449
    %v5567 = vadd.f32 %v5566, %v4453
    %v5568 = vadd.f32 %v5567, %v4457
    %v5569 = vadd.f32 %v5568, %v4461
    %v5570 = vadd.f32 %v5569, %v4465
    %v5571 = vadd.f32 %v5570, %v4469
    %v5572 = vadd.f32 %v5571, %v4473
    %v5573 = vadd.f32 %v5572, %v4477
    %v5574 = vadd.f32 %v5573, %v4481
    %v5575 = vadd.f32 %v5574, %v4485
    %v5576 = vadd.f32 %v5575, %v4489
    %v5577 = vadd.f32 %v5576, %v4493
    %v5578 = vadd.f32 %v5577, %v4497
    %v5579 = vadd.f32 %v5578, %v4501
    %v5580 = vadd.f32 %v5579, %v4505
    %v5581 = vadd.f32 %v5580, %v4509
    %v5582 = vadd.f32 %v5581, %v4513
    %v5583 = vadd.f32 %v5582, %v4517
    %v5584 = vadd.f32 %v5583, %v4521
    %v5585 = vadd.f32 %v5584, %v4525
    %v5586 = vadd.f32 %v5585, %v4529
    %v5587 = vadd.f32 %v5586, %v4533
    %v5588 = vadd.f32 %v5587, %v4537
    %v5589 = vadd.f32 %v5588, %v4541
    %v5590 = vadd.f32 %v5589, %v4545
    %v5591 = vadd.f32 %v5590, %v4549
    %v5592 = vadd.f32 %v5591, %v4553
    %v5593 = vadd.f32 %v5592, %v4557
    %v5594 = vadd.f32 %v5593, %v4561
    %v5595 = vadd.f32 %v5594, %v4565
    %v5596 = vrot.slane %v5595, 4
    %v5597 = vadd.f32 %v5595, %v5596
    %v5598 = vrot.slane %v5597, 2
    %v5599 = vadd.f32 %v5597, %v5598
    %v5600 = vrot.slane %v5599, 1
    %v5601 = vadd.f32 %v5599, %v5600
    %v5602 = vadd.f32 %v4442, %v4446
    %v5603 = vadd.f32 %v5602, %v4450
    %v5604 = vadd.f32 %v5603, %v4454
    %v5605 = vadd.f32 %v5604, %v4458
    %v5606 = vadd.f32 %v5605, %v4462
    %v5607 = vadd.f32 %v5606, %v4466
    %v5608 = vadd.f32 %v5607, %v4470
    %v5609 = vadd.f32 %v5608, %v4474
    %v5610 = vadd.f32 %v5609, %v4478
    %v5611 = vadd.f32 %v5610, %v4482
    %v5612 = vadd.f32 %v5611, %v4486
    %v5613 = vadd.f32 %v5612, %v4490
    %v5614 = vadd.f32 %v5613, %v4494
    %v5615 = vadd.f32 %v5614, %v4498
    %v5616 = vadd.f32 %v5615, %v4502
    %v5617 = vadd.f32 %v5616, %v4506
    %v5618 = vadd.f32 %v5617, %v4510
    %v5619 = vadd.f32 %v5618, %v4514
    %v5620 = vadd.f32 %v5619, %v4518
    %v5621 = vadd.f32 %v5620, %v4522
    %v5622 = vadd.f32 %v5621, %v4526
    %v5623 = vadd.f32 %v5622, %v4530
    %v5624 = vadd.f32 %v5623, %v4534
    %v5625 = vadd.f32 %v5624, %v4538
    %v5626 = vadd.f32 %v5625, %v4542
    %v5627 = vadd.f32 %v5626, %v4546
    %v5628 = vadd.f32 %v5627, %v4550
    %v5629 = vadd.f32 %v5628, %v4554
    %v5630 = vadd.f32 %v5629, %v4558
    %v5631 = vadd.f32 %v5630, %v4562
    %v5632 = vadd.f32 %v5631, %v4566
    %v5633 = vrot.slane %v5632, 4
    %v5634 = vadd.f32 %v5632, %v5633
    %v5635 = vrot.slane %v5634, 2
    %v5636 = vadd.f32 %v5634, %v5635
    %v5637 = vrot.slane %v5636, 1
    %v5638 = vadd.f32 %v5636, %v5637
    %v5639 = vadd.f32 %v4443, %v4447
    %v5640 = vadd.f32 %v5639, %v4451
    %v5641 = vadd.f32 %v5640, %v4455
    %v5642 = vadd.f32 %v5641, %v4459
    %v5643 = vadd.f32 %v5642, %v4463
    %v5644 = vadd.f32 %v5643, %v4467
    %v5645 = vadd.f32 %v5644, %v4471
    %v5646 = vadd.f32 %v5645, %v4475
    %v5647 = vadd.f32 %v5646, %v4479
    %v5648 = vadd.f32 %v5647, %v4483
    %v5649 = vadd.f32 %v5648, %v4487
    %v5650 = vadd.f32 %v5649, %v4491
    %v5651 = vadd.f32 %v5650, %v4495
    %v5652 = vadd.f32 %v5651, %v4499
    %v5653 = vadd.f32 %v5652, %v4503
    %v5654 = vadd.f32 %v5653, %v4507
    %v5655 = vadd.f32 %v5654, %v4511
    %v5656 = vadd.f32 %v5655, %v4515
    %v5657 = vadd.f32 %v5656, %v4519
    %v5658 = vadd.f32 %v5657, %v4523
    %v5659 = vadd.f32 %v5658, %v4527
    %v5660 = vadd.f32 %v5659, %v4531
    %v5661 = vadd.f32 %v5660, %v4535
    %v5662 = vadd.f32 %v5661, %v4539
    %v5663 = vadd.f32 %v5662, %v4543
    %v5664 = vadd.f32 %v5663, %v4547
    %v5665 = vadd.f32 %v5664, %v4551
    %v5666 = vadd.f32 %v5665, %v4555
    %v5667 = vadd.f32 %v5666, %v4559
    %v5668 = vadd.f32 %v5667, %v4563
    %v5669 = vadd.f32 %v5668, %v4567
    %v5670 = vrot.slane %v5669, 4
    %v5671 = vadd.f32 %v5669, %v5670
    %v5672 = vrot.slane %v5671, 2
    %v5673 = vadd.f32 %v5671, %v5672
    %v5674 = vrot.slane %v5673, 1
    %v5675 = vadd.f32 %v5673, %v5674
    %v5676 = vadd.f32 %v4568, %v4572
    %v5677 = vadd.f32 %v5676, %v4576
    %v5678 = vadd.f32 %v5677, %v4580
    %v5679 = vadd.f32 %v5678, %v4584
    %v5680 = vadd.f32 %v5679, %v4588
    %v5681 = vadd.f32 %v5680, %v4592
    %v5682 = vadd.f32 %v5681, %v4596
    %v5683 = vadd.f32 %v5682, %v4600
    %v5684 = vadd.f32 %v5683, %v4604
    %v5685 = vadd.f32 %v5684, %v4608
    %v5686 = vadd.f32 %v5685, %v4612
    %v5687 = vadd.f32 %v5686, %v4616
    %v5688 = vadd.f32 %v5687, %v4620
    %v5689 = vadd.f32 %v5688, %v4624
    %v5690 = vadd.f32 %v5689, %v4628
    %v5691 = vadd.f32 %v5690, %v4632
    %v5692 = vadd.f32 %v5691, %v4636
    %v5693 = vadd.f32 %v5692, %v4640
    %v5694 = vadd.f32 %v5693, %v4644
    %v5695 = vadd.f32 %v5694, %v4648
    %v5696 = vadd.f32 %v5695, %v4652
    %v5697 = vadd.f32 %v5696, %v4656
    %v5698 = vadd.f32 %v5697, %v4660
    %v5699 = vadd.f32 %v5698, %v4664
    %v5700 = vadd.f32 %v5699, %v4668
    %v5701 = vadd.f32 %v5700, %v4672
    %v5702 = vadd.f32 %v5701, %v4676
    %v5703 = vadd.f32 %v5702, %v4680
    %v5704 = vadd.f32 %v5703, %v4684
    %v5705 = vadd.f32 %v5704, %v4688
    %v5706 = vadd.f32 %v5705, %v4692
    %v5707 = vrot.slane %v5706, 4
    %v5708 = vadd.f32 %v5706, %v5707
    %v5709 = vrot.slane %v5708, 2
    %v5710 = vadd.f32 %v5708, %v5709
    %v5711 = vrot.slane %v5710, 1
    %v5712 = vadd.f32 %v5710, %v5711
    %v5713 = vadd.f32 %v4569, %v4573
    %v5714 = vadd.f32 %v5713, %v4577
    %v5715 = vadd.f32 %v5714, %v4581
    %v5716 = vadd.f32 %v5715, %v4585
    %v5717 = vadd.f32 %v5716, %v4589
    %v5718 = vadd.f32 %v5717, %v4593
    %v5719 = vadd.f32 %v5718, %v4597
    %v5720 = vadd.f32 %v5719, %v4601
    %v5721 = vadd.f32 %v5720, %v4605
    %v5722 = vadd.f32 %v5721, %v4609
    %v5723 = vadd.f32 %v5722, %v4613
    %v5724 = vadd.f32 %v5723, %v4617
    %v5725 = vadd.f32 %v5724, %v4621
    %v5726 = vadd.f32 %v5725, %v4625
    %v5727 = vadd.f32 %v5726, %v4629
    %v5728 = vadd.f32 %v5727, %v4633
    %v5729 = vadd.f32 %v5728, %v4637
    %v5730 = vadd.f32 %v5729, %v4641
    %v5731 = vadd.f32 %v5730, %v4645
    %v5732 = vadd.f32 %v5731, %v4649
    %v5733 = vadd.f32 %v5732, %v4653
    %v5734 = vadd.f32 %v5733, %v4657
    %v5735 = vadd.f32 %v5734, %v4661
    %v5736 = vadd.f32 %v5735, %v4665
    %v5737 = vadd.f32 %v5736, %v4669
    %v5738 = vadd.f32 %v5737, %v4673
    %v5739 = vadd.f32 %v5738, %v4677
    %v5740 = vadd.f32 %v5739, %v4681
    %v5741 = vadd.f32 %v5740, %v4685
    %v5742 = vadd.f32 %v5741, %v4689
    %v5743 = vadd.f32 %v5742, %v4693
    %v5744 = vrot.slane %v5743, 4
    %v5745 = vadd.f32 %v5743, %v5744
    %v5746 = vrot.slane %v5745, 2
    %v5747 = vadd.f32 %v5745, %v5746
    %v5748 = vrot.slane %v5747, 1
    %v5749 = vadd.f32 %v5747, %v5748
    %v5750 = vadd.f32 %v4570, %v4574
    %v5751 = vadd.f32 %v5750, %v4578
    %v5752 = vadd.f32 %v5751, %v4582
    %v5753 = vadd.f32 %v5752, %v4586
    %v5754 = vadd.f32 %v5753, %v4590
    %v5755 = vadd.f32 %v5754, %v4594
    %v5756 = vadd.f32 %v5755, %v4598
    %v5757 = vadd.f32 %v5756, %v4602
    %v5758 = vadd.f32 %v5757, %v4606
    %v5759 = vadd.f32 %v5758, %v4610
    %v5760 = vadd.f32 %v5759, %v4614
    %v5761 = vadd.f32 %v5760, %v4618
    %v5762 = vadd.f32 %v5761, %v4622
    %v5763 = vadd.f32 %v5762, %v4626
    %v5764 = vadd.f32 %v5763, %v4630
    %v5765 = vadd.f32 %v5764, %v4634
    %v5766 = vadd.f32 %v5765, %v4638
    %v5767 = vadd.f32 %v5766, %v4642
    %v5768 = vadd.f32 %v5767, %v4646
    %v5769 = vadd.f32 %v5768, %v4650
    %v5770 = vadd.f32 %v5769, %v4654
    %v5771 = vadd.f32 %v5770, %v4658
    %v5772 = vadd.f32 %v5771, %v4662
    %v5773 = vadd.f32 %v5772, %v4666
    %v5774 = vadd.f32 %v5773, %v4670
    %v5775 = vadd.f32 %v5774, %v4674
    %v5776 = vadd.f32 %v5775, %v4678
    %v5777 = vadd.f32 %v5776, %v4682
    %v5778 = vadd.f32 %v5777, %v4686
    %v5779 = vadd.f32 %v5778, %v4690
    %v5780 = vadd.f32 %v5779, %v4694
    %v5781 = vrot.slane %v5780, 4
    %v5782 = vadd.f32 %v5780, %v5781
    %v5783 = vrot.slane %v5782, 2
    %v5784 = vadd.f32 %v5782, %v5783
    %v5785 = vrot.slane %v5784, 1
    %v5786 = vadd.f32 %v5784, %v5785
    %v5787 = vadd.f32 %v4571, %v4575
    %v5788 = vadd.f32 %v5787, %v4579
    %v5789 = vadd.f32 %v5788, %v4583
    %v5790 = vadd.f32 %v5789, %v4587
    %v5791 = vadd.f32 %v5790, %v4591
    %v5792 = vadd.f32 %v5791, %v4595
    %v5793 = vadd.f32 %v5792, %v4599
    %v5794 = vadd.f32 %v5793, %v4603
    %v5795 = vadd.f32 %v5794, %v4607
    %v5796 = vadd.f32 %v5795, %v4611
    %v5797 = vadd.f32 %v5796, %v4615
    %v5798 = vadd.f32 %v5797, %v4619
    %v5799 = vadd.f32 %v5798, %v4623
    %v5800 = vadd.f32 %v5799, %v4627
    %v5801 = vadd.f32 %v5800, %v4631
    %v5802 = vadd.f32 %v5801, %v4635
    %v5803 = vadd.f32 %v5802, %v4639
    %v5804 = vadd.f32 %v5803, %v4643
    %v5805 = vadd.f32 %v5804, %v4647
    %v5806 = vadd.f32 %v5805, %v4651
    %v5807 = vadd.f32 %v5806, %v4655
    %v5808 = vadd.f32 %v5807, %v4659
    %v5809 = vadd.f32 %v5808, %v4663
    %v5810 = vadd.f32 %v5809, %v4667
    %v5811 = vadd.f32 %v5810, %v4671
    %v5812 = vadd.f32 %v5811, %v4675
    %v5813 = vadd.f32 %v5812, %v4679
    %v5814 = vadd.f32 %v5813, %v4683
    %v5815 = vadd.f32 %v5814, %v4687
    %v5816 = vadd.f32 %v5815, %v4691
    %v5817 = vadd.f32 %v5816, %v4695
    %v5818 = vrot.slane %v5817, 4
    %v5819 = vadd.f32 %v5817, %v5818
    %v5820 = vrot.slane %v5819, 2
    %v5821 = vadd.f32 %v5819, %v5820
    %v5822 = vrot.slane %v5821, 1
    %v5823 = vadd.f32 %v5821, %v5822
    %v5824 = vadd.f32 %v4696, %v4700
    %v5825 = vadd.f32 %v5824, %v4704
    %v5826 = vadd.f32 %v5825, %v4708
    %v5827 = vadd.f32 %v5826, %v4712
    %v5828 = vadd.f32 %v5827, %v4716
    %v5829 = vadd.f32 %v5828, %v4720
    %v5830 = vadd.f32 %v5829, %v4724
    %v5831 = vadd.f32 %v5830, %v4728
    %v5832 = vadd.f32 %v5831, %v4732
    %v5833 = vadd.f32 %v5832, %v4736
    %v5834 = vadd.f32 %v5833, %v4740
    %v5835 = vadd.f32 %v5834, %v4744
    %v5836 = vadd.f32 %v5835, %v4748
    %v5837 = vadd.f32 %v5836, %v4752
    %v5838 = vadd.f32 %v5837, %v4756
    %v5839 = vadd.f32 %v5838, %v4760
    %v5840 = vadd.f32 %v5839, %v4764
    %v5841 = vadd.f32 %v5840, %v4768
    %v5842 = vadd.f32 %v5841, %v4772
    %v5843 = vadd.f32 %v5842, %v4776
    %v5844 = vadd.f32 %v5843, %v4780
    %v5845 = vadd.f32 %v5844, %v4784
    %v5846 = vadd.f32 %v5845, %v4788
    %v5847 = vadd.f32 %v5846, %v4792
    %v5848 = vadd.f32 %v5847, %v4796
    %v5849 = vadd.f32 %v5848, %v4800
    %v5850 = vadd.f32 %v5849, %v4804
    %v5851 = vadd.f32 %v5850, %v4808
    %v5852 = vadd.f32 %v5851, %v4812
    %v5853 = vadd.f32 %v5852, %v4816
    %v5854 = vadd.f32 %v5853, %v4820
    %v5855 = vrot.slane %v5854, 4
    %v5856 = vadd.f32 %v5854, %v5855
    %v5857 = vrot.slane %v5856, 2
    %v5858 = vadd.f32 %v5856, %v5857
    %v5859 = vrot.slane %v5858, 1
    %v5860 = vadd.f32 %v5858, %v5859
    %v5861 = vadd.f32 %v4697, %v4701
    %v5862 = vadd.f32 %v5861, %v4705
    %v5863 = vadd.f32 %v5862, %v4709
    %v5864 = vadd.f32 %v5863, %v4713
    %v5865 = vadd.f32 %v5864, %v4717
    %v5866 = vadd.f32 %v5865, %v4721
    %v5867 = vadd.f32 %v5866, %v4725
    %v5868 = vadd.f32 %v5867, %v4729
    %v5869 = vadd.f32 %v5868, %v4733
    %v5870 = vadd.f32 %v5869, %v4737
    %v5871 = vadd.f32 %v5870, %v4741
    %v5872 = vadd.f32 %v5871, %v4745
    %v5873 = vadd.f32 %v5872, %v4749
    %v5874 = vadd.f32 %v5873, %v4753
    %v5875 = vadd.f32 %v5874, %v4757
    %v5876 = vadd.f32 %v5875, %v4761
    %v5877 = vadd.f32 %v5876, %v4765
    %v5878 = vadd.f32 %v5877, %v4769
    %v5879 = vadd.f32 %v5878, %v4773
    %v5880 = vadd.f32 %v5879, %v4777
    %v5881 = vadd.f32 %v5880, %v4781
    %v5882 = vadd.f32 %v5881, %v4785
    %v5883 = vadd.f32 %v5882, %v4789
    %v5884 = vadd.f32 %v5883, %v4793
    %v5885 = vadd.f32 %v5884, %v4797
    %v5886 = vadd.f32 %v5885, %v4801
    %v5887 = vadd.f32 %v5886, %v4805
    %v5888 = vadd.f32 %v5887, %v4809
    %v5889 = vadd.f32 %v5888, %v4813
    %v5890 = vadd.f32 %v5889, %v4817
    %v5891 = vadd.f32 %v5890, %v4821
    %v5892 = vrot.slane %v5891, 4
    %v5893 = vadd.f32 %v5891, %v5892
    %v5894 = vrot.slane %v5893, 2
    %v5895 = vadd.f32 %v5893, %v5894
    %v5896 = vrot.slane %v5895, 1
    %v5897 = vadd.f32 %v5895, %v5896
    %v5898 = vadd.f32 %v4698, %v4702
    %v5899 = vadd.f32 %v5898, %v4706
    %v5900 = vadd.f32 %v5899, %v4710
    %v5901 = vadd.f32 %v5900, %v4714
    %v5902 = vadd.f32 %v5901, %v4718
    %v5903 = vadd.f32 %v5902, %v4722
    %v5904 = vadd.f32 %v5903, %v4726
    %v5905 = vadd.f32 %v5904, %v4730
    %v5906 = vadd.f32 %v5905, %v4734
    %v5907 = vadd.f32 %v5906, %v4738
    %v5908 = vadd.f32 %v5907, %v4742
    %v5909 = vadd.f32 %v5908, %v4746
    %v5910 = vadd.f32 %v5909, %v4750
    %v5911 = vadd.f32 %v5910, %v4754
    %v5912 = vadd.f32 %v5911, %v4758
    %v5913 = vadd.f32 %v5912, %v4762
    %v5914 = vadd.f32 %v5913, %v4766
    %v5915 = vadd.f32 %v5914, %v4770
    %v5916 = vadd.f32 %v5915, %v4774
    %v5917 = vadd.f32 %v5916, %v4778
    %v5918 = vadd.f32 %v5917, %v4782
    %v5919 = vadd.f32 %v5918, %v4786
    %v5920 = vadd.f32 %v5919, %v4790
    %v5921 = vadd.f32 %v5920, %v4794
    %v5922 = vadd.f32 %v5921, %v4798
    %v5923 = vadd.f32 %v5922, %v4802
    %v5924 = vadd.f32 %v5923, %v4806
    %v5925 = vadd.f32 %v5924, %v4810
    %v5926 = vadd.f32 %v5925, %v4814
    %v5927 = vadd.f32 %v5926, %v4818
    %v5928 = vadd.f32 %v5927, %v4822
    %v5929 = vrot.slane %v5928, 4
    %v5930 = vadd.f32 %v5928, %v5929
    %v5931 = vrot.slane %v5930, 2
    %v5932 = vadd.f32 %v5930, %v5931
    %v5933 = vrot.slane %v5932, 1
    %v5934 = vadd.f32 %v5932, %v5933
    %v5935 = vadd.f32 %v4699, %v4703
    %v5936 = vadd.f32 %v5935, %v4707
    %v5937 = vadd.f32 %v5936, %v4711
    %v5938 = vadd.f32 %v5937, %v4715
    %v5939 = vadd.f32 %v5938, %v4719
    %v5940 = vadd.f32 %v5939, %v4723
    %v5941 = vadd.f32 %v5940, %v4727
    %v5942 = vadd.f32 %v5941, %v4731
    %v5943 = vadd.f32 %v5942, %v4735
    %v5944 = vadd.f32 %v5943, %v4739
    %v5945 = vadd.f32 %v5944, %v4743
    %v5946 = vadd.f32 %v5945, %v4747
    %v5947 = vadd.f32 %v5946, %v4751
    %v5948 = vadd.f32 %v5947, %v4755
    %v5949 = vadd.f32 %v5948, %v4759
    %v5950 = vadd.f32 %v5949, %v4763
    %v5951 = vadd.f32 %v5950, %v4767
    %v5952 = vadd.f32 %v5951, %v4771
    %v5953 = vadd.f32 %v5952, %v4775
    %v5954 = vadd.f32 %v5953, %v4779
    %v5955 = vadd.f32 %v5954, %v4783
    %v5956 = vadd.f32 %v5955, %v4787
    %v5957 = vadd.f32 %v5956, %v4791
    %v5958 = vadd.f32 %v5957, %v4795
    %v5959 = vadd.f32 %v5958, %v4799
    %v5960 = vadd.f32 %v5959, %v4803
    %v5961 = vadd.f32 %v5960, %v4807
    %v5962 = vadd.f32 %v5961, %v4811
    %v5963 = vadd.f32 %v5962, %v4815
    %v5964 = vadd.f32 %v5963, %v4819
    %v5965 = vadd.f32 %v5964, %v4823
    %v5966 = vrot.slane %v5965, 4
    %v5967 = vadd.f32 %v5965, %v5966
    %v5968 = vrot.slane %v5967, 2
    %v5969 = vadd.f32 %v5967, %v5968
    %v5970 = vrot.slane %v5969, 1
    %v5971 = vadd.f32 %v5969, %v5970
    %v5972 = vadd.f32 %v4824, %v4828
    %v5973 = vadd.f32 %v5972, %v4832
    %v5974 = vadd.f32 %v5973, %v4836
    %v5975 = vadd.f32 %v5974, %v4840
    %v5976 = vadd.f32 %v5975, %v4844
    %v5977 = vadd.f32 %v5976, %v4848
    %v5978 = vadd.f32 %v5977, %v4852
    %v5979 = vadd.f32 %v5978, %v4856
    %v5980 = vadd.f32 %v5979, %v4860
    %v5981 = vadd.f32 %v5980, %v4864
    %v5982 = vadd.f32 %v5981, %v4868
    %v5983 = vadd.f32 %v5982, %v4872
    %v5984 = vadd.f32 %v5983, %v4876
    %v5985 = vadd.f32 %v5984, %v4880
    %v5986 = vadd.f32 %v5985, %v4884
    %v5987 = vadd.f32 %v5986, %v4888
    %v5988 = vadd.f32 %v5987, %v4892
    %v5989 = vadd.f32 %v5988, %v4896
    %v5990 = vadd.f32 %v5989, %v4900
    %v5991 = vadd.f32 %v5990, %v4904
    %v5992 = vadd.f32 %v5991, %v4908
    %v5993 = vadd.f32 %v5992, %v4912
    %v5994 = vadd.f32 %v5993, %v4916
    %v5995 = vadd.f32 %v5994, %v4920
    %v5996 = vadd.f32 %v5995, %v4924
    %v5997 = vadd.f32 %v5996, %v4928
    %v5998 = vadd.f32 %v5997, %v4932
    %v5999 = vadd.f32 %v5998, %v4936
    %v6000 = vadd.f32 %v5999, %v4940
    %v6001 = vadd.f32 %v6000, %v4944
    %v6002 = vadd.f32 %v6001, %v4948
    %v6003 = vrot.slane %v6002, 4
    %v6004 = vadd.f32 %v6002, %v6003
    %v6005 = vrot.slane %v6004, 2
    %v6006 = vadd.f32 %v6004, %v6005
    %v6007 = vrot.slane %v6006, 1
    %v6008 = vadd.f32 %v6006, %v6007
    %v6009 = vadd.f32 %v4825, %v4829
    %v6010 = vadd.f32 %v6009, %v4833
    %v6011 = vadd.f32 %v6010, %v4837
    %v6012 = vadd.f32 %v6011, %v4841
    %v6013 = vadd.f32 %v6012, %v4845
    %v6014 = vadd.f32 %v6013, %v4849
    %v6015 = vadd.f32 %v6014, %v4853
    %v6016 = vadd.f32 %v6015, %v4857
    %v6017 = vadd.f32 %v6016, %v4861
    %v6018 = vadd.f32 %v6017, %v4865
    %v6019 = vadd.f32 %v6018, %v4869
    %v6020 = vadd.f32 %v6019, %v4873
    %v6021 = vadd.f32 %v6020, %v4877
    %v6022 = vadd.f32 %v6021, %v4881
    %v6023 = vadd.f32 %v6022, %v4885
    %v6024 = vadd.f32 %v6023, %v4889
    %v6025 = vadd.f32 %v6024, %v4893
    %v6026 = vadd.f32 %v6025, %v4897
    %v6027 = vadd.f32 %v6026, %v4901
    %v6028 = vadd.f32 %v6027, %v4905
    %v6029 = vadd.f32 %v6028, %v4909
    %v6030 = vadd.f32 %v6029, %v4913
    %v6031 = vadd.f32 %v6030, %v4917
    %v6032 = vadd.f32 %v6031, %v4921
    %v6033 = vadd.f32 %v6032, %v4925
    %v6034 = vadd.f32 %v6033, %v4929
    %v6035 = vadd.f32 %v6034, %v4933
    %v6036 = vadd.f32 %v6035, %v4937
    %v6037 = vadd.f32 %v6036, %v4941
    %v6038 = vadd.f32 %v6037, %v4945
    %v6039 = vadd.f32 %v6038, %v4949
    %v6040 = vrot.slane %v6039, 4
    %v6041 = vadd.f32 %v6039, %v6040
    %v6042 = vrot.slane %v6041, 2
    %v6043 = vadd.f32 %v6041, %v6042
    %v6044 = vrot.slane %v6043, 1
    %v6045 = vadd.f32 %v6043, %v6044
    %v6046 = vadd.f32 %v4826, %v4830
    %v6047 = vadd.f32 %v6046, %v4834
    %v6048 = vadd.f32 %v6047, %v4838
    %v6049 = vadd.f32 %v6048, %v4842
    %v6050 = vadd.f32 %v6049, %v4846
    %v6051 = vadd.f32 %v6050, %v4850
    %v6052 = vadd.f32 %v6051, %v4854
    %v6053 = vadd.f32 %v6052, %v4858
    %v6054 = vadd.f32 %v6053, %v4862
    %v6055 = vadd.f32 %v6054, %v4866
    %v6056 = vadd.f32 %v6055, %v4870
    %v6057 = vadd.f32 %v6056, %v4874
    %v6058 = vadd.f32 %v6057, %v4878
    %v6059 = vadd.f32 %v6058, %v4882
    %v6060 = vadd.f32 %v6059, %v4886
    %v6061 = vadd.f32 %v6060, %v4890
    %v6062 = vadd.f32 %v6061, %v4894
    %v6063 = vadd.f32 %v6062, %v4898
    %v6064 = vadd.f32 %v6063, %v4902
    %v6065 = vadd.f32 %v6064, %v4906
    %v6066 = vadd.f32 %v6065, %v4910
    %v6067 = vadd.f32 %v6066, %v4914
    %v6068 = vadd.f32 %v6067, %v4918
    %v6069 = vadd.f32 %v6068, %v4922
    %v6070 = vadd.f32 %v6069, %v4926
    %v6071 = vadd.f32 %v6070, %v4930
    %v6072 = vadd.f32 %v6071, %v4934
    %v6073 = vadd.f32 %v6072, %v4938
    %v6074 = vadd.f32 %v6073, %v4942
    %v6075 = vadd.f32 %v6074, %v4946
    %v6076 = vadd.f32 %v6075, %v4950
    %v6077 = vrot.slane %v6076, 4
    %v6078 = vadd.f32 %v6076, %v6077
    %v6079 = vrot.slane %v6078, 2
    %v6080 = vadd.f32 %v6078, %v6079
    %v6081 = vrot.slane %v6080, 1
    %v6082 = vadd.f32 %v6080, %v6081
    %v6083 = vadd.f32 %v4827, %v4831
    %v6084 = vadd.f32 %v6083, %v4835
    %v6085 = vadd.f32 %v6084, %v4839
    %v6086 = vadd.f32 %v6085, %v4843
    %v6087 = vadd.f32 %v6086, %v4847
    %v6088 = vadd.f32 %v6087, %v4851
    %v6089 = vadd.f32 %v6088, %v4855
    %v6090 = vadd.f32 %v6089, %v4859
    %v6091 = vadd.f32 %v6090, %v4863
    %v6092 = vadd.f32 %v6091, %v4867
    %v6093 = vadd.f32 %v6092, %v4871
    %v6094 = vadd.f32 %v6093, %v4875
    %v6095 = vadd.f32 %v6094, %v4879
    %v6096 = vadd.f32 %v6095, %v4883
    %v6097 = vadd.f32 %v6096, %v4887
    %v6098 = vadd.f32 %v6097, %v4891
    %v6099 = vadd.f32 %v6098, %v4895
    %v6100 = vadd.f32 %v6099, %v4899
    %v6101 = vadd.f32 %v6100, %v4903
    %v6102 = vadd.f32 %v6101, %v4907
    %v6103 = vadd.f32 %v6102, %v4911
    %v6104 = vadd.f32 %v6103, %v4915
    %v6105 = vadd.f32 %v6104, %v4919
    %v6106 = vadd.f32 %v6105, %v4923
    %v6107 = vadd.f32 %v6106, %v4927
    %v6108 = vadd.f32 %v6107, %v4931
    %v6109 = vadd.f32 %v6108, %v4935
    %v6110 = vadd.f32 %v6109, %v4939
    %v6111 = vadd.f32 %v6110, %v4943
    %v6112 = vadd.f32 %v6111, %v4947
    %v6113 = vadd.f32 %v6112, %v4951
    %v6114 = vrot.slane %v6113, 4
    %v6115 = vadd.f32 %v6113, %v6114
    %v6116 = vrot.slane %v6115, 2
    %v6117 = vadd.f32 %v6115, %v6116
    %v6118 = vrot.slane %v6117, 1
    %v6119 = vadd.f32 %v6117, %v6118
    %v6120 = vadd.f32 %v4952, %v4956
    %v6121 = vadd.f32 %v6120, %v4960
    %v6122 = vadd.f32 %v6121, %v4964
    %v6123 = vadd.f32 %v6122, %v4968
    %v6124 = vadd.f32 %v6123, %v4972
    %v6125 = vadd.f32 %v6124, %v4976
    %v6126 = vadd.f32 %v6125, %v4980
    %v6127 = vadd.f32 %v6126, %v4984
    %v6128 = vadd.f32 %v6127, %v4988
    %v6129 = vadd.f32 %v6128, %v4992
    %v6130 = vadd.f32 %v6129, %v4996
    %v6131 = vadd.f32 %v6130, %v5000
    %v6132 = vadd.f32 %v6131, %v5004
    %v6133 = vadd.f32 %v6132, %v5008
    %v6134 = vadd.f32 %v6133, %v5012
    %v6135 = vadd.f32 %v6134, %v5016
    %v6136 = vadd.f32 %v6135, %v5020
    %v6137 = vadd.f32 %v6136, %v5024
    %v6138 = vadd.f32 %v6137, %v5028
    %v6139 = vadd.f32 %v6138, %v5032
    %v6140 = vadd.f32 %v6139, %v5036
    %v6141 = vadd.f32 %v6140, %v5040
    %v6142 = vadd.f32 %v6141, %v5044
    %v6143 = vadd.f32 %v6142, %v5048
    %v6144 = vadd.f32 %v6143, %v5052
    %v6145 = vadd.f32 %v6144, %v5056
    %v6146 = vadd.f32 %v6145, %v5060
    %v6147 = vadd.f32 %v6146, %v5064
    %v6148 = vadd.f32 %v6147, %v5068
    %v6149 = vadd.f32 %v6148, %v5072
    %v6150 = vadd.f32 %v6149, %v5076
    %v6151 = vrot.slane %v6150, 4
    %v6152 = vadd.f32 %v6150, %v6151
    %v6153 = vrot.slane %v6152, 2
    %v6154 = vadd.f32 %v6152, %v6153
    %v6155 = vrot.slane %v6154, 1
    %v6156 = vadd.f32 %v6154, %v6155
    %v6157 = vadd.f32 %v4953, %v4957
    %v6158 = vadd.f32 %v6157, %v4961
    %v6159 = vadd.f32 %v6158, %v4965
    %v6160 = vadd.f32 %v6159, %v4969
    %v6161 = vadd.f32 %v6160, %v4973
    %v6162 = vadd.f32 %v6161, %v4977
    %v6163 = vadd.f32 %v6162, %v4981
    %v6164 = vadd.f32 %v6163, %v4985
    %v6165 = vadd.f32 %v6164, %v4989
    %v6166 = vadd.f32 %v6165, %v4993
    %v6167 = vadd.f32 %v6166, %v4997
    %v6168 = vadd.f32 %v6167, %v5001
    %v6169 = vadd.f32 %v6168, %v5005
    %v6170 = vadd.f32 %v6169, %v5009
    %v6171 = vadd.f32 %v6170, %v5013
    %v6172 = vadd.f32 %v6171, %v5017
    %v6173 = vadd.f32 %v6172, %v5021
    %v6174 = vadd.f32 %v6173, %v5025
    %v6175 = vadd.f32 %v6174, %v5029
    %v6176 = vadd.f32 %v6175, %v5033
    %v6177 = vadd.f32 %v6176, %v5037
    %v6178 = vadd.f32 %v6177, %v5041
    %v6179 = vadd.f32 %v6178, %v5045
    %v6180 = vadd.f32 %v6179, %v5049
    %v6181 = vadd.f32 %v6180, %v5053
    %v6182 = vadd.f32 %v6181, %v5057
    %v6183 = vadd.f32 %v6182, %v5061
    %v6184 = vadd.f32 %v6183, %v5065
    %v6185 = vadd.f32 %v6184, %v5069
    %v6186 = vadd.f32 %v6185, %v5073
    %v6187 = vadd.f32 %v6186, %v5077
    %v6188 = vrot.slane %v6187, 4
    %v6189 = vadd.f32 %v6187, %v6188
    %v6190 = vrot.slane %v6189, 2
    %v6191 = vadd.f32 %v6189, %v6190
    %v6192 = vrot.slane %v6191, 1
    %v6193 = vadd.f32 %v6191, %v6192
    %v6194 = vadd.f32 %v4954, %v4958
    %v6195 = vadd.f32 %v6194, %v4962
    %v6196 = vadd.f32 %v6195, %v4966
    %v6197 = vadd.f32 %v6196, %v4970
    %v6198 = vadd.f32 %v6197, %v4974
    %v6199 = vadd.f32 %v6198, %v4978
    %v6200 = vadd.f32 %v6199, %v4982
    %v6201 = vadd.f32 %v6200, %v4986
    %v6202 = vadd.f32 %v6201, %v4990
    %v6203 = vadd.f32 %v6202, %v4994
    %v6204 = vadd.f32 %v6203, %v4998
    %v6205 = vadd.f32 %v6204, %v5002
    %v6206 = vadd.f32 %v6205, %v5006
    %v6207 = vadd.f32 %v6206, %v5010
    %v6208 = vadd.f32 %v6207, %v5014
    %v6209 = vadd.f32 %v6208, %v5018
    %v6210 = vadd.f32 %v6209, %v5022
    %v6211 = vadd.f32 %v6210, %v5026
    %v6212 = vadd.f32 %v6211, %v5030
    %v6213 = vadd.f32 %v6212, %v5034
    %v6214 = vadd.f32 %v6213, %v5038
    %v6215 = vadd.f32 %v6214, %v5042
    %v6216 = vadd.f32 %v6215, %v5046
    %v6217 = vadd.f32 %v6216, %v5050
    %v6218 = vadd.f32 %v6217, %v5054
    %v6219 = vadd.f32 %v6218, %v5058
    %v6220 = vadd.f32 %v6219, %v5062
    %v6221 = vadd.f32 %v6220, %v5066
    %v6222 = vadd.f32 %v6221, %v5070
    %v6223 = vadd.f32 %v6222, %v5074
    %v6224 = vadd.f32 %v6223, %v5078
    %v6225 = vrot.slane %v6224, 4
    %v6226 = vadd.f32 %v6224, %v6225
    %v6227 = vrot.slane %v6226, 2
    %v6228 = vadd.f32 %v6226, %v6227
    %v6229 = vrot.slane %v6228, 1
    %v6230 = vadd.f32 %v6228, %v6229
    %v6231 = vadd.f32 %v4955, %v4959
    %v6232 = vadd.f32 %v6231, %v4963
    %v6233 = vadd.f32 %v6232, %v4967
    %v6234 = vadd.f32 %v6233, %v4971
    %v6235 = vadd.f32 %v6234, %v4975
    %v6236 = vadd.f32 %v6235, %v4979
    %v6237 = vadd.f32 %v6236, %v4983
    %v6238 = vadd.f32 %v6237, %v4987
    %v6239 = vadd.f32 %v6238, %v4991
    %v6240 = vadd.f32 %v6239, %v4995
    %v6241 = vadd.f32 %v6240, %v4999
    %v6242 = vadd.f32 %v6241, %v5003
    %v6243 = vadd.f32 %v6242, %v5007
    %v6244 = vadd.f32 %v6243, %v5011
    %v6245 = vadd.f32 %v6244, %v5015
    %v6246 = vadd.f32 %v6245, %v5019
    %v6247 = vadd.f32 %v6246, %v5023
    %v6248 = vadd.f32 %v6247, %v5027
    %v6249 = vadd.f32 %v6248, %v5031
    %v6250 = vadd.f32 %v6249, %v5035
    %v6251 = vadd.f32 %v6250, %v5039
    %v6252 = vadd.f32 %v6251, %v5043
    %v6253 = vadd.f32 %v6252, %v5047
    %v6254 = vadd.f32 %v6253, %v5051
    %v6255 = vadd.f32 %v6254, %v5055
    %v6256 = vadd.f32 %v6255, %v5059
    %v6257 = vadd.f32 %v6256, %v5063
    %v6258 = vadd.f32 %v6257, %v5067
    %v6259 = vadd.f32 %v6258, %v5071
    %v6260 = vadd.f32 %v6259, %v5075
    %v6261 = vadd.f32 %v6260, %v5079
    %v6262 = vrot.slane %v6261, 4
    %v6263 = vadd.f32 %v6261, %v6262
    %v6264 = vrot.slane %v6263, 2
    %v6265 = vadd.f32 %v6263, %v6264
    %v6266 = vrot.slane %v6265, 1
    %v6267 = vadd.f32 %v6265, %v6266
    %vm6300 = vcmask 1041409
    %v6301 = vsel %vm6300, %v5268, %v5120
    %vm6302 = vcmask 1042434
    %v6303 = vsel %vm6302, %v5416, %v6301
    %vm6304 = vcmask 1043459
    %v6305 = vsel %vm6304, %v5564, %v6303
    %vm6306 = vcmask 1044484
    %v6307 = vsel %vm6306, %v5712, %v6305
    %vm6308 = vcmask 1045509
    %v6309 = vsel %vm6308, %v5860, %v6307
    %vm6310 = vcmask 1046534
    %v6311 = vsel %vm6310, %v6008, %v6309
    %vm6312 = vcmask 1047559
    %v6313 = vsel %vm6312, %v6156, %v6311
    %v6314 = vsel %vm6300, %v5305, %v5157
    %v6315 = vsel %vm6302, %v5453, %v6314
    %v6316 = vsel %vm6304, %v5601, %v6315
    %v6317 = vsel %vm6306, %v5749, %v6316
    %v6318 = vsel %vm6308, %v5897, %v6317
    %v6319 = vsel %vm6310, %v6045, %v6318
    %v6320 = vsel %vm6312, %v6193, %v6319
    %v6321 = vsel %vm6300, %v5342, %v5194
    %v6322 = vsel %vm6302, %v5490, %v6321
    %v6323 = vsel %vm6304, %v5638, %v6322
    %v6324 = vsel %vm6306, %v5786, %v6323
    %v6325 = vsel %vm6308, %v5934, %v6324
    %v6326 = vsel %vm6310, %v6082, %v6325
    %v6327 = vsel %vm6312, %v6230, %v6326
    %v6328 = vsel %vm6300, %v5379, %v5231
    %v6329 = vsel %vm6302, %v5527, %v6328
    %v6330 = vsel %vm6304, %v5675, %v6329
    %v6331 = vsel %vm6306, %v5823, %v6330
    %v6332 = vsel %vm6308, %v5971, %v6331
    %v6333 = vsel %vm6310, %v6119, %v6332
    %v6334 = vsel %vm6312, %v6267, %v6333
    %v6339 = vadd.f32 %v5080, %v6313
    %v6340 = vadd.f32 %v5081, %v6320
    %v6341 = vadd.f32 %v5082, %v6327
    %v6342 = vadd.f32 %v5083, %v6334
    %6343 = vst [vmem:[#allocation2] sm:$0xff] %v6339
    %6344 = vst [vmem:[#allocation2 + $0x8] sm:$0xff] %v6340
    %6345 = vst [vmem:[#allocation2 + $0x10] sm:$0xff] %v6341
    %6346 = vst [vmem:[#allocation2 + $0x18] sm:$0xff] %v6342
    // Predicated region
    $region58: #{byol_forward.1} parent=1 // pred_check
      %p6347 = pneg %p46
    $region59: #{byol_forward.1} parent=1 // pred_check_branch
      %6349 = sbr.rel (%p6347) target = $region61
    $region60: #{byol_forward.1} parent=1 // pred_region
      %v6350 = vld [vmem:[#allocation2] sm:$0xff]
      %v6351 = vld [vmem:[#allocation2 + $0x8] sm:$0xff]
      %v6352 = vld [vmem:[#allocation2 + $0x10] sm:$0xff]
      %v6353 = vld [vmem:[#allocation2 + $0x18] sm:$0xff]
      %v6354 = vmul.f32 %v6350, 0.00390625
      %v6355 = vmul.f32 %v6351, 0.00390625
      %v6356 = vmul.f32 %v6352, 0.00390625
      %v6357 = vmul.f32 %v6353, 0.00390625
      %v6358 = vpack.c.bf16 %v6354, %v6354
      %v6359 = vpack.c.bf16 %v6355, %v6355
      %v6360 = vpack.c.bf16 %v6356, %v6356
      %v6361 = vpack.c.bf16 %v6357, %v6357
      %v6362 = vld [vmem:[%s3] sm:$0xff]
      %v6363 = vld [vmem:[%s3 + $0x8] sm:$0xff]
      %v6364 = vld [vmem:[%s3 + $0x10] sm:$0xff]
      %v6365 = vld [vmem:[%s3 + $0x18] sm:$0xff]
      %v6366 = vld [vmem:[%s3 + $0x20] sm:$0xff]
      %v6367 = vld [vmem:[%s3 + $0x28] sm:$0xff]
      %v6368 = vld [vmem:[%s3 + $0x30] sm:$0xff]
      %v6369 = vld [vmem:[%s3 + $0x38] sm:$0xff]
      %v6370 = vld [vmem:[%s3 + $0x40] sm:$0xff]
      %v6371 = vld [vmem:[%s3 + $0x48] sm:$0xff]
      %v6372 = vld [vmem:[%s3 + $0x50] sm:$0xff]
      %v6373 = vld [vmem:[%s3 + $0x58] sm:$0xff]
      %v6374 = vld [vmem:[%s3 + $0x60] sm:$0xff]
      %v6375 = vld [vmem:[%s3 + $0x68] sm:$0xff]
      %v6376 = vld [vmem:[%s3 + $0x70] sm:$0xff]
      %v6377 = vld [vmem:[%s3 + $0x78] sm:$0xff]
      %v6378 = vld [vmem:[%s3 + $0x80] sm:$0xff]
      %v6379 = vld [vmem:[%s3 + $0x88] sm:$0xff]
      %v6380 = vld [vmem:[%s3 + $0x90] sm:$0xff]
      %v6381 = vld [vmem:[%s3 + $0x98] sm:$0xff]
      %v6382 = vld [vmem:[%s3 + $0xa0] sm:$0xff]
      %v6383 = vld [vmem:[%s3 + $0xa8] sm:$0xff]
      %v6384 = vld [vmem:[%s3 + $0xb0] sm:$0xff]
      %v6385 = vld [vmem:[%s3 + $0xb8] sm:$0xff]
      %v6386 = vld [vmem:[%s3 + $0xc0] sm:$0xff]
      %v6387 = vld [vmem:[%s3 + $0xc8] sm:$0xff]
      %v6388 = vld [vmem:[%s3 + $0xd0] sm:$0xff]
      %v6389 = vld [vmem:[%s3 + $0xd8] sm:$0xff]
      %v6390 = vld [vmem:[%s3 + $0xe0] sm:$0xff]
      %v6391 = vld [vmem:[%s3 + $0xe8] sm:$0xff]
      %v6392 = vld [vmem:[%s3 + $0xf0] sm:$0xff]
      %v6393 = vld [vmem:[%s3 + $0xf8] sm:$0xff]
      %v6394 = vld [vmem:[%s3 + $0x100] sm:$0xff]
      %v6395 = vld [vmem:[%s3 + $0x108] sm:$0xff]
      %v6396 = vld [vmem:[%s3 + $0x110] sm:$0xff]
      %v6397 = vld [vmem:[%s3 + $0x118] sm:$0xff]
      %v6398 = vld [vmem:[%s3 + $0x120] sm:$0xff]
      %v6399 = vld [vmem:[%s3 + $0x128] sm:$0xff]
      %v6400 = vld [vmem:[%s3 + $0x130] sm:$0xff]
      %v6401 = vld [vmem:[%s3 + $0x138] sm:$0xff]
      %v6402 = vld [vmem:[%s3 + $0x140] sm:$0xff]
      %v6403 = vld [vmem:[%s3 + $0x148] sm:$0xff]
      %v6404 = vld [vmem:[%s3 + $0x150] sm:$0xff]
      %v6405 = vld [vmem:[%s3 + $0x158] sm:$0xff]
      %v6406 = vld [vmem:[%s3 + $0x160] sm:$0xff]
      %v6407 = vld [vmem:[%s3 + $0x168] sm:$0xff]
      %v6408 = vld [vmem:[%s3 + $0x170] sm:$0xff]
      %v6409 = vld [vmem:[%s3 + $0x178] sm:$0xff]
      %v6410 = vld [vmem:[%s3 + $0x180] sm:$0xff]
      %v6411 = vld [vmem:[%s3 + $0x188] sm:$0xff]
      %v6412 = vld [vmem:[%s3 + $0x190] sm:$0xff]
      %v6413 = vld [vmem:[%s3 + $0x198] sm:$0xff]
      %v6414 = vld [vmem:[%s3 + $0x1a0] sm:$0xff]
      %v6415 = vld [vmem:[%s3 + $0x1a8] sm:$0xff]
      %v6416 = vld [vmem:[%s3 + $0x1b0] sm:$0xff]
      %v6417 = vld [vmem:[%s3 + $0x1b8] sm:$0xff]
      %v6418 = vld [vmem:[%s3 + $0x1c0] sm:$0xff]
      %v6419 = vld [vmem:[%s3 + $0x1c8] sm:$0xff]
      %v6420 = vld [vmem:[%s3 + $0x1d0] sm:$0xff]
      %v6421 = vld [vmem:[%s3 + $0x1d8] sm:$0xff]
      %v6422 = vld [vmem:[%s3 + $0x1e0] sm:$0xff]
      %v6423 = vld [vmem:[%s3 + $0x1e8] sm:$0xff]
      %v6424 = vld [vmem:[%s3 + $0x1f0] sm:$0xff]
      %v6425 = vld [vmem:[%s3 + $0x1f8] sm:$0xff]
      %v6426 = vld [vmem:[%s3 + $0x200] sm:$0xff]
      %v6427 = vld [vmem:[%s3 + $0x208] sm:$0xff]
      %v6428 = vld [vmem:[%s3 + $0x210] sm:$0xff]
      %v6429 = vld [vmem:[%s3 + $0x218] sm:$0xff]
      %v6430 = vld [vmem:[%s3 + $0x220] sm:$0xff]
      %v6431 = vld [vmem:[%s3 + $0x228] sm:$0xff]
      %v6432 = vld [vmem:[%s3 + $0x230] sm:$0xff]
      %v6433 = vld [vmem:[%s3 + $0x238] sm:$0xff]
      %v6434 = vld [vmem:[%s3 + $0x240] sm:$0xff]
      %v6435 = vld [vmem:[%s3 + $0x248] sm:$0xff]
      %v6436 = vld [vmem:[%s3 + $0x250] sm:$0xff]
      %v6437 = vld [vmem:[%s3 + $0x258] sm:$0xff]
      %v6438 = vld [vmem:[%s3 + $0x260] sm:$0xff]
      %v6439 = vld [vmem:[%s3 + $0x268] sm:$0xff]
      %v6440 = vld [vmem:[%s3 + $0x270] sm:$0xff]
      %v6441 = vld [vmem:[%s3 + $0x278] sm:$0xff]
      %v6442 = vld [vmem:[%s3 + $0x280] sm:$0xff]
      %v6443 = vld [vmem:[%s3 + $0x288] sm:$0xff]
      %v6444 = vld [vmem:[%s3 + $0x290] sm:$0xff]
      %v6445 = vld [vmem:[%s3 + $0x298] sm:$0xff]
      %v6446 = vld [vmem:[%s3 + $0x2a0] sm:$0xff]
      %v6447 = vld [vmem:[%s3 + $0x2a8] sm:$0xff]
      %v6448 = vld [vmem:[%s3 + $0x2b0] sm:$0xff]
      %v6449 = vld [vmem:[%s3 + $0x2b8] sm:$0xff]
      %v6450 = vld [vmem:[%s3 + $0x2c0] sm:$0xff]
      %v6451 = vld [vmem:[%s3 + $0x2c8] sm:$0xff]
      %v6452 = vld [vmem:[%s3 + $0x2d0] sm:$0xff]
      %v6453 = vld [vmem:[%s3 + $0x2d8] sm:$0xff]
      %v6454 = vld [vmem:[%s3 + $0x2e0] sm:$0xff]
      %v6455 = vld [vmem:[%s3 + $0x2e8] sm:$0xff]
      %v6456 = vld [vmem:[%s3 + $0x2f0] sm:$0xff]
      %v6457 = vld [vmem:[%s3 + $0x2f8] sm:$0xff]
      %v6458 = vld [vmem:[%s3 + $0x300] sm:$0xff]
      %v6459 = vld [vmem:[%s3 + $0x308] sm:$0xff]
      %v6460 = vld [vmem:[%s3 + $0x310] sm:$0xff]
      %v6461 = vld [vmem:[%s3 + $0x318] sm:$0xff]
      %v6462 = vld [vmem:[%s3 + $0x320] sm:$0xff]
      %v6463 = vld [vmem:[%s3 + $0x328] sm:$0xff]
      %v6464 = vld [vmem:[%s3 + $0x330] sm:$0xff]
      %v6465 = vld [vmem:[%s3 + $0x338] sm:$0xff]
      %v6466 = vld [vmem:[%s3 + $0x340] sm:$0xff]
      %v6467 = vld [vmem:[%s3 + $0x348] sm:$0xff]
      %v6468 = vld [vmem:[%s3 + $0x350] sm:$0xff]
      %v6469 = vld [vmem:[%s3 + $0x358] sm:$0xff]
      %v6470 = vld [vmem:[%s3 + $0x360] sm:$0xff]
      %v6471 = vld [vmem:[%s3 + $0x368] sm:$0xff]
      %v6472 = vld [vmem:[%s3 + $0x370] sm:$0xff]
      %v6473 = vld [vmem:[%s3 + $0x378] sm:$0xff]
      %v6474 = vld [vmem:[%s3 + $0x380] sm:$0xff]
      %v6475 = vld [vmem:[%s3 + $0x388] sm:$0xff]
      %v6476 = vld [vmem:[%s3 + $0x390] sm:$0xff]
      %v6477 = vld [vmem:[%s3 + $0x398] sm:$0xff]
      %v6478 = vld [vmem:[%s3 + $0x3a0] sm:$0xff]
      %v6479 = vld [vmem:[%s3 + $0x3a8] sm:$0xff]
      %v6480 = vld [vmem:[%s3 + $0x3b0] sm:$0xff]
      %v6481 = vld [vmem:[%s3 + $0x3b8] sm:$0xff]
      %v6482 = vld [vmem:[%s3 + $0x3c0] sm:$0xff]
      %v6483 = vld [vmem:[%s3 + $0x3c8] sm:$0xff]
      %v6484 = vld [vmem:[%s3 + $0x3d0] sm:$0xff]
      %v6485 = vld [vmem:[%s3 + $0x3d8] sm:$0xff]
      %v6486 = vld [vmem:[%s3 + $0x3e0] sm:$0xff]
      %v6487 = vld [vmem:[%s3 + $0x3e8] sm:$0xff]
      %v6488 = vld [vmem:[%s3 + $0x3f0] sm:$0xff]
      %v6489 = vld [vmem:[%s3 + $0x3f8] sm:$0xff]
      %v6490 = vld [vmem:[%s3 + $0x400] sm:$0xff]
      %v6491 = vld [vmem:[%s3 + $0x408] sm:$0xff]
      %v6492 = vld [vmem:[%s3 + $0x410] sm:$0xff]
      %v6493 = vld [vmem:[%s3 + $0x418] sm:$0xff]
      %v6494 = vld [vmem:[%s3 + $0x420] sm:$0xff]
      %v6495 = vld [vmem:[%s3 + $0x428] sm:$0xff]
      %v6496 = vld [vmem:[%s3 + $0x430] sm:$0xff]
      %v6497 = vld [vmem:[%s3 + $0x438] sm:$0xff]
      %v6498 = vld [vmem:[%s3 + $0x440] sm:$0xff]
      %v6499 = vld [vmem:[%s3 + $0x448] sm:$0xff]
      %v6500 = vld [vmem:[%s3 + $0x450] sm:$0xff]
      %v6501 = vld [vmem:[%s3 + $0x458] sm:$0xff]
      %v6502 = vld [vmem:[%s3 + $0x460] sm:$0xff]
      %v6503 = vld [vmem:[%s3 + $0x468] sm:$0xff]
      %v6504 = vld [vmem:[%s3 + $0x470] sm:$0xff]
      %v6505 = vld [vmem:[%s3 + $0x478] sm:$0xff]
      %v6506 = vld [vmem:[%s3 + $0x480] sm:$0xff]
      %v6507 = vld [vmem:[%s3 + $0x488] sm:$0xff]
      %v6508 = vld [vmem:[%s3 + $0x490] sm:$0xff]
      %v6509 = vld [vmem:[%s3 + $0x498] sm:$0xff]
      %v6510 = vld [vmem:[%s3 + $0x4a0] sm:$0xff]
      %v6511 = vld [vmem:[%s3 + $0x4a8] sm:$0xff]
      %v6512 = vld [vmem:[%s3 + $0x4b0] sm:$0xff]
      %v6513 = vld [vmem:[%s3 + $0x4b8] sm:$0xff]
      %v6514 = vld [vmem:[%s3 + $0x4c0] sm:$0xff]
      %v6515 = vld [vmem:[%s3 + $0x4c8] sm:$0xff]
      %v6516 = vld [vmem:[%s3 + $0x4d0] sm:$0xff]
      %v6517 = vld [vmem:[%s3 + $0x4d8] sm:$0xff]
      %v6518 = vld [vmem:[%s3 + $0x4e0] sm:$0xff]
      %v6519 = vld [vmem:[%s3 + $0x4e8] sm:$0xff]
      %v6520 = vld [vmem:[%s3 + $0x4f0] sm:$0xff]
      %v6521 = vld [vmem:[%s3 + $0x4f8] sm:$0xff]
      %v6522 = vld [vmem:[%s3 + $0x500] sm:$0xff]
      %v6523 = vld [vmem:[%s3 + $0x508] sm:$0xff]
      %v6524 = vld [vmem:[%s3 + $0x510] sm:$0xff]
      %v6525 = vld [vmem:[%s3 + $0x518] sm:$0xff]
      %v6526 = vld [vmem:[%s3 + $0x520] sm:$0xff]
      %v6527 = vld [vmem:[%s3 + $0x528] sm:$0xff]
      %v6528 = vld [vmem:[%s3 + $0x530] sm:$0xff]
      %v6529 = vld [vmem:[%s3 + $0x538] sm:$0xff]
      %v6530 = vld [vmem:[%s3 + $0x540] sm:$0xff]
      %v6531 = vld [vmem:[%s3 + $0x548] sm:$0xff]
      %v6532 = vld [vmem:[%s3 + $0x550] sm:$0xff]
      %v6533 = vld [vmem:[%s3 + $0x558] sm:$0xff]
      %v6534 = vld [vmem:[%s3 + $0x560] sm:$0xff]
      %v6535 = vld [vmem:[%s3 + $0x568] sm:$0xff]
      %v6536 = vld [vmem:[%s3 + $0x570] sm:$0xff]
      %v6537 = vld [vmem:[%s3 + $0x578] sm:$0xff]
      %v6538 = vld [vmem:[%s3 + $0x580] sm:$0xff]
      %v6539 = vld [vmem:[%s3 + $0x588] sm:$0xff]
      %v6540 = vld [vmem:[%s3 + $0x590] sm:$0xff]
      %v6541 = vld [vmem:[%s3 + $0x598] sm:$0xff]
      %v6542 = vld [vmem:[%s3 + $0x5a0] sm:$0xff]
      %v6543 = vld [vmem:[%s3 + $0x5a8] sm:$0xff]
      %v6544 = vld [vmem:[%s3 + $0x5b0] sm:$0xff]
      %v6545 = vld [vmem:[%s3 + $0x5b8] sm:$0xff]
      %v6546 = vld [vmem:[%s3 + $0x5c0] sm:$0xff]
      %v6547 = vld [vmem:[%s3 + $0x5c8] sm:$0xff]
      %v6548 = vld [vmem:[%s3 + $0x5d0] sm:$0xff]
      %v6549 = vld [vmem:[%s3 + $0x5d8] sm:$0xff]
      %v6550 = vld [vmem:[%s3 + $0x5e0] sm:$0xff]
      %v6551 = vld [vmem:[%s3 + $0x5e8] sm:$0xff]
      %v6552 = vld [vmem:[%s3 + $0x5f0] sm:$0xff]
      %v6553 = vld [vmem:[%s3 + $0x5f8] sm:$0xff]
      %v6554 = vld [vmem:[%s3 + $0x600] sm:$0xff]
      %v6555 = vld [vmem:[%s3 + $0x608] sm:$0xff]
      %v6556 = vld [vmem:[%s3 + $0x610] sm:$0xff]
      %v6557 = vld [vmem:[%s3 + $0x618] sm:$0xff]
      %v6558 = vld [vmem:[%s3 + $0x620] sm:$0xff]
      %v6559 = vld [vmem:[%s3 + $0x628] sm:$0xff]
      %v6560 = vld [vmem:[%s3 + $0x630] sm:$0xff]
      %v6561 = vld [vmem:[%s3 + $0x638] sm:$0xff]
      %v6562 = vld [vmem:[%s3 + $0x640] sm:$0xff]
      %v6563 = vld [vmem:[%s3 + $0x648] sm:$0xff]
      %v6564 = vld [vmem:[%s3 + $0x650] sm:$0xff]
      %v6565 = vld [vmem:[%s3 + $0x658] sm:$0xff]
      %v6566 = vld [vmem:[%s3 + $0x660] sm:$0xff]
      %v6567 = vld [vmem:[%s3 + $0x668] sm:$0xff]
      %v6568 = vld [vmem:[%s3 + $0x670] sm:$0xff]
      %v6569 = vld [vmem:[%s3 + $0x678] sm:$0xff]
      %v6570 = vld [vmem:[%s3 + $0x680] sm:$0xff]
      %v6571 = vld [vmem:[%s3 + $0x688] sm:$0xff]
      %v6572 = vld [vmem:[%s3 + $0x690] sm:$0xff]
      %v6573 = vld [vmem:[%s3 + $0x698] sm:$0xff]
      %v6574 = vld [vmem:[%s3 + $0x6a0] sm:$0xff]
      %v6575 = vld [vmem:[%s3 + $0x6a8] sm:$0xff]
      %v6576 = vld [vmem:[%s3 + $0x6b0] sm:$0xff]
      %v6577 = vld [vmem:[%s3 + $0x6b8] sm:$0xff]
      %v6578 = vld [vmem:[%s3 + $0x6c0] sm:$0xff]
      %v6579 = vld [vmem:[%s3 + $0x6c8] sm:$0xff]
      %v6580 = vld [vmem:[%s3 + $0x6d0] sm:$0xff]
      %v6581 = vld [vmem:[%s3 + $0x6d8] sm:$0xff]
      %v6582 = vld [vmem:[%s3 + $0x6e0] sm:$0xff]
      %v6583 = vld [vmem:[%s3 + $0x6e8] sm:$0xff]
      %v6584 = vld [vmem:[%s3 + $0x6f0] sm:$0xff]
      %v6585 = vld [vmem:[%s3 + $0x6f8] sm:$0xff]
      %v6586 = vld [vmem:[%s3 + $0x700] sm:$0xff]
      %v6587 = vld [vmem:[%s3 + $0x708] sm:$0xff]
      %v6588 = vld [vmem:[%s3 + $0x710] sm:$0xff]
      %v6589 = vld [vmem:[%s3 + $0x718] sm:$0xff]
      %v6590 = vld [vmem:[%s3 + $0x720] sm:$0xff]
      %v6591 = vld [vmem:[%s3 + $0x728] sm:$0xff]
      %v6592 = vld [vmem:[%s3 + $0x730] sm:$0xff]
      %v6593 = vld [vmem:[%s3 + $0x738] sm:$0xff]
      %v6594 = vld [vmem:[%s3 + $0x740] sm:$0xff]
      %v6595 = vld [vmem:[%s3 + $0x748] sm:$0xff]
      %v6596 = vld [vmem:[%s3 + $0x750] sm:$0xff]
      %v6597 = vld [vmem:[%s3 + $0x758] sm:$0xff]
      %v6598 = vld [vmem:[%s3 + $0x760] sm:$0xff]
      %v6599 = vld [vmem:[%s3 + $0x768] sm:$0xff]
      %v6600 = vld [vmem:[%s3 + $0x770] sm:$0xff]
      %v6601 = vld [vmem:[%s3 + $0x778] sm:$0xff]
      %v6602 = vld [vmem:[%s3 + $0x780] sm:$0xff]
      %v6603 = vld [vmem:[%s3 + $0x788] sm:$0xff]
      %v6604 = vld [vmem:[%s3 + $0x790] sm:$0xff]
      %v6605 = vld [vmem:[%s3 + $0x798] sm:$0xff]
      %v6606 = vld [vmem:[%s3 + $0x7a0] sm:$0xff]
      %v6607 = vld [vmem:[%s3 + $0x7a8] sm:$0xff]
      %v6608 = vld [vmem:[%s3 + $0x7b0] sm:$0xff]
      %v6609 = vld [vmem:[%s3 + $0x7b8] sm:$0xff]
      %v6610 = vld [vmem:[%s3 + $0x7c0] sm:$0xff]
      %v6611 = vld [vmem:[%s3 + $0x7c8] sm:$0xff]
      %v6612 = vld [vmem:[%s3 + $0x7d0] sm:$0xff]
      %v6613 = vld [vmem:[%s3 + $0x7d8] sm:$0xff]
      %v6614 = vld [vmem:[%s3 + $0x7e0] sm:$0xff]
      %v6615 = vld [vmem:[%s3 + $0x7e8] sm:$0xff]
      %v6616 = vld [vmem:[%s3 + $0x7f0] sm:$0xff]
      %v6617 = vld [vmem:[%s3 + $0x7f8] sm:$0xff]
      %v6874 = vunpack.c.l.b16 %v6362
      %v6875 = vunpack.c.h.b16 %v6362
      %v6876 = vunpack.c.l.b16 %v6363
      %v6877 = vunpack.c.h.b16 %v6363
      %v6878 = vunpack.c.l.b16 %v6364
      %v6879 = vunpack.c.h.b16 %v6364
      %v6880 = vunpack.c.l.b16 %v6365
      %v6881 = vunpack.c.h.b16 %v6365
      %v6882 = vunpack.c.l.b16 %v6366
      %v6883 = vunpack.c.h.b16 %v6366
      %v6884 = vunpack.c.l.b16 %v6367
      %v6885 = vunpack.c.h.b16 %v6367
      %v6886 = vunpack.c.l.b16 %v6368
      %v6887 = vunpack.c.h.b16 %v6368
      %v6888 = vunpack.c.l.b16 %v6369
      %v6889 = vunpack.c.h.b16 %v6369
      %v6890 = vunpack.c.l.b16 %v6370
      %v6891 = vunpack.c.h.b16 %v6370
      %v6892 = vunpack.c.l.b16 %v6371
      %v6893 = vunpack.c.h.b16 %v6371
      %v6894 = vunpack.c.l.b16 %v6372
      %v6895 = vunpack.c.h.b16 %v6372
      %v6896 = vunpack.c.l.b16 %v6373
      %v6897 = vunpack.c.h.b16 %v6373
      %v6898 = vunpack.c.l.b16 %v6374
      %v6899 = vunpack.c.h.b16 %v6374
      %v6900 = vunpack.c.l.b16 %v6375
      %v6901 = vunpack.c.h.b16 %v6375
      %v6902 = vunpack.c.l.b16 %v6376
      %v6903 = vunpack.c.h.b16 %v6376
      %v6904 = vunpack.c.l.b16 %v6377
      %v6905 = vunpack.c.h.b16 %v6377
      %v6906 = vunpack.c.l.b16 %v6378
      %v6907 = vunpack.c.h.b16 %v6378
      %v6908 = vunpack.c.l.b16 %v6379
      %v6909 = vunpack.c.h.b16 %v6379
      %v6910 = vunpack.c.l.b16 %v6380
      %v6911 = vunpack.c.h.b16 %v6380
      %v6912 = vunpack.c.l.b16 %v6381
      %v6913 = vunpack.c.h.b16 %v6381
      %v6914 = vunpack.c.l.b16 %v6382
      %v6915 = vunpack.c.h.b16 %v6382
      %v6916 = vunpack.c.l.b16 %v6383
      %v6917 = vunpack.c.h.b16 %v6383
      %v6918 = vunpack.c.l.b16 %v6384
      %v6919 = vunpack.c.h.b16 %v6384
      %v6920 = vunpack.c.l.b16 %v6385
      %v6921 = vunpack.c.h.b16 %v6385
      %v6922 = vunpack.c.l.b16 %v6386
      %v6923 = vunpack.c.h.b16 %v6386
      %v6924 = vunpack.c.l.b16 %v6387
      %v6925 = vunpack.c.h.b16 %v6387
      %v6926 = vunpack.c.l.b16 %v6388
      %v6927 = vunpack.c.h.b16 %v6388
      %v6928 = vunpack.c.l.b16 %v6389
      %v6929 = vunpack.c.h.b16 %v6389
      %v6930 = vunpack.c.l.b16 %v6390
      %v6931 = vunpack.c.h.b16 %v6390
      %v6932 = vunpack.c.l.b16 %v6391
      %v6933 = vunpack.c.h.b16 %v6391
      %v6934 = vunpack.c.l.b16 %v6392
      %v6935 = vunpack.c.h.b16 %v6392
      %v6936 = vunpack.c.l.b16 %v6393
      %v6937 = vunpack.c.h.b16 %v6393
      %v6938 = vunpack.c.l.b16 %v6394
      %v6939 = vunpack.c.h.b16 %v6394
      %v6940 = vunpack.c.l.b16 %v6395
      %v6941 = vunpack.c.h.b16 %v6395
      %v6942 = vunpack.c.l.b16 %v6396
      %v6943 = vunpack.c.h.b16 %v6396
      %v6944 = vunpack.c.l.b16 %v6397
      %v6945 = vunpack.c.h.b16 %v6397
      %v6946 = vunpack.c.l.b16 %v6398
      %v6947 = vunpack.c.h.b16 %v6398
      %v6948 = vunpack.c.l.b16 %v6399
      %v6949 = vunpack.c.h.b16 %v6399
      %v6950 = vunpack.c.l.b16 %v6400
      %v6951 = vunpack.c.h.b16 %v6400
      %v6952 = vunpack.c.l.b16 %v6401
      %v6953 = vunpack.c.h.b16 %v6401
      %v6954 = vunpack.c.l.b16 %v6402
      %v6955 = vunpack.c.h.b16 %v6402
      %v6956 = vunpack.c.l.b16 %v6403
      %v6957 = vunpack.c.h.b16 %v6403
      %v6958 = vunpack.c.l.b16 %v6404
      %v6959 = vunpack.c.h.b16 %v6404
      %v6960 = vunpack.c.l.b16 %v6405
      %v6961 = vunpack.c.h.b16 %v6405
      %v6962 = vunpack.c.l.b16 %v6406
      %v6963 = vunpack.c.h.b16 %v6406
      %v6964 = vunpack.c.l.b16 %v6407
      %v6965 = vunpack.c.h.b16 %v6407
      %v6966 = vunpack.c.l.b16 %v6408
      %v6967 = vunpack.c.h.b16 %v6408
      %v6968 = vunpack.c.l.b16 %v6409
      %v6969 = vunpack.c.h.b16 %v6409
      %v6970 = vunpack.c.l.b16 %v6410
      %v6971 = vunpack.c.h.b16 %v6410
      %v6972 = vunpack.c.l.b16 %v6411
      %v6973 = vunpack.c.h.b16 %v6411
      %v6974 = vunpack.c.l.b16 %v6412
      %v6975 = vunpack.c.h.b16 %v6412
      %v6976 = vunpack.c.l.b16 %v6413
      %v6977 = vunpack.c.h.b16 %v6413
      %v6978 = vunpack.c.l.b16 %v6414
      %v6979 = vunpack.c.h.b16 %v6414
      %v6980 = vunpack.c.l.b16 %v6415
      %v6981 = vunpack.c.h.b16 %v6415
      %v6982 = vunpack.c.l.b16 %v6416
      %v6983 = vunpack.c.h.b16 %v6416
      %v6984 = vunpack.c.l.b16 %v6417
      %v6985 = vunpack.c.h.b16 %v6417
      %v6986 = vunpack.c.l.b16 %v6418
      %v6987 = vunpack.c.h.b16 %v6418
      %v6988 = vunpack.c.l.b16 %v6419
      %v6989 = vunpack.c.h.b16 %v6419
      %v6990 = vunpack.c.l.b16 %v6420
      %v6991 = vunpack.c.h.b16 %v6420
      %v6992 = vunpack.c.l.b16 %v6421
      %v6993 = vunpack.c.h.b16 %v6421
      %v6994 = vunpack.c.l.b16 %v6422
      %v6995 = vunpack.c.h.b16 %v6422
      %v6996 = vunpack.c.l.b16 %v6423
      %v6997 = vunpack.c.h.b16 %v6423
      %v6998 = vunpack.c.l.b16 %v6424
      %v6999 = vunpack.c.h.b16 %v6424
      %v7000 = vunpack.c.l.b16 %v6425
      %v7001 = vunpack.c.h.b16 %v6425
      %v7002 = vunpack.c.l.b16 %v6426
      %v7003 = vunpack.c.h.b16 %v6426
      %v7004 = vunpack.c.l.b16 %v6427
      %v7005 = vunpack.c.h.b16 %v6427
      %v7006 = vunpack.c.l.b16 %v6428
      %v7007 = vunpack.c.h.b16 %v6428
      %v7008 = vunpack.c.l.b16 %v6429
      %v7009 = vunpack.c.h.b16 %v6429
      %v7010 = vunpack.c.l.b16 %v6430
      %v7011 = vunpack.c.h.b16 %v6430
      %v7012 = vunpack.c.l.b16 %v6431
      %v7013 = vunpack.c.h.b16 %v6431
      %v7014 = vunpack.c.l.b16 %v6432
      %v7015 = vunpack.c.h.b16 %v6432
      %v7016 = vunpack.c.l.b16 %v6433
      %v7017 = vunpack.c.h.b16 %v6433
      %v7018 = vunpack.c.l.b16 %v6434
      %v7019 = vunpack.c.h.b16 %v6434
      %v7020 = vunpack.c.l.b16 %v6435
      %v7021 = vunpack.c.h.b16 %v6435
      %v7022 = vunpack.c.l.b16 %v6436
      %v7023 = vunpack.c.h.b16 %v6436
      %v7024 = vunpack.c.l.b16 %v6437
      %v7025 = vunpack.c.h.b16 %v6437
      %v7026 = vunpack.c.l.b16 %v6438
      %v7027 = vunpack.c.h.b16 %v6438
      %v7028 = vunpack.c.l.b16 %v6439
      %v7029 = vunpack.c.h.b16 %v6439
      %v7030 = vunpack.c.l.b16 %v6440
      %v7031 = vunpack.c.h.b16 %v6440
      %v7032 = vunpack.c.l.b16 %v6441
      %v7033 = vunpack.c.h.b16 %v6441
      %v7034 = vunpack.c.l.b16 %v6442
      %v7035 = vunpack.c.h.b16 %v6442
      %v7036 = vunpack.c.l.b16 %v6443
      %v7037 = vunpack.c.h.b16 %v6443
      %v7038 = vunpack.c.l.b16 %v6444
      %v7039 = vunpack.c.h.b16 %v6444
      %v7040 = vunpack.c.l.b16 %v6445
      %v7041 = vunpack.c.h.b16 %v6445
      %v7042 = vunpack.c.l.b16 %v6446
      %v7043 = vunpack.c.h.b16 %v6446
      %v7044 = vunpack.c.l.b16 %v6447
      %v7045 = vunpack.c.h.b16 %v6447
      %v7046 = vunpack.c.l.b16 %v6448
      %v7047 = vunpack.c.h.b16 %v6448
      %v7048 = vunpack.c.l.b16 %v6449
      %v7049 = vunpack.c.h.b16 %v6449
      %v7050 = vunpack.c.l.b16 %v6450
      %v7051 = vunpack.c.h.b16 %v6450
      %v7052 = vunpack.c.l.b16 %v6451
      %v7053 = vunpack.c.h.b16 %v6451
      %v7054 = vunpack.c.l.b16 %v6452
      %v7055 = vunpack.c.h.b16 %v6452
      %v7056 = vunpack.c.l.b16 %v6453
      %v7057 = vunpack.c.h.b16 %v6453
      %v7058 = vunpack.c.l.b16 %v6454
      %v7059 = vunpack.c.h.b16 %v6454
      %v7060 = vunpack.c.l.b16 %v6455
      %v7061 = vunpack.c.h.b16 %v6455
      %v7062 = vunpack.c.l.b16 %v6456
      %v7063 = vunpack.c.h.b16 %v6456
      %v7064 = vunpack.c.l.b16 %v6457
      %v7065 = vunpack.c.h.b16 %v6457
      %v7066 = vunpack.c.l.b16 %v6458
      %v7067 = vunpack.c.h.b16 %v6458
      %v7068 = vunpack.c.l.b16 %v6459
      %v7069 = vunpack.c.h.b16 %v6459
      %v7070 = vunpack.c.l.b16 %v6460
      %v7071 = vunpack.c.h.b16 %v6460
      %v7072 = vunpack.c.l.b16 %v6461
      %v7073 = vunpack.c.h.b16 %v6461
      %v7074 = vunpack.c.l.b16 %v6462
      %v7075 = vunpack.c.h.b16 %v6462
      %v7076 = vunpack.c.l.b16 %v6463
      %v7077 = vunpack.c.h.b16 %v6463
      %v7078 = vunpack.c.l.b16 %v6464
      %v7079 = vunpack.c.h.b16 %v6464
      %v7080 = vunpack.c.l.b16 %v6465
      %v7081 = vunpack.c.h.b16 %v6465
      %v7082 = vunpack.c.l.b16 %v6466
      %v7083 = vunpack.c.h.b16 %v6466
      %v7084 = vunpack.c.l.b16 %v6467
      %v7085 = vunpack.c.h.b16 %v6467
      %v7086 = vunpack.c.l.b16 %v6468
      %v7087 = vunpack.c.h.b16 %v6468
      %v7088 = vunpack.c.l.b16 %v6469
      %v7089 = vunpack.c.h.b16 %v6469
      %v7090 = vunpack.c.l.b16 %v6470
      %v7091 = vunpack.c.h.b16 %v6470
      %v7092 = vunpack.c.l.b16 %v6471
      %v7093 = vunpack.c.h.b16 %v6471
      %v7094 = vunpack.c.l.b16 %v6472
      %v7095 = vunpack.c.h.b16 %v6472
      %v7096 = vunpack.c.l.b16 %v6473
      %v7097 = vunpack.c.h.b16 %v6473
      %v7098 = vunpack.c.l.b16 %v6474
      %v7099 = vunpack.c.h.b16 %v6474
      %v7100 = vunpack.c.l.b16 %v6475
      %v7101 = vunpack.c.h.b16 %v6475
      %v7102 = vunpack.c.l.b16 %v6476
      %v7103 = vunpack.c.h.b16 %v6476
      %v7104 = vunpack.c.l.b16 %v6477
      %v7105 = vunpack.c.h.b16 %v6477
      %v7106 = vunpack.c.l.b16 %v6478
      %v7107 = vunpack.c.h.b16 %v6478
      %v7108 = vunpack.c.l.b16 %v6479
      %v7109 = vunpack.c.h.b16 %v6479
      %v7110 = vunpack.c.l.b16 %v6480
      %v7111 = vunpack.c.h.b16 %v6480
      %v7112 = vunpack.c.l.b16 %v6481
      %v7113 = vunpack.c.h.b16 %v6481
      %v7114 = vunpack.c.l.b16 %v6482
      %v7115 = vunpack.c.h.b16 %v6482
      %v7116 = vunpack.c.l.b16 %v6483
      %v7117 = vunpack.c.h.b16 %v6483
      %v7118 = vunpack.c.l.b16 %v6484
      %v7119 = vunpack.c.h.b16 %v6484
      %v7120 = vunpack.c.l.b16 %v6485
      %v7121 = vunpack.c.h.b16 %v6485
      %v7122 = vunpack.c.l.b16 %v6486
      %v7123 = vunpack.c.h.b16 %v6486
      %v7124 = vunpack.c.l.b16 %v6487
      %v7125 = vunpack.c.h.b16 %v6487
      %v7126 = vunpack.c.l.b16 %v6488
      %v7127 = vunpack.c.h.b16 %v6488
      %v7128 = vunpack.c.l.b16 %v6489
      %v7129 = vunpack.c.h.b16 %v6489
      %v7130 = vunpack.c.l.b16 %v6490
      %v7131 = vunpack.c.h.b16 %v6490
      %v7132 = vunpack.c.l.b16 %v6491
      %v7133 = vunpack.c.h.b16 %v6491
      %v7134 = vunpack.c.l.b16 %v6492
      %v7135 = vunpack.c.h.b16 %v6492
      %v7136 = vunpack.c.l.b16 %v6493
      %v7137 = vunpack.c.h.b16 %v6493
      %v7138 = vunpack.c.l.b16 %v6494
      %v7139 = vunpack.c.h.b16 %v6494
      %v7140 = vunpack.c.l.b16 %v6495
      %v7141 = vunpack.c.h.b16 %v6495
      %v7142 = vunpack.c.l.b16 %v6496
      %v7143 = vunpack.c.h.b16 %v6496
      %v7144 = vunpack.c.l.b16 %v6497
      %v7145 = vunpack.c.h.b16 %v6497
      %v7146 = vunpack.c.l.b16 %v6498
      %v7147 = vunpack.c.h.b16 %v6498
      %v7148 = vunpack.c.l.b16 %v6499
      %v7149 = vunpack.c.h.b16 %v6499
      %v7150 = vunpack.c.l.b16 %v6500
      %v7151 = vunpack.c.h.b16 %v6500
      %v7152 = vunpack.c.l.b16 %v6501
      %v7153 = vunpack.c.h.b16 %v6501
      %v7154 = vunpack.c.l.b16 %v6502
      %v7155 = vunpack.c.h.b16 %v6502
      %v7156 = vunpack.c.l.b16 %v6503
      %v7157 = vunpack.c.h.b16 %v6503
      %v7158 = vunpack.c.l.b16 %v6504
      %v7159 = vunpack.c.h.b16 %v6504
      %v7160 = vunpack.c.l.b16 %v6505
      %v7161 = vunpack.c.h.b16 %v6505
      %v7162 = vunpack.c.l.b16 %v6506
      %v7163 = vunpack.c.h.b16 %v6506
      %v7164 = vunpack.c.l.b16 %v6507
      %v7165 = vunpack.c.h.b16 %v6507
      %v7166 = vunpack.c.l.b16 %v6508
      %v7167 = vunpack.c.h.b16 %v6508
      %v7168 = vunpack.c.l.b16 %v6509
      %v7169 = vunpack.c.h.b16 %v6509
      %v7170 = vunpack.c.l.b16 %v6510
      %v7171 = vunpack.c.h.b16 %v6510
      %v7172 = vunpack.c.l.b16 %v6511
      %v7173 = vunpack.c.h.b16 %v6511
      %v7174 = vunpack.c.l.b16 %v6512
      %v7175 = vunpack.c.h.b16 %v6512
      %v7176 = vunpack.c.l.b16 %v6513
      %v7177 = vunpack.c.h.b16 %v6513
      %v7178 = vunpack.c.l.b16 %v6514
      %v7179 = vunpack.c.h.b16 %v6514
      %v7180 = vunpack.c.l.b16 %v6515
      %v7181 = vunpack.c.h.b16 %v6515
      %v7182 = vunpack.c.l.b16 %v6516
      %v7183 = vunpack.c.h.b16 %v6516
      %v7184 = vunpack.c.l.b16 %v6517
      %v7185 = vunpack.c.h.b16 %v6517
      %v7186 = vunpack.c.l.b16 %v6518
      %v7187 = vunpack.c.h.b16 %v6518
      %v7188 = vunpack.c.l.b16 %v6519
      %v7189 = vunpack.c.h.b16 %v6519
      %v7190 = vunpack.c.l.b16 %v6520
      %v7191 = vunpack.c.h.b16 %v6520
      %v7192 = vunpack.c.l.b16 %v6521
      %v7193 = vunpack.c.h.b16 %v6521
      %v7194 = vunpack.c.l.b16 %v6522
      %v7195 = vunpack.c.h.b16 %v6522
      %v7196 = vunpack.c.l.b16 %v6523
      %v7197 = vunpack.c.h.b16 %v6523
      %v7198 = vunpack.c.l.b16 %v6524
      %v7199 = vunpack.c.h.b16 %v6524
      %v7200 = vunpack.c.l.b16 %v6525
      %v7201 = vunpack.c.h.b16 %v6525
      %v7202 = vunpack.c.l.b16 %v6526
      %v7203 = vunpack.c.h.b16 %v6526
      %v7204 = vunpack.c.l.b16 %v6527
      %v7205 = vunpack.c.h.b16 %v6527
      %v7206 = vunpack.c.l.b16 %v6528
      %v7207 = vunpack.c.h.b16 %v6528
      %v7208 = vunpack.c.l.b16 %v6529
      %v7209 = vunpack.c.h.b16 %v6529
      %v7210 = vunpack.c.l.b16 %v6530
      %v7211 = vunpack.c.h.b16 %v6530
      %v7212 = vunpack.c.l.b16 %v6531
      %v7213 = vunpack.c.h.b16 %v6531
      %v7214 = vunpack.c.l.b16 %v6532
      %v7215 = vunpack.c.h.b16 %v6532
      %v7216 = vunpack.c.l.b16 %v6533
      %v7217 = vunpack.c.h.b16 %v6533
      %v7218 = vunpack.c.l.b16 %v6534
      %v7219 = vunpack.c.h.b16 %v6534
      %v7220 = vunpack.c.l.b16 %v6535
      %v7221 = vunpack.c.h.b16 %v6535
      %v7222 = vunpack.c.l.b16 %v6536
      %v7223 = vunpack.c.h.b16 %v6536
      %v7224 = vunpack.c.l.b16 %v6537
      %v7225 = vunpack.c.h.b16 %v6537
      %v7226 = vunpack.c.l.b16 %v6538
      %v7227 = vunpack.c.h.b16 %v6538
      %v7228 = vunpack.c.l.b16 %v6539
      %v7229 = vunpack.c.h.b16 %v6539
      %v7230 = vunpack.c.l.b16 %v6540
      %v7231 = vunpack.c.h.b16 %v6540
      %v7232 = vunpack.c.l.b16 %v6541
      %v7233 = vunpack.c.h.b16 %v6541
      %v7234 = vunpack.c.l.b16 %v6542
      %v7235 = vunpack.c.h.b16 %v6542
      %v7236 = vunpack.c.l.b16 %v6543
      %v7237 = vunpack.c.h.b16 %v6543
      %v7238 = vunpack.c.l.b16 %v6544
      %v7239 = vunpack.c.h.b16 %v6544
      %v7240 = vunpack.c.l.b16 %v6545
      %v7241 = vunpack.c.h.b16 %v6545
      %v7242 = vunpack.c.l.b16 %v6546
      %v7243 = vunpack.c.h.b16 %v6546
      %v7244 = vunpack.c.l.b16 %v6547
      %v7245 = vunpack.c.h.b16 %v6547
      %v7246 = vunpack.c.l.b16 %v6548
      %v7247 = vunpack.c.h.b16 %v6548
      %v7248 = vunpack.c.l.b16 %v6549
      %v7249 = vunpack.c.h.b16 %v6549
      %v7250 = vunpack.c.l.b16 %v6550
      %v7251 = vunpack.c.h.b16 %v6550
      %v7252 = vunpack.c.l.b16 %v6551
      %v7253 = vunpack.c.h.b16 %v6551
      %v7254 = vunpack.c.l.b16 %v6552
      %v7255 = vunpack.c.h.b16 %v6552
      %v7256 = vunpack.c.l.b16 %v6553
      %v7257 = vunpack.c.h.b16 %v6553
      %v7258 = vunpack.c.l.b16 %v6554
      %v7259 = vunpack.c.h.b16 %v6554
      %v7260 = vunpack.c.l.b16 %v6555
      %v7261 = vunpack.c.h.b16 %v6555
      %v7262 = vunpack.c.l.b16 %v6556
      %v7263 = vunpack.c.h.b16 %v6556
      %v7264 = vunpack.c.l.b16 %v6557
      %v7265 = vunpack.c.h.b16 %v6557
      %v7266 = vunpack.c.l.b16 %v6558
      %v7267 = vunpack.c.h.b16 %v6558
      %v7268 = vunpack.c.l.b16 %v6559
      %v7269 = vunpack.c.h.b16 %v6559
      %v7270 = vunpack.c.l.b16 %v6560
      %v7271 = vunpack.c.h.b16 %v6560
      %v7272 = vunpack.c.l.b16 %v6561
      %v7273 = vunpack.c.h.b16 %v6561
      %v7274 = vunpack.c.l.b16 %v6562
      %v7275 = vunpack.c.h.b16 %v6562
      %v7276 = vunpack.c.l.b16 %v6563
      %v7277 = vunpack.c.h.b16 %v6563
      %v7278 = vunpack.c.l.b16 %v6564
      %v7279 = vunpack.c.h.b16 %v6564
      %v7280 = vunpack.c.l.b16 %v6565
      %v7281 = vunpack.c.h.b16 %v6565
      %v7282 = vunpack.c.l.b16 %v6566
      %v7283 = vunpack.c.h.b16 %v6566
      %v7284 = vunpack.c.l.b16 %v6567
      %v7285 = vunpack.c.h.b16 %v6567
      %v7286 = vunpack.c.l.b16 %v6568
      %v7287 = vunpack.c.h.b16 %v6568
      %v7288 = vunpack.c.l.b16 %v6569
      %v7289 = vunpack.c.h.b16 %v6569
      %v7290 = vunpack.c.l.b16 %v6570
      %v7291 = vunpack.c.h.b16 %v6570
      %v7292 = vunpack.c.l.b16 %v6571
      %v7293 = vunpack.c.h.b16 %v6571
      %v7294 = vunpack.c.l.b16 %v6572
      %v7295 = vunpack.c.h.b16 %v6572
      %v7296 = vunpack.c.l.b16 %v6573
      %v7297 = vunpack.c.h.b16 %v6573
      %v7298 = vunpack.c.l.b16 %v6574
      %v7299 = vunpack.c.h.b16 %v6574
      %v7300 = vunpack.c.l.b16 %v6575
      %v7301 = vunpack.c.h.b16 %v6575
      %v7302 = vunpack.c.l.b16 %v6576
      %v7303 = vunpack.c.h.b16 %v6576
      %v7304 = vunpack.c.l.b16 %v6577
      %v7305 = vunpack.c.h.b16 %v6577
      %v7306 = vunpack.c.l.b16 %v6578
      %v7307 = vunpack.c.h.b16 %v6578
      %v7308 = vunpack.c.l.b16 %v6579
      %v7309 = vunpack.c.h.b16 %v6579
      %v7310 = vunpack.c.l.b16 %v6580
      %v7311 = vunpack.c.h.b16 %v6580
      %v7312 = vunpack.c.l.b16 %v6581
      %v7313 = vunpack.c.h.b16 %v6581
      %v7314 = vunpack.c.l.b16 %v6582
      %v7315 = vunpack.c.h.b16 %v6582
      %v7316 = vunpack.c.l.b16 %v6583
      %v7317 = vunpack.c.h.b16 %v6583
      %v7318 = vunpack.c.l.b16 %v6584
      %v7319 = vunpack.c.h.b16 %v6584
      %v7320 = vunpack.c.l.b16 %v6585
      %v7321 = vunpack.c.h.b16 %v6585
      %v7322 = vunpack.c.l.b16 %v6586
      %v7323 = vunpack.c.h.b16 %v6586
      %v7324 = vunpack.c.l.b16 %v6587
      %v7325 = vunpack.c.h.b16 %v6587
      %v7326 = vunpack.c.l.b16 %v6588
      %v7327 = vunpack.c.h.b16 %v6588
      %v7328 = vunpack.c.l.b16 %v6589
      %v7329 = vunpack.c.h.b16 %v6589
      %v7330 = vunpack.c.l.b16 %v6590
      %v7331 = vunpack.c.h.b16 %v6590
      %v7332 = vunpack.c.l.b16 %v6591
      %v7333 = vunpack.c.h.b16 %v6591
      %v7334 = vunpack.c.l.b16 %v6592
      %v7335 = vunpack.c.h.b16 %v6592
      %v7336 = vunpack.c.l.b16 %v6593
      %v7337 = vunpack.c.h.b16 %v6593
      %v7338 = vunpack.c.l.b16 %v6594
      %v7339 = vunpack.c.h.b16 %v6594
      %v7340 = vunpack.c.l.b16 %v6595
      %v7341 = vunpack.c.h.b16 %v6595
      %v7342 = vunpack.c.l.b16 %v6596
      %v7343 = vunpack.c.h.b16 %v6596
      %v7344 = vunpack.c.l.b16 %v6597
      %v7345 = vunpack.c.h.b16 %v6597
      %v7346 = vunpack.c.l.b16 %v6598
      %v7347 = vunpack.c.h.b16 %v6598
      %v7348 = vunpack.c.l.b16 %v6599
      %v7349 = vunpack.c.h.b16 %v6599
      %v7350 = vunpack.c.l.b16 %v6600
      %v7351 = vunpack.c.h.b16 %v6600
      %v7352 = vunpack.c.l.b16 %v6601
      %v7353 = vunpack.c.h.b16 %v6601
      %v7354 = vunpack.c.l.b16 %v6602
      %v7355 = vunpack.c.h.b16 %v6602
      %v7356 = vunpack.c.l.b16 %v6603
      %v7357 = vunpack.c.h.b16 %v6603
      %v7358 = vunpack.c.l.b16 %v6604
      %v7359 = vunpack.c.h.b16 %v6604
      %v7360 = vunpack.c.l.b16 %v6605
      %v7361 = vunpack.c.h.b16 %v6605
      %v7362 = vunpack.c.l.b16 %v6606
      %v7363 = vunpack.c.h.b16 %v6606
      %v7364 = vunpack.c.l.b16 %v6607
      %v7365 = vunpack.c.h.b16 %v6607
      %v7366 = vunpack.c.l.b16 %v6608
      %v7367 = vunpack.c.h.b16 %v6608
      %v7368 = vunpack.c.l.b16 %v6609
      %v7369 = vunpack.c.h.b16 %v6609
      %v7370 = vunpack.c.l.b16 %v6610
      %v7371 = vunpack.c.h.b16 %v6610
      %v7372 = vunpack.c.l.b16 %v6611
      %v7373 = vunpack.c.h.b16 %v6611
      %v7374 = vunpack.c.l.b16 %v6612
      %v7375 = vunpack.c.h.b16 %v6612
      %v7376 = vunpack.c.l.b16 %v6613
      %v7377 = vunpack.c.h.b16 %v6613
      %v7378 = vunpack.c.l.b16 %v6614
      %v7379 = vunpack.c.h.b16 %v6614
      %v7380 = vunpack.c.l.b16 %v6615
      %v7381 = vunpack.c.h.b16 %v6615
      %v7382 = vunpack.c.l.b16 %v6616
      %v7383 = vunpack.c.h.b16 %v6616
      %v7384 = vunpack.c.l.b16 %v6617
      %v7385 = vunpack.c.h.b16 %v6617
      %v7386 = vpack.c.b16 %v6882, %v6874
      %v7387 = vpack.c.b16 %v6883, %v6875
      %v7388 = vpack.c.b16 %v6884, %v6876
      %v7389 = vpack.c.b16 %v6885, %v6877
      %v7390 = vpack.c.b16 %v6886, %v6878
      %v7391 = vpack.c.b16 %v6887, %v6879
      %v7392 = vpack.c.b16 %v6888, %v6880
      %v7393 = vpack.c.b16 %v6889, %v6881
      %v7394 = vpack.c.b16 %v6898, %v6890
      %v7395 = vpack.c.b16 %v6899, %v6891
      %v7396 = vpack.c.b16 %v6900, %v6892
      %v7397 = vpack.c.b16 %v6901, %v6893
      %v7398 = vpack.c.b16 %v6902, %v6894
      %v7399 = vpack.c.b16 %v6903, %v6895
      %v7400 = vpack.c.b16 %v6904, %v6896
      %v7401 = vpack.c.b16 %v6905, %v6897
      %v7402 = vpack.c.b16 %v6914, %v6906
      %v7403 = vpack.c.b16 %v6915, %v6907
      %v7404 = vpack.c.b16 %v6916, %v6908
      %v7405 = vpack.c.b16 %v6917, %v6909
      %v7406 = vpack.c.b16 %v6918, %v6910
      %v7407 = vpack.c.b16 %v6919, %v6911
      %v7408 = vpack.c.b16 %v6920, %v6912
      %v7409 = vpack.c.b16 %v6921, %v6913
      %v7410 = vpack.c.b16 %v6930, %v6922
      %v7411 = vpack.c.b16 %v6931, %v6923
      %v7412 = vpack.c.b16 %v6932, %v6924
      %v7413 = vpack.c.b16 %v6933, %v6925
      %v7414 = vpack.c.b16 %v6934, %v6926
      %v7415 = vpack.c.b16 %v6935, %v6927
      %v7416 = vpack.c.b16 %v6936, %v6928
      %v7417 = vpack.c.b16 %v6937, %v6929
      %v7418 = vpack.c.b16 %v6946, %v6938
      %v7419 = vpack.c.b16 %v6947, %v6939
      %v7420 = vpack.c.b16 %v6948, %v6940
      %v7421 = vpack.c.b16 %v6949, %v6941
      %v7422 = vpack.c.b16 %v6950, %v6942
      %v7423 = vpack.c.b16 %v6951, %v6943
      %v7424 = vpack.c.b16 %v6952, %v6944
      %v7425 = vpack.c.b16 %v6953, %v6945
      %v7426 = vpack.c.b16 %v6962, %v6954
      %v7427 = vpack.c.b16 %v6963, %v6955
      %v7428 = vpack.c.b16 %v6964, %v6956
      %v7429 = vpack.c.b16 %v6965, %v6957
      %v7430 = vpack.c.b16 %v6966, %v6958
      %v7431 = vpack.c.b16 %v6967, %v6959
      %v7432 = vpack.c.b16 %v6968, %v6960
      %v7433 = vpack.c.b16 %v6969, %v6961
      %v7434 = vpack.c.b16 %v6978, %v6970
      %v7435 = vpack.c.b16 %v6979, %v6971
      %v7436 = vpack.c.b16 %v6980, %v6972
      %v7437 = vpack.c.b16 %v6981, %v6973
      %v7438 = vpack.c.b16 %v6982, %v6974
      %v7439 = vpack.c.b16 %v6983, %v6975
      %v7440 = vpack.c.b16 %v6984, %v6976
      %v7441 = vpack.c.b16 %v6985, %v6977
      %v7442 = vpack.c.b16 %v6994, %v6986
      %v7443 = vpack.c.b16 %v6995, %v6987
      %v7444 = vpack.c.b16 %v6996, %v6988
      %v7445 = vpack.c.b16 %v6997, %v6989
      %v7446 = vpack.c.b16 %v6998, %v6990
      %v7447 = vpack.c.b16 %v6999, %v6991
      %v7448 = vpack.c.b16 %v7000, %v6992
      %v7449 = vpack.c.b16 %v7001, %v6993
      %v7450 = vpack.c.b16 %v7010, %v7002
      %v7451 = vpack.c.b16 %v7011, %v7003
      %v7452 = vpack.c.b16 %v7012, %v7004
      %v7453 = vpack.c.b16 %v7013, %v7005
      %v7454 = vpack.c.b16 %v7014, %v7006
      %v7455 = vpack.c.b16 %v7015, %v7007
      %v7456 = vpack.c.b16 %v7016, %v7008
      %v7457 = vpack.c.b16 %v7017, %v7009
      %v7458 = vpack.c.b16 %v7026, %v7018
      %v7459 = vpack.c.b16 %v7027, %v7019
      %v7460 = vpack.c.b16 %v7028, %v7020
      %v7461 = vpack.c.b16 %v7029, %v7021
      %v7462 = vpack.c.b16 %v7030, %v7022
      %v7463 = vpack.c.b16 %v7031, %v7023
      %v7464 = vpack.c.b16 %v7032, %v7024
      %v7465 = vpack.c.b16 %v7033, %v7025
      %v7466 = vpack.c.b16 %v7042, %v7034
      %v7467 = vpack.c.b16 %v7043, %v7035
      %v7468 = vpack.c.b16 %v7044, %v7036
      %v7469 = vpack.c.b16 %v7045, %v7037
      %v7470 = vpack.c.b16 %v7046, %v7038
      %v7471 = vpack.c.b16 %v7047, %v7039
      %v7472 = vpack.c.b16 %v7048, %v7040
      %v7473 = vpack.c.b16 %v7049, %v7041
      %v7474 = vpack.c.b16 %v7058, %v7050
      %v7475 = vpack.c.b16 %v7059, %v7051
      %v7476 = vpack.c.b16 %v7060, %v7052
      %v7477 = vpack.c.b16 %v7061, %v7053
      %v7478 = vpack.c.b16 %v7062, %v7054
      %v7479 = vpack.c.b16 %v7063, %v7055
      %v7480 = vpack.c.b16 %v7064, %v7056
      %v7481 = vpack.c.b16 %v7065, %v7057
      %v7482 = vpack.c.b16 %v7074, %v7066
      %v7483 = vpack.c.b16 %v7075, %v7067
      %v7484 = vpack.c.b16 %v7076, %v7068
      %v7485 = vpack.c.b16 %v7077, %v7069
      %v7486 = vpack.c.b16 %v7078, %v7070
      %v7487 = vpack.c.b16 %v7079, %v7071
      %v7488 = vpack.c.b16 %v7080, %v7072
      %v7489 = vpack.c.b16 %v7081, %v7073
      %v7490 = vpack.c.b16 %v7090, %v7082
      %v7491 = vpack.c.b16 %v7091, %v7083
      %v7492 = vpack.c.b16 %v7092, %v7084
      %v7493 = vpack.c.b16 %v7093, %v7085
      %v7494 = vpack.c.b16 %v7094, %v7086
      %v7495 = vpack.c.b16 %v7095, %v7087
      %v7496 = vpack.c.b16 %v7096, %v7088
      %v7497 = vpack.c.b16 %v7097, %v7089
      %v7498 = vpack.c.b16 %v7106, %v7098
      %v7499 = vpack.c.b16 %v7107, %v7099
      %v7500 = vpack.c.b16 %v7108, %v7100
      %v7501 = vpack.c.b16 %v7109, %v7101
      %v7502 = vpack.c.b16 %v7110, %v7102
      %v7503 = vpack.c.b16 %v7111, %v7103
      %v7504 = vpack.c.b16 %v7112, %v7104
      %v7505 = vpack.c.b16 %v7113, %v7105
      %v7506 = vpack.c.b16 %v7122, %v7114
      %v7507 = vpack.c.b16 %v7123, %v7115
      %v7508 = vpack.c.b16 %v7124, %v7116
      %v7509 = vpack.c.b16 %v7125, %v7117
      %v7510 = vpack.c.b16 %v7126, %v7118
      %v7511 = vpack.c.b16 %v7127, %v7119
      %v7512 = vpack.c.b16 %v7128, %v7120
      %v7513 = vpack.c.b16 %v7129, %v7121
      %v7514 = vpack.c.b16 %v7138, %v7130
      %v7515 = vpack.c.b16 %v7139, %v7131
      %v7516 = vpack.c.b16 %v7140, %v7132
      %v7517 = vpack.c.b16 %v7141, %v7133
      %v7518 = vpack.c.b16 %v7142, %v7134
      %v7519 = vpack.c.b16 %v7143, %v7135
      %v7520 = vpack.c.b16 %v7144, %v7136
      %v7521 = vpack.c.b16 %v7145, %v7137
      %v7522 = vpack.c.b16 %v7154, %v7146
      %v7523 = vpack.c.b16 %v7155, %v7147
      %v7524 = vpack.c.b16 %v7156, %v7148
      %v7525 = vpack.c.b16 %v7157, %v7149
      %v7526 = vpack.c.b16 %v7158, %v7150
      %v7527 = vpack.c.b16 %v7159, %v7151
      %v7528 = vpack.c.b16 %v7160, %v7152
      %v7529 = vpack.c.b16 %v7161, %v7153
      %v7530 = vpack.c.b16 %v7170, %v7162
      %v7531 = vpack.c.b16 %v7171, %v7163
      %v7532 = vpack.c.b16 %v7172, %v7164
      %v7533 = vpack.c.b16 %v7173, %v7165
      %v7534 = vpack.c.b16 %v7174, %v7166
      %v7535 = vpack.c.b16 %v7175, %v7167
      %v7536 = vpack.c.b16 %v7176, %v7168
      %v7537 = vpack.c.b16 %v7177, %v7169
      %v7538 = vpack.c.b16 %v7186, %v7178
      %v7539 = vpack.c.b16 %v7187, %v7179
      %v7540 = vpack.c.b16 %v7188, %v7180
      %v7541 = vpack.c.b16 %v7189, %v7181
      %v7542 = vpack.c.b16 %v7190, %v7182
      %v7543 = vpack.c.b16 %v7191, %v7183
      %v7544 = vpack.c.b16 %v7192, %v7184
      %v7545 = vpack.c.b16 %v7193, %v7185
      %v7546 = vpack.c.b16 %v7202, %v7194
      %v7547 = vpack.c.b16 %v7203, %v7195
      %v7548 = vpack.c.b16 %v7204, %v7196
      %v7549 = vpack.c.b16 %v7205, %v7197
      %v7550 = vpack.c.b16 %v7206, %v7198
      %v7551 = vpack.c.b16 %v7207, %v7199
      %v7552 = vpack.c.b16 %v7208, %v7200
      %v7553 = vpack.c.b16 %v7209, %v7201
      %v7554 = vpack.c.b16 %v7218, %v7210
      %v7555 = vpack.c.b16 %v7219, %v7211
      %v7556 = vpack.c.b16 %v7220, %v7212
      %v7557 = vpack.c.b16 %v7221, %v7213
      %v7558 = vpack.c.b16 %v7222, %v7214
      %v7559 = vpack.c.b16 %v7223, %v7215
      %v7560 = vpack.c.b16 %v7224, %v7216
      %v7561 = vpack.c.b16 %v7225, %v7217
      %v7562 = vpack.c.b16 %v7234, %v7226
      %v7563 = vpack.c.b16 %v7235, %v7227
      %v7564 = vpack.c.b16 %v7236, %v7228
      %v7565 = vpack.c.b16 %v7237, %v7229
      %v7566 = vpack.c.b16 %v7238, %v7230
      %v7567 = vpack.c.b16 %v7239, %v7231
      %v7568 = vpack.c.b16 %v7240, %v7232
      %v7569 = vpack.c.b16 %v7241, %v7233
      %v7570 = vpack.c.b16 %v7250, %v7242
      %v7571 = vpack.c.b16 %v7251, %v7243
      %v7572 = vpack.c.b16 %v7252, %v7244
      %v7573 = vpack.c.b16 %v7253, %v7245
      %v7574 = vpack.c.b16 %v7254, %v7246
      %v7575 = vpack.c.b16 %v7255, %v7247
      %v7576 = vpack.c.b16 %v7256, %v7248
      %v7577 = vpack.c.b16 %v7257, %v7249
      %v7578 = vpack.c.b16 %v7266, %v7258
      %v7579 = vpack.c.b16 %v7267, %v7259
      %v7580 = vpack.c.b16 %v7268, %v7260
      %v7581 = vpack.c.b16 %v7269, %v7261
      %v7582 = vpack.c.b16 %v7270, %v7262
      %v7583 = vpack.c.b16 %v7271, %v7263
      %v7584 = vpack.c.b16 %v7272, %v7264
      %v7585 = vpack.c.b16 %v7273, %v7265
      %v7586 = vpack.c.b16 %v7282, %v7274
      %v7587 = vpack.c.b16 %v7283, %v7275
      %v7588 = vpack.c.b16 %v7284, %v7276
      %v7589 = vpack.c.b16 %v7285, %v7277
      %v7590 = vpack.c.b16 %v7286, %v7278
      %v7591 = vpack.c.b16 %v7287, %v7279
      %v7592 = vpack.c.b16 %v7288, %v7280
      %v7593 = vpack.c.b16 %v7289, %v7281
      %v7594 = vpack.c.b16 %v7298, %v7290
      %v7595 = vpack.c.b16 %v7299, %v7291
      %v7596 = vpack.c.b16 %v7300, %v7292
      %v7597 = vpack.c.b16 %v7301, %v7293
      %v7598 = vpack.c.b16 %v7302, %v7294
      %v7599 = vpack.c.b16 %v7303, %v7295
      %v7600 = vpack.c.b16 %v7304, %v7296
      %v7601 = vpack.c.b16 %v7305, %v7297
      %v7602 = vpack.c.b16 %v7314, %v7306
      %v7603 = vpack.c.b16 %v7315, %v7307
      %v7604 = vpack.c.b16 %v7316, %v7308
      %v7605 = vpack.c.b16 %v7317, %v7309
      %v7606 = vpack.c.b16 %v7318, %v7310
      %v7607 = vpack.c.b16 %v7319, %v7311
      %v7608 = vpack.c.b16 %v7320, %v7312
      %v7609 = vpack.c.b16 %v7321, %v7313
      %v7610 = vpack.c.b16 %v7330, %v7322
      %v7611 = vpack.c.b16 %v7331, %v7323
      %v7612 = vpack.c.b16 %v7332, %v7324
      %v7613 = vpack.c.b16 %v7333, %v7325
      %v7614 = vpack.c.b16 %v7334, %v7326
      %v7615 = vpack.c.b16 %v7335, %v7327
      %v7616 = vpack.c.b16 %v7336, %v7328
      %v7617 = vpack.c.b16 %v7337, %v7329
      %v7618 = vpack.c.b16 %v7346, %v7338
      %v7619 = vpack.c.b16 %v7347, %v7339
      %v7620 = vpack.c.b16 %v7348, %v7340
      %v7621 = vpack.c.b16 %v7349, %v7341
      %v7622 = vpack.c.b16 %v7350, %v7342
      %v7623 = vpack.c.b16 %v7351, %v7343
      %v7624 = vpack.c.b16 %v7352, %v7344
      %v7625 = vpack.c.b16 %v7353, %v7345
      %v7626 = vpack.c.b16 %v7362, %v7354
      %v7627 = vpack.c.b16 %v7363, %v7355
      %v7628 = vpack.c.b16 %v7364, %v7356
      %v7629 = vpack.c.b16 %v7365, %v7357
      %v7630 = vpack.c.b16 %v7366, %v7358
      %v7631 = vpack.c.b16 %v7367, %v7359
      %v7632 = vpack.c.b16 %v7368, %v7360
      %v7633 = vpack.c.b16 %v7369, %v7361
      %v7634 = vpack.c.b16 %v7378, %v7370
      %v7635 = vpack.c.b16 %v7379, %v7371
      %v7636 = vpack.c.b16 %v7380, %v7372
      %v7637 = vpack.c.b16 %v7381, %v7373
      %v7638 = vpack.c.b16 %v7382, %v7374
      %v7639 = vpack.c.b16 %v7383, %v7375
      %v7640 = vpack.c.b16 %v7384, %v7376
      %v7641 = vpack.c.b16 %v7385, %v7377
      %7898 = vmatprep.subr.bf16.mxu0 %v7443
      %7899 = vmatpush1.bf16.msra.mxu0 %v7442
      %7900 = vmatprep.subr.bf16.mxu0 %v7435
      %7901 = vmatpush1.bf16.msra.mxu0 %v7434
      %7902 = vmatprep.subr.bf16.mxu0 %v7427
      %7903 = vmatpush1.bf16.msra.mxu0 %v7426
      %7904 = vmatprep.subr.bf16.mxu0 %v7419
      %7905 = vmatpush1.bf16.msra.mxu0 %v7418
      %7906 = vmatprep.subr.bf16.mxu0 %v7411
      %7907 = vmatpush1.bf16.msra.mxu0 %v7410
      %7908 = vmatprep.subr.bf16.mxu0 %v7403
      %7909 = vmatpush1.bf16.msra.mxu0 %v7402
      %7910 = vmatprep.subr.bf16.mxu0 %v7395
      %7911 = vmatpush1.bf16.msra.mxu0 %v7394
      %7912 = vmatprep.subr.bf16.mxu0 %v7387
      %7913 = vmatpush1.bf16.msra.mxu0 %v7386
      %7914 = vmatprep.subr.bf16.mxu0 %v7507
      %7915 = vmatpush2.bf16.msra.mxu0 %v7506
      %7916 = vmatprep.subr.bf16.mxu0 %v7499
      %7917 = vmatpush2.bf16.msra.mxu0 %v7498
      %7918 = vmatprep.subr.bf16.mxu0 %v7491
      %7919 = vmatpush2.bf16.msra.mxu0 %v7490
      %7920 = vmatprep.subr.bf16.mxu0 %v7483
      %7921 = vmatpush2.bf16.msra.mxu0 %v7482
      %7922 = vmatprep.subr.bf16.mxu0 %v7475
      %7923 = vmatpush2.bf16.msra.mxu0 %v7474
      %7924 = vmatprep.subr.bf16.mxu0 %v7467
      %7925 = vmatpush2.bf16.msra.mxu0 %v7466
      %7926 = vmatprep.subr.bf16.mxu0 %v7459
      %7927 = vmatpush2.bf16.msra.mxu0 %v7458
      %7928 = vmatprep.subr.bf16.mxu0 %v7451
      %7929 = vmatpush2.bf16.msra.mxu0 %v7450
      %7930 = vmatprep.mubr.bf16.mxu0 %v6359
      %7931 = vmatmul.mubr.bf16.gmra.mxu0 %v6358
      %v7932 = vpop.f32.mrf.mxu0
      %v7933 = vadd.f32 0.0, %v7932
      %v7934 = vpop.f32.mrf.mxu0
      %v7935 = vadd.f32 0.0, %v7934
      %v7936 = vpop.f32.mrf.mxu0
      %v7937 = vpop.f32.mrf.mxu0
      %7938 = vdwg.mxu0
      %7939 = vmatprep.subr.bf16.mxu0 %v7571
      %7940 = vmatpush1.bf16.msra.mxu0 %v7570
      %7941 = vmatprep.subr.bf16.mxu0 %v7563
      %7942 = vmatpush1.bf16.msra.mxu0 %v7562
      %7943 = vmatprep.subr.bf16.mxu0 %v7555
      %7944 = vmatpush1.bf16.msra.mxu0 %v7554
      %7945 = vmatprep.subr.bf16.mxu0 %v7547
      %7946 = vmatpush1.bf16.msra.mxu0 %v7546
      %7947 = vmatprep.subr.bf16.mxu0 %v7539
      %7948 = vmatpush1.bf16.msra.mxu0 %v7538
      %7949 = vmatprep.subr.bf16.mxu0 %v7531
      %7950 = vmatpush1.bf16.msra.mxu0 %v7530
      %7951 = vmatprep.subr.bf16.mxu0 %v7523
      %7952 = vmatpush1.bf16.msra.mxu0 %v7522
      %7953 = vmatprep.subr.bf16.mxu0 %v7515
      %7954 = vmatpush1.bf16.msra.mxu0 %v7514
      %7955 = vmatprep.subr.bf16.mxu0 %v7635
      %7956 = vmatpush2.bf16.msra.mxu0 %v7634
      %7957 = vmatprep.subr.bf16.mxu0 %v7627
      %7958 = vmatpush2.bf16.msra.mxu0 %v7626
      %7959 = vmatprep.subr.bf16.mxu0 %v7619
      %7960 = vmatpush2.bf16.msra.mxu0 %v7618
      %7961 = vmatprep.subr.bf16.mxu0 %v7611
      %7962 = vmatpush2.bf16.msra.mxu0 %v7610
      %7963 = vmatprep.subr.bf16.mxu0 %v7603
      %7964 = vmatpush2.bf16.msra.mxu0 %v7602
      %7965 = vmatprep.subr.bf16.mxu0 %v7595
      %7966 = vmatpush2.bf16.msra.mxu0 %v7594
      %7967 = vmatprep.subr.bf16.mxu0 %v7587
      %7968 = vmatpush2.bf16.msra.mxu0 %v7586
      %7969 = vmatprep.subr.bf16.mxu0 %v7579
      %7970 = vmatpush2.bf16.msra.mxu0 %v7578
      %7971 = vmatprep.mubr.bf16.mxu0 %v6361
      %7972 = vmatmul.mubr.bf16.gmra.mxu0 %v6360
      %v7973 = vpop.f32.mrf.mxu0
      %v7974 = vadd.f32 %v7933, %v7973
      %v7975 = vpop.f32.mrf.mxu0
      %v7976 = vadd.f32 %v7935, %v7975
      %v7977 = vpop.f32.mrf.mxu0
      %v7978 = vpop.f32.mrf.mxu0
      %7979 = vdwg.mxu0
      %7980 = vmatprep.subr.bf16.mxu0 %v7445
      %7981 = vmatpush1.bf16.msra.mxu0 %v7444
      %7982 = vmatprep.subr.bf16.mxu0 %v7437
      %7983 = vmatpush1.bf16.msra.mxu0 %v7436
      %7984 = vmatprep.subr.bf16.mxu0 %v7429
      %7985 = vmatpush1.bf16.msra.mxu0 %v7428
      %7986 = vmatprep.subr.bf16.mxu0 %v7421
      %7987 = vmatpush1.bf16.msra.mxu0 %v7420
      %7988 = vmatprep.subr.bf16.mxu0 %v7413
      %7989 = vmatpush1.bf16.msra.mxu0 %v7412
      %7990 = vmatprep.subr.bf16.mxu0 %v7405
      %7991 = vmatpush1.bf16.msra.mxu0 %v7404
      %7992 = vmatprep.subr.bf16.mxu0 %v7397
      %7993 = vmatpush1.bf16.msra.mxu0 %v7396
      %7994 = vmatprep.subr.bf16.mxu0 %v7389
      %7995 = vmatpush1.bf16.msra.mxu0 %v7388
      %7996 = vmatprep.subr.bf16.mxu0 %v7509
      %7997 = vmatpush2.bf16.msra.mxu0 %v7508
      %7998 = vmatprep.subr.bf16.mxu0 %v7501
      %7999 = vmatpush2.bf16.msra.mxu0 %v7500
      %8000 = vmatprep.subr.bf16.mxu0 %v7493
      %8001 = vmatpush2.bf16.msra.mxu0 %v7492
      %8002 = vmatprep.subr.bf16.mxu0 %v7485
      %8003 = vmatpush2.bf16.msra.mxu0 %v7484
      %8004 = vmatprep.subr.bf16.mxu0 %v7477
      %8005 = vmatpush2.bf16.msra.mxu0 %v7476
      %8006 = vmatprep.subr.bf16.mxu0 %v7469
      %8007 = vmatpush2.bf16.msra.mxu0 %v7468
      %8008 = vmatprep.subr.bf16.mxu0 %v7461
      %8009 = vmatpush2.bf16.msra.mxu0 %v7460
      %8010 = vmatprep.subr.bf16.mxu0 %v7453
      %8011 = vmatpush2.bf16.msra.mxu0 %v7452
      %8012 = vmatprep.mubr.bf16.mxu0 %v6359
      %8013 = vmatmul.mubr.bf16.gmra.mxu0 %v6358
      %v8014 = vpop.f32.mrf.mxu0
      %v8015 = vadd.f32 0.0, %v8014
      %v8016 = vpop.f32.mrf.mxu0
      %v8017 = vadd.f32 0.0, %v8016
      %v8018 = vpop.f32.mrf.mxu0
      %v8019 = vpop.f32.mrf.mxu0
      %8020 = vdwg.mxu0
      %8021 = vmatprep.subr.bf16.mxu0 %v7573
      %8022 = vmatpush1.bf16.msra.mxu0 %v7572
      %8023 = vmatprep.subr.bf16.mxu0 %v7565
      %8024 = vmatpush1.bf16.msra.mxu0 %v7564
      %8025 = vmatprep.subr.bf16.mxu0 %v7557
      %8026 = vmatpush1.bf16.msra.mxu0 %v7556
      %8027 = vmatprep.subr.bf16.mxu0 %v7549
      %8028 = vmatpush1.bf16.msra.mxu0 %v7548
      %8029 = vmatprep.subr.bf16.mxu0 %v7541
      %8030 = vmatpush1.bf16.msra.mxu0 %v7540
      %8031 = vmatprep.subr.bf16.mxu0 %v7533
      %8032 = vmatpush1.bf16.msra.mxu0 %v7532
      %8033 = vmatprep.subr.bf16.mxu0 %v7525
      %8034 = vmatpush1.bf16.msra.mxu0 %v7524
      %8035 = vmatprep.subr.bf16.mxu0 %v7517
      %8036 = vmatpush1.bf16.msra.mxu0 %v7516
      %8037 = vmatprep.subr.bf16.mxu0 %v7637
      %8038 = vmatpush2.bf16.msra.mxu0 %v7636
      %8039 = vmatprep.subr.bf16.mxu0 %v7629
      %8040 = vmatpush2.bf16.msra.mxu0 %v7628
      %8041 = vmatprep.subr.bf16.mxu0 %v7621
      %8042 = vmatpush2.bf16.msra.mxu0 %v7620
      %8043 = vmatprep.subr.bf16.mxu0 %v7613
      %8044 = vmatpush2.bf16.msra.mxu0 %v7612
      %8045 = vmatprep.subr.bf16.mxu0 %v7605
      %8046 = vmatpush2.bf16.msra.mxu0 %v7604
      %8047 = vmatprep.subr.bf16.mxu0 %v7597
      %8048 = vmatpush2.bf16.msra.mxu0 %v7596
      %8049 = vmatprep.subr.bf16.mxu0 %v7589
      %8050 = vmatpush2.bf16.msra.mxu0 %v7588
      %8051 = vmatprep.subr.bf16.mxu0 %v7581
      %8052 = vmatpush2.bf16.msra.mxu0 %v7580
      %8053 = vmatprep.mubr.bf16.mxu0 %v6361
      %8054 = vmatmul.mubr.bf16.gmra.mxu0 %v6360
      %v8055 = vpop.f32.mrf.mxu0
      %v8056 = vadd.f32 %v8015, %v8055
      %v8057 = vpop.f32.mrf.mxu0
      %v8058 = vadd.f32 %v8017, %v8057
      %v8059 = vpop.f32.mrf.mxu0
      %v8060 = vpop.f32.mrf.mxu0
      %8061 = vdwg.mxu0
      %8062 = vmatprep.subr.bf16.mxu0 %v7447
      %8063 = vmatpush1.bf16.msra.mxu0 %v7446
      %8064 = vmatprep.subr.bf16.mxu0 %v7439
      %8065 = vmatpush1.bf16.msra.mxu0 %v7438
      %8066 = vmatprep.subr.bf16.mxu0 %v7431
      %8067 = vmatpush1.bf16.msra.mxu0 %v7430
      %8068 = vmatprep.subr.bf16.mxu0 %v7423
      %8069 = vmatpush1.bf16.msra.mxu0 %v7422
      %8070 = vmatprep.subr.bf16.mxu0 %v7415
      %8071 = vmatpush1.bf16.msra.mxu0 %v7414
      %8072 = vmatprep.subr.bf16.mxu0 %v7407
      %8073 = vmatpush1.bf16.msra.mxu0 %v7406
      %8074 = vmatprep.subr.bf16.mxu0 %v7399
      %8075 = vmatpush1.bf16.msra.mxu0 %v7398
      %8076 = vmatprep.subr.bf16.mxu0 %v7391
      %8077 = vmatpush1.bf16.msra.mxu0 %v7390
      %8078 = vmatprep.subr.bf16.mxu0 %v7511
      %8079 = vmatpush2.bf16.msra.mxu0 %v7510
      %8080 = vmatprep.subr.bf16.mxu0 %v7503
      %8081 = vmatpush2.bf16.msra.mxu0 %v7502
      %8082 = vmatprep.subr.bf16.mxu0 %v7495
      %8083 = vmatpush2.bf16.msra.mxu0 %v7494
      %8084 = vmatprep.subr.bf16.mxu0 %v7487
      %8085 = vmatpush2.bf16.msra.mxu0 %v7486
      %8086 = vmatprep.subr.bf16.mxu0 %v7479
      %8087 = vmatpush2.bf16.msra.mxu0 %v7478
      %8088 = vmatprep.subr.bf16.mxu0 %v7471
      %8089 = vmatpush2.bf16.msra.mxu0 %v7470
      %8090 = vmatprep.subr.bf16.mxu0 %v7463
      %8091 = vmatpush2.bf16.msra.mxu0 %v7462
      %8092 = vmatprep.subr.bf16.mxu0 %v7455
      %8093 = vmatpush2.bf16.msra.mxu0 %v7454
      %8094 = vmatprep.mubr.bf16.mxu0 %v6359
      %8095 = vmatmul.mubr.bf16.gmra.mxu0 %v6358
      %v8096 = vpop.f32.mrf.mxu0
      %v8097 = vadd.f32 0.0, %v8096
      %v8098 = vpop.f32.mrf.mxu0
      %v8099 = vadd.f32 0.0, %v8098
      %v8100 = vpop.f32.mrf.mxu0
      %v8101 = vpop.f32.mrf.mxu0
      %8102 = vdwg.mxu0
      %8103 = vmatprep.subr.bf16.mxu0 %v7575
      %8104 = vmatpush1.bf16.msra.mxu0 %v7574
      %8105 = vmatprep.subr.bf16.mxu0 %v7567
      %8106 = vmatpush1.bf16.msra.mxu0 %v7566
      %8107 = vmatprep.subr.bf16.mxu0 %v7559
      %8108 = vmatpush1.bf16.msra.mxu0 %v7558
      %8109 = vmatprep.subr.bf16.mxu0 %v7551
      %8110 = vmatpush1.bf16.msra.mxu0 %v7550
      %8111 = vmatprep.subr.bf16.mxu0 %v7543
      %8112 = vmatpush1.bf16.msra.mxu0 %v7542
      %8113 = vmatprep.subr.bf16.mxu0 %v7535
      %8114 = vmatpush1.bf16.msra.mxu0 %v7534
      %8115 = vmatprep.subr.bf16.mxu0 %v7527
      %8116 = vmatpush1.bf16.msra.mxu0 %v7526
      %8117 = vmatprep.subr.bf16.mxu0 %v7519
      %8118 = vmatpush1.bf16.msra.mxu0 %v7518
      %8119 = vmatprep.subr.bf16.mxu0 %v7639
      %8120 = vmatpush2.bf16.msra.mxu0 %v7638
      %8121 = vmatprep.subr.bf16.mxu0 %v7631
      %8122 = vmatpush2.bf16.msra.mxu0 %v7630
      %8123 = vmatprep.subr.bf16.mxu0 %v7623
      %8124 = vmatpush2.bf16.msra.mxu0 %v7622
      %8125 = vmatprep.subr.bf16.mxu0 %v7615
      %8126 = vmatpush2.bf16.msra.mxu0 %v7614
      %8127 = vmatprep.subr.bf16.mxu0 %v7607
      %8128 = vmatpush2.bf16.msra.mxu0 %v7606
      %8129 = vmatprep.subr.bf16.mxu0 %v7599
      %8130 = vmatpush2.bf16.msra.mxu0 %v7598
      %8131 = vmatprep.subr.bf16.mxu0 %v7591
      %8132 = vmatpush2.bf16.msra.mxu0 %v7590
      %8133 = vmatprep.subr.bf16.mxu0 %v7583
      %8134 = vmatpush2.bf16.msra.mxu0 %v7582
      %8135 = vmatprep.mubr.bf16.mxu0 %v6361
      %8136 = vmatmul.mubr.bf16.gmra.mxu0 %v6360
      %v8137 = vpop.f32.mrf.mxu0
      %v8138 = vadd.f32 %v8097, %v8137
      %v8139 = vpop.f32.mrf.mxu0
      %v8140 = vadd.f32 %v8099, %v8139
      %v8141 = vpop.f32.mrf.mxu0
      %v8142 = vpop.f32.mrf.mxu0
      %8143 = vdwg.mxu0
      %8144 = vmatprep.subr.bf16.mxu0 %v7449
      %8145 = vmatpush1.bf16.msra.mxu0 %v7448
      %8146 = vmatprep.subr.bf16.mxu0 %v7441
      %8147 = vmatpush1.bf16.msra.mxu0 %v7440
      %8148 = vmatprep.subr.bf16.mxu0 %v7433
      %8149 = vmatpush1.bf16.msra.mxu0 %v7432
      %8150 = vmatprep.subr.bf16.mxu0 %v7425
      %8151 = vmatpush1.bf16.msra.mxu0 %v7424
      %8152 = vmatprep.subr.bf16.mxu0 %v7417
      %8153 = vmatpush1.bf16.msra.mxu0 %v7416
      %8154 = vmatprep.subr.bf16.mxu0 %v7409
      %8155 = vmatpush1.bf16.msra.mxu0 %v7408
      %8156 = vmatprep.subr.bf16.mxu0 %v7401
      %8157 = vmatpush1.bf16.msra.mxu0 %v7400
      %8158 = vmatprep.subr.bf16.mxu0 %v7393
      %8159 = vmatpush1.bf16.msra.mxu0 %v7392
      %8160 = vmatprep.subr.bf16.mxu0 %v7513
      %8161 = vmatpush2.bf16.msra.mxu0 %v7512
      %8162 = vmatprep.subr.bf16.mxu0 %v7505
      %8163 = vmatpush2.bf16.msra.mxu0 %v7504
      %8164 = vmatprep.subr.bf16.mxu0 %v7497
      %8165 = vmatpush2.bf16.msra.mxu0 %v7496
      %8166 = vmatprep.subr.bf16.mxu0 %v7489
      %8167 = vmatpush2.bf16.msra.mxu0 %v7488
      %8168 = vmatprep.subr.bf16.mxu0 %v7481
      %8169 = vmatpush2.bf16.msra.mxu0 %v7480
      %8170 = vmatprep.subr.bf16.mxu0 %v7473
      %8171 = vmatpush2.bf16.msra.mxu0 %v7472
      %8172 = vmatprep.subr.bf16.mxu0 %v7465
      %8173 = vmatpush2.bf16.msra.mxu0 %v7464
      %8174 = vmatprep.subr.bf16.mxu0 %v7457
      %8175 = vmatpush2.bf16.msra.mxu0 %v7456
      %8176 = vmatprep.mubr.bf16.mxu0 %v6359
      %8177 = vmatmul.mubr.bf16.gmra.mxu0 %v6358
      %v8178 = vpop.f32.mrf.mxu0
      %v8179 = vadd.f32 0.0, %v8178
      %v8180 = vpop.f32.mrf.mxu0
      %v8181 = vadd.f32 0.0, %v8180
      %v8182 = vpop.f32.mrf.mxu0
      %v8183 = vpop.f32.mrf.mxu0
      %8184 = vdwg.mxu0
      %8185 = vmatprep.subr.bf16.mxu0 %v7577
      %8186 = vmatpush1.bf16.msra.mxu0 %v7576
      %8187 = vmatprep.subr.bf16.mxu0 %v7569
      %8188 = vmatpush1.bf16.msra.mxu0 %v7568
      %8189 = vmatprep.subr.bf16.mxu0 %v7561
      %8190 = vmatpush1.bf16.msra.mxu0 %v7560
      %8191 = vmatprep.subr.bf16.mxu0 %v7553
      %8192 = vmatpush1.bf16.msra.mxu0 %v7552
      %8193 = vmatprep.subr.bf16.mxu0 %v7545
      %8194 = vmatpush1.bf16.msra.mxu0 %v7544
      %8195 = vmatprep.subr.bf16.mxu0 %v7537
      %8196 = vmatpush1.bf16.msra.mxu0 %v7536
      %8197 = vmatprep.subr.bf16.mxu0 %v7529
      %8198 = vmatpush1.bf16.msra.mxu0 %v7528
      %8199 = vmatprep.subr.bf16.mxu0 %v7521
      %8200 = vmatpush1.bf16.msra.mxu0 %v7520
      %8201 = vmatprep.subr.bf16.mxu0 %v7641
      %8202 = vmatpush2.bf16.msra.mxu0 %v7640
      %8203 = vmatprep.subr.bf16.mxu0 %v7633
      %8204 = vmatpush2.bf16.msra.mxu0 %v7632
      %8205 = vmatprep.subr.bf16.mxu0 %v7625
      %8206 = vmatpush2.bf16.msra.mxu0 %v7624
      %8207 = vmatprep.subr.bf16.mxu0 %v7617
      %8208 = vmatpush2.bf16.msra.mxu0 %v7616
      %8209 = vmatprep.subr.bf16.mxu0 %v7609
      %8210 = vmatpush2.bf16.msra.mxu0 %v7608
      %8211 = vmatprep.subr.bf16.mxu0 %v7601
      %8212 = vmatpush2.bf16.msra.mxu0 %v7600
      %8213 = vmatprep.subr.bf16.mxu0 %v7593
      %8214 = vmatpush2.bf16.msra.mxu0 %v7592
      %8215 = vmatprep.subr.bf16.mxu0 %v7585
      %8216 = vmatpush2.bf16.msra.mxu0 %v7584
      %8217 = vmatprep.mubr.bf16.mxu0 %v6361
      %8218 = vmatmul.mubr.bf16.gmra.mxu0 %v6360
      %v8219 = vpop.f32.mrf.mxu0
      %v8220 = vadd.f32 %v8179, %v8219
      %v8221 = vpop.f32.mrf.mxu0
      %v8222 = vadd.f32 %v8181, %v8221
      %v8223 = vpop.f32.mrf.mxu0
      %v8224 = vpop.f32.mrf.mxu0
      %8225 = vdwg.mxu0
      %v8226 = vrot.slane %v7974, 4
      %v8227 = vadd.f32 %v7974, %v8226
      %v8228 = vrot.slane %v8227, 2
      %v8229 = vadd.f32 %v8227, %v8228
      %v8230 = vrot.slane %v8229, 1
      %v8231 = vadd.f32 %v8229, %v8230
      %v8232 = vrot.slane %v7976, 4
      %v8233 = vadd.f32 %v7976, %v8232
      %v8234 = vrot.slane %v8233, 2
      %v8235 = vadd.f32 %v8233, %v8234
      %v8236 = vrot.slane %v8235, 1
      %v8237 = vadd.f32 %v8235, %v8236
      %v8238 = vrot.slane %v8056, 4
      %v8239 = vadd.f32 %v8056, %v8238
      %v8240 = vrot.slane %v8239, 2
      %v8241 = vadd.f32 %v8239, %v8240
      %v8242 = vrot.slane %v8241, 1
      %v8243 = vadd.f32 %v8241, %v8242
      %v8244 = vrot.slane %v8058, 4
      %v8245 = vadd.f32 %v8058, %v8244
      %v8246 = vrot.slane %v8245, 2
      %v8247 = vadd.f32 %v8245, %v8246
      %v8248 = vrot.slane %v8247, 1
      %v8249 = vadd.f32 %v8247, %v8248
      %v8250 = vrot.slane %v8138, 4
      %v8251 = vadd.f32 %v8138, %v8250
      %v8252 = vrot.slane %v8251, 2
      %v8253 = vadd.f32 %v8251, %v8252
      %v8254 = vrot.slane %v8253, 1
      %v8255 = vadd.f32 %v8253, %v8254
      %v8256 = vrot.slane %v8140, 4
      %v8257 = vadd.f32 %v8140, %v8256
      %v8258 = vrot.slane %v8257, 2
      %v8259 = vadd.f32 %v8257, %v8258
      %v8260 = vrot.slane %v8259, 1
      %v8261 = vadd.f32 %v8259, %v8260
      %v8262 = vrot.slane %v8220, 4
      %v8263 = vadd.f32 %v8220, %v8262
      %v8264 = vrot.slane %v8263, 2
      %v8265 = vadd.f32 %v8263, %v8264
      %v8266 = vrot.slane %v8265, 1
      %v8267 = vadd.f32 %v8265, %v8266
      %v8268 = vrot.slane %v8222, 4
      %v8269 = vadd.f32 %v8222, %v8268
      %v8270 = vrot.slane %v8269, 2
      %v8271 = vadd.f32 %v8269, %v8270
      %v8272 = vrot.slane %v8271, 1
      %v8273 = vadd.f32 %v8271, %v8272
      %v8274 = vmul.f32 %v7974, %v7974
      %v8275 = vmul.f32 %v7976, %v7976
      %v8276 = vmul.f32 %v8056, %v8056
      %v8277 = vmul.f32 %v8058, %v8058
      %v8278 = vmul.f32 %v8138, %v8138
      %v8279 = vmul.f32 %v8140, %v8140
      %v8280 = vmul.f32 %v8220, %v8220
      %v8281 = vmul.f32 %v8222, %v8222
      %v8282 = vrot.slane %v8274, 4
      %v8283 = vadd.f32 %v8274, %v8282
      %v8284 = vrot.slane %v8283, 2
      %v8285 = vadd.f32 %v8283, %v8284
      %v8286 = vrot.slane %v8285, 1
      %v8287 = vadd.f32 %v8285, %v8286
      %v8288 = vrot.slane %v8275, 4
      %v8289 = vadd.f32 %v8275, %v8288
      %v8290 = vrot.slane %v8289, 2
      %v8291 = vadd.f32 %v8289, %v8290
      %v8292 = vrot.slane %v8291, 1
      %v8293 = vadd.f32 %v8291, %v8292
      %v8294 = vrot.slane %v8276, 4
      %v8295 = vadd.f32 %v8276, %v8294
      %v8296 = vrot.slane %v8295, 2
      %v8297 = vadd.f32 %v8295, %v8296
      %v8298 = vrot.slane %v8297, 1
      %v8299 = vadd.f32 %v8297, %v8298
      %v8300 = vrot.slane %v8277, 4
      %v8301 = vadd.f32 %v8277, %v8300
      %v8302 = vrot.slane %v8301, 2
      %v8303 = vadd.f32 %v8301, %v8302
      %v8304 = vrot.slane %v8303, 1
      %v8305 = vadd.f32 %v8303, %v8304
      %v8306 = vrot.slane %v8278, 4
      %v8307 = vadd.f32 %v8278, %v8306
      %v8308 = vrot.slane %v8307, 2
      %v8309 = vadd.f32 %v8307, %v8308
      %v8310 = vrot.slane %v8309, 1
      %v8311 = vadd.f32 %v8309, %v8310
      %v8312 = vrot.slane %v8279, 4
      %v8313 = vadd.f32 %v8279, %v8312
      %v8314 = vrot.slane %v8313, 2
      %v8315 = vadd.f32 %v8313, %v8314
      %v8316 = vrot.slane %v8315, 1
      %v8317 = vadd.f32 %v8315, %v8316
      %v8318 = vrot.slane %v8280, 4
      %v8319 = vadd.f32 %v8280, %v8318
      %v8320 = vrot.slane %v8319, 2
      %v8321 = vadd.f32 %v8319, %v8320
      %v8322 = vrot.slane %v8321, 1
      %v8323 = vadd.f32 %v8321, %v8322
      %v8324 = vrot.slane %v8281, 4
      %v8325 = vadd.f32 %v8281, %v8324
      %v8326 = vrot.slane %v8325, 2
      %v8327 = vadd.f32 %v8325, %v8326
      %v8328 = vrot.slane %v8327, 1
      %v8329 = vadd.f32 %v8327, %v8328
      %v8330 = vmul.f32 %v8231, 0.125
      %v8331 = vmul.f32 %v8237, 0.125
      %v8332 = vmul.f32 %v8243, 0.125
      %v8333 = vmul.f32 %v8249, 0.125
      %v8334 = vmul.f32 %v8255, 0.125
      %v8335 = vmul.f32 %v8261, 0.125
      %v8336 = vmul.f32 %v8267, 0.125
      %v8337 = vmul.f32 %v8273, 0.125
      %v8338 = vmul.f32 %v8287, 0.125
      %v8339 = vmul.f32 %v8293, 0.125
      %v8340 = vmul.f32 %v8299, 0.125
      %v8341 = vmul.f32 %v8305, 0.125
      %v8342 = vmul.f32 %v8311, 0.125
      %v8343 = vmul.f32 %v8317, 0.125
      %v8344 = vmul.f32 %v8323, 0.125
      %v8345 = vmul.f32 %v8329, 0.125
      %v8346 = vmul.f32 %v8330, %v8330
      %v8347 = vmul.f32 %v8331, %v8331
      %v8348 = vmul.f32 %v8332, %v8332
      %v8349 = vmul.f32 %v8333, %v8333
      %v8350 = vmul.f32 %v8334, %v8334
      %v8351 = vmul.f32 %v8335, %v8335
      %v8352 = vmul.f32 %v8336, %v8336
      %v8353 = vmul.f32 %v8337, %v8337
      %v8354 = vsub.f32 %v8338, %v8346
      %v8355 = vsub.f32 %v8339, %v8347
      %v8356 = vsub.f32 %v8340, %v8348
      %v8357 = vsub.f32 %v8341, %v8349
      %v8358 = vsub.f32 %v8342, %v8350
      %v8359 = vsub.f32 %v8343, %v8351
      %v8360 = vsub.f32 %v8344, %v8352
      %v8361 = vsub.f32 %v8345, %v8353
      %v8362 = vmax.f32 %v8354, 0.0
      %v8363 = vmax.f32 %v8355, 0.0
      %v8364 = vmax.f32 %v8356, 0.0
      %v8365 = vmax.f32 %v8357, 0.0
      %v8366 = vmax.f32 %v8358, 0.0
      %v8367 = vmax.f32 %v8359, 0.0
      %v8368 = vmax.f32 %v8360, 0.0
      %v8369 = vmax.f32 %v8361, 0.0
      %v8370 = vsub.f32 %v7974, %v8330
      %v8371 = vsub.f32 %v7976, %v8331
      %v8372 = vsub.f32 %v8056, %v8332
      %v8373 = vsub.f32 %v8058, %v8333
      %v8374 = vsub.f32 %v8138, %v8334
      %v8375 = vsub.f32 %v8140, %v8335
      %v8376 = vsub.f32 %v8220, %v8336
      %v8377 = vsub.f32 %v8222, %v8337
      %v8378 = vadd.f32 %v8362, 1e-05
      %v8379 = vadd.f32 %v8363, 1e-05
      %v8380 = vadd.f32 %v8364, 1e-05
      %v8381 = vadd.f32 %v8365, 1e-05
      %v8382 = vadd.f32 %v8366, 1e-05
      %v8383 = vadd.f32 %v8367, 1e-05
      %v8384 = vadd.f32 %v8368, 1e-05
      %v8385 = vadd.f32 %v8369, 1e-05
      %v8386 = vrsqrt.pop %v8378
      %v8387 = vrsqrt.pop %v8379
      %v8388 = vrsqrt.pop %v8380
      %v8389 = vrsqrt.pop %v8381
      %v8390 = vrsqrt.pop %v8382
      %v8391 = vrsqrt.pop %v8383
      %v8392 = vrsqrt.pop %v8384
      %v8393 = vrsqrt.pop %v8385
      %v8394 = vmul.f32 %v8370, %v8386
      %v8395 = vmul.f32 %v8371, %v8387
      %v8396 = vmul.f32 %v8372, %v8388
      %v8397 = vmul.f32 %v8373, %v8389
      %v8398 = vmul.f32 %v8374, %v8390
      %v8399 = vmul.f32 %v8375, %v8391
      %v8400 = vmul.f32 %v8376, %v8392
      %v8401 = vmul.f32 %v8377, %v8393
      %v8402 = vld [vmem:[%s4] sm:$0xff]
      %v8404 = vlaneseq
      %v8405 = vshrl.u32 %v8404, 7
      %v8406 = vsub.s32 0, %v8405
      %v8407 = vrot.slane %v8402, %v8406
      %v8408 = vlaneseq
      %v8409 = vshrl.u32 %v8408, 7
      %v8410 = vsub.s32 1, %v8409
      %v8411 = vrot.slane %v8402, %v8410
      %v8412 = vlaneseq
      %v8413 = vshrl.u32 %v8412, 7
      %v8414 = vsub.s32 2, %v8413
      %v8415 = vrot.slane %v8402, %v8414
      %v8416 = vlaneseq
      %v8417 = vshrl.u32 %v8416, 7
      %v8418 = vsub.s32 3, %v8417
      %v8419 = vrot.slane %v8402, %v8418
      %v8420 = vlaneseq
      %v8421 = vshrl.u32 %v8420, 7
      %v8422 = vsub.s32 4, %v8421
      %v8423 = vrot.slane %v8402, %v8422
      %v8424 = vlaneseq
      %v8425 = vshrl.u32 %v8424, 7
      %v8426 = vsub.s32 5, %v8425
      %v8427 = vrot.slane %v8402, %v8426
      %v8428 = vlaneseq
      %v8429 = vshrl.u32 %v8428, 7
      %v8430 = vsub.s32 6, %v8429
      %v8431 = vrot.slane %v8402, %v8430
      %v8432 = vlaneseq
      %v8433 = vshrl.u32 %v8432, 7
      %v8434 = vsub.s32 7, %v8433
      %v8435 = vrot.slane %v8402, %v8434
      %v8444 = vmul.f32 %v8394, %v8407
      %v8445 = vmul.f32 %v8395, %v8411
      %v8446 = vmul.f32 %v8396, %v8415
      %v8447 = vmul.f32 %v8397, %v8419
      %v8448 = vmul.f32 %v8398, %v8423
      %v8449 = vmul.f32 %v8399, %v8427
      %v8450 = vmul.f32 %v8400, %v8431
      %v8451 = vmul.f32 %v8401, %v8435
      %v8452 = vld [vmem:[%s5] sm:$0xff]
      %v8454 = vlaneseq
      %v8455 = vshrl.u32 %v8454, 7
      %v8456 = vsub.s32 0, %v8455
      %v8457 = vrot.slane %v8452, %v8456
      %v8458 = vlaneseq
      %v8459 = vshrl.u32 %v8458, 7
      %v8460 = vsub.s32 1, %v8459
      %v8461 = vrot.slane %v8452, %v8460
      %v8462 = vlaneseq
      %v8463 = vshrl.u32 %v8462, 7
      %v8464 = vsub.s32 2, %v8463
      %v8465 = vrot.slane %v8452, %v8464
      %v8466 = vlaneseq
      %v8467 = vshrl.u32 %v8466, 7
      %v8468 = vsub.s32 3, %v8467
      %v8469 = vrot.slane %v8452, %v8468
      %v8470 = vlaneseq
      %v8471 = vshrl.u32 %v8470, 7
      %v8472 = vsub.s32 4, %v8471
      %v8473 = vrot.slane %v8452, %v8472
      %v8474 = vlaneseq
      %v8475 = vshrl.u32 %v8474, 7
      %v8476 = vsub.s32 5, %v8475
      %v8477 = vrot.slane %v8452, %v8476
      %v8478 = vlaneseq
      %v8479 = vshrl.u32 %v8478, 7
      %v8480 = vsub.s32 6, %v8479
      %v8481 = vrot.slane %v8452, %v8480
      %v8482 = vlaneseq
      %v8483 = vshrl.u32 %v8482, 7
      %v8484 = vsub.s32 7, %v8483
      %v8485 = vrot.slane %v8452, %v8484
      %v8494 = vadd.f32 %v8444, %v8457
      %v8495 = vadd.f32 %v8445, %v8461
      %v8496 = vadd.f32 %v8446, %v8465
      %v8497 = vadd.f32 %v8447, %v8469
      %v8498 = vadd.f32 %v8448, %v8473
      %v8499 = vadd.f32 %v8449, %v8477
      %v8500 = vadd.f32 %v8450, %v8481
      %v8501 = vadd.f32 %v8451, %v8485
      %v8502 = vmax.f32 %v8494, 0.0
      %v8503 = vmax.f32 %v8495, 0.0
      %v8504 = vmax.f32 %v8496, 0.0
      %v8505 = vmax.f32 %v8497, 0.0
      %v8506 = vmax.f32 %v8498, 0.0
      %v8507 = vmax.f32 %v8499, 0.0
      %v8508 = vmax.f32 %v8500, 0.0
      %v8509 = vmax.f32 %v8501, 0.0
      %v8510 = vpack.c.bf16 %v8502, %v8502
      %v8511 = vpack.c.bf16 %v8503, %v8503
      %v8512 = vpack.c.bf16 %v8504, %v8504
      %v8513 = vpack.c.bf16 %v8505, %v8505
      %v8514 = vpack.c.bf16 %v8506, %v8506
      %v8515 = vpack.c.bf16 %v8507, %v8507
      %v8516 = vpack.c.bf16 %v8508, %v8508
      %v8517 = vpack.c.bf16 %v8509, %v8509
      %v8518 = vld [vmem:[%s6] sm:$0xff]
      %v8519 = vld [vmem:[%s6 + $0x8] sm:$0xff]
      %v8520 = vld [vmem:[%s6 + $0x10] sm:$0xff]
      %v8521 = vld [vmem:[%s6 + $0x18] sm:$0xff]
      %v8522 = vld [vmem:[%s6 + $0x20] sm:$0xff]
      %v8523 = vld [vmem:[%s6 + $0x28] sm:$0xff]
      %v8524 = vld [vmem:[%s6 + $0x30] sm:$0xff]
      %v8525 = vld [vmem:[%s6 + $0x38] sm:$0xff]
      %v8526 = vld [vmem:[%s6 + $0x40] sm:$0xff]
      %v8527 = vld [vmem:[%s6 + $0x48] sm:$0xff]
      %v8528 = vld [vmem:[%s6 + $0x50] sm:$0xff]
      %v8529 = vld [vmem:[%s6 + $0x58] sm:$0xff]
      %v8530 = vld [vmem:[%s6 + $0x60] sm:$0xff]
      %v8531 = vld [vmem:[%s6 + $0x68] sm:$0xff]
      %v8532 = vld [vmem:[%s6 + $0x70] sm:$0xff]
      %v8533 = vld [vmem:[%s6 + $0x78] sm:$0xff]
      %v8534 = vld [vmem:[%s6 + $0x80] sm:$0xff]
      %v8535 = vld [vmem:[%s6 + $0x88] sm:$0xff]
      %v8536 = vld [vmem:[%s6 + $0x90] sm:$0xff]
      %v8537 = vld [vmem:[%s6 + $0x98] sm:$0xff]
      %v8538 = vld [vmem:[%s6 + $0xa0] sm:$0xff]
      %v8539 = vld [vmem:[%s6 + $0xa8] sm:$0xff]
      %v8540 = vld [vmem:[%s6 + $0xb0] sm:$0xff]
      %v8541 = vld [vmem:[%s6 + $0xb8] sm:$0xff]
      %v8542 = vld [vmem:[%s6 + $0xc0] sm:$0xff]
      %v8543 = vld [vmem:[%s6 + $0xc8] sm:$0xff]
      %v8544 = vld [vmem:[%s6 + $0xd0] sm:$0xff]
      %v8545 = vld [vmem:[%s6 + $0xd8] sm:$0xff]
      %v8546 = vld [vmem:[%s6 + $0xe0] sm:$0xff]
      %v8547 = vld [vmem:[%s6 + $0xe8] sm:$0xff]
      %v8548 = vld [vmem:[%s6 + $0xf0] sm:$0xff]
      %v8549 = vld [vmem:[%s6 + $0xf8] sm:$0xff]
      %v8550 = vld [vmem:[%s6 + $0x100] sm:$0xff]
      %v8551 = vld [vmem:[%s6 + $0x108] sm:$0xff]
      %v8552 = vld [vmem:[%s6 + $0x110] sm:$0xff]
      %v8553 = vld [vmem:[%s6 + $0x118] sm:$0xff]
      %v8554 = vld [vmem:[%s6 + $0x120] sm:$0xff]
      %v8555 = vld [vmem:[%s6 + $0x128] sm:$0xff]
      %v8556 = vld [vmem:[%s6 + $0x130] sm:$0xff]
      %v8557 = vld [vmem:[%s6 + $0x138] sm:$0xff]
      %v8558 = vld [vmem:[%s6 + $0x140] sm:$0xff]
      %v8559 = vld [vmem:[%s6 + $0x148] sm:$0xff]
      %v8560 = vld [vmem:[%s6 + $0x150] sm:$0xff]
      %v8561 = vld [vmem:[%s6 + $0x158] sm:$0xff]
      %v8562 = vld [vmem:[%s6 + $0x160] sm:$0xff]
      %v8563 = vld [vmem:[%s6 + $0x168] sm:$0xff]
      %v8564 = vld [vmem:[%s6 + $0x170] sm:$0xff]
      %v8565 = vld [vmem:[%s6 + $0x178] sm:$0xff]
      %v8566 = vld [vmem:[%s6 + $0x180] sm:$0xff]
      %v8567 = vld [vmem:[%s6 + $0x188] sm:$0xff]
      %v8568 = vld [vmem:[%s6 + $0x190] sm:$0xff]
      %v8569 = vld [vmem:[%s6 + $0x198] sm:$0xff]
      %v8570 = vld [vmem:[%s6 + $0x1a0] sm:$0xff]
      %v8571 = vld [vmem:[%s6 + $0x1a8] sm:$0xff]
      %v8572 = vld [vmem:[%s6 + $0x1b0] sm:$0xff]
      %v8573 = vld [vmem:[%s6 + $0x1b8] sm:$0xff]
      %v8574 = vld [vmem:[%s6 + $0x1c0] sm:$0xff]
      %v8575 = vld [vmem:[%s6 + $0x1c8] sm:$0xff]
      %v8576 = vld [vmem:[%s6 + $0x1d0] sm:$0xff]
      %v8577 = vld [vmem:[%s6 + $0x1d8] sm:$0xff]
      %v8578 = vld [vmem:[%s6 + $0x1e0] sm:$0xff]
      %v8579 = vld [vmem:[%s6 + $0x1e8] sm:$0xff]
      %v8580 = vld [vmem:[%s6 + $0x1f0] sm:$0xff]
      %v8581 = vld [vmem:[%s6 + $0x1f8] sm:$0xff]
      %v8582 = vld [vmem:[%s6 + $0x200] sm:$0xff]
      %v8583 = vld [vmem:[%s6 + $0x208] sm:$0xff]
      %v8584 = vld [vmem:[%s6 + $0x210] sm:$0xff]
      %v8585 = vld [vmem:[%s6 + $0x218] sm:$0xff]
      %v8586 = vld [vmem:[%s6 + $0x220] sm:$0xff]
      %v8587 = vld [vmem:[%s6 + $0x228] sm:$0xff]
      %v8588 = vld [vmem:[%s6 + $0x230] sm:$0xff]
      %v8589 = vld [vmem:[%s6 + $0x238] sm:$0xff]
      %v8590 = vld [vmem:[%s6 + $0x240] sm:$0xff]
      %v8591 = vld [vmem:[%s6 + $0x248] sm:$0xff]
      %v8592 = vld [vmem:[%s6 + $0x250] sm:$0xff]
      %v8593 = vld [vmem:[%s6 + $0x258] sm:$0xff]
      %v8594 = vld [vmem:[%s6 + $0x260] sm:$0xff]
      %v8595 = vld [vmem:[%s6 + $0x268] sm:$0xff]
      %v8596 = vld [vmem:[%s6 + $0x270] sm:$0xff]
      %v8597 = vld [vmem:[%s6 + $0x278] sm:$0xff]
      %v8598 = vld [vmem:[%s6 + $0x280] sm:$0xff]
      %v8599 = vld [vmem:[%s6 + $0x288] sm:$0xff]
      %v8600 = vld [vmem:[%s6 + $0x290] sm:$0xff]
      %v8601 = vld [vmem:[%s6 + $0x298] sm:$0xff]
      %v8602 = vld [vmem:[%s6 + $0x2a0] sm:$0xff]
      %v8603 = vld [vmem:[%s6 + $0x2a8] sm:$0xff]
      %v8604 = vld [vmem:[%s6 + $0x2b0] sm:$0xff]
      %v8605 = vld [vmem:[%s6 + $0x2b8] sm:$0xff]
      %v8606 = vld [vmem:[%s6 + $0x2c0] sm:$0xff]
      %v8607 = vld [vmem:[%s6 + $0x2c8] sm:$0xff]
      %v8608 = vld [vmem:[%s6 + $0x2d0] sm:$0xff]
      %v8609 = vld [vmem:[%s6 + $0x2d8] sm:$0xff]
      %v8610 = vld [vmem:[%s6 + $0x2e0] sm:$0xff]
      %v8611 = vld [vmem:[%s6 + $0x2e8] sm:$0xff]
      %v8612 = vld [vmem:[%s6 + $0x2f0] sm:$0xff]
      %v8613 = vld [vmem:[%s6 + $0x2f8] sm:$0xff]
      %v8614 = vld [vmem:[%s6 + $0x300] sm:$0xff]
      %v8615 = vld [vmem:[%s6 + $0x308] sm:$0xff]
      %v8616 = vld [vmem:[%s6 + $0x310] sm:$0xff]
      %v8617 = vld [vmem:[%s6 + $0x318] sm:$0xff]
      %v8618 = vld [vmem:[%s6 + $0x320] sm:$0xff]
      %v8619 = vld [vmem:[%s6 + $0x328] sm:$0xff]
      %v8620 = vld [vmem:[%s6 + $0x330] sm:$0xff]
      %v8621 = vld [vmem:[%s6 + $0x338] sm:$0xff]
      %v8622 = vld [vmem:[%s6 + $0x340] sm:$0xff]
      %v8623 = vld [vmem:[%s6 + $0x348] sm:$0xff]
      %v8624 = vld [vmem:[%s6 + $0x350] sm:$0xff]
      %v8625 = vld [vmem:[%s6 + $0x358] sm:$0xff]
      %v8626 = vld [vmem:[%s6 + $0x360] sm:$0xff]
      %v8627 = vld [vmem:[%s6 + $0x368] sm:$0xff]
      %v8628 = vld [vmem:[%s6 + $0x370] sm:$0xff]
      %v8629 = vld [vmem:[%s6 + $0x378] sm:$0xff]
      %v8630 = vld [vmem:[%s6 + $0x380] sm:$0xff]
      %v8631 = vld [vmem:[%s6 + $0x388] sm:$0xff]
      %v8632 = vld [vmem:[%s6 + $0x390] sm:$0xff]
      %v8633 = vld [vmem:[%s6 + $0x398] sm:$0xff]
      %v8634 = vld [vmem:[%s6 + $0x3a0] sm:$0xff]
      %v8635 = vld [vmem:[%s6 + $0x3a8] sm:$0xff]
      %v8636 = vld [vmem:[%s6 + $0x3b0] sm:$0xff]
      %v8637 = vld [vmem:[%s6 + $0x3b8] sm:$0xff]
      %v8638 = vld [vmem:[%s6 + $0x3c0] sm:$0xff]
      %v8639 = vld [vmem:[%s6 + $0x3c8] sm:$0xff]
      %v8640 = vld [vmem:[%s6 + $0x3d0] sm:$0xff]
      %v8641 = vld [vmem:[%s6 + $0x3d8] sm:$0xff]
      %v8642 = vld [vmem:[%s6 + $0x3e0] sm:$0xff]
      %v8643 = vld [vmem:[%s6 + $0x3e8] sm:$0xff]
      %v8644 = vld [vmem:[%s6 + $0x3f0] sm:$0xff]
      %v8645 = vld [vmem:[%s6 + $0x3f8] sm:$0xff]
      %v8646 = vld [vmem:[%s7] sm:$0x3]
      %v8648 = vlaneseq
      %v8649 = vshrl.u32 %v8648, 7
      %v8650 = vsub.s32 0, %v8649
      %v8651 = vrot.slane %v8646, %v8650
      %v8652 = vlaneseq
      %v8653 = vshrl.u32 %v8652, 7
      %v8654 = vsub.s32 1, %v8653
      %v8655 = vrot.slane %v8646, %v8654
      %v8786 = vunpack.c.l.b16 %v8518
      %v8787 = vunpack.c.h.b16 %v8518
      %v8788 = vunpack.c.l.b16 %v8519
      %v8789 = vunpack.c.h.b16 %v8519
      %v8790 = vunpack.c.l.b16 %v8520
      %v8791 = vunpack.c.h.b16 %v8520
      %v8792 = vunpack.c.l.b16 %v8521
      %v8793 = vunpack.c.h.b16 %v8521
      %v8794 = vunpack.c.l.b16 %v8522
      %v8795 = vunpack.c.h.b16 %v8522
      %v8796 = vunpack.c.l.b16 %v8523
      %v8797 = vunpack.c.h.b16 %v8523
      %v8798 = vunpack.c.l.b16 %v8524
      %v8799 = vunpack.c.h.b16 %v8524
      %v8800 = vunpack.c.l.b16 %v8525
      %v8801 = vunpack.c.h.b16 %v8525
      %v8802 = vunpack.c.l.b16 %v8526
      %v8803 = vunpack.c.h.b16 %v8526
      %v8804 = vunpack.c.l.b16 %v8527
      %v8805 = vunpack.c.h.b16 %v8527
      %v8806 = vunpack.c.l.b16 %v8528
      %v8807 = vunpack.c.h.b16 %v8528
      %v8808 = vunpack.c.l.b16 %v8529
      %v8809 = vunpack.c.h.b16 %v8529
      %v8810 = vunpack.c.l.b16 %v8530
      %v8811 = vunpack.c.h.b16 %v8530
      %v8812 = vunpack.c.l.b16 %v8531
      %v8813 = vunpack.c.h.b16 %v8531
      %v8814 = vunpack.c.l.b16 %v8532
      %v8815 = vunpack.c.h.b16 %v8532
      %v8816 = vunpack.c.l.b16 %v8533
      %v8817 = vunpack.c.h.b16 %v8533
      %v8818 = vunpack.c.l.b16 %v8534
      %v8819 = vunpack.c.h.b16 %v8534
      %v8820 = vunpack.c.l.b16 %v8535
      %v8821 = vunpack.c.h.b16 %v8535
      %v8822 = vunpack.c.l.b16 %v8536
      %v8823 = vunpack.c.h.b16 %v8536
      %v8824 = vunpack.c.l.b16 %v8537
      %v8825 = vunpack.c.h.b16 %v8537
      %v8826 = vunpack.c.l.b16 %v8538
      %v8827 = vunpack.c.h.b16 %v8538
      %v8828 = vunpack.c.l.b16 %v8539
      %v8829 = vunpack.c.h.b16 %v8539
      %v8830 = vunpack.c.l.b16 %v8540
      %v8831 = vunpack.c.h.b16 %v8540
      %v8832 = vunpack.c.l.b16 %v8541
      %v8833 = vunpack.c.h.b16 %v8541
      %v8834 = vunpack.c.l.b16 %v8542
      %v8835 = vunpack.c.h.b16 %v8542
      %v8836 = vunpack.c.l.b16 %v8543
      %v8837 = vunpack.c.h.b16 %v8543
      %v8838 = vunpack.c.l.b16 %v8544
      %v8839 = vunpack.c.h.b16 %v8544
      %v8840 = vunpack.c.l.b16 %v8545
      %v8841 = vunpack.c.h.b16 %v8545
      %v8842 = vunpack.c.l.b16 %v8546
      %v8843 = vunpack.c.h.b16 %v8546
      %v8844 = vunpack.c.l.b16 %v8547
      %v8845 = vunpack.c.h.b16 %v8547
      %v8846 = vunpack.c.l.b16 %v8548
      %v8847 = vunpack.c.h.b16 %v8548
      %v8848 = vunpack.c.l.b16 %v8549
      %v8849 = vunpack.c.h.b16 %v8549
      %v8850 = vunpack.c.l.b16 %v8550
      %v8851 = vunpack.c.h.b16 %v8550
      %v8852 = vunpack.c.l.b16 %v8551
      %v8853 = vunpack.c.h.b16 %v8551
      %v8854 = vunpack.c.l.b16 %v8552
      %v8855 = vunpack.c.h.b16 %v8552
      %v8856 = vunpack.c.l.b16 %v8553
      %v8857 = vunpack.c.h.b16 %v8553
      %v8858 = vunpack.c.l.b16 %v8554
      %v8859 = vunpack.c.h.b16 %v8554
      %v8860 = vunpack.c.l.b16 %v8555
      %v8861 = vunpack.c.h.b16 %v8555
      %v8862 = vunpack.c.l.b16 %v8556
      %v8863 = vunpack.c.h.b16 %v8556
      %v8864 = vunpack.c.l.b16 %v8557
      %v8865 = vunpack.c.h.b16 %v8557
      %v8866 = vunpack.c.l.b16 %v8558
      %v8867 = vunpack.c.h.b16 %v8558
      %v8868 = vunpack.c.l.b16 %v8559
      %v8869 = vunpack.c.h.b16 %v8559
      %v8870 = vunpack.c.l.b16 %v8560
      %v8871 = vunpack.c.h.b16 %v8560
      %v8872 = vunpack.c.l.b16 %v8561
      %v8873 = vunpack.c.h.b16 %v8561
      %v8874 = vunpack.c.l.b16 %v8562
      %v8875 = vunpack.c.h.b16 %v8562
      %v8876 = vunpack.c.l.b16 %v8563
      %v8877 = vunpack.c.h.b16 %v8563
      %v8878 = vunpack.c.l.b16 %v8564
      %v8879 = vunpack.c.h.b16 %v8564
      %v8880 = vunpack.c.l.b16 %v8565
      %v8881 = vunpack.c.h.b16 %v8565
      %v8882 = vunpack.c.l.b16 %v8566
      %v8883 = vunpack.c.h.b16 %v8566
      %v8884 = vunpack.c.l.b16 %v8567
      %v8885 = vunpack.c.h.b16 %v8567
      %v8886 = vunpack.c.l.b16 %v8568
      %v8887 = vunpack.c.h.b16 %v8568
      %v8888 = vunpack.c.l.b16 %v8569
      %v8889 = vunpack.c.h.b16 %v8569
      %v8890 = vunpack.c.l.b16 %v8570
      %v8891 = vunpack.c.h.b16 %v8570
      %v8892 = vunpack.c.l.b16 %v8571
      %v8893 = vunpack.c.h.b16 %v8571
      %v8894 = vunpack.c.l.b16 %v8572
      %v8895 = vunpack.c.h.b16 %v8572
      %v8896 = vunpack.c.l.b16 %v8573
      %v8897 = vunpack.c.h.b16 %v8573
      %v8898 = vunpack.c.l.b16 %v8574
      %v8899 = vunpack.c.h.b16 %v8574
      %v8900 = vunpack.c.l.b16 %v8575
      %v8901 = vunpack.c.h.b16 %v8575
      %v8902 = vunpack.c.l.b16 %v8576
      %v8903 = vunpack.c.h.b16 %v8576
      %v8904 = vunpack.c.l.b16 %v8577
      %v8905 = vunpack.c.h.b16 %v8577
      %v8906 = vunpack.c.l.b16 %v8578
      %v8907 = vunpack.c.h.b16 %v8578
      %v8908 = vunpack.c.l.b16 %v8579
      %v8909 = vunpack.c.h.b16 %v8579
      %v8910 = vunpack.c.l.b16 %v8580
      %v8911 = vunpack.c.h.b16 %v8580
      %v8912 = vunpack.c.l.b16 %v8581
      %v8913 = vunpack.c.h.b16 %v8581
      %v8914 = vunpack.c.l.b16 %v8582
      %v8915 = vunpack.c.h.b16 %v8582
      %v8916 = vunpack.c.l.b16 %v8583
      %v8917 = vunpack.c.h.b16 %v8583
      %v8918 = vunpack.c.l.b16 %v8584
      %v8919 = vunpack.c.h.b16 %v8584
      %v8920 = vunpack.c.l.b16 %v8585
      %v8921 = vunpack.c.h.b16 %v8585
      %v8922 = vunpack.c.l.b16 %v8586
      %v8923 = vunpack.c.h.b16 %v8586
      %v8924 = vunpack.c.l.b16 %v8587
      %v8925 = vunpack.c.h.b16 %v8587
      %v8926 = vunpack.c.l.b16 %v8588
      %v8927 = vunpack.c.h.b16 %v8588
      %v8928 = vunpack.c.l.b16 %v8589
      %v8929 = vunpack.c.h.b16 %v8589
      %v8930 = vunpack.c.l.b16 %v8590
      %v8931 = vunpack.c.h.b16 %v8590
      %v8932 = vunpack.c.l.b16 %v8591
      %v8933 = vunpack.c.h.b16 %v8591
      %v8934 = vunpack.c.l.b16 %v8592
      %v8935 = vunpack.c.h.b16 %v8592
      %v8936 = vunpack.c.l.b16 %v8593
      %v8937 = vunpack.c.h.b16 %v8593
      %v8938 = vunpack.c.l.b16 %v8594
      %v8939 = vunpack.c.h.b16 %v8594
      %v8940 = vunpack.c.l.b16 %v8595
      %v8941 = vunpack.c.h.b16 %v8595
      %v8942 = vunpack.c.l.b16 %v8596
      %v8943 = vunpack.c.h.b16 %v8596
      %v8944 = vunpack.c.l.b16 %v8597
      %v8945 = vunpack.c.h.b16 %v8597
      %v8946 = vunpack.c.l.b16 %v8598
      %v8947 = vunpack.c.h.b16 %v8598
      %v8948 = vunpack.c.l.b16 %v8599
      %v8949 = vunpack.c.h.b16 %v8599
      %v8950 = vunpack.c.l.b16 %v8600
      %v8951 = vunpack.c.h.b16 %v8600
      %v8952 = vunpack.c.l.b16 %v8601
      %v8953 = vunpack.c.h.b16 %v8601
      %v8954 = vunpack.c.l.b16 %v8602
      %v8955 = vunpack.c.h.b16 %v8602
      %v8956 = vunpack.c.l.b16 %v8603
      %v8957 = vunpack.c.h.b16 %v8603
      %v8958 = vunpack.c.l.b16 %v8604
      %v8959 = vunpack.c.h.b16 %v8604
      %v8960 = vunpack.c.l.b16 %v8605
      %v8961 = vunpack.c.h.b16 %v8605
      %v8962 = vunpack.c.l.b16 %v8606
      %v8963 = vunpack.c.h.b16 %v8606
      %v8964 = vunpack.c.l.b16 %v8607
      %v8965 = vunpack.c.h.b16 %v8607
      %v8966 = vunpack.c.l.b16 %v8608
      %v8967 = vunpack.c.h.b16 %v8608
      %v8968 = vunpack.c.l.b16 %v8609
      %v8969 = vunpack.c.h.b16 %v8609
      %v8970 = vunpack.c.l.b16 %v8610
      %v8971 = vunpack.c.h.b16 %v8610
      %v8972 = vunpack.c.l.b16 %v8611
      %v8973 = vunpack.c.h.b16 %v8611
      %v8974 = vunpack.c.l.b16 %v8612
      %v8975 = vunpack.c.h.b16 %v8612
      %v8976 = vunpack.c.l.b16 %v8613
      %v8977 = vunpack.c.h.b16 %v8613
      %v8978 = vunpack.c.l.b16 %v8614
      %v8979 = vunpack.c.h.b16 %v8614
      %v8980 = vunpack.c.l.b16 %v8615
      %v8981 = vunpack.c.h.b16 %v8615
      %v8982 = vunpack.c.l.b16 %v8616
      %v8983 = vunpack.c.h.b16 %v8616
      %v8984 = vunpack.c.l.b16 %v8617
      %v8985 = vunpack.c.h.b16 %v8617
      %v8986 = vunpack.c.l.b16 %v8618
      %v8987 = vunpack.c.h.b16 %v8618
      %v8988 = vunpack.c.l.b16 %v8619
      %v8989 = vunpack.c.h.b16 %v8619
      %v8990 = vunpack.c.l.b16 %v8620
      %v8991 = vunpack.c.h.b16 %v8620
      %v8992 = vunpack.c.l.b16 %v8621
      %v8993 = vunpack.c.h.b16 %v8621
      %v8994 = vunpack.c.l.b16 %v8622
      %v8995 = vunpack.c.h.b16 %v8622
      %v8996 = vunpack.c.l.b16 %v8623
      %v8997 = vunpack.c.h.b16 %v8623
      %v8998 = vunpack.c.l.b16 %v8624
      %v8999 = vunpack.c.h.b16 %v8624
      %v9000 = vunpack.c.l.b16 %v8625
      %v9001 = vunpack.c.h.b16 %v8625
      %v9002 = vunpack.c.l.b16 %v8626
      %v9003 = vunpack.c.h.b16 %v8626
      %v9004 = vunpack.c.l.b16 %v8627
      %v9005 = vunpack.c.h.b16 %v8627
      %v9006 = vunpack.c.l.b16 %v8628
      %v9007 = vunpack.c.h.b16 %v8628
      %v9008 = vunpack.c.l.b16 %v8629
      %v9009 = vunpack.c.h.b16 %v8629
      %v9010 = vunpack.c.l.b16 %v8630
      %v9011 = vunpack.c.h.b16 %v8630
      %v9012 = vunpack.c.l.b16 %v8631
      %v9013 = vunpack.c.h.b16 %v8631
      %v9014 = vunpack.c.l.b16 %v8632
      %v9015 = vunpack.c.h.b16 %v8632
      %v9016 = vunpack.c.l.b16 %v8633
      %v9017 = vunpack.c.h.b16 %v8633
      %v9018 = vunpack.c.l.b16 %v8634
      %v9019 = vunpack.c.h.b16 %v8634
      %v9020 = vunpack.c.l.b16 %v8635
      %v9021 = vunpack.c.h.b16 %v8635
      %v9022 = vunpack.c.l.b16 %v8636
      %v9023 = vunpack.c.h.b16 %v8636
      %v9024 = vunpack.c.l.b16 %v8637
      %v9025 = vunpack.c.h.b16 %v8637
      %v9026 = vunpack.c.l.b16 %v8638
      %v9027 = vunpack.c.h.b16 %v8638
      %v9028 = vunpack.c.l.b16 %v8639
      %v9029 = vunpack.c.h.b16 %v8639
      %v9030 = vunpack.c.l.b16 %v8640
      %v9031 = vunpack.c.h.b16 %v8640
      %v9032 = vunpack.c.l.b16 %v8641
      %v9033 = vunpack.c.h.b16 %v8641
      %v9034 = vunpack.c.l.b16 %v8642
      %v9035 = vunpack.c.h.b16 %v8642
      %v9036 = vunpack.c.l.b16 %v8643
      %v9037 = vunpack.c.h.b16 %v8643
      %v9038 = vunpack.c.l.b16 %v8644
      %v9039 = vunpack.c.h.b16 %v8644
      %v9040 = vunpack.c.l.b16 %v8645
      %v9041 = vunpack.c.h.b16 %v8645
      %v9042 = vpack.c.b16 %v8788, %v8786
      %v9043 = vpack.c.b16 %v8789, %v8787
      %v9044 = vpack.c.b16 %v8792, %v8790
      %v9045 = vpack.c.b16 %v8793, %v8791
      %v9046 = vpack.c.b16 %v8796, %v8794
      %v9047 = vpack.c.b16 %v8797, %v8795
      %v9048 = vpack.c.b16 %v8800, %v8798
      %v9049 = vpack.c.b16 %v8801, %v8799
      %v9050 = vpack.c.b16 %v8804, %v8802
      %v9051 = vpack.c.b16 %v8805, %v8803
      %v9052 = vpack.c.b16 %v8808, %v8806
      %v9053 = vpack.c.b16 %v8809, %v8807
      %v9054 = vpack.c.b16 %v8812, %v8810
      %v9055 = vpack.c.b16 %v8813, %v8811
      %v9056 = vpack.c.b16 %v8816, %v8814
      %v9057 = vpack.c.b16 %v8817, %v8815
      %v9058 = vpack.c.b16 %v8820, %v8818
      %v9059 = vpack.c.b16 %v8821, %v8819
      %v9060 = vpack.c.b16 %v8824, %v8822
      %v9061 = vpack.c.b16 %v8825, %v8823
      %v9062 = vpack.c.b16 %v8828, %v8826
      %v9063 = vpack.c.b16 %v8829, %v8827
      %v9064 = vpack.c.b16 %v8832, %v8830
      %v9065 = vpack.c.b16 %v8833, %v8831
      %v9066 = vpack.c.b16 %v8836, %v8834
      %v9067 = vpack.c.b16 %v8837, %v8835
      %v9068 = vpack.c.b16 %v8840, %v8838
      %v9069 = vpack.c.b16 %v8841, %v8839
      %v9070 = vpack.c.b16 %v8844, %v8842
      %v9071 = vpack.c.b16 %v8845, %v8843
      %v9072 = vpack.c.b16 %v8848, %v8846
      %v9073 = vpack.c.b16 %v8849, %v8847
      %v9074 = vpack.c.b16 %v8852, %v8850
      %v9075 = vpack.c.b16 %v8853, %v8851
      %v9076 = vpack.c.b16 %v8856, %v8854
      %v9077 = vpack.c.b16 %v8857, %v8855
      %v9078 = vpack.c.b16 %v8860, %v8858
      %v9079 = vpack.c.b16 %v8861, %v8859
      %v9080 = vpack.c.b16 %v8864, %v8862
      %v9081 = vpack.c.b16 %v8865, %v8863
      %v9082 = vpack.c.b16 %v8868, %v8866
      %v9083 = vpack.c.b16 %v8869, %v8867
      %v9084 = vpack.c.b16 %v8872, %v8870
      %v9085 = vpack.c.b16 %v8873, %v8871
      %v9086 = vpack.c.b16 %v8876, %v8874
      %v9087 = vpack.c.b16 %v8877, %v8875
      %v9088 = vpack.c.b16 %v8880, %v8878
      %v9089 = vpack.c.b16 %v8881, %v8879
      %v9090 = vpack.c.b16 %v8884, %v8882
      %v9091 = vpack.c.b16 %v8885, %v8883
      %v9092 = vpack.c.b16 %v8888, %v8886
      %v9093 = vpack.c.b16 %v8889, %v8887
      %v9094 = vpack.c.b16 %v8892, %v8890
      %v9095 = vpack.c.b16 %v8893, %v8891
      %v9096 = vpack.c.b16 %v8896, %v8894
      %v9097 = vpack.c.b16 %v8897, %v8895
      %v9098 = vpack.c.b16 %v8900, %v8898
      %v9099 = vpack.c.b16 %v8901, %v8899
      %v9100 = vpack.c.b16 %v8904, %v8902
      %v9101 = vpack.c.b16 %v8905, %v8903
      %v9102 = vpack.c.b16 %v8908, %v8906
      %v9103 = vpack.c.b16 %v8909, %v8907
      %v9104 = vpack.c.b16 %v8912, %v8910
      %v9105 = vpack.c.b16 %v8913, %v8911
      %v9106 = vpack.c.b16 %v8916, %v8914
      %v9107 = vpack.c.b16 %v8917, %v8915
      %v9108 = vpack.c.b16 %v8920, %v8918
      %v9109 = vpack.c.b16 %v8921, %v8919
      %v9110 = vpack.c.b16 %v8924, %v8922
      %v9111 = vpack.c.b16 %v8925, %v8923
      %v9112 = vpack.c.b16 %v8928, %v8926
      %v9113 = vpack.c.b16 %v8929, %v8927
      %v9114 = vpack.c.b16 %v8932, %v8930
      %v9115 = vpack.c.b16 %v8933, %v8931
      %v9116 = vpack.c.b16 %v8936, %v8934
      %v9117 = vpack.c.b16 %v8937, %v8935
      %v9118 = vpack.c.b16 %v8940, %v8938
      %v9119 = vpack.c.b16 %v8941, %v8939
      %v9120 = vpack.c.b16 %v8944, %v8942
      %v9121 = vpack.c.b16 %v8945, %v8943
      %v9122 = vpack.c.b16 %v8948, %v8946
      %v9123 = vpack.c.b16 %v8949, %v8947
      %v9124 = vpack.c.b16 %v8952, %v8950
      %v9125 = vpack.c.b16 %v8953, %v8951
      %v9126 = vpack.c.b16 %v8956, %v8954
      %v9127 = vpack.c.b16 %v8957, %v8955
      %v9128 = vpack.c.b16 %v8960, %v8958
      %v9129 = vpack.c.b16 %v8961, %v8959
      %v9130 = vpack.c.b16 %v8964, %v8962
      %v9131 = vpack.c.b16 %v8965, %v8963
      %v9132 = vpack.c.b16 %v8968, %v8966
      %v9133 = vpack.c.b16 %v8969, %v8967
      %v9134 = vpack.c.b16 %v8972, %v8970
      %v9135 = vpack.c.b16 %v8973, %v8971
      %v9136 = vpack.c.b16 %v8976, %v8974
      %v9137 = vpack.c.b16 %v8977, %v8975
      %v9138 = vpack.c.b16 %v8980, %v8978
      %v9139 = vpack.c.b16 %v8981, %v8979
      %v9140 = vpack.c.b16 %v8984, %v8982
      %v9141 = vpack.c.b16 %v8985, %v8983
      %v9142 = vpack.c.b16 %v8988, %v8986
      %v9143 = vpack.c.b16 %v8989, %v8987
      %v9144 = vpack.c.b16 %v8992, %v8990
      %v9145 = vpack.c.b16 %v8993, %v8991
      %v9146 = vpack.c.b16 %v8996, %v8994
      %v9147 = vpack.c.b16 %v8997, %v8995
      %v9148 = vpack.c.b16 %v9000, %v8998
      %v9149 = vpack.c.b16 %v9001, %v8999
      %v9150 = vpack.c.b16 %v9004, %v9002
      %v9151 = vpack.c.b16 %v9005, %v9003
      %v9152 = vpack.c.b16 %v9008, %v9006
      %v9153 = vpack.c.b16 %v9009, %v9007
      %v9154 = vpack.c.b16 %v9012, %v9010
      %v9155 = vpack.c.b16 %v9013, %v9011
      %v9156 = vpack.c.b16 %v9016, %v9014
      %v9157 = vpack.c.b16 %v9017, %v9015
      %v9158 = vpack.c.b16 %v9020, %v9018
      %v9159 = vpack.c.b16 %v9021, %v9019
      %v9160 = vpack.c.b16 %v9024, %v9022
      %v9161 = vpack.c.b16 %v9025, %v9023
      %v9162 = vpack.c.b16 %v9028, %v9026
      %v9163 = vpack.c.b16 %v9029, %v9027
      %v9164 = vpack.c.b16 %v9032, %v9030
      %v9165 = vpack.c.b16 %v9033, %v9031
      %v9166 = vpack.c.b16 %v9036, %v9034
      %v9167 = vpack.c.b16 %v9037, %v9035
      %v9168 = vpack.c.b16 %v9040, %v9038
      %v9169 = vpack.c.b16 %v9041, %v9039
      %9298 = vmatprep.subr.bf16.mxu0 %v9057
      %9299 = vmatpush1.bf16.msra.mxu0 %v9056
      %9300 = vmatprep.subr.bf16.mxu0 %v9055
      %9301 = vmatpush1.bf16.msra.mxu0 %v9054
      %9302 = vmatprep.subr.bf16.mxu0 %v9053
      %9303 = vmatpush1.bf16.msra.mxu0 %v9052
      %9304 = vmatprep.subr.bf16.mxu0 %v9051
      %9305 = vmatpush1.bf16.msra.mxu0 %v9050
      %9306 = vmatprep.subr.bf16.mxu0 %v9049
      %9307 = vmatpush1.bf16.msra.mxu0 %v9048
      %9308 = vmatprep.subr.bf16.mxu0 %v9047
      %9309 = vmatpush1.bf16.msra.mxu0 %v9046
      %9310 = vmatprep.subr.bf16.mxu0 %v9045
      %9311 = vmatpush1.bf16.msra.mxu0 %v9044
      %9312 = vmatprep.subr.bf16.mxu0 %v9043
      %9313 = vmatpush1.bf16.msra.mxu0 %v9042
      %9314 = vmatprep.subr.bf16.mxu0 %v9073
      %9315 = vmatpush2.bf16.msra.mxu0 %v9072
      %9316 = vmatprep.subr.bf16.mxu0 %v9071
      %9317 = vmatpush2.bf16.msra.mxu0 %v9070
      %9318 = vmatprep.subr.bf16.mxu0 %v9069
      %9319 = vmatpush2.bf16.msra.mxu0 %v9068
      %9320 = vmatprep.subr.bf16.mxu0 %v9067
      %9321 = vmatpush2.bf16.msra.mxu0 %v9066
      %9322 = vmatprep.subr.bf16.mxu0 %v9065
      %9323 = vmatpush2.bf16.msra.mxu0 %v9064
      %9324 = vmatprep.subr.bf16.mxu0 %v9063
      %9325 = vmatpush2.bf16.msra.mxu0 %v9062
      %9326 = vmatprep.subr.bf16.mxu0 %v9061
      %9327 = vmatpush2.bf16.msra.mxu0 %v9060
      %9328 = vmatprep.subr.bf16.mxu0 %v9059
      %9329 = vmatpush2.bf16.msra.mxu0 %v9058
      %9330 = vmatprep.mubr.bf16.mxu0 %v8511
      %9331 = vmatmul.mubr.bf16.gmra.mxu0 %v8510
      %v9332 = vpop.f32.mrf.mxu0
      %v9333 = vadd.f32 %v8651, %v9332
      %v9334 = vpop.f32.mrf.mxu0
      %v9335 = vadd.f32 %v8655, %v9334
      %v9336 = vpop.f32.mrf.mxu0
      %v9337 = vpop.f32.mrf.mxu0
      %9338 = vdwg.mxu0
      %9339 = vmatprep.subr.bf16.mxu0 %v9089
      %9340 = vmatpush1.bf16.msra.mxu0 %v9088
      %9341 = vmatprep.subr.bf16.mxu0 %v9087
      %9342 = vmatpush1.bf16.msra.mxu0 %v9086
      %9343 = vmatprep.subr.bf16.mxu0 %v9085
      %9344 = vmatpush1.bf16.msra.mxu0 %v9084
      %9345 = vmatprep.subr.bf16.mxu0 %v9083
      %9346 = vmatpush1.bf16.msra.mxu0 %v9082
      %9347 = vmatprep.subr.bf16.mxu0 %v9081
      %9348 = vmatpush1.bf16.msra.mxu0 %v9080
      %9349 = vmatprep.subr.bf16.mxu0 %v9079
      %9350 = vmatpush1.bf16.msra.mxu0 %v9078
      %9351 = vmatprep.subr.bf16.mxu0 %v9077
      %9352 = vmatpush1.bf16.msra.mxu0 %v9076
      %9353 = vmatprep.subr.bf16.mxu0 %v9075
      %9354 = vmatpush1.bf16.msra.mxu0 %v9074
      %9355 = vmatprep.subr.bf16.mxu0 %v9105
      %9356 = vmatpush2.bf16.msra.mxu0 %v9104
      %9357 = vmatprep.subr.bf16.mxu0 %v9103
      %9358 = vmatpush2.bf16.msra.mxu0 %v9102
      %9359 = vmatprep.subr.bf16.mxu0 %v9101
      %9360 = vmatpush2.bf16.msra.mxu0 %v9100
      %9361 = vmatprep.subr.bf16.mxu0 %v9099
      %9362 = vmatpush2.bf16.msra.mxu0 %v9098
      %9363 = vmatprep.subr.bf16.mxu0 %v9097
      %9364 = vmatpush2.bf16.msra.mxu0 %v9096
      %9365 = vmatprep.subr.bf16.mxu0 %v9095
      %9366 = vmatpush2.bf16.msra.mxu0 %v9094
      %9367 = vmatprep.subr.bf16.mxu0 %v9093
      %9368 = vmatpush2.bf16.msra.mxu0 %v9092
      %9369 = vmatprep.subr.bf16.mxu0 %v9091
      %9370 = vmatpush2.bf16.msra.mxu0 %v9090
      %9371 = vmatprep.mubr.bf16.mxu0 %v8513
      %9372 = vmatmul.mubr.bf16.gmra.mxu0 %v8512
      %v9373 = vpop.f32.mrf.mxu0
      %v9374 = vadd.f32 %v9333, %v9373
      %v9375 = vpop.f32.mrf.mxu0
      %v9376 = vadd.f32 %v9335, %v9375
      %v9377 = vpop.f32.mrf.mxu0
      %v9378 = vpop.f32.mrf.mxu0
      %9379 = vdwg.mxu0
      %9380 = vmatprep.subr.bf16.mxu0 %v9121
      %9381 = vmatpush1.bf16.msra.mxu0 %v9120
      %9382 = vmatprep.subr.bf16.mxu0 %v9119
      %9383 = vmatpush1.bf16.msra.mxu0 %v9118
      %9384 = vmatprep.subr.bf16.mxu0 %v9117
      %9385 = vmatpush1.bf16.msra.mxu0 %v9116
      %9386 = vmatprep.subr.bf16.mxu0 %v9115
      %9387 = vmatpush1.bf16.msra.mxu0 %v9114
      %9388 = vmatprep.subr.bf16.mxu0 %v9113
      %9389 = vmatpush1.bf16.msra.mxu0 %v9112
      %9390 = vmatprep.subr.bf16.mxu0 %v9111
      %9391 = vmatpush1.bf16.msra.mxu0 %v9110
      %9392 = vmatprep.subr.bf16.mxu0 %v9109
      %9393 = vmatpush1.bf16.msra.mxu0 %v9108
      %9394 = vmatprep.subr.bf16.mxu0 %v9107
      %9395 = vmatpush1.bf16.msra.mxu0 %v9106
      %9396 = vmatprep.subr.bf16.mxu0 %v9137
      %9397 = vmatpush2.bf16.msra.mxu0 %v9136
      %9398 = vmatprep.subr.bf16.mxu0 %v9135
      %9399 = vmatpush2.bf16.msra.mxu0 %v9134
      %9400 = vmatprep.subr.bf16.mxu0 %v9133
      %9401 = vmatpush2.bf16.msra.mxu0 %v9132
      %9402 = vmatprep.subr.bf16.mxu0 %v9131
      %9403 = vmatpush2.bf16.msra.mxu0 %v9130
      %9404 = vmatprep.subr.bf16.mxu0 %v9129
      %9405 = vmatpush2.bf16.msra.mxu0 %v9128
      %9406 = vmatprep.subr.bf16.mxu0 %v9127
      %9407 = vmatpush2.bf16.msra.mxu0 %v9126
      %9408 = vmatprep.subr.bf16.mxu0 %v9125
      %9409 = vmatpush2.bf16.msra.mxu0 %v9124
      %9410 = vmatprep.subr.bf16.mxu0 %v9123
      %9411 = vmatpush2.bf16.msra.mxu0 %v9122
      %9412 = vmatprep.mubr.bf16.mxu0 %v8515
      %9413 = vmatmul.mubr.bf16.gmra.mxu0 %v8514
      %v9414 = vpop.f32.mrf.mxu0
      %v9415 = vadd.f32 %v9374, %v9414
      %v9416 = vpop.f32.mrf.mxu0
      %v9417 = vadd.f32 %v9376, %v9416
      %v9418 = vpop.f32.mrf.mxu0
      %v9419 = vpop.f32.mrf.mxu0
      %9420 = vdwg.mxu0
      %9421 = vmatprep.subr.bf16.mxu0 %v9153
      %9422 = vmatpush1.bf16.msra.mxu0 %v9152
      %9423 = vmatprep.subr.bf16.mxu0 %v9151
      %9424 = vmatpush1.bf16.msra.mxu0 %v9150
      %9425 = vmatprep.subr.bf16.mxu0 %v9149
      %9426 = vmatpush1.bf16.msra.mxu0 %v9148
      %9427 = vmatprep.subr.bf16.mxu0 %v9147
      %9428 = vmatpush1.bf16.msra.mxu0 %v9146
      %9429 = vmatprep.subr.bf16.mxu0 %v9145
      %9430 = vmatpush1.bf16.msra.mxu0 %v9144
      %9431 = vmatprep.subr.bf16.mxu0 %v9143
      %9432 = vmatpush1.bf16.msra.mxu0 %v9142
      %9433 = vmatprep.subr.bf16.mxu0 %v9141
      %9434 = vmatpush1.bf16.msra.mxu0 %v9140
      %9435 = vmatprep.subr.bf16.mxu0 %v9139
      %9436 = vmatpush1.bf16.msra.mxu0 %v9138
      %9437 = vmatprep.subr.bf16.mxu0 %v9169
      %9438 = vmatpush2.bf16.msra.mxu0 %v9168
      %9439 = vmatprep.subr.bf16.mxu0 %v9167
      %9440 = vmatpush2.bf16.msra.mxu0 %v9166
      %9441 = vmatprep.subr.bf16.mxu0 %v9165
      %9442 = vmatpush2.bf16.msra.mxu0 %v9164
      %9443 = vmatprep.subr.bf16.mxu0 %v9163
      %9444 = vmatpush2.bf16.msra.mxu0 %v9162
      %9445 = vmatprep.subr.bf16.mxu0 %v9161
      %9446 = vmatpush2.bf16.msra.mxu0 %v9160
      %9447 = vmatprep.subr.bf16.mxu0 %v9159
      %9448 = vmatpush2.bf16.msra.mxu0 %v9158
      %9449 = vmatprep.subr.bf16.mxu0 %v9157
      %9450 = vmatpush2.bf16.msra.mxu0 %v9156
      %9451 = vmatprep.subr.bf16.mxu0 %v9155
      %9452 = vmatpush2.bf16.msra.mxu0 %v9154
      %9453 = vmatprep.mubr.bf16.mxu0 %v8517
      %9454 = vmatmul.mubr.bf16.gmra.mxu0 %v8516
      %v9455 = vpop.f32.mrf.mxu0
      %v9456 = vadd.f32 %v9415, %v9455
      %v9457 = vpop.f32.mrf.mxu0
      %v9458 = vadd.f32 %v9417, %v9457
      %v9459 = vpop.f32.mrf.mxu0
      %v9460 = vpop.f32.mrf.mxu0
      %9461 = vdwg.mxu0
      %v9462 = vpack.c.bf16 %v9456, %v9456
      %v9463 = vpack.c.bf16 %v9458, %v9458
      %v9464 = vld [vmem:[%s8] sm:$0xff]
      %v9465 = vld [vmem:[%s8 + $0x8] sm:$0xff]
      %v9466 = vld [vmem:[%s8 + $0x10] sm:$0xff]
      %v9467 = vld [vmem:[%s8 + $0x18] sm:$0xff]
      %v9468 = vld [vmem:[%s8 + $0x20] sm:$0xff]
      %v9469 = vld [vmem:[%s8 + $0x28] sm:$0xff]
      %v9470 = vld [vmem:[%s8 + $0x30] sm:$0xff]
      %v9471 = vld [vmem:[%s8 + $0x38] sm:$0xff]
      %v9472 = vld [vmem:[%s8 + $0x40] sm:$0xff]
      %v9473 = vld [vmem:[%s8 + $0x48] sm:$0xff]
      %v9474 = vld [vmem:[%s8 + $0x50] sm:$0xff]
      %v9475 = vld [vmem:[%s8 + $0x58] sm:$0xff]
      %v9476 = vld [vmem:[%s8 + $0x60] sm:$0xff]
      %v9477 = vld [vmem:[%s8 + $0x68] sm:$0xff]
      %v9478 = vld [vmem:[%s8 + $0x70] sm:$0xff]
      %v9479 = vld [vmem:[%s8 + $0x78] sm:$0xff]
      %v9480 = vld [vmem:[%s8 + $0x80] sm:$0xff]
      %v9481 = vld [vmem:[%s8 + $0x88] sm:$0xff]
      %v9482 = vld [vmem:[%s8 + $0x90] sm:$0xff]
      %v9483 = vld [vmem:[%s8 + $0x98] sm:$0xff]
      %v9484 = vld [vmem:[%s8 + $0xa0] sm:$0xff]
      %v9485 = vld [vmem:[%s8 + $0xa8] sm:$0xff]
      %v9486 = vld [vmem:[%s8 + $0xb0] sm:$0xff]
      %v9487 = vld [vmem:[%s8 + $0xb8] sm:$0xff]
      %v9488 = vld [vmem:[%s8 + $0xc0] sm:$0xff]
      %v9489 = vld [vmem:[%s8 + $0xc8] sm:$0xff]
      %v9490 = vld [vmem:[%s8 + $0xd0] sm:$0xff]
      %v9491 = vld [vmem:[%s8 + $0xd8] sm:$0xff]
      %v9492 = vld [vmem:[%s8 + $0xe0] sm:$0xff]
      %v9493 = vld [vmem:[%s8 + $0xe8] sm:$0xff]
      %v9494 = vld [vmem:[%s8 + $0xf0] sm:$0xff]
      %v9495 = vld [vmem:[%s8 + $0xf8] sm:$0xff]
      %v9496 = vld [vmem:[%s8 + $0x100] sm:$0xff]
      %v9497 = vld [vmem:[%s8 + $0x108] sm:$0xff]
      %v9498 = vld [vmem:[%s8 + $0x110] sm:$0xff]
      %v9499 = vld [vmem:[%s8 + $0x118] sm:$0xff]
      %v9500 = vld [vmem:[%s8 + $0x120] sm:$0xff]
      %v9501 = vld [vmem:[%s8 + $0x128] sm:$0xff]
      %v9502 = vld [vmem:[%s8 + $0x130] sm:$0xff]
      %v9503 = vld [vmem:[%s8 + $0x138] sm:$0xff]
      %v9504 = vld [vmem:[%s8 + $0x140] sm:$0xff]
      %v9505 = vld [vmem:[%s8 + $0x148] sm:$0xff]
      %v9506 = vld [vmem:[%s8 + $0x150] sm:$0xff]
      %v9507 = vld [vmem:[%s8 + $0x158] sm:$0xff]
      %v9508 = vld [vmem:[%s8 + $0x160] sm:$0xff]
      %v9509 = vld [vmem:[%s8 + $0x168] sm:$0xff]
      %v9510 = vld [vmem:[%s8 + $0x170] sm:$0xff]
      %v9511 = vld [vmem:[%s8 + $0x178] sm:$0xff]
      %v9512 = vld [vmem:[%s8 + $0x180] sm:$0xff]
      %v9513 = vld [vmem:[%s8 + $0x188] sm:$0xff]
      %v9514 = vld [vmem:[%s8 + $0x190] sm:$0xff]
      %v9515 = vld [vmem:[%s8 + $0x198] sm:$0xff]
      %v9516 = vld [vmem:[%s8 + $0x1a0] sm:$0xff]
      %v9517 = vld [vmem:[%s8 + $0x1a8] sm:$0xff]
      %v9518 = vld [vmem:[%s8 + $0x1b0] sm:$0xff]
      %v9519 = vld [vmem:[%s8 + $0x1b8] sm:$0xff]
      %v9520 = vld [vmem:[%s8 + $0x1c0] sm:$0xff]
      %v9521 = vld [vmem:[%s8 + $0x1c8] sm:$0xff]
      %v9522 = vld [vmem:[%s8 + $0x1d0] sm:$0xff]
      %v9523 = vld [vmem:[%s8 + $0x1d8] sm:$0xff]
      %v9524 = vld [vmem:[%s8 + $0x1e0] sm:$0xff]
      %v9525 = vld [vmem:[%s8 + $0x1e8] sm:$0xff]
      %v9526 = vld [vmem:[%s8 + $0x1f0] sm:$0xff]
      %v9527 = vld [vmem:[%s8 + $0x1f8] sm:$0xff]
      %v9528 = vld [vmem:[%s8 + $0x200] sm:$0xff]
      %v9529 = vld [vmem:[%s8 + $0x208] sm:$0xff]
      %v9530 = vld [vmem:[%s8 + $0x210] sm:$0xff]
      %v9531 = vld [vmem:[%s8 + $0x218] sm:$0xff]
      %v9532 = vld [vmem:[%s8 + $0x220] sm:$0xff]
      %v9533 = vld [vmem:[%s8 + $0x228] sm:$0xff]
      %v9534 = vld [vmem:[%s8 + $0x230] sm:$0xff]
      %v9535 = vld [vmem:[%s8 + $0x238] sm:$0xff]
      %v9536 = vld [vmem:[%s8 + $0x240] sm:$0xff]
      %v9537 = vld [vmem:[%s8 + $0x248] sm:$0xff]
      %v9538 = vld [vmem:[%s8 + $0x250] sm:$0xff]
      %v9539 = vld [vmem:[%s8 + $0x258] sm:$0xff]
      %v9540 = vld [vmem:[%s8 + $0x260] sm:$0xff]
      %v9541 = vld [vmem:[%s8 + $0x268] sm:$0xff]
      %v9542 = vld [vmem:[%s8 + $0x270] sm:$0xff]
      %v9543 = vld [vmem:[%s8 + $0x278] sm:$0xff]
      %v9544 = vld [vmem:[%s8 + $0x280] sm:$0xff]
      %v9545 = vld [vmem:[%s8 + $0x288] sm:$0xff]
      %v9546 = vld [vmem:[%s8 + $0x290] sm:$0xff]
      %v9547 = vld [vmem:[%s8 + $0x298] sm:$0xff]
      %v9548 = vld [vmem:[%s8 + $0x2a0] sm:$0xff]
      %v9549 = vld [vmem:[%s8 + $0x2a8] sm:$0xff]
      %v9550 = vld [vmem:[%s8 + $0x2b0] sm:$0xff]
      %v9551 = vld [vmem:[%s8 + $0x2b8] sm:$0xff]
      %v9552 = vld [vmem:[%s8 + $0x2c0] sm:$0xff]
      %v9553 = vld [vmem:[%s8 + $0x2c8] sm:$0xff]
      %v9554 = vld [vmem:[%s8 + $0x2d0] sm:$0xff]
      %v9555 = vld [vmem:[%s8 + $0x2d8] sm:$0xff]
      %v9556 = vld [vmem:[%s8 + $0x2e0] sm:$0xff]
      %v9557 = vld [vmem:[%s8 + $0x2e8] sm:$0xff]
      %v9558 = vld [vmem:[%s8 + $0x2f0] sm:$0xff]
      %v9559 = vld [vmem:[%s8 + $0x2f8] sm:$0xff]
      %v9560 = vld [vmem:[%s8 + $0x300] sm:$0xff]
      %v9561 = vld [vmem:[%s8 + $0x308] sm:$0xff]
      %v9562 = vld [vmem:[%s8 + $0x310] sm:$0xff]
      %v9563 = vld [vmem:[%s8 + $0x318] sm:$0xff]
      %v9564 = vld [vmem:[%s8 + $0x320] sm:$0xff]
      %v9565 = vld [vmem:[%s8 + $0x328] sm:$0xff]
      %v9566 = vld [vmem:[%s8 + $0x330] sm:$0xff]
      %v9567 = vld [vmem:[%s8 + $0x338] sm:$0xff]
      %v9568 = vld [vmem:[%s8 + $0x340] sm:$0xff]
      %v9569 = vld [vmem:[%s8 + $0x348] sm:$0xff]
      %v9570 = vld [vmem:[%s8 + $0x350] sm:$0xff]
      %v9571 = vld [vmem:[%s8 + $0x358] sm:$0xff]
      %v9572 = vld [vmem:[%s8 + $0x360] sm:$0xff]
      %v9573 = vld [vmem:[%s8 + $0x368] sm:$0xff]
      %v9574 = vld [vmem:[%s8 + $0x370] sm:$0xff]
      %v9575 = vld [vmem:[%s8 + $0x378] sm:$0xff]
      %v9576 = vld [vmem:[%s8 + $0x380] sm:$0xff]
      %v9577 = vld [vmem:[%s8 + $0x388] sm:$0xff]
      %v9578 = vld [vmem:[%s8 + $0x390] sm:$0xff]
      %v9579 = vld [vmem:[%s8 + $0x398] sm:$0xff]
      %v9580 = vld [vmem:[%s8 + $0x3a0] sm:$0xff]
      %v9581 = vld [vmem:[%s8 + $0x3a8] sm:$0xff]
      %v9582 = vld [vmem:[%s8 + $0x3b0] sm:$0xff]
      %v9583 = vld [vmem:[%s8 + $0x3b8] sm:$0xff]
      %v9584 = vld [vmem:[%s8 + $0x3c0] sm:$0xff]
      %v9585 = vld [vmem:[%s8 + $0x3c8] sm:$0xff]
      %v9586 = vld [vmem:[%s8 + $0x3d0] sm:$0xff]
      %v9587 = vld [vmem:[%s8 + $0x3d8] sm:$0xff]
      %v9588 = vld [vmem:[%s8 + $0x3e0] sm:$0xff]
      %v9589 = vld [vmem:[%s8 + $0x3e8] sm:$0xff]
      %v9590 = vld [vmem:[%s8 + $0x3f0] sm:$0xff]
      %v9591 = vld [vmem:[%s8 + $0x3f8] sm:$0xff]
      %v9720 = vunpack.c.l.b16 %v9464
      %v9721 = vunpack.c.h.b16 %v9464
      %v9722 = vunpack.c.l.b16 %v9465
      %v9723 = vunpack.c.h.b16 %v9465
      %v9724 = vunpack.c.l.b16 %v9466
      %v9725 = vunpack.c.h.b16 %v9466
      %v9726 = vunpack.c.l.b16 %v9467
      %v9727 = vunpack.c.h.b16 %v9467
      %v9728 = vunpack.c.l.b16 %v9468
      %v9729 = vunpack.c.h.b16 %v9468
      %v9730 = vunpack.c.l.b16 %v9469
      %v9731 = vunpack.c.h.b16 %v9469
      %v9732 = vunpack.c.l.b16 %v9470
      %v9733 = vunpack.c.h.b16 %v9470
      %v9734 = vunpack.c.l.b16 %v9471
      %v9735 = vunpack.c.h.b16 %v9471
      %v9736 = vunpack.c.l.b16 %v9472
      %v9737 = vunpack.c.h.b16 %v9472
      %v9738 = vunpack.c.l.b16 %v9473
      %v9739 = vunpack.c.h.b16 %v9473
      %v9740 = vunpack.c.l.b16 %v9474
      %v9741 = vunpack.c.h.b16 %v9474
      %v9742 = vunpack.c.l.b16 %v9475
      %v9743 = vunpack.c.h.b16 %v9475
      %v9744 = vunpack.c.l.b16 %v9476
      %v9745 = vunpack.c.h.b16 %v9476
      %v9746 = vunpack.c.l.b16 %v9477
      %v9747 = vunpack.c.h.b16 %v9477
      %v9748 = vunpack.c.l.b16 %v9478
      %v9749 = vunpack.c.h.b16 %v9478
      %v9750 = vunpack.c.l.b16 %v9479
      %v9751 = vunpack.c.h.b16 %v9479
      %v9752 = vunpack.c.l.b16 %v9480
      %v9753 = vunpack.c.h.b16 %v9480
      %v9754 = vunpack.c.l.b16 %v9481
      %v9755 = vunpack.c.h.b16 %v9481
      %v9756 = vunpack.c.l.b16 %v9482
      %v9757 = vunpack.c.h.b16 %v9482
      %v9758 = vunpack.c.l.b16 %v9483
      %v9759 = vunpack.c.h.b16 %v9483
      %v9760 = vunpack.c.l.b16 %v9484
      %v9761 = vunpack.c.h.b16 %v9484
      %v9762 = vunpack.c.l.b16 %v9485
      %v9763 = vunpack.c.h.b16 %v9485
      %v9764 = vunpack.c.l.b16 %v9486
      %v9765 = vunpack.c.h.b16 %v9486
      %v9766 = vunpack.c.l.b16 %v9487
      %v9767 = vunpack.c.h.b16 %v9487
      %v9768 = vunpack.c.l.b16 %v9488
      %v9769 = vunpack.c.h.b16 %v9488
      %v9770 = vunpack.c.l.b16 %v9489
      %v9771 = vunpack.c.h.b16 %v9489
      %v9772 = vunpack.c.l.b16 %v9490
      %v9773 = vunpack.c.h.b16 %v9490
      %v9774 = vunpack.c.l.b16 %v9491
      %v9775 = vunpack.c.h.b16 %v9491
      %v9776 = vunpack.c.l.b16 %v9492
      %v9777 = vunpack.c.h.b16 %v9492
      %v9778 = vunpack.c.l.b16 %v9493
      %v9779 = vunpack.c.h.b16 %v9493
      %v9780 = vunpack.c.l.b16 %v9494
      %v9781 = vunpack.c.h.b16 %v9494
      %v9782 = vunpack.c.l.b16 %v9495
      %v9783 = vunpack.c.h.b16 %v9495
      %v9784 = vunpack.c.l.b16 %v9496
      %v9785 = vunpack.c.h.b16 %v9496
      %v9786 = vunpack.c.l.b16 %v9497
      %v9787 = vunpack.c.h.b16 %v9497
      %v9788 = vunpack.c.l.b16 %v9498
      %v9789 = vunpack.c.h.b16 %v9498
      %v9790 = vunpack.c.l.b16 %v9499
      %v9791 = vunpack.c.h.b16 %v9499
      %v9792 = vunpack.c.l.b16 %v9500
      %v9793 = vunpack.c.h.b16 %v9500
      %v9794 = vunpack.c.l.b16 %v9501
      %v9795 = vunpack.c.h.b16 %v9501
      %v9796 = vunpack.c.l.b16 %v9502
      %v9797 = vunpack.c.h.b16 %v9502
      %v9798 = vunpack.c.l.b16 %v9503
      %v9799 = vunpack.c.h.b16 %v9503
      %v9800 = vunpack.c.l.b16 %v9504
      %v9801 = vunpack.c.h.b16 %v9504
      %v9802 = vunpack.c.l.b16 %v9505
      %v9803 = vunpack.c.h.b16 %v9505
      %v9804 = vunpack.c.l.b16 %v9506
      %v9805 = vunpack.c.h.b16 %v9506
      %v9806 = vunpack.c.l.b16 %v9507
      %v9807 = vunpack.c.h.b16 %v9507
      %v9808 = vunpack.c.l.b16 %v9508
      %v9809 = vunpack.c.h.b16 %v9508
      %v9810 = vunpack.c.l.b16 %v9509
      %v9811 = vunpack.c.h.b16 %v9509
      %v9812 = vunpack.c.l.b16 %v9510
      %v9813 = vunpack.c.h.b16 %v9510
      %v9814 = vunpack.c.l.b16 %v9511
      %v9815 = vunpack.c.h.b16 %v9511
      %v9816 = vunpack.c.l.b16 %v9512
      %v9817 = vunpack.c.h.b16 %v9512
      %v9818 = vunpack.c.l.b16 %v9513
      %v9819 = vunpack.c.h.b16 %v9513
      %v9820 = vunpack.c.l.b16 %v9514
      %v9821 = vunpack.c.h.b16 %v9514
      %v9822 = vunpack.c.l.b16 %v9515
      %v9823 = vunpack.c.h.b16 %v9515
      %v9824 = vunpack.c.l.b16 %v9516
      %v9825 = vunpack.c.h.b16 %v9516
      %v9826 = vunpack.c.l.b16 %v9517
      %v9827 = vunpack.c.h.b16 %v9517
      %v9828 = vunpack.c.l.b16 %v9518
      %v9829 = vunpack.c.h.b16 %v9518
      %v9830 = vunpack.c.l.b16 %v9519
      %v9831 = vunpack.c.h.b16 %v9519
      %v9832 = vunpack.c.l.b16 %v9520
      %v9833 = vunpack.c.h.b16 %v9520
      %v9834 = vunpack.c.l.b16 %v9521
      %v9835 = vunpack.c.h.b16 %v9521
      %v9836 = vunpack.c.l.b16 %v9522
      %v9837 = vunpack.c.h.b16 %v9522
      %v9838 = vunpack.c.l.b16 %v9523
      %v9839 = vunpack.c.h.b16 %v9523
      %v9840 = vunpack.c.l.b16 %v9524
      %v9841 = vunpack.c.h.b16 %v9524
      %v9842 = vunpack.c.l.b16 %v9525
      %v9843 = vunpack.c.h.b16 %v9525
      %v9844 = vunpack.c.l.b16 %v9526
      %v9845 = vunpack.c.h.b16 %v9526
      %v9846 = vunpack.c.l.b16 %v9527
      %v9847 = vunpack.c.h.b16 %v9527
      %v9848 = vunpack.c.l.b16 %v9528
      %v9849 = vunpack.c.h.b16 %v9528
      %v9850 = vunpack.c.l.b16 %v9529
      %v9851 = vunpack.c.h.b16 %v9529
      %v9852 = vunpack.c.l.b16 %v9530
      %v9853 = vunpack.c.h.b16 %v9530
      %v9854 = vunpack.c.l.b16 %v9531
      %v9855 = vunpack.c.h.b16 %v9531
      %v9856 = vunpack.c.l.b16 %v9532
      %v9857 = vunpack.c.h.b16 %v9532
      %v9858 = vunpack.c.l.b16 %v9533
      %v9859 = vunpack.c.h.b16 %v9533
      %v9860 = vunpack.c.l.b16 %v9534
      %v9861 = vunpack.c.h.b16 %v9534
      %v9862 = vunpack.c.l.b16 %v9535
      %v9863 = vunpack.c.h.b16 %v9535
      %v9864 = vunpack.c.l.b16 %v9536
      %v9865 = vunpack.c.h.b16 %v9536
      %v9866 = vunpack.c.l.b16 %v9537
      %v9867 = vunpack.c.h.b16 %v9537
      %v9868 = vunpack.c.l.b16 %v9538
      %v9869 = vunpack.c.h.b16 %v9538
      %v9870 = vunpack.c.l.b16 %v9539
      %v9871 = vunpack.c.h.b16 %v9539
      %v9872 = vunpack.c.l.b16 %v9540
      %v9873 = vunpack.c.h.b16 %v9540
      %v9874 = vunpack.c.l.b16 %v9541
      %v9875 = vunpack.c.h.b16 %v9541
      %v9876 = vunpack.c.l.b16 %v9542
      %v9877 = vunpack.c.h.b16 %v9542
      %v9878 = vunpack.c.l.b16 %v9543
      %v9879 = vunpack.c.h.b16 %v9543
      %v9880 = vunpack.c.l.b16 %v9544
      %v9881 = vunpack.c.h.b16 %v9544
      %v9882 = vunpack.c.l.b16 %v9545
      %v9883 = vunpack.c.h.b16 %v9545
      %v9884 = vunpack.c.l.b16 %v9546
      %v9885 = vunpack.c.h.b16 %v9546
      %v9886 = vunpack.c.l.b16 %v9547
      %v9887 = vunpack.c.h.b16 %v9547
      %v9888 = vunpack.c.l.b16 %v9548
      %v9889 = vunpack.c.h.b16 %v9548
      %v9890 = vunpack.c.l.b16 %v9549
      %v9891 = vunpack.c.h.b16 %v9549
      %v9892 = vunpack.c.l.b16 %v9550
      %v9893 = vunpack.c.h.b16 %v9550
      %v9894 = vunpack.c.l.b16 %v9551
      %v9895 = vunpack.c.h.b16 %v9551
      %v9896 = vunpack.c.l.b16 %v9552
      %v9897 = vunpack.c.h.b16 %v9552
      %v9898 = vunpack.c.l.b16 %v9553
      %v9899 = vunpack.c.h.b16 %v9553
      %v9900 = vunpack.c.l.b16 %v9554
      %v9901 = vunpack.c.h.b16 %v9554
      %v9902 = vunpack.c.l.b16 %v9555
      %v9903 = vunpack.c.h.b16 %v9555
      %v9904 = vunpack.c.l.b16 %v9556
      %v9905 = vunpack.c.h.b16 %v9556
      %v9906 = vunpack.c.l.b16 %v9557
      %v9907 = vunpack.c.h.b16 %v9557
      %v9908 = vunpack.c.l.b16 %v9558
      %v9909 = vunpack.c.h.b16 %v9558
      %v9910 = vunpack.c.l.b16 %v9559
      %v9911 = vunpack.c.h.b16 %v9559
      %v9912 = vunpack.c.l.b16 %v9560
      %v9913 = vunpack.c.h.b16 %v9560
      %v9914 = vunpack.c.l.b16 %v9561
      %v9915 = vunpack.c.h.b16 %v9561
      %v9916 = vunpack.c.l.b16 %v9562
      %v9917 = vunpack.c.h.b16 %v9562
      %v9918 = vunpack.c.l.b16 %v9563
      %v9919 = vunpack.c.h.b16 %v9563
      %v9920 = vunpack.c.l.b16 %v9564
      %v9921 = vunpack.c.h.b16 %v9564
      %v9922 = vunpack.c.l.b16 %v9565
      %v9923 = vunpack.c.h.b16 %v9565
      %v9924 = vunpack.c.l.b16 %v9566
      %v9925 = vunpack.c.h.b16 %v9566
      %v9926 = vunpack.c.l.b16 %v9567
      %v9927 = vunpack.c.h.b16 %v9567
      %v9928 = vunpack.c.l.b16 %v9568
      %v9929 = vunpack.c.h.b16 %v9568
      %v9930 = vunpack.c.l.b16 %v9569
      %v9931 = vunpack.c.h.b16 %v9569
      %v9932 = vunpack.c.l.b16 %v9570
      %v9933 = vunpack.c.h.b16 %v9570
      %v9934 = vunpack.c.l.b16 %v9571
      %v9935 = vunpack.c.h.b16 %v9571
      %v9936 = vunpack.c.l.b16 %v9572
      %v9937 = vunpack.c.h.b16 %v9572
      %v9938 = vunpack.c.l.b16 %v9573
      %v9939 = vunpack.c.h.b16 %v9573
      %v9940 = vunpack.c.l.b16 %v9574
      %v9941 = vunpack.c.h.b16 %v9574
      %v9942 = vunpack.c.l.b16 %v9575
      %v9943 = vunpack.c.h.b16 %v9575
      %v9944 = vunpack.c.l.b16 %v9576
      %v9945 = vunpack.c.h.b16 %v9576
      %v9946 = vunpack.c.l.b16 %v9577
      %v9947 = vunpack.c.h.b16 %v9577
      %v9948 = vunpack.c.l.b16 %v9578
      %v9949 = vunpack.c.h.b16 %v9578
      %v9950 = vunpack.c.l.b16 %v9579
      %v9951 = vunpack.c.h.b16 %v9579
      %v9952 = vunpack.c.l.b16 %v9580
      %v9953 = vunpack.c.h.b16 %v9580
      %v9954 = vunpack.c.l.b16 %v9581
      %v9955 = vunpack.c.h.b16 %v9581
      %v9956 = vunpack.c.l.b16 %v9582
      %v9957 = vunpack.c.h.b16 %v9582
      %v9958 = vunpack.c.l.b16 %v9583
      %v9959 = vunpack.c.h.b16 %v9583
      %v9960 = vunpack.c.l.b16 %v9584
      %v9961 = vunpack.c.h.b16 %v9584
      %v9962 = vunpack.c.l.b16 %v9585
      %v9963 = vunpack.c.h.b16 %v9585
      %v9964 = vunpack.c.l.b16 %v9586
      %v9965 = vunpack.c.h.b16 %v9586
      %v9966 = vunpack.c.l.b16 %v9587
      %v9967 = vunpack.c.h.b16 %v9587
      %v9968 = vunpack.c.l.b16 %v9588
      %v9969 = vunpack.c.h.b16 %v9588
      %v9970 = vunpack.c.l.b16 %v9589
      %v9971 = vunpack.c.h.b16 %v9589
      %v9972 = vunpack.c.l.b16 %v9590
      %v9973 = vunpack.c.h.b16 %v9590
      %v9974 = vunpack.c.l.b16 %v9591
      %v9975 = vunpack.c.h.b16 %v9591
      %v9976 = vpack.c.b16 %v9728, %v9720
      %v9977 = vpack.c.b16 %v9729, %v9721
      %v9978 = vpack.c.b16 %v9730, %v9722
      %v9979 = vpack.c.b16 %v9731, %v9723
      %v9980 = vpack.c.b16 %v9732, %v9724
      %v9981 = vpack.c.b16 %v9733, %v9725
      %v9982 = vpack.c.b16 %v9734, %v9726
      %v9983 = vpack.c.b16 %v9735, %v9727
      %v9984 = vpack.c.b16 %v9744, %v9736
      %v9985 = vpack.c.b16 %v9745, %v9737
      %v9986 = vpack.c.b16 %v9746, %v9738
      %v9987 = vpack.c.b16 %v9747, %v9739
      %v9988 = vpack.c.b16 %v9748, %v9740
      %v9989 = vpack.c.b16 %v9749, %v9741
      %v9990 = vpack.c.b16 %v9750, %v9742
      %v9991 = vpack.c.b16 %v9751, %v9743
      %v9992 = vpack.c.b16 %v9760, %v9752
      %v9993 = vpack.c.b16 %v9761, %v9753
      %v9994 = vpack.c.b16 %v9762, %v9754
      %v9995 = vpack.c.b16 %v9763, %v9755
      %v9996 = vpack.c.b16 %v9764, %v9756
      %v9997 = vpack.c.b16 %v9765, %v9757
      %v9998 = vpack.c.b16 %v9766, %v9758
      %v9999 = vpack.c.b16 %v9767, %v9759
      %v10000 = vpack.c.b16 %v9776, %v9768
      %v10001 = vpack.c.b16 %v9777, %v9769
      %v10002 = vpack.c.b16 %v9778, %v9770
      %v10003 = vpack.c.b16 %v9779, %v9771
      %v10004 = vpack.c.b16 %v9780, %v9772
      %v10005 = vpack.c.b16 %v9781, %v9773
      %v10006 = vpack.c.b16 %v9782, %v9774
      %v10007 = vpack.c.b16 %v9783, %v9775
      %v10008 = vpack.c.b16 %v9792, %v9784
      %v10009 = vpack.c.b16 %v9793, %v9785
      %v10010 = vpack.c.b16 %v9794, %v9786
      %v10011 = vpack.c.b16 %v9795, %v9787
      %v10012 = vpack.c.b16 %v9796, %v9788
      %v10013 = vpack.c.b16 %v9797, %v9789
      %v10014 = vpack.c.b16 %v9798, %v9790
      %v10015 = vpack.c.b16 %v9799, %v9791
      %v10016 = vpack.c.b16 %v9808, %v9800
      %v10017 = vpack.c.b16 %v9809, %v9801
      %v10018 = vpack.c.b16 %v9810, %v9802
      %v10019 = vpack.c.b16 %v9811, %v9803
      %v10020 = vpack.c.b16 %v9812, %v9804
      %v10021 = vpack.c.b16 %v9813, %v9805
      %v10022 = vpack.c.b16 %v9814, %v9806
      %v10023 = vpack.c.b16 %v9815, %v9807
      %v10024 = vpack.c.b16 %v9824, %v9816
      %v10025 = vpack.c.b16 %v9825, %v9817
      %v10026 = vpack.c.b16 %v9826, %v9818
      %v10027 = vpack.c.b16 %v9827, %v9819
      %v10028 = vpack.c.b16 %v9828, %v9820
      %v10029 = vpack.c.b16 %v9829, %v9821
      %v10030 = vpack.c.b16 %v9830, %v9822
      %v10031 = vpack.c.b16 %v9831, %v9823
      %v10032 = vpack.c.b16 %v9840, %v9832
      %v10033 = vpack.c.b16 %v9841, %v9833
      %v10034 = vpack.c.b16 %v9842, %v9834
      %v10035 = vpack.c.b16 %v9843, %v9835
      %v10036 = vpack.c.b16 %v9844, %v9836
      %v10037 = vpack.c.b16 %v9845, %v9837
      %v10038 = vpack.c.b16 %v9846, %v9838
      %v10039 = vpack.c.b16 %v9847, %v9839
      %v10040 = vpack.c.b16 %v9856, %v9848
      %v10041 = vpack.c.b16 %v9857, %v9849
      %v10042 = vpack.c.b16 %v9858, %v9850
      %v10043 = vpack.c.b16 %v9859, %v9851
      %v10044 = vpack.c.b16 %v9860, %v9852
      %v10045 = vpack.c.b16 %v9861, %v9853
      %v10046 = vpack.c.b16 %v9862, %v9854
      %v10047 = vpack.c.b16 %v9863, %v9855
      %v10048 = vpack.c.b16 %v9872, %v9864
      %v10049 = vpack.c.b16 %v9873, %v9865
      %v10050 = vpack.c.b16 %v9874, %v9866
      %v10051 = vpack.c.b16 %v9875, %v9867
      %v10052 = vpack.c.b16 %v9876, %v9868
      %v10053 = vpack.c.b16 %v9877, %v9869
      %v10054 = vpack.c.b16 %v9878, %v9870
      %v10055 = vpack.c.b16 %v9879, %v9871
      %v10056 = vpack.c.b16 %v9888, %v9880
      %v10057 = vpack.c.b16 %v9889, %v9881
      %v10058 = vpack.c.b16 %v9890, %v9882
      %v10059 = vpack.c.b16 %v9891, %v9883
      %v10060 = vpack.c.b16 %v9892, %v9884
      %v10061 = vpack.c.b16 %v9893, %v9885
      %v10062 = vpack.c.b16 %v9894, %v9886
      %v10063 = vpack.c.b16 %v9895, %v9887
      %v10064 = vpack.c.b16 %v9904, %v9896
      %v10065 = vpack.c.b16 %v9905, %v9897
      %v10066 = vpack.c.b16 %v9906, %v9898
      %v10067 = vpack.c.b16 %v9907, %v9899
      %v10068 = vpack.c.b16 %v9908, %v9900
      %v10069 = vpack.c.b16 %v9909, %v9901
      %v10070 = vpack.c.b16 %v9910, %v9902
      %v10071 = vpack.c.b16 %v9911, %v9903
      %v10072 = vpack.c.b16 %v9920, %v9912
      %v10073 = vpack.c.b16 %v9921, %v9913
      %v10074 = vpack.c.b16 %v9922, %v9914
      %v10075 = vpack.c.b16 %v9923, %v9915
      %v10076 = vpack.c.b16 %v9924, %v9916
      %v10077 = vpack.c.b16 %v9925, %v9917
      %v10078 = vpack.c.b16 %v9926, %v9918
      %v10079 = vpack.c.b16 %v9927, %v9919
      %v10080 = vpack.c.b16 %v9936, %v9928
      %v10081 = vpack.c.b16 %v9937, %v9929
      %v10082 = vpack.c.b16 %v9938, %v9930
      %v10083 = vpack.c.b16 %v9939, %v9931
      %v10084 = vpack.c.b16 %v9940, %v9932
      %v10085 = vpack.c.b16 %v9941, %v9933
      %v10086 = vpack.c.b16 %v9942, %v9934
      %v10087 = vpack.c.b16 %v9943, %v9935
      %v10088 = vpack.c.b16 %v9952, %v9944
      %v10089 = vpack.c.b16 %v9953, %v9945
      %v10090 = vpack.c.b16 %v9954, %v9946
      %v10091 = vpack.c.b16 %v9955, %v9947
      %v10092 = vpack.c.b16 %v9956, %v9948
      %v10093 = vpack.c.b16 %v9957, %v9949
      %v10094 = vpack.c.b16 %v9958, %v9950
      %v10095 = vpack.c.b16 %v9959, %v9951
      %v10096 = vpack.c.b16 %v9968, %v9960
      %v10097 = vpack.c.b16 %v9969, %v9961
      %v10098 = vpack.c.b16 %v9970, %v9962
      %v10099 = vpack.c.b16 %v9971, %v9963
      %v10100 = vpack.c.b16 %v9972, %v9964
      %v10101 = vpack.c.b16 %v9973, %v9965
      %v10102 = vpack.c.b16 %v9974, %v9966
      %v10103 = vpack.c.b16 %v9975, %v9967
      %10232 = vmatprep.subr.bf16.mxu0 %v10033
      %10233 = vmatpush1.bf16.msra.mxu0 %v10032
      %10234 = vmatprep.subr.bf16.mxu0 %v10025
      %10235 = vmatpush1.bf16.msra.mxu0 %v10024
      %10236 = vmatprep.subr.bf16.mxu0 %v10017
      %10237 = vmatpush1.bf16.msra.mxu0 %v10016
      %10238 = vmatprep.subr.bf16.mxu0 %v10009
      %10239 = vmatpush1.bf16.msra.mxu0 %v10008
      %10240 = vmatprep.subr.bf16.mxu0 %v10001
      %10241 = vmatpush1.bf16.msra.mxu0 %v10000
      %10242 = vmatprep.subr.bf16.mxu0 %v9993
      %10243 = vmatpush1.bf16.msra.mxu0 %v9992
      %10244 = vmatprep.subr.bf16.mxu0 %v9985
      %10245 = vmatpush1.bf16.msra.mxu0 %v9984
      %10246 = vmatprep.subr.bf16.mxu0 %v9977
      %10247 = vmatpush1.bf16.msra.mxu0 %v9976
      %10248 = vmatprep.subr.bf16.mxu0 %v10097
      %10249 = vmatpush2.bf16.msra.mxu0 %v10096
      %10250 = vmatprep.subr.bf16.mxu0 %v10089
      %10251 = vmatpush2.bf16.msra.mxu0 %v10088
      %10252 = vmatprep.subr.bf16.mxu0 %v10081
      %10253 = vmatpush2.bf16.msra.mxu0 %v10080
      %10254 = vmatprep.subr.bf16.mxu0 %v10073
      %10255 = vmatpush2.bf16.msra.mxu0 %v10072
      %10256 = vmatprep.subr.bf16.mxu0 %v10065
      %10257 = vmatpush2.bf16.msra.mxu0 %v10064
      %10258 = vmatprep.subr.bf16.mxu0 %v10057
      %10259 = vmatpush2.bf16.msra.mxu0 %v10056
      %10260 = vmatprep.subr.bf16.mxu0 %v10049
      %10261 = vmatpush2.bf16.msra.mxu0 %v10048
      %10262 = vmatprep.subr.bf16.mxu0 %v10041
      %10263 = vmatpush2.bf16.msra.mxu0 %v10040
      %10264 = vmatprep.mubr.bf16.mxu0 %v9463
      %10265 = vmatmul.mubr.bf16.gmra.mxu0 %v9462
      %v10266 = vpop.f32.mrf.mxu0
      %v10267 = vadd.f32 0.0, %v10266
      %v10268 = vpop.f32.mrf.mxu0
      %v10269 = vadd.f32 0.0, %v10268
      %v10270 = vpop.f32.mrf.mxu0
      %v10271 = vpop.f32.mrf.mxu0
      %10272 = vdwg.mxu0
      %10273 = vmatprep.subr.bf16.mxu0 %v10035
      %10274 = vmatpush1.bf16.msra.mxu0 %v10034
      %10275 = vmatprep.subr.bf16.mxu0 %v10027
      %10276 = vmatpush1.bf16.msra.mxu0 %v10026
      %10277 = vmatprep.subr.bf16.mxu0 %v10019
      %10278 = vmatpush1.bf16.msra.mxu0 %v10018
      %10279 = vmatprep.subr.bf16.mxu0 %v10011
      %10280 = vmatpush1.bf16.msra.mxu0 %v10010
      %10281 = vmatprep.subr.bf16.mxu0 %v10003
      %10282 = vmatpush1.bf16.msra.mxu0 %v10002
      %10283 = vmatprep.subr.bf16.mxu0 %v9995
      %10284 = vmatpush1.bf16.msra.mxu0 %v9994
      %10285 = vmatprep.subr.bf16.mxu0 %v9987
      %10286 = vmatpush1.bf16.msra.mxu0 %v9986
      %10287 = vmatprep.subr.bf16.mxu0 %v9979
      %10288 = vmatpush1.bf16.msra.mxu0 %v9978
      %10289 = vmatprep.subr.bf16.mxu0 %v10099
      %10290 = vmatpush2.bf16.msra.mxu0 %v10098
      %10291 = vmatprep.subr.bf16.mxu0 %v10091
      %10292 = vmatpush2.bf16.msra.mxu0 %v10090
      %10293 = vmatprep.subr.bf16.mxu0 %v10083
      %10294 = vmatpush2.bf16.msra.mxu0 %v10082
      %10295 = vmatprep.subr.bf16.mxu0 %v10075
      %10296 = vmatpush2.bf16.msra.mxu0 %v10074
      %10297 = vmatprep.subr.bf16.mxu0 %v10067
      %10298 = vmatpush2.bf16.msra.mxu0 %v10066
      %10299 = vmatprep.subr.bf16.mxu0 %v10059
      %10300 = vmatpush2.bf16.msra.mxu0 %v10058
      %10301 = vmatprep.subr.bf16.mxu0 %v10051
      %10302 = vmatpush2.bf16.msra.mxu0 %v10050
      %10303 = vmatprep.subr.bf16.mxu0 %v10043
      %10304 = vmatpush2.bf16.msra.mxu0 %v10042
      %10305 = vmatprep.mubr.bf16.mxu0 %v9463
      %10306 = vmatmul.mubr.bf16.gmra.mxu0 %v9462
      %v10307 = vpop.f32.mrf.mxu0
      %v10308 = vadd.f32 0.0, %v10307
      %v10309 = vpop.f32.mrf.mxu0
      %v10310 = vadd.f32 0.0, %v10309
      %v10311 = vpop.f32.mrf.mxu0
      %v10312 = vpop.f32.mrf.mxu0
      %10313 = vdwg.mxu0
      %10314 = vmatprep.subr.bf16.mxu0 %v10037
      %10315 = vmatpush1.bf16.msra.mxu0 %v10036
      %10316 = vmatprep.subr.bf16.mxu0 %v10029
      %10317 = vmatpush1.bf16.msra.mxu0 %v10028
      %10318 = vmatprep.subr.bf16.mxu0 %v10021
      %10319 = vmatpush1.bf16.msra.mxu0 %v10020
      %10320 = vmatprep.subr.bf16.mxu0 %v10013
      %10321 = vmatpush1.bf16.msra.mxu0 %v10012
      %10322 = vmatprep.subr.bf16.mxu0 %v10005
      %10323 = vmatpush1.bf16.msra.mxu0 %v10004
      %10324 = vmatprep.subr.bf16.mxu0 %v9997
      %10325 = vmatpush1.bf16.msra.mxu0 %v9996
      %10326 = vmatprep.subr.bf16.mxu0 %v9989
      %10327 = vmatpush1.bf16.msra.mxu0 %v9988
      %10328 = vmatprep.subr.bf16.mxu0 %v9981
      %10329 = vmatpush1.bf16.msra.mxu0 %v9980
      %10330 = vmatprep.subr.bf16.mxu0 %v10101
      %10331 = vmatpush2.bf16.msra.mxu0 %v10100
      %10332 = vmatprep.subr.bf16.mxu0 %v10093
      %10333 = vmatpush2.bf16.msra.mxu0 %v10092
      %10334 = vmatprep.subr.bf16.mxu0 %v10085
      %10335 = vmatpush2.bf16.msra.mxu0 %v10084
      %10336 = vmatprep.subr.bf16.mxu0 %v10077
      %10337 = vmatpush2.bf16.msra.mxu0 %v10076
      %10338 = vmatprep.subr.bf16.mxu0 %v10069
      %10339 = vmatpush2.bf16.msra.mxu0 %v10068
      %10340 = vmatprep.subr.bf16.mxu0 %v10061
      %10341 = vmatpush2.bf16.msra.mxu0 %v10060
      %10342 = vmatprep.subr.bf16.mxu0 %v10053
      %10343 = vmatpush2.bf16.msra.mxu0 %v10052
      %10344 = vmatprep.subr.bf16.mxu0 %v10045
      %10345 = vmatpush2.bf16.msra.mxu0 %v10044
      %10346 = vmatprep.mubr.bf16.mxu0 %v9463
      %10347 = vmatmul.mubr.bf16.gmra.mxu0 %v9462
      %v10348 = vpop.f32.mrf.mxu0
      %v10349 = vadd.f32 0.0, %v10348
      %v10350 = vpop.f32.mrf.mxu0
      %v10351 = vadd.f32 0.0, %v10350
      %v10352 = vpop.f32.mrf.mxu0
      %v10353 = vpop.f32.mrf.mxu0
      %10354 = vdwg.mxu0
      %10355 = vmatprep.subr.bf16.mxu0 %v10039
      %10356 = vmatpush1.bf16.msra.mxu0 %v10038
      %10357 = vmatprep.subr.bf16.mxu0 %v10031
      %10358 = vmatpush1.bf16.msra.mxu0 %v10030
      %10359 = vmatprep.subr.bf16.mxu0 %v10023
      %10360 = vmatpush1.bf16.msra.mxu0 %v10022
      %10361 = vmatprep.subr.bf16.mxu0 %v10015
      %10362 = vmatpush1.bf16.msra.mxu0 %v10014
      %10363 = vmatprep.subr.bf16.mxu0 %v10007
      %10364 = vmatpush1.bf16.msra.mxu0 %v10006
      %10365 = vmatprep.subr.bf16.mxu0 %v9999
      %10366 = vmatpush1.bf16.msra.mxu0 %v9998
      %10367 = vmatprep.subr.bf16.mxu0 %v9991
      %10368 = vmatpush1.bf16.msra.mxu0 %v9990
      %10369 = vmatprep.subr.bf16.mxu0 %v9983
      %10370 = vmatpush1.bf16.msra.mxu0 %v9982
      %10371 = vmatprep.subr.bf16.mxu0 %v10103
      %10372 = vmatpush2.bf16.msra.mxu0 %v10102
      %10373 = vmatprep.subr.bf16.mxu0 %v10095
      %10374 = vmatpush2.bf16.msra.mxu0 %v10094
      %10375 = vmatprep.subr.bf16.mxu0 %v10087
      %10376 = vmatpush2.bf16.msra.mxu0 %v10086
      %10377 = vmatprep.subr.bf16.mxu0 %v10079
      %10378 = vmatpush2.bf16.msra.mxu0 %v10078
      %10379 = vmatprep.subr.bf16.mxu0 %v10071
      %10380 = vmatpush2.bf16.msra.mxu0 %v10070
      %10381 = vmatprep.subr.bf16.mxu0 %v10063
      %10382 = vmatpush2.bf16.msra.mxu0 %v10062
      %10383 = vmatprep.subr.bf16.mxu0 %v10055
      %10384 = vmatpush2.bf16.msra.mxu0 %v10054
      %10385 = vmatprep.subr.bf16.mxu0 %v10047
      %10386 = vmatpush2.bf16.msra.mxu0 %v10046
      %10387 = vmatprep.mubr.bf16.mxu0 %v9463
      %10388 = vmatmul.mubr.bf16.gmra.mxu0 %v9462
      %v10389 = vpop.f32.mrf.mxu0
      %v10390 = vadd.f32 0.0, %v10389
      %v10391 = vpop.f32.mrf.mxu0
      %v10392 = vadd.f32 0.0, %v10391
      %v10393 = vpop.f32.mrf.mxu0
      %v10394 = vpop.f32.mrf.mxu0
      %10395 = vdwg.mxu0
      %v10396 = vrot.slane %v10267, 4
      %v10397 = vadd.f32 %v10267, %v10396
      %v10398 = vrot.slane %v10397, 2
      %v10399 = vadd.f32 %v10397, %v10398
      %v10400 = vrot.slane %v10399, 1
      %v10401 = vadd.f32 %v10399, %v10400
      %v10402 = vrot.slane %v10269, 4
      %v10403 = vadd.f32 %v10269, %v10402
      %v10404 = vrot.slane %v10403, 2
      %v10405 = vadd.f32 %v10403, %v10404
      %v10406 = vrot.slane %v10405, 1
      %v10407 = vadd.f32 %v10405, %v10406
      %v10408 = vrot.slane %v10308, 4
      %v10409 = vadd.f32 %v10308, %v10408
      %v10410 = vrot.slane %v10409, 2
      %v10411 = vadd.f32 %v10409, %v10410
      %v10412 = vrot.slane %v10411, 1
      %v10413 = vadd.f32 %v10411, %v10412
      %v10414 = vrot.slane %v10310, 4
      %v10415 = vadd.f32 %v10310, %v10414
      %v10416 = vrot.slane %v10415, 2
      %v10417 = vadd.f32 %v10415, %v10416
      %v10418 = vrot.slane %v10417, 1
      %v10419 = vadd.f32 %v10417, %v10418
      %v10420 = vrot.slane %v10349, 4
      %v10421 = vadd.f32 %v10349, %v10420
      %v10422 = vrot.slane %v10421, 2
      %v10423 = vadd.f32 %v10421, %v10422
      %v10424 = vrot.slane %v10423, 1
      %v10425 = vadd.f32 %v10423, %v10424
      %v10426 = vrot.slane %v10351, 4
      %v10427 = vadd.f32 %v10351, %v10426
      %v10428 = vrot.slane %v10427, 2
      %v10429 = vadd.f32 %v10427, %v10428
      %v10430 = vrot.slane %v10429, 1
      %v10431 = vadd.f32 %v10429, %v10430
      %v10432 = vrot.slane %v10390, 4
      %v10433 = vadd.f32 %v10390, %v10432
      %v10434 = vrot.slane %v10433, 2
      %v10435 = vadd.f32 %v10433, %v10434
      %v10436 = vrot.slane %v10435, 1
      %v10437 = vadd.f32 %v10435, %v10436
      %v10438 = vrot.slane %v10392, 4
      %v10439 = vadd.f32 %v10392, %v10438
      %v10440 = vrot.slane %v10439, 2
      %v10441 = vadd.f32 %v10439, %v10440
      %v10442 = vrot.slane %v10441, 1
      %v10443 = vadd.f32 %v10441, %v10442
      %v10444 = vmul.f32 %v10267, %v10267
      %v10445 = vmul.f32 %v10269, %v10269
      %v10446 = vmul.f32 %v10308, %v10308
      %v10447 = vmul.f32 %v10310, %v10310
      %v10448 = vmul.f32 %v10349, %v10349
      %v10449 = vmul.f32 %v10351, %v10351
      %v10450 = vmul.f32 %v10390, %v10390
      %v10451 = vmul.f32 %v10392, %v10392
      %v10452 = vrot.slane %v10444, 4
      %v10453 = vadd.f32 %v10444, %v10452
      %v10454 = vrot.slane %v10453, 2
      %v10455 = vadd.f32 %v10453, %v10454
      %v10456 = vrot.slane %v10455, 1
      %v10457 = vadd.f32 %v10455, %v10456
      %v10458 = vrot.slane %v10445, 4
      %v10459 = vadd.f32 %v10445, %v10458
      %v10460 = vrot.slane %v10459, 2
      %v10461 = vadd.f32 %v10459, %v10460
      %v10462 = vrot.slane %v10461, 1
      %v10463 = vadd.f32 %v10461, %v10462
      %v10464 = vrot.slane %v10446, 4
      %v10465 = vadd.f32 %v10446, %v10464
      %v10466 = vrot.slane %v10465, 2
      %v10467 = vadd.f32 %v10465, %v10466
      %v10468 = vrot.slane %v10467, 1
      %v10469 = vadd.f32 %v10467, %v10468
      %v10470 = vrot.slane %v10447, 4
      %v10471 = vadd.f32 %v10447, %v10470
      %v10472 = vrot.slane %v10471, 2
      %v10473 = vadd.f32 %v10471, %v10472
      %v10474 = vrot.slane %v10473, 1
      %v10475 = vadd.f32 %v10473, %v10474
      %v10476 = vrot.slane %v10448, 4
      %v10477 = vadd.f32 %v10448, %v10476
      %v10478 = vrot.slane %v10477, 2
      %v10479 = vadd.f32 %v10477, %v10478
      %v10480 = vrot.slane %v10479, 1
      %v10481 = vadd.f32 %v10479, %v10480
      %v10482 = vrot.slane %v10449, 4
      %v10483 = vadd.f32 %v10449, %v10482
      %v10484 = vrot.slane %v10483, 2
      %v10485 = vadd.f32 %v10483, %v10484
      %v10486 = vrot.slane %v10485, 1
      %v10487 = vadd.f32 %v10485, %v10486
      %v10488 = vrot.slane %v10450, 4
      %v10489 = vadd.f32 %v10450, %v10488
      %v10490 = vrot.slane %v10489, 2
      %v10491 = vadd.f32 %v10489, %v10490
      %v10492 = vrot.slane %v10491, 1
      %v10493 = vadd.f32 %v10491, %v10492
      %v10494 = vrot.slane %v10451, 4
      %v10495 = vadd.f32 %v10451, %v10494
      %v10496 = vrot.slane %v10495, 2
      %v10497 = vadd.f32 %v10495, %v10496
      %v10498 = vrot.slane %v10497, 1
      %v10499 = vadd.f32 %v10497, %v10498
      %v10500 = vmul.f32 %v10401, 0.125
      %v10501 = vmul.f32 %v10407, 0.125
      %v10502 = vmul.f32 %v10413, 0.125
      %v10503 = vmul.f32 %v10419, 0.125
      %v10504 = vmul.f32 %v10425, 0.125
      %v10505 = vmul.f32 %v10431, 0.125
      %v10506 = vmul.f32 %v10437, 0.125
      %v10507 = vmul.f32 %v10443, 0.125
      %v10508 = vmul.f32 %v10457, 0.125
      %v10509 = vmul.f32 %v10463, 0.125
      %v10510 = vmul.f32 %v10469, 0.125
      %v10511 = vmul.f32 %v10475, 0.125
      %v10512 = vmul.f32 %v10481, 0.125
      %v10513 = vmul.f32 %v10487, 0.125
      %v10514 = vmul.f32 %v10493, 0.125
      %v10515 = vmul.f32 %v10499, 0.125
      %v10516 = vmul.f32 %v10500, %v10500
      %v10517 = vmul.f32 %v10501, %v10501
      %v10518 = vmul.f32 %v10502, %v10502
      %v10519 = vmul.f32 %v10503, %v10503
      %v10520 = vmul.f32 %v10504, %v10504
      %v10521 = vmul.f32 %v10505, %v10505
      %v10522 = vmul.f32 %v10506, %v10506
      %v10523 = vmul.f32 %v10507, %v10507
      %v10524 = vsub.f32 %v10508, %v10516
      %v10525 = vsub.f32 %v10509, %v10517
      %v10526 = vsub.f32 %v10510, %v10518
      %v10527 = vsub.f32 %v10511, %v10519
      %v10528 = vsub.f32 %v10512, %v10520
      %v10529 = vsub.f32 %v10513, %v10521
      %v10530 = vsub.f32 %v10514, %v10522
      %v10531 = vsub.f32 %v10515, %v10523
      %v10532 = vmax.f32 %v10524, 0.0
      %v10533 = vmax.f32 %v10525, 0.0
      %v10534 = vmax.f32 %v10526, 0.0
      %v10535 = vmax.f32 %v10527, 0.0
      %v10536 = vmax.f32 %v10528, 0.0
      %v10537 = vmax.f32 %v10529, 0.0
      %v10538 = vmax.f32 %v10530, 0.0
      %v10539 = vmax.f32 %v10531, 0.0
      %v10540 = vsub.f32 %v10267, %v10500
      %v10541 = vsub.f32 %v10269, %v10501
      %v10542 = vsub.f32 %v10308, %v10502
      %v10543 = vsub.f32 %v10310, %v10503
      %v10544 = vsub.f32 %v10349, %v10504
      %v10545 = vsub.f32 %v10351, %v10505
      %v10546 = vsub.f32 %v10390, %v10506
      %v10547 = vsub.f32 %v10392, %v10507
      %v10548 = vadd.f32 %v10532, 1e-05
      %v10549 = vadd.f32 %v10533, 1e-05
      %v10550 = vadd.f32 %v10534, 1e-05
      %v10551 = vadd.f32 %v10535, 1e-05
      %v10552 = vadd.f32 %v10536, 1e-05
      %v10553 = vadd.f32 %v10537, 1e-05
      %v10554 = vadd.f32 %v10538, 1e-05
      %v10555 = vadd.f32 %v10539, 1e-05
      %v10556 = vrsqrt.pop %v10548
      %v10557 = vrsqrt.pop %v10549
      %v10558 = vrsqrt.pop %v10550
      %v10559 = vrsqrt.pop %v10551
      %v10560 = vrsqrt.pop %v10552
      %v10561 = vrsqrt.pop %v10553
      %v10562 = vrsqrt.pop %v10554
      %v10563 = vrsqrt.pop %v10555
      %v10564 = vmul.f32 %v10540, %v10556
      %v10565 = vmul.f32 %v10541, %v10557
      %v10566 = vmul.f32 %v10542, %v10558
      %v10567 = vmul.f32 %v10543, %v10559
      %v10568 = vmul.f32 %v10544, %v10560
      %v10569 = vmul.f32 %v10545, %v10561
      %v10570 = vmul.f32 %v10546, %v10562
      %v10571 = vmul.f32 %v10547, %v10563
      %v10572 = vld [vmem:[%s9] sm:$0xff]
      %v10574 = vlaneseq
      %v10575 = vshrl.u32 %v10574, 7
      %v10576 = vsub.s32 0, %v10575
      %v10577 = vrot.slane %v10572, %v10576
      %v10578 = vlaneseq
      %v10579 = vshrl.u32 %v10578, 7
      %v10580 = vsub.s32 1, %v10579
      %v10581 = vrot.slane %v10572, %v10580
      %v10582 = vlaneseq
      %v10583 = vshrl.u32 %v10582, 7
      %v10584 = vsub.s32 2, %v10583
      %v10585 = vrot.slane %v10572, %v10584
      %v10586 = vlaneseq
      %v10587 = vshrl.u32 %v10586, 7
      %v10588 = vsub.s32 3, %v10587
      %v10589 = vrot.slane %v10572, %v10588
      %v10590 = vlaneseq
      %v10591 = vshrl.u32 %v10590, 7
      %v10592 = vsub.s32 4, %v10591
      %v10593 = vrot.slane %v10572, %v10592
      %v10594 = vlaneseq
      %v10595 = vshrl.u32 %v10594, 7
      %v10596 = vsub.s32 5, %v10595
      %v10597 = vrot.slane %v10572, %v10596
      %v10598 = vlaneseq
      %v10599 = vshrl.u32 %v10598, 7
      %v10600 = vsub.s32 6, %v10599
      %v10601 = vrot.slane %v10572, %v10600
      %v10602 = vlaneseq
      %v10603 = vshrl.u32 %v10602, 7
      %v10604 = vsub.s32 7, %v10603
      %v10605 = vrot.slane %v10572, %v10604
      %v10614 = vmul.f32 %v10564, %v10577
      %v10615 = vmul.f32 %v10565, %v10581
      %v10616 = vmul.f32 %v10566, %v10585
      %v10617 = vmul.f32 %v10567, %v10589
      %v10618 = vmul.f32 %v10568, %v10593
      %v10619 = vmul.f32 %v10569, %v10597
      %v10620 = vmul.f32 %v10570, %v10601
      %v10621 = vmul.f32 %v10571, %v10605
      %v10622 = vld [vmem:[%s10] sm:$0xff]
      %v10624 = vlaneseq
      %v10625 = vshrl.u32 %v10624, 7
      %v10626 = vsub.s32 0, %v10625
      %v10627 = vrot.slane %v10622, %v10626
      %v10628 = vlaneseq
      %v10629 = vshrl.u32 %v10628, 7
      %v10630 = vsub.s32 1, %v10629
      %v10631 = vrot.slane %v10622, %v10630
      %v10632 = vlaneseq
      %v10633 = vshrl.u32 %v10632, 7
      %v10634 = vsub.s32 2, %v10633
      %v10635 = vrot.slane %v10622, %v10634
      %v10636 = vlaneseq
      %v10637 = vshrl.u32 %v10636, 7
      %v10638 = vsub.s32 3, %v10637
      %v10639 = vrot.slane %v10622, %v10638
      %v10640 = vlaneseq
      %v10641 = vshrl.u32 %v10640, 7
      %v10642 = vsub.s32 4, %v10641
      %v10643 = vrot.slane %v10622, %v10642
      %v10644 = vlaneseq
      %v10645 = vshrl.u32 %v10644, 7
      %v10646 = vsub.s32 5, %v10645
      %v10647 = vrot.slane %v10622, %v10646
      %v10648 = vlaneseq
      %v10649 = vshrl.u32 %v10648, 7
      %v10650 = vsub.s32 6, %v10649
      %v10651 = vrot.slane %v10622, %v10650
      %v10652 = vlaneseq
      %v10653 = vshrl.u32 %v10652, 7
      %v10654 = vsub.s32 7, %v10653
      %v10655 = vrot.slane %v10622, %v10654
      %v10664 = vadd.f32 %v10614, %v10627
      %v10665 = vadd.f32 %v10615, %v10631
      %v10666 = vadd.f32 %v10616, %v10635
      %v10667 = vadd.f32 %v10617, %v10639
      %v10668 = vadd.f32 %v10618, %v10643
      %v10669 = vadd.f32 %v10619, %v10647
      %v10670 = vadd.f32 %v10620, %v10651
      %v10671 = vadd.f32 %v10621, %v10655
      %v10672 = vmax.f32 %v10664, 0.0
      %v10673 = vmax.f32 %v10665, 0.0
      %v10674 = vmax.f32 %v10666, 0.0
      %v10675 = vmax.f32 %v10667, 0.0
      %v10676 = vmax.f32 %v10668, 0.0
      %v10677 = vmax.f32 %v10669, 0.0
      %v10678 = vmax.f32 %v10670, 0.0
      %v10679 = vmax.f32 %v10671, 0.0
      %v10680 = vpack.c.bf16 %v10672, %v10672
      %v10681 = vpack.c.bf16 %v10673, %v10673
      %v10682 = vpack.c.bf16 %v10674, %v10674
      %v10683 = vpack.c.bf16 %v10675, %v10675
      %v10684 = vpack.c.bf16 %v10676, %v10676
      %v10685 = vpack.c.bf16 %v10677, %v10677
      %v10686 = vpack.c.bf16 %v10678, %v10678
      %v10687 = vpack.c.bf16 %v10679, %v10679
      %v10688 = vld [vmem:[%s11] sm:$0xff]
      %v10689 = vld [vmem:[%s11 + $0x8] sm:$0xff]
      %v10690 = vld [vmem:[%s11 + $0x10] sm:$0xff]
      %v10691 = vld [vmem:[%s11 + $0x18] sm:$0xff]
      %v10692 = vld [vmem:[%s11 + $0x20] sm:$0xff]
      %v10693 = vld [vmem:[%s11 + $0x28] sm:$0xff]
      %v10694 = vld [vmem:[%s11 + $0x30] sm:$0xff]
      %v10695 = vld [vmem:[%s11 + $0x38] sm:$0xff]
      %v10696 = vld [vmem:[%s11 + $0x40] sm:$0xff]
      %v10697 = vld [vmem:[%s11 + $0x48] sm:$0xff]
      %v10698 = vld [vmem:[%s11 + $0x50] sm:$0xff]
      %v10699 = vld [vmem:[%s11 + $0x58] sm:$0xff]
      %v10700 = vld [vmem:[%s11 + $0x60] sm:$0xff]
      %v10701 = vld [vmem:[%s11 + $0x68] sm:$0xff]
      %v10702 = vld [vmem:[%s11 + $0x70] sm:$0xff]
      %v10703 = vld [vmem:[%s11 + $0x78] sm:$0xff]
      %v10704 = vld [vmem:[%s11 + $0x80] sm:$0xff]
      %v10705 = vld [vmem:[%s11 + $0x88] sm:$0xff]
      %v10706 = vld [vmem:[%s11 + $0x90] sm:$0xff]
      %v10707 = vld [vmem:[%s11 + $0x98] sm:$0xff]
      %v10708 = vld [vmem:[%s11 + $0xa0] sm:$0xff]
      %v10709 = vld [vmem:[%s11 + $0xa8] sm:$0xff]
      %v10710 = vld [vmem:[%s11 + $0xb0] sm:$0xff]
      %v10711 = vld [vmem:[%s11 + $0xb8] sm:$0xff]
      %v10712 = vld [vmem:[%s11 + $0xc0] sm:$0xff]
      %v10713 = vld [vmem:[%s11 + $0xc8] sm:$0xff]
      %v10714 = vld [vmem:[%s11 + $0xd0] sm:$0xff]
      %v10715 = vld [vmem:[%s11 + $0xd8] sm:$0xff]
      %v10716 = vld [vmem:[%s11 + $0xe0] sm:$0xff]
      %v10717 = vld [vmem:[%s11 + $0xe8] sm:$0xff]
      %v10718 = vld [vmem:[%s11 + $0xf0] sm:$0xff]
      %v10719 = vld [vmem:[%s11 + $0xf8] sm:$0xff]
      %v10720 = vld [vmem:[%s11 + $0x100] sm:$0xff]
      %v10721 = vld [vmem:[%s11 + $0x108] sm:$0xff]
      %v10722 = vld [vmem:[%s11 + $0x110] sm:$0xff]
      %v10723 = vld [vmem:[%s11 + $0x118] sm:$0xff]
      %v10724 = vld [vmem:[%s11 + $0x120] sm:$0xff]
      %v10725 = vld [vmem:[%s11 + $0x128] sm:$0xff]
      %v10726 = vld [vmem:[%s11 + $0x130] sm:$0xff]
      %v10727 = vld [vmem:[%s11 + $0x138] sm:$0xff]
      %v10728 = vld [vmem:[%s11 + $0x140] sm:$0xff]
      %v10729 = vld [vmem:[%s11 + $0x148] sm:$0xff]
      %v10730 = vld [vmem:[%s11 + $0x150] sm:$0xff]
      %v10731 = vld [vmem:[%s11 + $0x158] sm:$0xff]
      %v10732 = vld [vmem:[%s11 + $0x160] sm:$0xff]
      %v10733 = vld [vmem:[%s11 + $0x168] sm:$0xff]
      %v10734 = vld [vmem:[%s11 + $0x170] sm:$0xff]
      %v10735 = vld [vmem:[%s11 + $0x178] sm:$0xff]
      %v10736 = vld [vmem:[%s11 + $0x180] sm:$0xff]
      %v10737 = vld [vmem:[%s11 + $0x188] sm:$0xff]
      %v10738 = vld [vmem:[%s11 + $0x190] sm:$0xff]
      %v10739 = vld [vmem:[%s11 + $0x198] sm:$0xff]
      %v10740 = vld [vmem:[%s11 + $0x1a0] sm:$0xff]
      %v10741 = vld [vmem:[%s11 + $0x1a8] sm:$0xff]
      %v10742 = vld [vmem:[%s11 + $0x1b0] sm:$0xff]
      %v10743 = vld [vmem:[%s11 + $0x1b8] sm:$0xff]
      %v10744 = vld [vmem:[%s11 + $0x1c0] sm:$0xff]
      %v10745 = vld [vmem:[%s11 + $0x1c8] sm:$0xff]
      %v10746 = vld [vmem:[%s11 + $0x1d0] sm:$0xff]
      %v10747 = vld [vmem:[%s11 + $0x1d8] sm:$0xff]
      %v10748 = vld [vmem:[%s11 + $0x1e0] sm:$0xff]
      %v10749 = vld [vmem:[%s11 + $0x1e8] sm:$0xff]
      %v10750 = vld [vmem:[%s11 + $0x1f0] sm:$0xff]
      %v10751 = vld [vmem:[%s11 + $0x1f8] sm:$0xff]
      %v10752 = vld [vmem:[%s11 + $0x200] sm:$0xff]
      %v10753 = vld [vmem:[%s11 + $0x208] sm:$0xff]
      %v10754 = vld [vmem:[%s11 + $0x210] sm:$0xff]
      %v10755 = vld [vmem:[%s11 + $0x218] sm:$0xff]
      %v10756 = vld [vmem:[%s11 + $0x220] sm:$0xff]
      %v10757 = vld [vmem:[%s11 + $0x228] sm:$0xff]
      %v10758 = vld [vmem:[%s11 + $0x230] sm:$0xff]
      %v10759 = vld [vmem:[%s11 + $0x238] sm:$0xff]
      %v10760 = vld [vmem:[%s11 + $0x240] sm:$0xff]
      %v10761 = vld [vmem:[%s11 + $0x248] sm:$0xff]
      %v10762 = vld [vmem:[%s11 + $0x250] sm:$0xff]
      %v10763 = vld [vmem:[%s11 + $0x258] sm:$0xff]
      %v10764 = vld [vmem:[%s11 + $0x260] sm:$0xff]
      %v10765 = vld [vmem:[%s11 + $0x268] sm:$0xff]
      %v10766 = vld [vmem:[%s11 + $0x270] sm:$0xff]
      %v10767 = vld [vmem:[%s11 + $0x278] sm:$0xff]
      %v10768 = vld [vmem:[%s11 + $0x280] sm:$0xff]
      %v10769 = vld [vmem:[%s11 + $0x288] sm:$0xff]
      %v10770 = vld [vmem:[%s11 + $0x290] sm:$0xff]
      %v10771 = vld [vmem:[%s11 + $0x298] sm:$0xff]
      %v10772 = vld [vmem:[%s11 + $0x2a0] sm:$0xff]
      %v10773 = vld [vmem:[%s11 + $0x2a8] sm:$0xff]
      %v10774 = vld [vmem:[%s11 + $0x2b0] sm:$0xff]
      %v10775 = vld [vmem:[%s11 + $0x2b8] sm:$0xff]
      %v10776 = vld [vmem:[%s11 + $0x2c0] sm:$0xff]
      %v10777 = vld [vmem:[%s11 + $0x2c8] sm:$0xff]
      %v10778 = vld [vmem:[%s11 + $0x2d0] sm:$0xff]
      %v10779 = vld [vmem:[%s11 + $0x2d8] sm:$0xff]
      %v10780 = vld [vmem:[%s11 + $0x2e0] sm:$0xff]
      %v10781 = vld [vmem:[%s11 + $0x2e8] sm:$0xff]
      %v10782 = vld [vmem:[%s11 + $0x2f0] sm:$0xff]
      %v10783 = vld [vmem:[%s11 + $0x2f8] sm:$0xff]
      %v10784 = vld [vmem:[%s11 + $0x300] sm:$0xff]
      %v10785 = vld [vmem:[%s11 + $0x308] sm:$0xff]
      %v10786 = vld [vmem:[%s11 + $0x310] sm:$0xff]
      %v10787 = vld [vmem:[%s11 + $0x318] sm:$0xff]
      %v10788 = vld [vmem:[%s11 + $0x320] sm:$0xff]
      %v10789 = vld [vmem:[%s11 + $0x328] sm:$0xff]
      %v10790 = vld [vmem:[%s11 + $0x330] sm:$0xff]
      %v10791 = vld [vmem:[%s11 + $0x338] sm:$0xff]
      %v10792 = vld [vmem:[%s11 + $0x340] sm:$0xff]
      %v10793 = vld [vmem:[%s11 + $0x348] sm:$0xff]
      %v10794 = vld [vmem:[%s11 + $0x350] sm:$0xff]
      %v10795 = vld [vmem:[%s11 + $0x358] sm:$0xff]
      %v10796 = vld [vmem:[%s11 + $0x360] sm:$0xff]
      %v10797 = vld [vmem:[%s11 + $0x368] sm:$0xff]
      %v10798 = vld [vmem:[%s11 + $0x370] sm:$0xff]
      %v10799 = vld [vmem:[%s11 + $0x378] sm:$0xff]
      %v10800 = vld [vmem:[%s11 + $0x380] sm:$0xff]
      %v10801 = vld [vmem:[%s11 + $0x388] sm:$0xff]
      %v10802 = vld [vmem:[%s11 + $0x390] sm:$0xff]
      %v10803 = vld [vmem:[%s11 + $0x398] sm:$0xff]
      %v10804 = vld [vmem:[%s11 + $0x3a0] sm:$0xff]
      %v10805 = vld [vmem:[%s11 + $0x3a8] sm:$0xff]
      %v10806 = vld [vmem:[%s11 + $0x3b0] sm:$0xff]
      %v10807 = vld [vmem:[%s11 + $0x3b8] sm:$0xff]
      %v10808 = vld [vmem:[%s11 + $0x3c0] sm:$0xff]
      %v10809 = vld [vmem:[%s11 + $0x3c8] sm:$0xff]
      %v10810 = vld [vmem:[%s11 + $0x3d0] sm:$0xff]
      %v10811 = vld [vmem:[%s11 + $0x3d8] sm:$0xff]
      %v10812 = vld [vmem:[%s11 + $0x3e0] sm:$0xff]
      %v10813 = vld [vmem:[%s11 + $0x3e8] sm:$0xff]
      %v10814 = vld [vmem:[%s11 + $0x3f0] sm:$0xff]
      %v10815 = vld [vmem:[%s11 + $0x3f8] sm:$0xff]
      %v10816 = vld [vmem:[%s12] sm:$0x3]
      %v10818 = vlaneseq
      %v10819 = vshrl.u32 %v10818, 7
      %v10820 = vsub.s32 0, %v10819
      %v10821 = vrot.slane %v10816, %v10820
      %v10822 = vlaneseq
      %v10823 = vshrl.u32 %v10822, 7
      %v10824 = vsub.s32 1, %v10823
      %v10825 = vrot.slane %v10816, %v10824
      %v10956 = vunpack.c.l.b16 %v10688
      %v10957 = vunpack.c.h.b16 %v10688
      %v10958 = vunpack.c.l.b16 %v10689
      %v10959 = vunpack.c.h.b16 %v10689
      %v10960 = vunpack.c.l.b16 %v10690
      %v10961 = vunpack.c.h.b16 %v10690
      %v10962 = vunpack.c.l.b16 %v10691
      %v10963 = vunpack.c.h.b16 %v10691
      %v10964 = vunpack.c.l.b16 %v10692
      %v10965 = vunpack.c.h.b16 %v10692
      %v10966 = vunpack.c.l.b16 %v10693
      %v10967 = vunpack.c.h.b16 %v10693
      %v10968 = vunpack.c.l.b16 %v10694
      %v10969 = vunpack.c.h.b16 %v10694
      %v10970 = vunpack.c.l.b16 %v10695
      %v10971 = vunpack.c.h.b16 %v10695
      %v10972 = vunpack.c.l.b16 %v10696
      %v10973 = vunpack.c.h.b16 %v10696
      %v10974 = vunpack.c.l.b16 %v10697
      %v10975 = vunpack.c.h.b16 %v10697
      %v10976 = vunpack.c.l.b16 %v10698
      %v10977 = vunpack.c.h.b16 %v10698
      %v10978 = vunpack.c.l.b16 %v10699
      %v10979 = vunpack.c.h.b16 %v10699
      %v10980 = vunpack.c.l.b16 %v10700
      %v10981 = vunpack.c.h.b16 %v10700
      %v10982 = vunpack.c.l.b16 %v10701
      %v10983 = vunpack.c.h.b16 %v10701
      %v10984 = vunpack.c.l.b16 %v10702
      %v10985 = vunpack.c.h.b16 %v10702
      %v10986 = vunpack.c.l.b16 %v10703
      %v10987 = vunpack.c.h.b16 %v10703
      %v10988 = vunpack.c.l.b16 %v10704
      %v10989 = vunpack.c.h.b16 %v10704
      %v10990 = vunpack.c.l.b16 %v10705
      %v10991 = vunpack.c.h.b16 %v10705
      %v10992 = vunpack.c.l.b16 %v10706
      %v10993 = vunpack.c.h.b16 %v10706
      %v10994 = vunpack.c.l.b16 %v10707
      %v10995 = vunpack.c.h.b16 %v10707
      %v10996 = vunpack.c.l.b16 %v10708
      %v10997 = vunpack.c.h.b16 %v10708
      %v10998 = vunpack.c.l.b16 %v10709
      %v10999 = vunpack.c.h.b16 %v10709
      %v11000 = vunpack.c.l.b16 %v10710
      %v11001 = vunpack.c.h.b16 %v10710
      %v11002 = vunpack.c.l.b16 %v10711
      %v11003 = vunpack.c.h.b16 %v10711
      %v11004 = vunpack.c.l.b16 %v10712
      %v11005 = vunpack.c.h.b16 %v10712
      %v11006 = vunpack.c.l.b16 %v10713
      %v11007 = vunpack.c.h.b16 %v10713
      %v11008 = vunpack.c.l.b16 %v10714
      %v11009 = vunpack.c.h.b16 %v10714
      %v11010 = vunpack.c.l.b16 %v10715
      %v11011 = vunpack.c.h.b16 %v10715
      %v11012 = vunpack.c.l.b16 %v10716
      %v11013 = vunpack.c.h.b16 %v10716
      %v11014 = vunpack.c.l.b16 %v10717
      %v11015 = vunpack.c.h.b16 %v10717
      %v11016 = vunpack.c.l.b16 %v10718
      %v11017 = vunpack.c.h.b16 %v10718
      %v11018 = vunpack.c.l.b16 %v10719
      %v11019 = vunpack.c.h.b16 %v10719
      %v11020 = vunpack.c.l.b16 %v10720
      %v11021 = vunpack.c.h.b16 %v10720
      %v11022 = vunpack.c.l.b16 %v10721
      %v11023 = vunpack.c.h.b16 %v10721
      %v11024 = vunpack.c.l.b16 %v10722
      %v11025 = vunpack.c.h.b16 %v10722
      %v11026 = vunpack.c.l.b16 %v10723
      %v11027 = vunpack.c.h.b16 %v10723
      %v11028 = vunpack.c.l.b16 %v10724
      %v11029 = vunpack.c.h.b16 %v10724
      %v11030 = vunpack.c.l.b16 %v10725
      %v11031 = vunpack.c.h.b16 %v10725
      %v11032 = vunpack.c.l.b16 %v10726
      %v11033 = vunpack.c.h.b16 %v10726
      %v11034 = vunpack.c.l.b16 %v10727
      %v11035 = vunpack.c.h.b16 %v10727
      %v11036 = vunpack.c.l.b16 %v10728
      %v11037 = vunpack.c.h.b16 %v10728
      %v11038 = vunpack.c.l.b16 %v10729
      %v11039 = vunpack.c.h.b16 %v10729
      %v11040 = vunpack.c.l.b16 %v10730
      %v11041 = vunpack.c.h.b16 %v10730
      %v11042 = vunpack.c.l.b16 %v10731
      %v11043 = vunpack.c.h.b16 %v10731
      %v11044 = vunpack.c.l.b16 %v10732
      %v11045 = vunpack.c.h.b16 %v10732
      %v11046 = vunpack.c.l.b16 %v10733
      %v11047 = vunpack.c.h.b16 %v10733
      %v11048 = vunpack.c.l.b16 %v10734
      %v11049 = vunpack.c.h.b16 %v10734
      %v11050 = vunpack.c.l.b16 %v10735
      %v11051 = vunpack.c.h.b16 %v10735
      %v11052 = vunpack.c.l.b16 %v10736
      %v11053 = vunpack.c.h.b16 %v10736
      %v11054 = vunpack.c.l.b16 %v10737
      %v11055 = vunpack.c.h.b16 %v10737
      %v11056 = vunpack.c.l.b16 %v10738
      %v11057 = vunpack.c.h.b16 %v10738
      %v11058 = vunpack.c.l.b16 %v10739
      %v11059 = vunpack.c.h.b16 %v10739
      %v11060 = vunpack.c.l.b16 %v10740
      %v11061 = vunpack.c.h.b16 %v10740
      %v11062 = vunpack.c.l.b16 %v10741
      %v11063 = vunpack.c.h.b16 %v10741
      %v11064 = vunpack.c.l.b16 %v10742
      %v11065 = vunpack.c.h.b16 %v10742
      %v11066 = vunpack.c.l.b16 %v10743
      %v11067 = vunpack.c.h.b16 %v10743
      %v11068 = vunpack.c.l.b16 %v10744
      %v11069 = vunpack.c.h.b16 %v10744
      %v11070 = vunpack.c.l.b16 %v10745
      %v11071 = vunpack.c.h.b16 %v10745
      %v11072 = vunpack.c.l.b16 %v10746
      %v11073 = vunpack.c.h.b16 %v10746
      %v11074 = vunpack.c.l.b16 %v10747
      %v11075 = vunpack.c.h.b16 %v10747
      %v11076 = vunpack.c.l.b16 %v10748
      %v11077 = vunpack.c.h.b16 %v10748
      %v11078 = vunpack.c.l.b16 %v10749
      %v11079 = vunpack.c.h.b16 %v10749
      %v11080 = vunpack.c.l.b16 %v10750
      %v11081 = vunpack.c.h.b16 %v10750
      %v11082 = vunpack.c.l.b16 %v10751
      %v11083 = vunpack.c.h.b16 %v10751
      %v11084 = vunpack.c.l.b16 %v10752
      %v11085 = vunpack.c.h.b16 %v10752
      %v11086 = vunpack.c.l.b16 %v10753
      %v11087 = vunpack.c.h.b16 %v10753
      %v11088 = vunpack.c.l.b16 %v10754
      %v11089 = vunpack.c.h.b16 %v10754
      %v11090 = vunpack.c.l.b16 %v10755
      %v11091 = vunpack.c.h.b16 %v10755
      %v11092 = vunpack.c.l.b16 %v10756
      %v11093 = vunpack.c.h.b16 %v10756
      %v11094 = vunpack.c.l.b16 %v10757
      %v11095 = vunpack.c.h.b16 %v10757
      %v11096 = vunpack.c.l.b16 %v10758
      %v11097 = vunpack.c.h.b16 %v10758
      %v11098 = vunpack.c.l.b16 %v10759
      %v11099 = vunpack.c.h.b16 %v10759
      %v11100 = vunpack.c.l.b16 %v10760
      %v11101 = vunpack.c.h.b16 %v10760
      %v11102 = vunpack.c.l.b16 %v10761
      %v11103 = vunpack.c.h.b16 %v10761
      %v11104 = vunpack.c.l.b16 %v10762
      %v11105 = vunpack.c.h.b16 %v10762
      %v11106 = vunpack.c.l.b16 %v10763
      %v11107 = vunpack.c.h.b16 %v10763
      %v11108 = vunpack.c.l.b16 %v10764
      %v11109 = vunpack.c.h.b16 %v10764
      %v11110 = vunpack.c.l.b16 %v10765
      %v11111 = vunpack.c.h.b16 %v10765
      %v11112 = vunpack.c.l.b16 %v10766
      %v11113 = vunpack.c.h.b16 %v10766
      %v11114 = vunpack.c.l.b16 %v10767
      %v11115 = vunpack.c.h.b16 %v10767
      %v11116 = vunpack.c.l.b16 %v10768
      %v11117 = vunpack.c.h.b16 %v10768
      %v11118 = vunpack.c.l.b16 %v10769
      %v11119 = vunpack.c.h.b16 %v10769
      %v11120 = vunpack.c.l.b16 %v10770
      %v11121 = vunpack.c.h.b16 %v10770
      %v11122 = vunpack.c.l.b16 %v10771
      %v11123 = vunpack.c.h.b16 %v10771
      %v11124 = vunpack.c.l.b16 %v10772
      %v11125 = vunpack.c.h.b16 %v10772
      %v11126 = vunpack.c.l.b16 %v10773
      %v11127 = vunpack.c.h.b16 %v10773
      %v11128 = vunpack.c.l.b16 %v10774
      %v11129 = vunpack.c.h.b16 %v10774
      %v11130 = vunpack.c.l.b16 %v10775
      %v11131 = vunpack.c.h.b16 %v10775
      %v11132 = vunpack.c.l.b16 %v10776
      %v11133 = vunpack.c.h.b16 %v10776
      %v11134 = vunpack.c.l.b16 %v10777
      %v11135 = vunpack.c.h.b16 %v10777
      %v11136 = vunpack.c.l.b16 %v10778
      %v11137 = vunpack.c.h.b16 %v10778
      %v11138 = vunpack.c.l.b16 %v10779
      %v11139 = vunpack.c.h.b16 %v10779
      %v11140 = vunpack.c.l.b16 %v10780
      %v11141 = vunpack.c.h.b16 %v10780
      %v11142 = vunpack.c.l.b16 %v10781
      %v11143 = vunpack.c.h.b16 %v10781
      %v11144 = vunpack.c.l.b16 %v10782
      %v11145 = vunpack.c.h.b16 %v10782
      %v11146 = vunpack.c.l.b16 %v10783
      %v11147 = vunpack.c.h.b16 %v10783
      %v11148 = vunpack.c.l.b16 %v10784
      %v11149 = vunpack.c.h.b16 %v10784
      %v11150 = vunpack.c.l.b16 %v10785
      %v11151 = vunpack.c.h.b16 %v10785
      %v11152 = vunpack.c.l.b16 %v10786
      %v11153 = vunpack.c.h.b16 %v10786
      %v11154 = vunpack.c.l.b16 %v10787
      %v11155 = vunpack.c.h.b16 %v10787
      %v11156 = vunpack.c.l.b16 %v10788
      %v11157 = vunpack.c.h.b16 %v10788
      %v11158 = vunpack.c.l.b16 %v10789
      %v11159 = vunpack.c.h.b16 %v10789
      %v11160 = vunpack.c.l.b16 %v10790
      %v11161 = vunpack.c.h.b16 %v10790
      %v11162 = vunpack.c.l.b16 %v10791
      %v11163 = vunpack.c.h.b16 %v10791
      %v11164 = vunpack.c.l.b16 %v10792
      %v11165 = vunpack.c.h.b16 %v10792
      %v11166 = vunpack.c.l.b16 %v10793
      %v11167 = vunpack.c.h.b16 %v10793
      %v11168 = vunpack.c.l.b16 %v10794
      %v11169 = vunpack.c.h.b16 %v10794
      %v11170 = vunpack.c.l.b16 %v10795
      %v11171 = vunpack.c.h.b16 %v10795
      %v11172 = vunpack.c.l.b16 %v10796
      %v11173 = vunpack.c.h.b16 %v10796
      %v11174 = vunpack.c.l.b16 %v10797
      %v11175 = vunpack.c.h.b16 %v10797
      %v11176 = vunpack.c.l.b16 %v10798
      %v11177 = vunpack.c.h.b16 %v10798
      %v11178 = vunpack.c.l.b16 %v10799
      %v11179 = vunpack.c.h.b16 %v10799
      %v11180 = vunpack.c.l.b16 %v10800
      %v11181 = vunpack.c.h.b16 %v10800
      %v11182 = vunpack.c.l.b16 %v10801
      %v11183 = vunpack.c.h.b16 %v10801
      %v11184 = vunpack.c.l.b16 %v10802
      %v11185 = vunpack.c.h.b16 %v10802
      %v11186 = vunpack.c.l.b16 %v10803
      %v11187 = vunpack.c.h.b16 %v10803
      %v11188 = vunpack.c.l.b16 %v10804
      %v11189 = vunpack.c.h.b16 %v10804
      %v11190 = vunpack.c.l.b16 %v10805
      %v11191 = vunpack.c.h.b16 %v10805
      %v11192 = vunpack.c.l.b16 %v10806
      %v11193 = vunpack.c.h.b16 %v10806
      %v11194 = vunpack.c.l.b16 %v10807
      %v11195 = vunpack.c.h.b16 %v10807
      %v11196 = vunpack.c.l.b16 %v10808
      %v11197 = vunpack.c.h.b16 %v10808
      %v11198 = vunpack.c.l.b16 %v10809
      %v11199 = vunpack.c.h.b16 %v10809
      %v11200 = vunpack.c.l.b16 %v10810
      %v11201 = vunpack.c.h.b16 %v10810
      %v11202 = vunpack.c.l.b16 %v10811
      %v11203 = vunpack.c.h.b16 %v10811
      %v11204 = vunpack.c.l.b16 %v10812
      %v11205 = vunpack.c.h.b16 %v10812
      %v11206 = vunpack.c.l.b16 %v10813
      %v11207 = vunpack.c.h.b16 %v10813
      %v11208 = vunpack.c.l.b16 %v10814
      %v11209 = vunpack.c.h.b16 %v10814
      %v11210 = vunpack.c.l.b16 %v10815
      %v11211 = vunpack.c.h.b16 %v10815
      %v11212 = vpack.c.b16 %v10958, %v10956
      %v11213 = vpack.c.b16 %v10959, %v10957
      %v11214 = vpack.c.b16 %v10962, %v10960
      %v11215 = vpack.c.b16 %v10963, %v10961
      %v11216 = vpack.c.b16 %v10966, %v10964
      %v11217 = vpack.c.b16 %v10967, %v10965
      %v11218 = vpack.c.b16 %v10970, %v10968
      %v11219 = vpack.c.b16 %v10971, %v10969
      %v11220 = vpack.c.b16 %v10974, %v10972
      %v11221 = vpack.c.b16 %v10975, %v10973
      %v11222 = vpack.c.b16 %v10978, %v10976
      %v11223 = vpack.c.b16 %v10979, %v10977
      %v11224 = vpack.c.b16 %v10982, %v10980
      %v11225 = vpack.c.b16 %v10983, %v10981
      %v11226 = vpack.c.b16 %v10986, %v10984
      %v11227 = vpack.c.b16 %v10987, %v10985
      %v11228 = vpack.c.b16 %v10990, %v10988
      %v11229 = vpack.c.b16 %v10991, %v10989
      %v11230 = vpack.c.b16 %v10994, %v10992
      %v11231 = vpack.c.b16 %v10995, %v10993
      %v11232 = vpack.c.b16 %v10998, %v10996
      %v11233 = vpack.c.b16 %v10999, %v10997
      %v11234 = vpack.c.b16 %v11002, %v11000
      %v11235 = vpack.c.b16 %v11003, %v11001
      %v11236 = vpack.c.b16 %v11006, %v11004
      %v11237 = vpack.c.b16 %v11007, %v11005
      %v11238 = vpack.c.b16 %v11010, %v11008
      %v11239 = vpack.c.b16 %v11011, %v11009
      %v11240 = vpack.c.b16 %v11014, %v11012
      %v11241 = vpack.c.b16 %v11015, %v11013
      %v11242 = vpack.c.b16 %v11018, %v11016
      %v11243 = vpack.c.b16 %v11019, %v11017
      %v11244 = vpack.c.b16 %v11022, %v11020
      %v11245 = vpack.c.b16 %v11023, %v11021
      %v11246 = vpack.c.b16 %v11026, %v11024
      %v11247 = vpack.c.b16 %v11027, %v11025
      %v11248 = vpack.c.b16 %v11030, %v11028
      %v11249 = vpack.c.b16 %v11031, %v11029
      %v11250 = vpack.c.b16 %v11034, %v11032
      %v11251 = vpack.c.b16 %v11035, %v11033
      %v11252 = vpack.c.b16 %v11038, %v11036
      %v11253 = vpack.c.b16 %v11039, %v11037
      %v11254 = vpack.c.b16 %v11042, %v11040
      %v11255 = vpack.c.b16 %v11043, %v11041
      %v11256 = vpack.c.b16 %v11046, %v11044
      %v11257 = vpack.c.b16 %v11047, %v11045
      %v11258 = vpack.c.b16 %v11050, %v11048
      %v11259 = vpack.c.b16 %v11051, %v11049
      %v11260 = vpack.c.b16 %v11054, %v11052
      %v11261 = vpack.c.b16 %v11055, %v11053
      %v11262 = vpack.c.b16 %v11058, %v11056
      %v11263 = vpack.c.b16 %v11059, %v11057
      %v11264 = vpack.c.b16 %v11062, %v11060
      %v11265 = vpack.c.b16 %v11063, %v11061
      %v11266 = vpack.c.b16 %v11066, %v11064
      %v11267 = vpack.c.b16 %v11067, %v11065
      %v11268 = vpack.c.b16 %v11070, %v11068
      %v11269 = vpack.c.b16 %v11071, %v11069
      %v11270 = vpack.c.b16 %v11074, %v11072
      %v11271 = vpack.c.b16 %v11075, %v11073
      %v11272 = vpack.c.b16 %v11078, %v11076
      %v11273 = vpack.c.b16 %v11079, %v11077
      %v11274 = vpack.c.b16 %v11082, %v11080
      %v11275 = vpack.c.b16 %v11083, %v11081
      %v11276 = vpack.c.b16 %v11086, %v11084
      %v11277 = vpack.c.b16 %v11087, %v11085
      %v11278 = vpack.c.b16 %v11090, %v11088
      %v11279 = vpack.c.b16 %v11091, %v11089
      %v11280 = vpack.c.b16 %v11094, %v11092
      %v11281 = vpack.c.b16 %v11095, %v11093
      %v11282 = vpack.c.b16 %v11098, %v11096
      %v11283 = vpack.c.b16 %v11099, %v11097
      %v11284 = vpack.c.b16 %v11102, %v11100
      %v11285 = vpack.c.b16 %v11103, %v11101
      %v11286 = vpack.c.b16 %v11106, %v11104
      %v11287 = vpack.c.b16 %v11107, %v11105
      %v11288 = vpack.c.b16 %v11110, %v11108
      %v11289 = vpack.c.b16 %v11111, %v11109
      %v11290 = vpack.c.b16 %v11114, %v11112
      %v11291 = vpack.c.b16 %v11115, %v11113
      %v11292 = vpack.c.b16 %v11118, %v11116
      %v11293 = vpack.c.b16 %v11119, %v11117
      %v11294 = vpack.c.b16 %v11122, %v11120
      %v11295 = vpack.c.b16 %v11123, %v11121
      %v11296 = vpack.c.b16 %v11126, %v11124
      %v11297 = vpack.c.b16 %v11127, %v11125
      %v11298 = vpack.c.b16 %v11130, %v11128
      %v11299 = vpack.c.b16 %v11131, %v11129
      %v11300 = vpack.c.b16 %v11134, %v11132
      %v11301 = vpack.c.b16 %v11135, %v11133
      %v11302 = vpack.c.b16 %v11138, %v11136
      %v11303 = vpack.c.b16 %v11139, %v11137
      %v11304 = vpack.c.b16 %v11142, %v11140
      %v11305 = vpack.c.b16 %v11143, %v11141
      %v11306 = vpack.c.b16 %v11146, %v11144
      %v11307 = vpack.c.b16 %v11147, %v11145
      %v11308 = vpack.c.b16 %v11150, %v11148
      %v11309 = vpack.c.b16 %v11151, %v11149
      %v11310 = vpack.c.b16 %v11154, %v11152
      %v11311 = vpack.c.b16 %v11155, %v11153
      %v11312 = vpack.c.b16 %v11158, %v11156
      %v11313 = vpack.c.b16 %v11159, %v11157
      %v11314 = vpack.c.b16 %v11162, %v11160
      %v11315 = vpack.c.b16 %v11163, %v11161
      %v11316 = vpack.c.b16 %v11166, %v11164
      %v11317 = vpack.c.b16 %v11167, %v11165
      %v11318 = vpack.c.b16 %v11170, %v11168
      %v11319 = vpack.c.b16 %v11171, %v11169
      %v11320 = vpack.c.b16 %v11174, %v11172
      %v11321 = vpack.c.b16 %v11175, %v11173
      %v11322 = vpack.c.b16 %v11178, %v11176
      %v11323 = vpack.c.b16 %v11179, %v11177
      %v11324 = vpack.c.b16 %v11182, %v11180
      %v11325 = vpack.c.b16 %v11183, %v11181
      %v11326 = vpack.c.b16 %v11186, %v11184
      %v11327 = vpack.c.b16 %v11187, %v11185
      %v11328 = vpack.c.b16 %v11190, %v11188
      %v11329 = vpack.c.b16 %v11191, %v11189
      %v11330 = vpack.c.b16 %v11194, %v11192
      %v11331 = vpack.c.b16 %v11195, %v11193
      %v11332 = vpack.c.b16 %v11198, %v11196
      %v11333 = vpack.c.b16 %v11199, %v11197
      %v11334 = vpack.c.b16 %v11202, %v11200
      %v11335 = vpack.c.b16 %v11203, %v11201
      %v11336 = vpack.c.b16 %v11206, %v11204
      %v11337 = vpack.c.b16 %v11207, %v11205
      %v11338 = vpack.c.b16 %v11210, %v11208
      %v11339 = vpack.c.b16 %v11211, %v11209
      %11468 = vmatprep.subr.bf16.mxu0 %v11227
      %11469 = vmatpush1.bf16.msra.mxu0 %v11226
      %11470 = vmatprep.subr.bf16.mxu0 %v11225
      %11471 = vmatpush1.bf16.msra.mxu0 %v11224
      %11472 = vmatprep.subr.bf16.mxu0 %v11223
      %11473 = vmatpush1.bf16.msra.mxu0 %v11222
      %11474 = vmatprep.subr.bf16.mxu0 %v11221
      %11475 = vmatpush1.bf16.msra.mxu0 %v11220
      %11476 = vmatprep.subr.bf16.mxu0 %v11219
      %11477 = vmatpush1.bf16.msra.mxu0 %v11218
      %11478 = vmatprep.subr.bf16.mxu0 %v11217
      %11479 = vmatpush1.bf16.msra.mxu0 %v11216
      %11480 = vmatprep.subr.bf16.mxu0 %v11215
      %11481 = vmatpush1.bf16.msra.mxu0 %v11214
      %11482 = vmatprep.subr.bf16.mxu0 %v11213
      %11483 = vmatpush1.bf16.msra.mxu0 %v11212
      %11484 = vmatprep.subr.bf16.mxu0 %v11243
      %11485 = vmatpush2.bf16.msra.mxu0 %v11242
      %11486 = vmatprep.subr.bf16.mxu0 %v11241
      %11487 = vmatpush2.bf16.msra.mxu0 %v11240
      %11488 = vmatprep.subr.bf16.mxu0 %v11239
      %11489 = vmatpush2.bf16.msra.mxu0 %v11238
      %11490 = vmatprep.subr.bf16.mxu0 %v11237
      %11491 = vmatpush2.bf16.msra.mxu0 %v11236
      %11492 = vmatprep.subr.bf16.mxu0 %v11235
      %11493 = vmatpush2.bf16.msra.mxu0 %v11234
      %11494 = vmatprep.subr.bf16.mxu0 %v11233
      %11495 = vmatpush2.bf16.msra.mxu0 %v11232
      %11496 = vmatprep.subr.bf16.mxu0 %v11231
      %11497 = vmatpush2.bf16.msra.mxu0 %v11230
      %11498 = vmatprep.subr.bf16.mxu0 %v11229
      %11499 = vmatpush2.bf16.msra.mxu0 %v11228
      %11500 = vmatprep.mubr.bf16.mxu0 %v10681
      %11501 = vmatmul.mubr.bf16.gmra.mxu0 %v10680
      %v11502 = vpop.f32.mrf.mxu0
      %v11503 = vadd.f32 %v10821, %v11502
      %v11504 = vpop.f32.mrf.mxu0
      %v11505 = vadd.f32 %v10825, %v11504
      %v11506 = vpop.f32.mrf.mxu0
      %v11507 = vpop.f32.mrf.mxu0
      %11508 = vdwg.mxu0
      %11509 = vmatprep.subr.bf16.mxu0 %v11259
      %11510 = vmatpush1.bf16.msra.mxu0 %v11258
      %11511 = vmatprep.subr.bf16.mxu0 %v11257
      %11512 = vmatpush1.bf16.msra.mxu0 %v11256
      %11513 = vmatprep.subr.bf16.mxu0 %v11255
      %11514 = vmatpush1.bf16.msra.mxu0 %v11254
      %11515 = vmatprep.subr.bf16.mxu0 %v11253
      %11516 = vmatpush1.bf16.msra.mxu0 %v11252
      %11517 = vmatprep.subr.bf16.mxu0 %v11251
      %11518 = vmatpush1.bf16.msra.mxu0 %v11250
      %11519 = vmatprep.subr.bf16.mxu0 %v11249
      %11520 = vmatpush1.bf16.msra.mxu0 %v11248
      %11521 = vmatprep.subr.bf16.mxu0 %v11247
      %11522 = vmatpush1.bf16.msra.mxu0 %v11246
      %11523 = vmatprep.subr.bf16.mxu0 %v11245
      %11524 = vmatpush1.bf16.msra.mxu0 %v11244
      %11525 = vmatprep.subr.bf16.mxu0 %v11275
      %11526 = vmatpush2.bf16.msra.mxu0 %v11274
      %11527 = vmatprep.subr.bf16.mxu0 %v11273
      %11528 = vmatpush2.bf16.msra.mxu0 %v11272
      %11529 = vmatprep.subr.bf16.mxu0 %v11271
      %11530 = vmatpush2.bf16.msra.mxu0 %v11270
      %11531 = vmatprep.subr.bf16.mxu0 %v11269
      %11532 = vmatpush2.bf16.msra.mxu0 %v11268
      %11533 = vmatprep.subr.bf16.mxu0 %v11267
      %11534 = vmatpush2.bf16.msra.mxu0 %v11266
      %11535 = vmatprep.subr.bf16.mxu0 %v11265
      %11536 = vmatpush2.bf16.msra.mxu0 %v11264
      %11537 = vmatprep.subr.bf16.mxu0 %v11263
      %11538 = vmatpush2.bf16.msra.mxu0 %v11262
      %11539 = vmatprep.subr.bf16.mxu0 %v11261
      %11540 = vmatpush2.bf16.msra.mxu0 %v11260
      %11541 = vmatprep.mubr.bf16.mxu0 %v10683
      %11542 = vmatmul.mubr.bf16.gmra.mxu0 %v10682
      %v11543 = vpop.f32.mrf.mxu0
      %v11544 = vadd.f32 %v11503, %v11543
      %v11545 = vpop.f32.mrf.mxu0
      %v11546 = vadd.f32 %v11505, %v11545
      %v11547 = vpop.f32.mrf.mxu0
      %v11548 = vpop.f32.mrf.mxu0
      %11549 = vdwg.mxu0
      %11550 = vmatprep.subr.bf16.mxu0 %v11291
      %11551 = vmatpush1.bf16.msra.mxu0 %v11290
      %11552 = vmatprep.subr.bf16.mxu0 %v11289
      %11553 = vmatpush1.bf16.msra.mxu0 %v11288
      %11554 = vmatprep.subr.bf16.mxu0 %v11287
      %11555 = vmatpush1.bf16.msra.mxu0 %v11286
      %11556 = vmatprep.subr.bf16.mxu0 %v11285
      %11557 = vmatpush1.bf16.msra.mxu0 %v11284
      %11558 = vmatprep.subr.bf16.mxu0 %v11283
      %11559 = vmatpush1.bf16.msra.mxu0 %v11282
      %11560 = vmatprep.subr.bf16.mxu0 %v11281
      %11561 = vmatpush1.bf16.msra.mxu0 %v11280
      %11562 = vmatprep.subr.bf16.mxu0 %v11279
      %11563 = vmatpush1.bf16.msra.mxu0 %v11278
      %11564 = vmatprep.subr.bf16.mxu0 %v11277
      %11565 = vmatpush1.bf16.msra.mxu0 %v11276
      %11566 = vmatprep.subr.bf16.mxu0 %v11307
      %11567 = vmatpush2.bf16.msra.mxu0 %v11306
      %11568 = vmatprep.subr.bf16.mxu0 %v11305
      %11569 = vmatpush2.bf16.msra.mxu0 %v11304
      %11570 = vmatprep.subr.bf16.mxu0 %v11303
      %11571 = vmatpush2.bf16.msra.mxu0 %v11302
      %11572 = vmatprep.subr.bf16.mxu0 %v11301
      %11573 = vmatpush2.bf16.msra.mxu0 %v11300
      %11574 = vmatprep.subr.bf16.mxu0 %v11299
      %11575 = vmatpush2.bf16.msra.mxu0 %v11298
      %11576 = vmatprep.subr.bf16.mxu0 %v11297
      %11577 = vmatpush2.bf16.msra.mxu0 %v11296
      %11578 = vmatprep.subr.bf16.mxu0 %v11295
      %11579 = vmatpush2.bf16.msra.mxu0 %v11294
      %11580 = vmatprep.subr.bf16.mxu0 %v11293
      %11581 = vmatpush2.bf16.msra.mxu0 %v11292
      %11582 = vmatprep.mubr.bf16.mxu0 %v10685
      %11583 = vmatmul.mubr.bf16.gmra.mxu0 %v10684
      %v11584 = vpop.f32.mrf.mxu0
      %v11585 = vadd.f32 %v11544, %v11584
      %v11586 = vpop.f32.mrf.mxu0
      %v11587 = vadd.f32 %v11546, %v11586
      %v11588 = vpop.f32.mrf.mxu0
      %v11589 = vpop.f32.mrf.mxu0
      %11590 = vdwg.mxu0
      %11591 = vmatprep.subr.bf16.mxu0 %v11323
      %11592 = vmatpush1.bf16.msra.mxu0 %v11322
      %11593 = vmatprep.subr.bf16.mxu0 %v11321
      %11594 = vmatpush1.bf16.msra.mxu0 %v11320
      %11595 = vmatprep.subr.bf16.mxu0 %v11319
      %11596 = vmatpush1.bf16.msra.mxu0 %v11318
      %11597 = vmatprep.subr.bf16.mxu0 %v11317
      %11598 = vmatpush1.bf16.msra.mxu0 %v11316
      %11599 = vmatprep.subr.bf16.mxu0 %v11315
      %11600 = vmatpush1.bf16.msra.mxu0 %v11314
      %11601 = vmatprep.subr.bf16.mxu0 %v11313
      %11602 = vmatpush1.bf16.msra.mxu0 %v11312
      %11603 = vmatprep.subr.bf16.mxu0 %v11311
      %11604 = vmatpush1.bf16.msra.mxu0 %v11310
      %11605 = vmatprep.subr.bf16.mxu0 %v11309
      %11606 = vmatpush1.bf16.msra.mxu0 %v11308
      %11607 = vmatprep.subr.bf16.mxu0 %v11339
      %11608 = vmatpush2.bf16.msra.mxu0 %v11338
      %11609 = vmatprep.subr.bf16.mxu0 %v11337
      %11610 = vmatpush2.bf16.msra.mxu0 %v11336
      %11611 = vmatprep.subr.bf16.mxu0 %v11335
      %11612 = vmatpush2.bf16.msra.mxu0 %v11334
      %11613 = vmatprep.subr.bf16.mxu0 %v11333
      %11614 = vmatpush2.bf16.msra.mxu0 %v11332
      %11615 = vmatprep.subr.bf16.mxu0 %v11331
      %11616 = vmatpush2.bf16.msra.mxu0 %v11330
      %11617 = vmatprep.subr.bf16.mxu0 %v11329
      %11618 = vmatpush2.bf16.msra.mxu0 %v11328
      %11619 = vmatprep.subr.bf16.mxu0 %v11327
      %11620 = vmatpush2.bf16.msra.mxu0 %v11326
      %11621 = vmatprep.subr.bf16.mxu0 %v11325
      %11622 = vmatpush2.bf16.msra.mxu0 %v11324
      %11623 = vmatprep.mubr.bf16.mxu0 %v10687
      %11624 = vmatmul.mubr.bf16.gmra.mxu0 %v10686
      %v11625 = vpop.f32.mrf.mxu0
      %v11626 = vadd.f32 %v11585, %v11625
      %v11627 = vpop.f32.mrf.mxu0
      %v11628 = vadd.f32 %v11587, %v11627
      %v11629 = vpop.f32.mrf.mxu0
      %v11630 = vpop.f32.mrf.mxu0
      %11631 = vdwg.mxu0
      %11632 = vst [vmem:[#allocation3] sm:$0xff] %v11626
      %11633 = vst [vmem:[#allocation3 + $0x8] sm:$0xff] %v11628
    $region61: #{byol_forward.1} parent=1 // pred_fallthru
      _
    // Predicated region
    $region62: #{byol_forward.1} parent=1 // pred_check
      _
    $region63: #{byol_forward.1} parent=1 // pred_check_branch
      %11635 = sbr.rel (0) target = $region65
    $region64: #{byol_forward.1} parent=1 // pred_region
      %s11637 = ssub.s32 256, 256
      %11638 = vsyncadd [#allocation4], %s11637
      %s11640 = sshll.u32 [#allocation3], 4
      %s11641 = int_to_ptr.vmem [resolvable:$true] %s11640
      %11643 = dma.vmem_to_hbm [thread:$0]  %s11641, 256, %s13, [#allocation4]
    $region65: #{byol_forward.1} parent=1 // pred_fallthru
      _
    // Predicated region
    $region66: #{byol_forward.1} parent=1 // pred_check
      _
    $region67: #{byol_forward.1} parent=1 // pred_check_branch
      %11645 = sbr.rel (0) target = $region69
    $region68: #{byol_forward.1} parent=1 // pred_region
      %11646 = dma.done [#allocation4], 256
    $region69: #{byol_forward.1} parent=1 // pred_fallthru
      _
    %11647 = vsyncpa [#allocation4], 1

</llo_original>
